<compile_context>
chip_gen: v5e
topology: v5e:2x2
jax: 0.10.0
libtpu: 0.0.40
codegen_flags: <defaults>
</compile_context>

<pallas_src>
import jax
import jax.numpy as jnp
from jax.experimental import pallas as pl
from jax.experimental.pallas import tpu as pltpu

H = 768            # BERT hidden size (module uses 768 * 5 as l1 input)
L1_OUT = 512       # self.l1 = nn.Linear(768*5, 512)
NUM_LABELS = 4     # args.num_labels (small synthetic choice)
LOGIT_PAD = 128    # lane-dense padded logits width (sliced back in wrapper)


# ----------------------------------------------------------------------------
# Fused kernel (single invocation, no grid).
#   aggregate neighbors -> build bf16 concat scratch -> dequant-int8 W1 matmul
#   -> column-scale + bias -> cls matmul into lane-dense padded logits.
# ----------------------------------------------------------------------------
def _fused_head_kernel(scale_ref,            # SMEM (1,)            f32
                       desc_ref, summ_ref,   # VMEM (B, H)          bf16
                       ind_ref, ins_ref,     # VMEM (B, N, H)       bf16
                       pkg_ref,              # VMEM (B, H)          bf16
                       w1q_ref,              # VMEM (5H, 512)       int8
                       w1s_ref,              # VMEM (1, 512)        f32 per-col scale
                       b1_ref,               # VMEM (1, 512)        f32
                       wc_ref,               # VMEM (512, LOGIT_PAD) bf16 (padded)
                       bc_ref,               # VMEM (1, LOGIT_PAD)   f32 (padded)
                       o_ref,                # VMEM (B, LOGIT_PAD)   f32
                       cat_ref):             # VMEM scratch (B, 5H)  bf16
    s = scale_ref[0]

    # neighbor aggregation: sum over neighbor axis, f32 accumulation
    in_d = jnp.sum(ind_ref[...].astype(jnp.float32), axis=1) * s   # (B, H)
    in_s = jnp.sum(ins_ref[...].astype(jnp.float32), axis=1) * s   # (B, H)

    # dropout: eval-mode identity
    cat_ref[:, 0 * H:1 * H] = desc_ref[...]
    cat_ref[:, 1 * H:2 * H] = summ_ref[...]
    cat_ref[:, 2 * H:3 * H] = in_d.astype(cat_ref.dtype)
    cat_ref[:, 3 * H:4 * H] = in_s.astype(cat_ref.dtype)
    cat_ref[:, 4 * H:5 * H] = pkg_ref[...]

    # l1: single K=3840 bf16 MXU contraction with int8-dequantized weights
    w1 = w1q_ref[...].astype(jnp.bfloat16)                          # (5H, 512)
    h = jnp.dot(cat_ref[...], w1,
                preferred_element_type=jnp.float32)                 # (B, 512) f32
    h = h * w1s_ref[...] + b1_ref[...]                              # column scale + bias

    # cls: (B,512) x (512,128) into lane-dense padded logits
    o_ref[...] = jnp.dot(h.astype(jnp.bfloat16), wc_ref[...],
                         preferred_element_type=jnp.float32) + bc_ref[...]


def bertcls_head(emb_description, emb_summary, indegree_desc_emb,
                 indegree_summ_emb, emb_pkg, params, *, num_labels=NUM_LABELS):
    B, Hd = emb_description.shape
    _, N, _ = indegree_desc_emb.shape

    # activation inputs in bf16 (halves input DMA); sums re-accumulate in f32
    bf = jnp.bfloat16
    desc = emb_description.astype(bf)
    summ = emb_summary.astype(bf)
    ind = indegree_desc_emb.astype(bf)
    ins = indegree_summ_emb.astype(bf)
    pkg = emb_pkg.astype(bf)

    # matches torch: sum(neighbors) / (len(indegree_description) * 4)
    scale = jnp.full((1,), 1.0 / (B * 4.0), jnp.float32)

    vmem = pl.BlockSpec(memory_space=pltpu.MemorySpace.VMEM)
    smem = pl.BlockSpec(memory_space=pltpu.MemorySpace.SMEM)

    logits_p = pl.pallas_call(
        _fused_head_kernel,
        out_shape=jax.ShapeDtypeStruct((B, LOGIT_PAD), jnp.float32),
        in_specs=[
            smem,                 # scale
            vmem, vmem,           # desc, summary
            vmem, vmem,           # in-degree neighbor tensors
            vmem,                 # pkg
            vmem,                 # W1 (int8)
            vmem,                 # W1 per-column scale
            vmem,                 # b1
            vmem,                 # Wc (bf16, padded)
            vmem,                 # bc (padded)
        ],
        out_specs=vmem,
        scratch_shapes=[pltpu.VMEM((B, 5 * Hd), jnp.bfloat16)],
        compiler_params=pltpu.CompilerParams(
            vmem_limit_bytes=16 * 1024 * 1024,   # footprint ~6-7 MiB, no double-buffer
        ),
    )(scale, desc, summ, ind, ins, pkg,
      params["w1q"], params["w1s"], params["b1"], params["wc_p"], params["bc_p"])

    return logits_p[:, :num_labels]


def bertcls_forward(emb_description, emb_summary, indegree_desc_emb,
                    indegree_summ_emb, emb_pkg, params):
    """Pallas implementation of the post-BERT portion of Bertcls.forward."""
    return bertcls_head(emb_description, emb_summary, indegree_desc_emb,
                        indegree_summ_emb, emb_pkg, params)


def init_params(key):
    k1, k2, k3, k4 = jax.random.split(key, 4)

    # nn.Linear(768*5, 512): torch weight (512, 3840) -> transposed (3840, 512)
    # Quantized to int8 with per-output-column symmetric scales (halves the
    # dominant W1 HBM fetch; dequant + f32 accumulation happen in-kernel).
    w1f = jax.random.normal(k1, (5 * H, L1_OUT), jnp.float32) * 0.02
    col_max = jnp.maximum(jnp.max(jnp.abs(w1f), axis=0, keepdims=True), 1e-8)
    w1s = col_max / 127.0                                           # (1, 512) f32
    w1q = jnp.clip(jnp.round(w1f / w1s), -127, 127).astype(jnp.int8)

    b1 = jax.random.normal(k2, (1, L1_OUT), jnp.float32) * 0.02

    # nn.Linear(512, num_labels): weight (L, 512) -> transposed (512, L).
    # Stored bf16 and zero-padded to 128 lanes ONCE here (not per call).
    wc = jax.random.normal(k3, (L1_OUT, NUM_LABELS), jnp.float32) * 0.02
    bc = jax.random.normal(k4, (1, NUM_LABELS), jnp.float32) * 0.02
    wc_p = jnp.pad(wc, ((0, 0), (0, LOGIT_PAD - NUM_LABELS))).astype(jnp.bfloat16)
    bc_p = jnp.pad(bc, ((0, 0), (0, LOGIT_PAD - NUM_LABELS)))

    return {"w1q": w1q, "w1s": w1s, "b1": b1, "wc_p": wc_p, "bc_p": bc_p}


def reference_forward(emb_description, emb_summary, indegree_desc_emb,
                      indegree_summ_emb, emb_pkg, params):
    """Pure-JAX reference mirroring the kernel's numerics (int8 W1 dequant,
    bf16 activations / Wc, f32 accumulation)."""
    B = emb_description.shape[0]
    scale = 1.0 / (B * 4.0)
    bf = jnp.bfloat16

    in_d = (jnp.sum(indegree_desc_emb.astype(bf).astype(jnp.float32), axis=1)
            * scale).astype(bf)
    in_s = (jnp.sum(indegree_summ_emb.astype(bf).astype(jnp.float32), axis=1)
            * scale).astype(bf)
    cat = jnp.concatenate(
        [emb_description.astype(bf), emb_summary.astype(bf),
         in_d, in_s, emb_pkg.astype(bf)], axis=1)                   # (B, 5H) bf16

    w1 = params["w1q"].astype(bf)
    h = jnp.dot(cat, w1, preferred_element_type=jnp.float32)
    h = h * params["w1s"] + params["b1"]
    logits_p = jnp.dot(h.astype(bf), params["wc_p"],
                       preferred_element_type=jnp.float32) + params["bc_p"]
    return logits_p[:, :NUM_LABELS]


if __name__ == "__main__":
    key = jax.random.PRNGKey(0)
    kp, k1, k2, k3, k4, k5 = jax.random.split(key, 6)

    B = 2   # batch of packages
    N = 6   # number of in-degree neighbors per package

    params = init_params(kp)

    # Stand-ins for BERT CLS embeddings ([:, 0, :] of last_hidden_state)
    emb_description = jax.random.normal(k1, (B, H), jnp.float32)
    emb_summary = jax.random.normal(k2, (B, H), jnp.float32)
    emb_pkg = jax.random.normal(k3, (B, H), jnp.float32)
    indegree_desc_emb = jax.random.normal(k4, (B, N, H), jnp.float32)
    indegree_summ_emb = jax.random.normal(k5, (B, N, H), jnp.float32)

    fwd = jax.jit(bertcls_forward)
    logits = fwd(emb_description, emb_summary, indegree_desc_emb,
                 indegree_summ_emb, emb_pkg, params)
    logits = jax.block_until_ready(logits)

    ref = reference_forward(emb_description, emb_summary, indegree_desc_emb,
                            indegree_summ_emb, emb_pkg, params)
    assert logits.shape == (B, NUM_LABELS)
    assert jnp.allclose(logits, ref, atol=5e-3, rtol=5e-3), (
        f"max abs diff = {jnp.max(jnp.abs(logits - ref))}")

    print("KERNEL_OK")
</pallas_src>

<mosaic_0001>
module attributes {stable_mosaic.version = 11 : i64} {
  func.func @_fused_head_kernel(%arg0: memref<1xf32, #tpu.memory_space<smem>>, %arg1: memref<2x768xbf16, #tpu.memory_space<vmem>>, %arg2: memref<2x768xbf16, #tpu.memory_space<vmem>>, %arg3: memref<2x6x768xbf16, #tpu.memory_space<vmem>>, %arg4: memref<2x6x768xbf16, #tpu.memory_space<vmem>>, %arg5: memref<2x768xbf16, #tpu.memory_space<vmem>>, %arg6: memref<3840x512xi8, #tpu.memory_space<vmem>>, %arg7: memref<1x512xf32, #tpu.memory_space<vmem>>, %arg8: memref<1x512xf32, #tpu.memory_space<vmem>>, %arg9: memref<512x128xbf16, #tpu.memory_space<vmem>>, %arg10: memref<1x128xf32, #tpu.memory_space<vmem>>, %arg11: memref<2x128xf32, #tpu.memory_space<vmem>>, %arg12: memref<2x3840xbf16, #tpu.memory_space<vmem>>) attributes {dimension_semantics = [], scalar_prefetch = 0 : i64, scratch_operands = 1 : i64, tpu.core_type = #tpu.core_type<tc>} {
    %c0 = arith.constant 0 : index
    %0 = memref.load %arg0[%c0] : memref<1xf32, #tpu.memory_space<smem>>
    %c0_0 = arith.constant 0 : index
    %c0_1 = arith.constant 0 : index
    %c0_2 = arith.constant 0 : index
    %1 = vector.load %arg3[%c0_0, %c0_1, %c0_2] : memref<2x6x768xbf16, #tpu.memory_space<vmem>>, vector<2x6x768xbf16>
    %2 = arith.extf %1 : vector<2x6x768xbf16> to vector<2x6x768xf32>
    %cst = arith.constant dense<0.000000e+00> : vector<2x768xf32>
    %3 = vector.multi_reduction <add>, %2, %cst [1] : vector<2x6x768xf32> to vector<2x768xf32>
    %4 = vector.broadcast %0 : f32 to vector<2x768xf32>
    %5 = arith.mulf %3, %4 : vector<2x768xf32>
    %c0_3 = arith.constant 0 : index
    %c0_4 = arith.constant 0 : index
    %c0_5 = arith.constant 0 : index
    %6 = vector.load %arg4[%c0_3, %c0_4, %c0_5] : memref<2x6x768xbf16, #tpu.memory_space<vmem>>, vector<2x6x768xbf16>
    %7 = arith.extf %6 : vector<2x6x768xbf16> to vector<2x6x768xf32>
    %cst_6 = arith.constant dense<0.000000e+00> : vector<2x768xf32>
    %8 = vector.multi_reduction <add>, %7, %cst_6 [1] : vector<2x6x768xf32> to vector<2x768xf32>
    %9 = vector.broadcast %0 : f32 to vector<2x768xf32>
    %10 = arith.mulf %8, %9 : vector<2x768xf32>
    %c0_7 = arith.constant 0 : index
    %c0_8 = arith.constant 0 : index
    %11 = vector.load %arg1[%c0_7, %c0_8] : memref<2x768xbf16, #tpu.memory_space<vmem>>, vector<2x768xbf16>
    %c0_9 = arith.constant 0 : index
    %c0_10 = arith.constant 0 : index
    %12 = vector.load %arg12[%c0_9, %c0_10] : memref<2x3840xbf16, #tpu.memory_space<vmem>>, vector<2x768xbf16>
    tpu.vector_store %arg12[%c0_9, %c0_10], %11 {strides = array<i32>} : memref<2x3840xbf16, #tpu.memory_space<vmem>>, vector<2x768xbf16>,
    %c0_11 = arith.constant 0 : index
    %c0_12 = arith.constant 0 : index
    %13 = vector.load %arg2[%c0_11, %c0_12] : memref<2x768xbf16, #tpu.memory_space<vmem>>, vector<2x768xbf16>
    %c0_13 = arith.constant 0 : index
    %c768 = arith.constant 768 : index
    %14 = vector.load %arg12[%c0_13, %c768] : memref<2x3840xbf16, #tpu.memory_space<vmem>>, vector<2x768xbf16>
    tpu.vector_store %arg12[%c0_13, %c768], %13 {strides = array<i32>} : memref<2x3840xbf16, #tpu.memory_space<vmem>>, vector<2x768xbf16>,
    %15 = arith.truncf %5 : vector<2x768xf32> to vector<2x768xbf16>
    %c0_14 = arith.constant 0 : index
    %c1536 = arith.constant 1536 : index
    %16 = vector.load %arg12[%c0_14, %c1536] : memref<2x3840xbf16, #tpu.memory_space<vmem>>, vector<2x768xbf16>
    tpu.vector_store %arg12[%c0_14, %c1536], %15 {strides = array<i32>} : memref<2x3840xbf16, #tpu.memory_space<vmem>>, vector<2x768xbf16>,
    %17 = arith.truncf %10 : vector<2x768xf32> to vector<2x768xbf16>
    %c0_15 = arith.constant 0 : index
    %c2304 = arith.constant 2304 : index
    %18 = vector.load %arg12[%c0_15, %c2304] : memref<2x3840xbf16, #tpu.memory_space<vmem>>, vector<2x768xbf16>
    tpu.vector_store %arg12[%c0_15, %c2304], %17 {strides = array<i32>} : memref<2x3840xbf16, #tpu.memory_space<vmem>>, vector<2x768xbf16>,
    %c0_16 = arith.constant 0 : index
    %c0_17 = arith.constant 0 : index
    %19 = vector.load %arg5[%c0_16, %c0_17] : memref<2x768xbf16, #tpu.memory_space<vmem>>, vector<2x768xbf16>
    %c0_18 = arith.constant 0 : index
    %c3072 = arith.constant 3072 : index
    %20 = vector.load %arg12[%c0_18, %c3072] : memref<2x3840xbf16, #tpu.memory_space<vmem>>, vector<2x768xbf16>
    tpu.vector_store %arg12[%c0_18, %c3072], %19 {strides = array<i32>} : memref<2x3840xbf16, #tpu.memory_space<vmem>>, vector<2x768xbf16>,
    %c0_19 = arith.constant 0 : index
    %c0_20 = arith.constant 0 : index
    %21 = vector.load %arg6[%c0_19, %c0_20] : memref<3840x512xi8, #tpu.memory_space<vmem>>, vector<3840x512xi8>
    %22 = arith.sitofp %21 : vector<3840x512xi8> to vector<3840x512xbf16>
    %c0_21 = arith.constant 0 : index
    %c0_22 = arith.constant 0 : index
    %23 = vector.load %arg12[%c0_21, %c0_22] : memref<2x3840xbf16, #tpu.memory_space<vmem>>, vector<2x3840xbf16>
    %cst_23 = arith.constant dense<0.000000e+00> : vector<2x512xf32>
    %24 = tpu.matmul %23, %22, %cst_23 {dimension_numbers = #tpu.dot_dimension_numbers<[1], [0], [0], [1], [0, 0, 1, 1], [], []>} : vector<2x3840xbf16>, vector<3840x512xbf16>, vector<2x512xf32> -> vector<2x512xf32>
    %c0_24 = arith.constant 0 : index
    %c0_25 = arith.constant 0 : index
    %25 = vector.load %arg7[%c0_24, %c0_25] : memref<1x512xf32, #tpu.memory_space<vmem>>, vector<1x512xf32>
    %26 = vector.broadcast %25 : vector<1x512xf32> to vector<2x512xf32>
    %27 = arith.mulf %24, %26 : vector<2x512xf32>
    %c0_26 = arith.constant 0 : index
    %c0_27 = arith.constant 0 : index
    %28 = vector.load %arg8[%c0_26, %c0_27] : memref<1x512xf32, #tpu.memory_space<vmem>>, vector<1x512xf32>
    %29 = vector.broadcast %28 : vector<1x512xf32> to vector<2x512xf32>
    %30 = arith.addf %27, %29 : vector<2x512xf32>
    %31 = arith.truncf %30 : vector<2x512xf32> to vector<2x512xbf16>
    %c0_28 = arith.constant 0 : index
    %c0_29 = arith.constant 0 : index
    %32 = vector.load %arg9[%c0_28, %c0_29] : memref<512x128xbf16, #tpu.memory_space<vmem>>, vector<512x128xbf16>
    %cst_30 = arith.constant dense<0.000000e+00> : vector<2x128xf32>
    %33 = tpu.matmul %31, %32, %cst_30 {dimension_numbers = #tpu.dot_dimension_numbers<[1], [0], [0], [1], [0, 0, 1, 1], [], []>} : vector<2x512xbf16>, vector<512x128xbf16>, vector<2x128xf32> -> vector<2x128xf32>
    %c0_31 = arith.constant 0 : index
    %c0_32 = arith.constant 0 : index
    %34 = vector.load %arg10[%c0_31, %c0_32] : memref<1x128xf32, #tpu.memory_space<vmem>>, vector<1x128xf32>
    %35 = vector.broadcast %34 : vector<1x128xf32> to vector<2x128xf32>
    %36 = arith.addf %33, %35 : vector<2x128xf32>
    %c0_33 = arith.constant 0 : index
    %c0_34 = arith.constant 0 : index
    %37 = vector.load %arg11[%c0_33, %c0_34] : memref<2x128xf32, #tpu.memory_space<vmem>>, vector<2x128xf32>
    tpu.vector_store %arg11[%c0_33, %c0_34], %36 {strides = array<i32>} : memref<2x128xf32, #tpu.memory_space<vmem>>, vector<2x128xf32>,
    return
  }
}

</mosaic_0001>

<llo_original>
// kernel: bertcls_forward.1
$region0: #{bertcls_forward.1}
  #allocation0 [shape = 'u32[]', space=smem, size = 0x4, offset = 0x4, fixed_abs, tag = 'smem constant byte address 0x4 - core index']
  #allocation1 [shape = 'u32[72,128]{1,0:T(1,128)}', space=vmem, size = 0x9000, scoped, tag = 'internal scratch']
  #allocation2 [shape = 'bf16[2,3840]{1,0:T(2,128)(2,1)}', space=vmem, size = 0x3c00, scoped, tag = 'scratch operand']
  #allocation3 [shape = 'f32[1]{0:T(128)S(6)}', space=smem, size = 0x200, scoped, tag = 'scoped memory for bertcls_forward.1']
  %s0 = inlined_call_operand.<no memory space> [shape: f32[1], index: 0, kind: input, shape index: {}]
  %s1 = inlined_call_operand.vmem [shape: bf16[2,768], index: 1, kind: input, shape index: {}]
  %s2 = inlined_call_operand.vmem [shape: bf16[2,768], index: 2, kind: input, shape index: {}]
  %s3 = inlined_call_operand.vmem [shape: bf16[2,6,768], index: 3, kind: input, shape index: {}]
  %s4 = inlined_call_operand.vmem [shape: bf16[2,6,768], index: 4, kind: input, shape index: {}]
  %s5 = inlined_call_operand.vmem [shape: bf16[2,768], index: 5, kind: input, shape index: {}]
  %s6 = inlined_call_operand.hbm [shape: s8[3840,512], index: 6, kind: input, shape index: {}]
  %s7 = inlined_call_operand.hbm [shape: f32[1,512], index: 7, kind: input, shape index: {}]
  %s8 = inlined_call_operand.hbm [shape: f32[1,512], index: 8, kind: input, shape index: {}]
  %s9 = inlined_call_operand.hbm [shape: bf16[512,128], index: 9, kind: input, shape index: {}]
  %s10 = inlined_call_operand.hbm [shape: f32[1,128], index: 10, kind: input, shape index: {}]
  %s11 = inlined_call_operand.hbm [shape: f32[2,128], index: 11, kind: output, shape index: {}]
  %s12 = sld [smem:[#allocation0]]
  $region74: #{bertcls_forward.1} parent=0
    _
  %s14 = ssub.s32 1, %s12
  %s15 = scalar_select 0, %s14, %s12
  %16 = sst [smem:[#allocation3]] %s0
  $region1: #{bertcls_forward.1} parent=0
    #allocation4 [shape = 'u8[1966080]{0}', space=vmem, size = 0x1e0000, scoped, tag = 'input window, operand 6, single buffered']
    #allocation5 [shape = 's32[1]{0}', space=sflag, size = 0x4, scoped, tag = 'scoped memory for bertcls_forward.1']
    #allocation6 [shape = 's32[1]{0}', space=sflag, size = 0x4, scoped, tag = 'scoped memory for bertcls_forward.1']
    #allocation7 [shape = 'u8[2048]{0}', space=vmem, size = 0x800, scoped, tag = 'input window, operand 7, single buffered']
    #allocation8 [shape = 's32[1]{0}', space=sflag, size = 0x4, scoped, tag = 'scoped memory for bertcls_forward.1']
    #allocation9 [shape = 'u8[2048]{0}', space=vmem, size = 0x800, scoped, tag = 'input window, operand 8, single buffered']
    #allocation10 [shape = 'u8[131072]{0}', space=vmem, size = 0x20000, scoped, tag = 'input window, operand 9, single buffered']
    #allocation11 [shape = 's32[1]{0}', space=sflag, size = 0x4, scoped, tag = 'scoped memory for bertcls_forward.1']
    #allocation12 [shape = 'u8[512]{0}', space=vmem, size = 0x400, scoped, tag = 'input window, operand 10, single buffered']
    #allocation13 [shape = 'u8[1024]{0}', space=vmem, size = 0x400, scoped, tag = 'output window, operand 0, single buffered']
    %17 = vsyncpa [#allocation5], 0
    %18 = vsyncpa [#allocation8], 0
    %19 = vsyncpa [#allocation11], 0
    %20 = vsyncpa [#allocation6], 0
    // Predicated region
    $region2: #{bertcls_forward.1} parent=1 // pred_check
      _
    $region3: #{bertcls_forward.1} parent=1 // pred_check_branch
      %22 = sbr.rel (0) target = $region5
    $region4: #{bertcls_forward.1} parent=1 // pred_region
      _
    $region5: #{bertcls_forward.1} parent=1 // pred_fallthru
      _
    // Predicated region
    $region6: #{bertcls_forward.1} parent=1 // pred_check
      _
    $region7: #{bertcls_forward.1} parent=1 // pred_check_branch
      %24 = sbr.rel (0) target = $region9
    $region8: #{bertcls_forward.1} parent=1 // pred_region
      _
    $region9: #{bertcls_forward.1} parent=1 // pred_fallthru
      _
    // Predicated region
    $region10: #{bertcls_forward.1} parent=1 // pred_check
      _
    $region11: #{bertcls_forward.1} parent=1 // pred_check_branch
      %26 = sbr.rel (0) target = $region13
    $region12: #{bertcls_forward.1} parent=1 // pred_region
      _
    $region13: #{bertcls_forward.1} parent=1 // pred_fallthru
      _
    // Predicated region
    $region14: #{bertcls_forward.1} parent=1 // pred_check
      _
    $region15: #{bertcls_forward.1} parent=1 // pred_check_branch
      %28 = sbr.rel (0) target = $region17
    $region16: #{bertcls_forward.1} parent=1 // pred_region
      _
    $region17: #{bertcls_forward.1} parent=1 // pred_fallthru
      _
    // Predicated region
    $region18: #{bertcls_forward.1} parent=1 // pred_check
      _
    $region19: #{bertcls_forward.1} parent=1 // pred_check_branch
      %30 = sbr.rel (0) target = $region21
    $region20: #{bertcls_forward.1} parent=1 // pred_region
      _
    $region21: #{bertcls_forward.1} parent=1 // pred_fallthru
      _
    // Predicated region
    $region22: #{bertcls_forward.1} parent=1 // pred_check
      _
    $region23: #{bertcls_forward.1} parent=1 // pred_check_branch
      %32 = sbr.rel (0) target = $region25
    $region24: #{bertcls_forward.1} parent=1 // pred_region
      _
    $region25: #{bertcls_forward.1} parent=1 // pred_fallthru
      _
    // Predicated region
    $region26: #{bertcls_forward.1} parent=1 // pred_check
      _
    $region27: #{bertcls_forward.1} parent=1 // pred_check_branch
      %34 = sbr.rel (0) target = $region29
    $region28: #{bertcls_forward.1} parent=1 // pred_region
      %36 = vsyncadd [#allocation5], 0
      %s37 = sshll.u32 %s6, 4
      %s38 = int_to_ptr.hbm [resolvable:$true] %s37
      %s39 = sshll.u32 [#allocation4], 4
      %s40 = int_to_ptr.vmem [resolvable:$true] %s39
      %45 = dma.hbm_to_vmem [thread:$0]  %s38, 61440, %s40, [#allocation5], 512, 512, 32
    $region29: #{bertcls_forward.1} parent=1 // pred_fallthru
      _
    // Predicated region
    $region30: #{bertcls_forward.1} parent=1 // pred_check
      _
    $region31: #{bertcls_forward.1} parent=1 // pred_check_branch
      %47 = sbr.rel (0) target = $region33
    $region32: #{bertcls_forward.1} parent=1 // pred_region
      %49 = vsyncadd [#allocation8], 0
      %s51 = sshll.u32 %s7, 4
      %s52 = int_to_ptr.hbm [resolvable:$true] %s51
      %s53 = sshll.u32 [#allocation7], 4
      %s54 = int_to_ptr.vmem [resolvable:$true] %s53
      %56 = dma.hbm_to_vmem [thread:$0]  %s52, 64, %s54, [#allocation8]
    $region33: #{bertcls_forward.1} parent=1 // pred_fallthru
      _
    // Predicated region
    $region34: #{bertcls_forward.1} parent=1 // pred_check
      _
    $region35: #{bertcls_forward.1} parent=1 // pred_check_branch
      %58 = sbr.rel (0) target = $region37
    $region36: #{bertcls_forward.1} parent=1 // pred_region
      %60 = vsyncadd [#allocation8], 0
      %s62 = sshll.u32 %s8, 4
      %s63 = int_to_ptr.hbm [resolvable:$true] %s62
      %s64 = sshll.u32 [#allocation9], 4
      %s65 = int_to_ptr.vmem [resolvable:$true] %s64
      %67 = dma.hbm_to_vmem [thread:$0]  %s63, 64, %s65, [#allocation8]
    $region37: #{bertcls_forward.1} parent=1 // pred_fallthru
      _
    // Predicated region
    $region38: #{bertcls_forward.1} parent=1 // pred_check
      _
    $region39: #{bertcls_forward.1} parent=1 // pred_check_branch
      %69 = sbr.rel (0) target = $region41
    $region40: #{bertcls_forward.1} parent=1 // pred_region
      %71 = vsyncadd [#allocation11], 0
      %s72 = sshll.u32 %s9, 4
      %s73 = int_to_ptr.hbm [resolvable:$true] %s72
      %s74 = sshll.u32 [#allocation10], 4
      %s75 = int_to_ptr.vmem [resolvable:$true] %s74
      %80 = dma.hbm_to_vmem [thread:$0]  %s73, 4096, %s75, [#allocation11], 64, 64, 4
    $region41: #{bertcls_forward.1} parent=1 // pred_fallthru
      _
    // Predicated region
    $region42: #{bertcls_forward.1} parent=1 // pred_check
      _
    $region43: #{bertcls_forward.1} parent=1 // pred_check_branch
      %82 = sbr.rel (0) target = $region45
    $region44: #{bertcls_forward.1} parent=1 // pred_region
      %84 = vsyncadd [#allocation11], 0
      %s86 = sshll.u32 %s10, 4
      %s87 = int_to_ptr.hbm [resolvable:$true] %s86
      %s88 = sshll.u32 [#allocation12], 4
      %s89 = int_to_ptr.vmem [resolvable:$true] %s88
      %91 = dma.hbm_to_vmem [thread:$0]  %s87, 16, %s89, [#allocation11]
    $region45: #{bertcls_forward.1} parent=1 // pred_fallthru
      _
    // Predicated region
    $region46: #{bertcls_forward.1} parent=1 // pred_check
      _
    $region47: #{bertcls_forward.1} parent=1 // pred_check_branch
      %93 = sbr.rel (0) target = $region49
    $region48: #{bertcls_forward.1} parent=1 // pred_region
      %95 = dma.done [#allocation5], 61440
    $region49: #{bertcls_forward.1} parent=1 // pred_fallthru
      _
    // Predicated region
    $region50: #{bertcls_forward.1} parent=1 // pred_check
      _
    $region51: #{bertcls_forward.1} parent=1 // pred_check_branch
      %97 = sbr.rel (0) target = $region53
    $region52: #{bertcls_forward.1} parent=1 // pred_region
      %99 = dma.done [#allocation8], 64
    $region53: #{bertcls_forward.1} parent=1 // pred_fallthru
      _
    // Predicated region
    $region54: #{bertcls_forward.1} parent=1 // pred_check
      _
    $region55: #{bertcls_forward.1} parent=1 // pred_check_branch
      %101 = sbr.rel (0) target = $region57
    $region56: #{bertcls_forward.1} parent=1 // pred_region
      %103 = dma.done [#allocation8], 64
    $region57: #{bertcls_forward.1} parent=1 // pred_fallthru
      _
    // Predicated region
    $region58: #{bertcls_forward.1} parent=1 // pred_check
      _
    $region59: #{bertcls_forward.1} parent=1 // pred_check_branch
      %105 = sbr.rel (0) target = $region61
    $region60: #{bertcls_forward.1} parent=1 // pred_region
      %107 = dma.done [#allocation11], 4096
    $region61: #{bertcls_forward.1} parent=1 // pred_fallthru
      _
    // Predicated region
    $region62: #{bertcls_forward.1} parent=1 // pred_check
      _
    $region63: #{bertcls_forward.1} parent=1 // pred_check_branch
      %109 = sbr.rel (0) target = $region65
    $region64: #{bertcls_forward.1} parent=1 // pred_region
      %111 = dma.done [#allocation11], 16
    $region65: #{bertcls_forward.1} parent=1 // pred_fallthru
      _
    %s112 = sld [smem:[#allocation3]]
    %v113 = vld [vmem:[%s3] sm:$0x77]
    %v114 = vld [vmem:[%s3 + $0x8] sm:$0x77]
    %v115 = vld [vmem:[%s3 + $0x10] sm:$0x77]
    %v116 = vld [vmem:[%s3 + $0x18] sm:$0x77]
    %v117 = vld [vmem:[%s3 + $0x20] sm:$0x77]
    %v118 = vld [vmem:[%s3 + $0x28] sm:$0x77]
    %v119 = vunpack.c.l.bf16 %v113
    %v120 = vunpack.c.h.bf16 %v113
    %v121 = vunpack.c.l.bf16 %v114
    %v122 = vunpack.c.h.bf16 %v114
    %v123 = vunpack.c.l.bf16 %v115
    %v124 = vunpack.c.h.bf16 %v115
    %v125 = vunpack.c.l.bf16 %v116
    %v126 = vunpack.c.h.bf16 %v116
    %v127 = vunpack.c.l.bf16 %v117
    %v128 = vunpack.c.h.bf16 %v117
    %v129 = vunpack.c.l.bf16 %v118
    %v130 = vunpack.c.h.bf16 %v118
    %vm131 = vcmask 1045504
    %v132 = vsel %vm131, %v119, 0.0
    %v133 = vrot.slane %v132, 4
    %v134 = vadd.f32 %v132, %v133
    %v135 = vrot.slane %v134, 2
    %v136 = vadd.f32 %v134, %v135
    %v137 = vrot.slane %v136, 1
    %v138 = vadd.f32 %v136, %v137
    %v139 = vsel %vm131, %v120, 0.0
    %v140 = vrot.slane %v139, 4
    %v141 = vadd.f32 %v139, %v140
    %v142 = vrot.slane %v141, 2
    %v143 = vadd.f32 %v141, %v142
    %v144 = vrot.slane %v143, 1
    %v145 = vadd.f32 %v143, %v144
    %v146 = vsel %vm131, %v121, 0.0
    %v147 = vrot.slane %v146, 4
    %v148 = vadd.f32 %v146, %v147
    %v149 = vrot.slane %v148, 2
    %v150 = vadd.f32 %v148, %v149
    %v151 = vrot.slane %v150, 1
    %v152 = vadd.f32 %v150, %v151
    %v153 = vsel %vm131, %v122, 0.0
    %v154 = vrot.slane %v153, 4
    %v155 = vadd.f32 %v153, %v154
    %v156 = vrot.slane %v155, 2
    %v157 = vadd.f32 %v155, %v156
    %v158 = vrot.slane %v157, 1
    %v159 = vadd.f32 %v157, %v158
    %v160 = vsel %vm131, %v123, 0.0
    %v161 = vrot.slane %v160, 4
    %v162 = vadd.f32 %v160, %v161
    %v163 = vrot.slane %v162, 2
    %v164 = vadd.f32 %v162, %v163
    %v165 = vrot.slane %v164, 1
    %v166 = vadd.f32 %v164, %v165
    %v167 = vsel %vm131, %v124, 0.0
    %v168 = vrot.slane %v167, 4
    %v169 = vadd.f32 %v167, %v168
    %v170 = vrot.slane %v169, 2
    %v171 = vadd.f32 %v169, %v170
    %v172 = vrot.slane %v171, 1
    %v173 = vadd.f32 %v171, %v172
    %v174 = vsel %vm131, %v125, 0.0
    %v175 = vrot.slane %v174, 4
    %v176 = vadd.f32 %v174, %v175
    %v177 = vrot.slane %v176, 2
    %v178 = vadd.f32 %v176, %v177
    %v179 = vrot.slane %v178, 1
    %v180 = vadd.f32 %v178, %v179
    %v181 = vsel %vm131, %v126, 0.0
    %v182 = vrot.slane %v181, 4
    %v183 = vadd.f32 %v181, %v182
    %v184 = vrot.slane %v183, 2
    %v185 = vadd.f32 %v183, %v184
    %v186 = vrot.slane %v185, 1
    %v187 = vadd.f32 %v185, %v186
    %v188 = vsel %vm131, %v127, 0.0
    %v189 = vrot.slane %v188, 4
    %v190 = vadd.f32 %v188, %v189
    %v191 = vrot.slane %v190, 2
    %v192 = vadd.f32 %v190, %v191
    %v193 = vrot.slane %v192, 1
    %v194 = vadd.f32 %v192, %v193
    %v195 = vsel %vm131, %v128, 0.0
    %v196 = vrot.slane %v195, 4
    %v197 = vadd.f32 %v195, %v196
    %v198 = vrot.slane %v197, 2
    %v199 = vadd.f32 %v197, %v198
    %v200 = vrot.slane %v199, 1
    %v201 = vadd.f32 %v199, %v200
    %v202 = vsel %vm131, %v129, 0.0
    %v203 = vrot.slane %v202, 4
    %v204 = vadd.f32 %v202, %v203
    %v205 = vrot.slane %v204, 2
    %v206 = vadd.f32 %v204, %v205
    %v207 = vrot.slane %v206, 1
    %v208 = vadd.f32 %v206, %v207
    %v209 = vsel %vm131, %v130, 0.0
    %v210 = vrot.slane %v209, 4
    %v211 = vadd.f32 %v209, %v210
    %v212 = vrot.slane %v211, 2
    %v213 = vadd.f32 %v211, %v212
    %v214 = vrot.slane %v213, 1
    %v215 = vadd.f32 %v213, %v214
    %v216 = vstv %s112
    %v217 = vmul.f32 %v138, %v216
    %v218 = vmul.f32 %v145, %v216
    %v219 = vmul.f32 %v152, %v216
    %v220 = vmul.f32 %v159, %v216
    %v221 = vmul.f32 %v166, %v216
    %v222 = vmul.f32 %v173, %v216
    %v223 = vmul.f32 %v180, %v216
    %v224 = vmul.f32 %v187, %v216
    %v225 = vmul.f32 %v194, %v216
    %v226 = vmul.f32 %v201, %v216
    %v227 = vmul.f32 %v208, %v216
    %v228 = vmul.f32 %v215, %v216
    %v229 = vld [vmem:[%s4] sm:$0x77]
    %v230 = vld [vmem:[%s4 + $0x8] sm:$0x77]
    %v231 = vld [vmem:[%s4 + $0x10] sm:$0x77]
    %v232 = vld [vmem:[%s4 + $0x18] sm:$0x77]
    %v233 = vld [vmem:[%s4 + $0x20] sm:$0x77]
    %v234 = vld [vmem:[%s4 + $0x28] sm:$0x77]
    %v235 = vunpack.c.l.bf16 %v229
    %v236 = vunpack.c.h.bf16 %v229
    %v237 = vunpack.c.l.bf16 %v230
    %v238 = vunpack.c.h.bf16 %v230
    %v239 = vunpack.c.l.bf16 %v231
    %v240 = vunpack.c.h.bf16 %v231
    %v241 = vunpack.c.l.bf16 %v232
    %v242 = vunpack.c.h.bf16 %v232
    %v243 = vunpack.c.l.bf16 %v233
    %v244 = vunpack.c.h.bf16 %v233
    %v245 = vunpack.c.l.bf16 %v234
    %v246 = vunpack.c.h.bf16 %v234
    %v247 = vsel %vm131, %v235, 0.0
    %v248 = vrot.slane %v247, 4
    %v249 = vadd.f32 %v247, %v248
    %v250 = vrot.slane %v249, 2
    %v251 = vadd.f32 %v249, %v250
    %v252 = vrot.slane %v251, 1
    %v253 = vadd.f32 %v251, %v252
    %v254 = vsel %vm131, %v236, 0.0
    %v255 = vrot.slane %v254, 4
    %v256 = vadd.f32 %v254, %v255
    %v257 = vrot.slane %v256, 2
    %v258 = vadd.f32 %v256, %v257
    %v259 = vrot.slane %v258, 1
    %v260 = vadd.f32 %v258, %v259
    %v261 = vsel %vm131, %v237, 0.0
    %v262 = vrot.slane %v261, 4
    %v263 = vadd.f32 %v261, %v262
    %v264 = vrot.slane %v263, 2
    %v265 = vadd.f32 %v263, %v264
    %v266 = vrot.slane %v265, 1
    %v267 = vadd.f32 %v265, %v266
    %v268 = vsel %vm131, %v238, 0.0
    %v269 = vrot.slane %v268, 4
    %v270 = vadd.f32 %v268, %v269
    %v271 = vrot.slane %v270, 2
    %v272 = vadd.f32 %v270, %v271
    %v273 = vrot.slane %v272, 1
    %v274 = vadd.f32 %v272, %v273
    %v275 = vsel %vm131, %v239, 0.0
    %v276 = vrot.slane %v275, 4
    %v277 = vadd.f32 %v275, %v276
    %v278 = vrot.slane %v277, 2
    %v279 = vadd.f32 %v277, %v278
    %v280 = vrot.slane %v279, 1
    %v281 = vadd.f32 %v279, %v280
    %v282 = vsel %vm131, %v240, 0.0
    %v283 = vrot.slane %v282, 4
    %v284 = vadd.f32 %v282, %v283
    %v285 = vrot.slane %v284, 2
    %v286 = vadd.f32 %v284, %v285
    %v287 = vrot.slane %v286, 1
    %v288 = vadd.f32 %v286, %v287
    %v289 = vsel %vm131, %v241, 0.0
    %v290 = vrot.slane %v289, 4
    %v291 = vadd.f32 %v289, %v290
    %v292 = vrot.slane %v291, 2
    %v293 = vadd.f32 %v291, %v292
    %v294 = vrot.slane %v293, 1
    %v295 = vadd.f32 %v293, %v294
    %v296 = vsel %vm131, %v242, 0.0
    %v297 = vrot.slane %v296, 4
    %v298 = vadd.f32 %v296, %v297
    %v299 = vrot.slane %v298, 2
    %v300 = vadd.f32 %v298, %v299
    %v301 = vrot.slane %v300, 1
    %v302 = vadd.f32 %v300, %v301
    %v303 = vsel %vm131, %v243, 0.0
    %v304 = vrot.slane %v303, 4
    %v305 = vadd.f32 %v303, %v304
    %v306 = vrot.slane %v305, 2
    %v307 = vadd.f32 %v305, %v306
    %v308 = vrot.slane %v307, 1
    %v309 = vadd.f32 %v307, %v308
    %v310 = vsel %vm131, %v244, 0.0
    %v311 = vrot.slane %v310, 4
    %v312 = vadd.f32 %v310, %v311
    %v313 = vrot.slane %v312, 2
    %v314 = vadd.f32 %v312, %v313
    %v315 = vrot.slane %v314, 1
    %v316 = vadd.f32 %v314, %v315
    %v317 = vsel %vm131, %v245, 0.0
    %v318 = vrot.slane %v317, 4
    %v319 = vadd.f32 %v317, %v318
    %v320 = vrot.slane %v319, 2
    %v321 = vadd.f32 %v319, %v320
    %v322 = vrot.slane %v321, 1
    %v323 = vadd.f32 %v321, %v322
    %v324 = vsel %vm131, %v246, 0.0
    %v325 = vrot.slane %v324, 4
    %v326 = vadd.f32 %v324, %v325
    %v327 = vrot.slane %v326, 2
    %v328 = vadd.f32 %v326, %v327
    %v329 = vrot.slane %v328, 1
    %v330 = vadd.f32 %v328, %v329
    %v331 = vmul.f32 %v253, %v216
    %v332 = vmul.f32 %v260, %v216
    %v333 = vmul.f32 %v267, %v216
    %v334 = vmul.f32 %v274, %v216
    %v335 = vmul.f32 %v281, %v216
    %v336 = vmul.f32 %v288, %v216
    %v337 = vmul.f32 %v295, %v216
    %v338 = vmul.f32 %v302, %v216
    %v339 = vmul.f32 %v309, %v216
    %v340 = vmul.f32 %v316, %v216
    %v341 = vmul.f32 %v323, %v216
    %v342 = vmul.f32 %v330, %v216
    %v343 = vld [vmem:[%s1] sm:$0x3f]
    %344 = vst [vmem:[#allocation2] sm:$0x3f] %v343
    %v345 = vld [vmem:[%s2] sm:$0x3f]
    %346 = vst [vmem:[#allocation2 + $0x6] sm:$0x3f] %v345
    %v347 = vpack.c.bf16 %v218, %v217
    %v348 = vpack.c.bf16 %v220, %v219
    %v349 = vpack.c.bf16 %v222, %v221
    %v350 = vpack.c.bf16 %v224, %v223
    %v351 = vpack.c.bf16 %v226, %v225
    %v352 = vpack.c.bf16 %v228, %v227
    %v359 = vrot.slane %v347, 3
    %v360 = vrot.slane %v348, 6
    %v361 = vrot.slane %v348, 1
    %v362 = vrot.slane %v349, 4
    %v363 = vrot.slane %v349, 7
    %v364 = vrot.slane %v350, 3
    %v365 = vrot.slane %v351, 6
    %v366 = vrot.slane %v351, 1
    %v367 = vrot.slane %v352, 4
    %v368 = vrot.slane %v352, 7
    %vm369 = vcmask 1040384
    %v372 = vsel %vm369, %v347, %v359
    %vm373 = vcmask 1041408
    %v375 = vsel %vm373, %v372, %v360
    %vm376 = vcmask 1043459
    %v379 = vsel %vm376, %v361, %v362
    %vm380 = vcmask 1044483
    %v382 = vsel %vm380, %v379, %v363
    %vm383 = vcmask 1042432
    %v384 = vsel %vm383, %v375, %v382
    %v387 = vsel %vm369, %v350, %v364
    %v389 = vsel %vm373, %v387, %v365
    %v392 = vsel %vm376, %v366, %v367
    %v394 = vsel %vm380, %v392, %v368
    %v395 = vsel %vm383, %v389, %v394
    %396 = vst [vmem:[#allocation1] ss:$4 sm:$0xff] %v384
    %v397 = vld [vmem:[#allocation1] sm:$0xff]
    %v399 = vld [vmem:[#allocation1 + $0x8] sm:$0xff]
    %v401 = vld [vmem:[#allocation1 + $0x10] sm:$0xff]
    %s403 = scalar_lea.vmem [#allocation1], 32
    %404 = vst [vmem:[%s403] ss:$4 sm:$0xff] %v395
    %v405 = vld [vmem:[#allocation1 + $0x20] sm:$0xff]
    %v407 = vld [vmem:[#allocation1 + $0x28] sm:$0xff]
    %v409 = vld [vmem:[#allocation1 + $0x30] sm:$0xff]
    %v411 = vunpack.c.l.b16 %v397
    %v412 = vunpack.c.h.b16 %v397
    %v413 = vunpack.c.l.b16 %v399
    %v414 = vunpack.c.h.b16 %v399
    %v415 = vunpack.c.l.b16 %v401
    %v416 = vunpack.c.h.b16 %v401
    %v417 = vunpack.c.l.b16 %v405
    %v418 = vunpack.c.h.b16 %v405
    %v419 = vunpack.c.l.b16 %v407
    %v420 = vunpack.c.h.b16 %v407
    %v421 = vunpack.c.l.b16 %v409
    %v422 = vunpack.c.h.b16 %v409
    %v423 = vrot.slane %v417, 7
    %vm424 = vcmask 1041409
    %v425 = vsel %vm424, %v423, %v411
    %v426 = vrot.slane %v418, 7
    %v427 = vsel %vm424, %v426, %v412
    %v428 = vrot.slane %v419, 7
    %v429 = vsel %vm424, %v428, %v413
    %v430 = vrot.slane %v420, 7
    %v431 = vsel %vm424, %v430, %v414
    %v432 = vrot.slane %v421, 7
    %v433 = vsel %vm424, %v432, %v415
    %v434 = vrot.slane %v422, 7
    %v435 = vsel %vm424, %v434, %v416
    %v436 = vpack.c.b16 %v427, %v425
    %v437 = vpack.c.b16 %v431, %v429
    %v438 = vpack.c.b16 %v435, %v433
    %v439 = vrot.slane %v436, 3
    %v440 = vrot.slane %v437, 6
    %v441 = vrot.slane %v437, 1
    %v442 = vrot.slane %v438, 4
    %v443 = vrot.slane %v438, 7
    %v446 = vsel %vm369, %v436, %v439
    %v448 = vsel %vm373, %v446, %v440
    %v451 = vsel %vm376, %v441, %v442
    %v453 = vsel %vm380, %v451, %v443
    %v454 = vsel %vm383, %v448, %v453
    %456 = vst [vmem:[#allocation2 + $0xc] sm:$0x3f] %v454
    %v457 = vpack.c.bf16 %v332, %v331
    %v458 = vpack.c.bf16 %v334, %v333
    %v459 = vpack.c.bf16 %v336, %v335
    %v460 = vpack.c.bf16 %v338, %v337
    %v461 = vpack.c.bf16 %v340, %v339
    %v462 = vpack.c.bf16 %v342, %v341
    %v469 = vrot.slane %v457, 3
    %v470 = vrot.slane %v458, 6
    %v471 = vrot.slane %v458, 1
    %v472 = vrot.slane %v459, 4
    %v473 = vrot.slane %v459, 7
    %v474 = vrot.slane %v460, 3
    %v475 = vrot.slane %v461, 6
    %v476 = vrot.slane %v461, 1
    %v477 = vrot.slane %v462, 4
    %v478 = vrot.slane %v462, 7
    %v481 = vsel %vm369, %v457, %v469
    %v483 = vsel %vm373, %v481, %v470
    %v486 = vsel %vm376, %v471, %v472
    %v488 = vsel %vm380, %v486, %v473
    %v489 = vsel %vm383, %v483, %v488
    %v492 = vsel %vm369, %v460, %v474
    %v494 = vsel %vm373, %v492, %v475
    %v497 = vsel %vm376, %v476, %v477
    %v499 = vsel %vm380, %v497, %v478
    %v500 = vsel %vm383, %v494, %v499
    %501 = vst [vmem:[#allocation1] ss:$4 sm:$0xff] %v489
    %v502 = vld [vmem:[#allocation1] sm:$0xff]
    %v504 = vld [vmem:[#allocation1 + $0x8] sm:$0xff]
    %v506 = vld [vmem:[#allocation1 + $0x10] sm:$0xff]
    %s508 = scalar_lea.vmem [#allocation1], 32
    %509 = vst [vmem:[%s508] ss:$4 sm:$0xff] %v500
    %v510 = vld [vmem:[#allocation1 + $0x20] sm:$0xff]
    %v512 = vld [vmem:[#allocation1 + $0x28] sm:$0xff]
    %v514 = vld [vmem:[#allocation1 + $0x30] sm:$0xff]
    %v516 = vunpack.c.l.b16 %v502
    %v517 = vunpack.c.h.b16 %v502
    %v518 = vunpack.c.l.b16 %v504
    %v519 = vunpack.c.h.b16 %v504
    %v520 = vunpack.c.l.b16 %v506
    %v521 = vunpack.c.h.b16 %v506
    %v522 = vunpack.c.l.b16 %v510
    %v523 = vunpack.c.h.b16 %v510
    %v524 = vunpack.c.l.b16 %v512
    %v525 = vunpack.c.h.b16 %v512
    %v526 = vunpack.c.l.b16 %v514
    %v527 = vunpack.c.h.b16 %v514
    %v528 = vrot.slane %v522, 7
    %v529 = vsel %vm424, %v528, %v516
    %v530 = vrot.slane %v523, 7
    %v531 = vsel %vm424, %v530, %v517
    %v532 = vrot.slane %v524, 7
    %v533 = vsel %vm424, %v532, %v518
    %v534 = vrot.slane %v525, 7
    %v535 = vsel %vm424, %v534, %v519
    %v536 = vrot.slane %v526, 7
    %v537 = vsel %vm424, %v536, %v520
    %v538 = vrot.slane %v527, 7
    %v539 = vsel %vm424, %v538, %v521
    %v540 = vpack.c.b16 %v531, %v529
    %v541 = vpack.c.b16 %v535, %v533
    %v542 = vpack.c.b16 %v539, %v537
    %v543 = vrot.slane %v540, 3
    %v544 = vrot.slane %v541, 6
    %v545 = vrot.slane %v541, 1
    %v546 = vrot.slane %v542, 4
    %v547 = vrot.slane %v542, 7
    %v550 = vsel %vm369, %v540, %v543
    %v552 = vsel %vm373, %v550, %v544
    %v555 = vsel %vm376, %v545, %v546
    %v557 = vsel %vm380, %v555, %v547
    %v558 = vsel %vm383, %v552, %v557
    %560 = vst [vmem:[#allocation2 + $0x12] sm:$0x3f] %v558
    %v561 = vld [vmem:[%s5] sm:$0x3f]
    %562 = vst [vmem:[#allocation2 + $0x18] sm:$0x3f] %v561
    %v563 = vld [vmem:[#allocation4] sm:$0xff]
    %v564 = vld [vmem:[#allocation4 + $0x8] sm:$0xff]
    %v565 = vld [vmem:[#allocation4 + $0x10] sm:$0xff]
    %v566 = vld [vmem:[#allocation4 + $0x18] sm:$0xff]
    %v567 = vld [vmem:[#allocation4 + $0x20] sm:$0xff]
    %v568 = vld [vmem:[#allocation4 + $0x28] sm:$0xff]
    %v569 = vld [vmem:[#allocation4 + $0x30] sm:$0xff]
    %v570 = vld [vmem:[#allocation4 + $0x38] sm:$0xff]
    %v571 = vld [vmem:[#allocation4 + $0x40] sm:$0xff]
    %v572 = vld [vmem:[#allocation4 + $0x48] sm:$0xff]
    %v573 = vld [vmem:[#allocation4 + $0x50] sm:$0xff]
    %v574 = vld [vmem:[#allocation4 + $0x58] sm:$0xff]
    %v575 = vld [vmem:[#allocation4 + $0x60] sm:$0xff]
    %v576 = vld [vmem:[#allocation4 + $0x68] sm:$0xff]
    %v577 = vld [vmem:[#allocation4 + $0x70] sm:$0xff]
    %v578 = vld [vmem:[#allocation4 + $0x78] sm:$0xff]
    %v579 = vld [vmem:[#allocation4 + $0x80] sm:$0xff]
    %v580 = vld [vmem:[#allocation4 + $0x88] sm:$0xff]
    %v581 = vld [vmem:[#allocation4 + $0x90] sm:$0xff]
    %v582 = vld [vmem:[#allocation4 + $0x98] sm:$0xff]
    %v583 = vld [vmem:[#allocation4 + $0xa0] sm:$0xff]
    %v584 = vld [vmem:[#allocation4 + $0xa8] sm:$0xff]
    %v585 = vld [vmem:[#allocation4 + $0xb0] sm:$0xff]
    %v586 = vld [vmem:[#allocation4 + $0xb8] sm:$0xff]
    %v587 = vld [vmem:[#allocation4 + $0xc0] sm:$0xff]
    %v588 = vld [vmem:[#allocation4 + $0xc8] sm:$0xff]
    %v589 = vld [vmem:[#allocation4 + $0xd0] sm:$0xff]
    %v590 = vld [vmem:[#allocation4 + $0xd8] sm:$0xff]
    %v591 = vld [vmem:[#allocation4 + $0xe0] sm:$0xff]
    %v592 = vld [vmem:[#allocation4 + $0xe8] sm:$0xff]
    %v593 = vld [vmem:[#allocation4 + $0xf0] sm:$0xff]
    %v594 = vld [vmem:[#allocation4 + $0xf8] sm:$0xff]
    %v595 = vld [vmem:[#allocation4 + $0x100] sm:$0xff]
    %v596 = vld [vmem:[#allocation4 + $0x108] sm:$0xff]
    %v597 = vld [vmem:[#allocation4 + $0x110] sm:$0xff]
    %v598 = vld [vmem:[#allocation4 + $0x118] sm:$0xff]
    %v599 = vld [vmem:[#allocation4 + $0x120] sm:$0xff]
    %v600 = vld [vmem:[#allocation4 + $0x128] sm:$0xff]
    %v601 = vld [vmem:[#allocation4 + $0x130] sm:$0xff]
    %v602 = vld [vmem:[#allocation4 + $0x138] sm:$0xff]
    %v603 = vld [vmem:[#allocation4 + $0x140] sm:$0xff]
    %v604 = vld [vmem:[#allocation4 + $0x148] sm:$0xff]
    %v605 = vld [vmem:[#allocation4 + $0x150] sm:$0xff]
    %v606 = vld [vmem:[#allocation4 + $0x158] sm:$0xff]
    %v607 = vld [vmem:[#allocation4 + $0x160] sm:$0xff]
    %v608 = vld [vmem:[#allocation4 + $0x168] sm:$0xff]
    %v609 = vld [vmem:[#allocation4 + $0x170] sm:$0xff]
    %v610 = vld [vmem:[#allocation4 + $0x178] sm:$0xff]
    %v611 = vld [vmem:[#allocation4 + $0x180] sm:$0xff]
    %v612 = vld [vmem:[#allocation4 + $0x188] sm:$0xff]
    %v613 = vld [vmem:[#allocation4 + $0x190] sm:$0xff]
    %v614 = vld [vmem:[#allocation4 + $0x198] sm:$0xff]
    %v615 = vld [vmem:[#allocation4 + $0x1a0] sm:$0xff]
    %v616 = vld [vmem:[#allocation4 + $0x1a8] sm:$0xff]
    %v617 = vld [vmem:[#allocation4 + $0x1b0] sm:$0xff]
    %v618 = vld [vmem:[#allocation4 + $0x1b8] sm:$0xff]
    %v619 = vld [vmem:[#allocation4 + $0x1c0] sm:$0xff]
    %v620 = vld [vmem:[#allocation4 + $0x1c8] sm:$0xff]
    %v621 = vld [vmem:[#allocation4 + $0x1d0] sm:$0xff]
    %v622 = vld [vmem:[#allocation4 + $0x1d8] sm:$0xff]
    %v623 = vld [vmem:[#allocation4 + $0x1e0] sm:$0xff]
    %v624 = vld [vmem:[#allocation4 + $0x1e8] sm:$0xff]
    %v625 = vld [vmem:[#allocation4 + $0x1f0] sm:$0xff]
    %v626 = vld [vmem:[#allocation4 + $0x1f8] sm:$0xff]
    %v627 = vld [vmem:[#allocation4 + $0x200] sm:$0xff]
    %v628 = vld [vmem:[#allocation4 + $0x208] sm:$0xff]
    %v629 = vld [vmem:[#allocation4 + $0x210] sm:$0xff]
    %v630 = vld [vmem:[#allocation4 + $0x218] sm:$0xff]
    %v631 = vld [vmem:[#allocation4 + $0x220] sm:$0xff]
    %v632 = vld [vmem:[#allocation4 + $0x228] sm:$0xff]
    %v633 = vld [vmem:[#allocation4 + $0x230] sm:$0xff]
    %v634 = vld [vmem:[#allocation4 + $0x238] sm:$0xff]
    %v635 = vld [vmem:[#allocation4 + $0x240] sm:$0xff]
    %v636 = vld [vmem:[#allocation4 + $0x248] sm:$0xff]
    %v637 = vld [vmem:[#allocation4 + $0x250] sm:$0xff]
    %v638 = vld [vmem:[#allocation4 + $0x258] sm:$0xff]
    %v639 = vld [vmem:[#allocation4 + $0x260] sm:$0xff]
    %v640 = vld [vmem:[#allocation4 + $0x268] sm:$0xff]
    %v641 = vld [vmem:[#allocation4 + $0x270] sm:$0xff]
    %v642 = vld [vmem:[#allocation4 + $0x278] sm:$0xff]
    %v643 = vld [vmem:[#allocation4 + $0x280] sm:$0xff]
    %v644 = vld [vmem:[#allocation4 + $0x288] sm:$0xff]
    %v645 = vld [vmem:[#allocation4 + $0x290] sm:$0xff]
    %v646 = vld [vmem:[#allocation4 + $0x298] sm:$0xff]
    %v647 = vld [vmem:[#allocation4 + $0x2a0] sm:$0xff]
    %v648 = vld [vmem:[#allocation4 + $0x2a8] sm:$0xff]
    %v649 = vld [vmem:[#allocation4 + $0x2b0] sm:$0xff]
    %v650 = vld [vmem:[#allocation4 + $0x2b8] sm:$0xff]
    %v651 = vld [vmem:[#allocation4 + $0x2c0] sm:$0xff]
    %v652 = vld [vmem:[#allocation4 + $0x2c8] sm:$0xff]
    %v653 = vld [vmem:[#allocation4 + $0x2d0] sm:$0xff]
    %v654 = vld [vmem:[#allocation4 + $0x2d8] sm:$0xff]
    %v655 = vld [vmem:[#allocation4 + $0x2e0] sm:$0xff]
    %v656 = vld [vmem:[#allocation4 + $0x2e8] sm:$0xff]
    %v657 = vld [vmem:[#allocation4 + $0x2f0] sm:$0xff]
    %v658 = vld [vmem:[#allocation4 + $0x2f8] sm:$0xff]
    %v659 = vld [vmem:[#allocation4 + $0x300] sm:$0xff]
    %v660 = vld [vmem:[#allocation4 + $0x308] sm:$0xff]
    %v661 = vld [vmem:[#allocation4 + $0x310] sm:$0xff]
    %v662 = vld [vmem:[#allocation4 + $0x318] sm:$0xff]
    %v663 = vld [vmem:[#allocation4 + $0x320] sm:$0xff]
    %v664 = vld [vmem:[#allocation4 + $0x328] sm:$0xff]
    %v665 = vld [vmem:[#allocation4 + $0x330] sm:$0xff]
    %v666 = vld [vmem:[#allocation4 + $0x338] sm:$0xff]
    %v667 = vld [vmem:[#allocation4 + $0x340] sm:$0xff]
    %v668 = vld [vmem:[#allocation4 + $0x348] sm:$0xff]
    %v669 = vld [vmem:[#allocation4 + $0x350] sm:$0xff]
    %v670 = vld [vmem:[#allocation4 + $0x358] sm:$0xff]
    %v671 = vld [vmem:[#allocation4 + $0x360] sm:$0xff]
    %v672 = vld [vmem:[#allocation4 + $0x368] sm:$0xff]
    %v673 = vld [vmem:[#allocation4 + $0x370] sm:$0xff]
    %v674 = vld [vmem:[#allocation4 + $0x378] sm:$0xff]
    %v675 = vld [vmem:[#allocation4 + $0x380] sm:$0xff]
    %v676 = vld [vmem:[#allocation4 + $0x388] sm:$0xff]
    %v677 = vld [vmem:[#allocation4 + $0x390] sm:$0xff]
    %v678 = vld [vmem:[#allocation4 + $0x398] sm:$0xff]
    %v679 = vld [vmem:[#allocation4 + $0x3a0] sm:$0xff]
    %v680 = vld [vmem:[#allocation4 + $0x3a8] sm:$0xff]
    %v681 = vld [vmem:[#allocation4 + $0x3b0] sm:$0xff]
    %v682 = vld [vmem:[#allocation4 + $0x3b8] sm:$0xff]
    %v683 = vld [vmem:[#allocation4 + $0x3c0] sm:$0xff]
    %v684 = vld [vmem:[#allocation4 + $0x3c8] sm:$0xff]
    %v685 = vld [vmem:[#allocation4 + $0x3d0] sm:$0xff]
    %v686 = vld [vmem:[#allocation4 + $0x3d8] sm:$0xff]
    %v687 = vld [vmem:[#allocation4 + $0x3e0] sm:$0xff]
    %v688 = vld [vmem:[#allocation4 + $0x3e8] sm:$0xff]
    %v689 = vld [vmem:[#allocation4 + $0x3f0] sm:$0xff]
    %v690 = vld [vmem:[#allocation4 + $0x3f8] sm:$0xff]
    %v691 = vld [vmem:[#allocation4 + $0x400] sm:$0xff]
    %v692 = vld [vmem:[#allocation4 + $0x408] sm:$0xff]
    %v693 = vld [vmem:[#allocation4 + $0x410] sm:$0xff]
    %v694 = vld [vmem:[#allocation4 + $0x418] sm:$0xff]
    %v695 = vld [vmem:[#allocation4 + $0x420] sm:$0xff]
    %v696 = vld [vmem:[#allocation4 + $0x428] sm:$0xff]
    %v697 = vld [vmem:[#allocation4 + $0x430] sm:$0xff]
    %v698 = vld [vmem:[#allocation4 + $0x438] sm:$0xff]
    %v699 = vld [vmem:[#allocation4 + $0x440] sm:$0xff]
    %v700 = vld [vmem:[#allocation4 + $0x448] sm:$0xff]
    %v701 = vld [vmem:[#allocation4 + $0x450] sm:$0xff]
    %v702 = vld [vmem:[#allocation4 + $0x458] sm:$0xff]
    %v703 = vld [vmem:[#allocation4 + $0x460] sm:$0xff]
    %v704 = vld [vmem:[#allocation4 + $0x468] sm:$0xff]
    %v705 = vld [vmem:[#allocation4 + $0x470] sm:$0xff]
    %v706 = vld [vmem:[#allocation4 + $0x478] sm:$0xff]
    %v707 = vld [vmem:[#allocation4 + $0x480] sm:$0xff]
    %v708 = vld [vmem:[#allocation4 + $0x488] sm:$0xff]
    %v709 = vld [vmem:[#allocation4 + $0x490] sm:$0xff]
    %v710 = vld [vmem:[#allocation4 + $0x498] sm:$0xff]
    %v711 = vld [vmem:[#allocation4 + $0x4a0] sm:$0xff]
    %v712 = vld [vmem:[#allocation4 + $0x4a8] sm:$0xff]
    %v713 = vld [vmem:[#allocation4 + $0x4b0] sm:$0xff]
    %v714 = vld [vmem:[#allocation4 + $0x4b8] sm:$0xff]
    %v715 = vld [vmem:[#allocation4 + $0x4c0] sm:$0xff]
    %v716 = vld [vmem:[#allocation4 + $0x4c8] sm:$0xff]
    %v717 = vld [vmem:[#allocation4 + $0x4d0] sm:$0xff]
    %v718 = vld [vmem:[#allocation4 + $0x4d8] sm:$0xff]
    %v719 = vld [vmem:[#allocation4 + $0x4e0] sm:$0xff]
    %v720 = vld [vmem:[#allocation4 + $0x4e8] sm:$0xff]
    %v721 = vld [vmem:[#allocation4 + $0x4f0] sm:$0xff]
    %v722 = vld [vmem:[#allocation4 + $0x4f8] sm:$0xff]
    %v723 = vld [vmem:[#allocation4 + $0x500] sm:$0xff]
    %v724 = vld [vmem:[#allocation4 + $0x508] sm:$0xff]
    %v725 = vld [vmem:[#allocation4 + $0x510] sm:$0xff]
    %v726 = vld [vmem:[#allocation4 + $0x518] sm:$0xff]
    %v727 = vld [vmem:[#allocation4 + $0x520] sm:$0xff]
    %v728 = vld [vmem:[#allocation4 + $0x528] sm:$0xff]
    %v729 = vld [vmem:[#allocation4 + $0x530] sm:$0xff]
    %v730 = vld [vmem:[#allocation4 + $0x538] sm:$0xff]
    %v731 = vld [vmem:[#allocation4 + $0x540] sm:$0xff]
    %v732 = vld [vmem:[#allocation4 + $0x548] sm:$0xff]
    %v733 = vld [vmem:[#allocation4 + $0x550] sm:$0xff]
    %v734 = vld [vmem:[#allocation4 + $0x558] sm:$0xff]
    %v735 = vld [vmem:[#allocation4 + $0x560] sm:$0xff]
    %v736 = vld [vmem:[#allocation4 + $0x568] sm:$0xff]
    %v737 = vld [vmem:[#allocation4 + $0x570] sm:$0xff]
    %v738 = vld [vmem:[#allocation4 + $0x578] sm:$0xff]
    %v739 = vld [vmem:[#allocation4 + $0x580] sm:$0xff]
    %v740 = vld [vmem:[#allocation4 + $0x588] sm:$0xff]
    %v741 = vld [vmem:[#allocation4 + $0x590] sm:$0xff]
    %v742 = vld [vmem:[#allocation4 + $0x598] sm:$0xff]
    %v743 = vld [vmem:[#allocation4 + $0x5a0] sm:$0xff]
    %v744 = vld [vmem:[#allocation4 + $0x5a8] sm:$0xff]
    %v745 = vld [vmem:[#allocation4 + $0x5b0] sm:$0xff]
    %v746 = vld [vmem:[#allocation4 + $0x5b8] sm:$0xff]
    %v747 = vld [vmem:[#allocation4 + $0x5c0] sm:$0xff]
    %v748 = vld [vmem:[#allocation4 + $0x5c8] sm:$0xff]
    %v749 = vld [vmem:[#allocation4 + $0x5d0] sm:$0xff]
    %v750 = vld [vmem:[#allocation4 + $0x5d8] sm:$0xff]
    %v751 = vld [vmem:[#allocation4 + $0x5e0] sm:$0xff]
    %v752 = vld [vmem:[#allocation4 + $0x5e8] sm:$0xff]
    %v753 = vld [vmem:[#allocation4 + $0x5f0] sm:$0xff]
    %v754 = vld [vmem:[#allocation4 + $0x5f8] sm:$0xff]
    %v755 = vld [vmem:[#allocation4 + $0x600] sm:$0xff]
    %v756 = vld [vmem:[#allocation4 + $0x608] sm:$0xff]
    %v757 = vld [vmem:[#allocation4 + $0x610] sm:$0xff]
    %v758 = vld [vmem:[#allocation4 + $0x618] sm:$0xff]
    %v759 = vld [vmem:[#allocation4 + $0x620] sm:$0xff]
    %v760 = vld [vmem:[#allocation4 + $0x628] sm:$0xff]
    %v761 = vld [vmem:[#allocation4 + $0x630] sm:$0xff]
    %v762 = vld [vmem:[#allocation4 + $0x638] sm:$0xff]
    %v763 = vld [vmem:[#allocation4 + $0x640] sm:$0xff]
    %v764 = vld [vmem:[#allocation4 + $0x648] sm:$0xff]
    %v765 = vld [vmem:[#allocation4 + $0x650] sm:$0xff]
    %v766 = vld [vmem:[#allocation4 + $0x658] sm:$0xff]
    %v767 = vld [vmem:[#allocation4 + $0x660] sm:$0xff]
    %v768 = vld [vmem:[#allocation4 + $0x668] sm:$0xff]
    %v769 = vld [vmem:[#allocation4 + $0x670] sm:$0xff]
    %v770 = vld [vmem:[#allocation4 + $0x678] sm:$0xff]
    %v771 = vld [vmem:[#allocation4 + $0x680] sm:$0xff]
    %v772 = vld [vmem:[#allocation4 + $0x688] sm:$0xff]
    %v773 = vld [vmem:[#allocation4 + $0x690] sm:$0xff]
    %v774 = vld [vmem:[#allocation4 + $0x698] sm:$0xff]
    %v775 = vld [vmem:[#allocation4 + $0x6a0] sm:$0xff]
    %v776 = vld [vmem:[#allocation4 + $0x6a8] sm:$0xff]
    %v777 = vld [vmem:[#allocation4 + $0x6b0] sm:$0xff]
    %v778 = vld [vmem:[#allocation4 + $0x6b8] sm:$0xff]
    %v779 = vld [vmem:[#allocation4 + $0x6c0] sm:$0xff]
    %v780 = vld [vmem:[#allocation4 + $0x6c8] sm:$0xff]
    %v781 = vld [vmem:[#allocation4 + $0x6d0] sm:$0xff]
    %v782 = vld [vmem:[#allocation4 + $0x6d8] sm:$0xff]
    %v783 = vld [vmem:[#allocation4 + $0x6e0] sm:$0xff]
    %v784 = vld [vmem:[#allocation4 + $0x6e8] sm:$0xff]
    %v785 = vld [vmem:[#allocation4 + $0x6f0] sm:$0xff]
    %v786 = vld [vmem:[#allocation4 + $0x6f8] sm:$0xff]
    %v787 = vld [vmem:[#allocation4 + $0x700] sm:$0xff]
    %v788 = vld [vmem:[#allocation4 + $0x708] sm:$0xff]
    %v789 = vld [vmem:[#allocation4 + $0x710] sm:$0xff]
    %v790 = vld [vmem:[#allocation4 + $0x718] sm:$0xff]
    %v791 = vld [vmem:[#allocation4 + $0x720] sm:$0xff]
    %v792 = vld [vmem:[#allocation4 + $0x728] sm:$0xff]
    %v793 = vld [vmem:[#allocation4 + $0x730] sm:$0xff]
    %v794 = vld [vmem:[#allocation4 + $0x738] sm:$0xff]
    %v795 = vld [vmem:[#allocation4 + $0x740] sm:$0xff]
    %v796 = vld [vmem:[#allocation4 + $0x748] sm:$0xff]
    %v797 = vld [vmem:[#allocation4 + $0x750] sm:$0xff]
    %v798 = vld [vmem:[#allocation4 + $0x758] sm:$0xff]
    %v799 = vld [vmem:[#allocation4 + $0x760] sm:$0xff]
    %v800 = vld [vmem:[#allocation4 + $0x768] sm:$0xff]
    %v801 = vld [vmem:[#allocation4 + $0x770] sm:$0xff]
    %v802 = vld [vmem:[#allocation4 + $0x778] sm:$0xff]
    %v803 = vld [vmem:[#allocation4 + $0x780] sm:$0xff]
    %v804 = vld [vmem:[#allocation4 + $0x788] sm:$0xff]
    %v805 = vld [vmem:[#allocation4 + $0x790] sm:$0xff]
    %v806 = vld [vmem:[#allocation4 + $0x798] sm:$0xff]
    %v807 = vld [vmem:[#allocation4 + $0x7a0] sm:$0xff]
    %v808 = vld [vmem:[#allocation4 + $0x7a8] sm:$0xff]
    %v809 = vld [vmem:[#allocation4 + $0x7b0] sm:$0xff]
    %v810 = vld [vmem:[#allocation4 + $0x7b8] sm:$0xff]
    %v811 = vld [vmem:[#allocation4 + $0x7c0] sm:$0xff]
    %v812 = vld [vmem:[#allocation4 + $0x7c8] sm:$0xff]
    %v813 = vld [vmem:[#allocation4 + $0x7d0] sm:$0xff]
    %v814 = vld [vmem:[#allocation4 + $0x7d8] sm:$0xff]
    %v815 = vld [vmem:[#allocation4 + $0x7e0] sm:$0xff]
    %v816 = vld [vmem:[#allocation4 + $0x7e8] sm:$0xff]
    %v817 = vld [vmem:[#allocation4 + $0x7f0] sm:$0xff]
    %v818 = vld [vmem:[#allocation4 + $0x7f8] sm:$0xff]
    %v819 = vld [vmem:[#allocation4 + $0x800] sm:$0xff]
    %v820 = vld [vmem:[#allocation4 + $0x808] sm:$0xff]
    %v821 = vld [vmem:[#allocation4 + $0x810] sm:$0xff]
    %v822 = vld [vmem:[#allocation4 + $0x818] sm:$0xff]
    %v823 = vld [vmem:[#allocation4 + $0x820] sm:$0xff]
    %v824 = vld [vmem:[#allocation4 + $0x828] sm:$0xff]
    %v825 = vld [vmem:[#allocation4 + $0x830] sm:$0xff]
    %v826 = vld [vmem:[#allocation4 + $0x838] sm:$0xff]
    %v827 = vld [vmem:[#allocation4 + $0x840] sm:$0xff]
    %v828 = vld [vmem:[#allocation4 + $0x848] sm:$0xff]
    %v829 = vld [vmem:[#allocation4 + $0x850] sm:$0xff]
    %v830 = vld [vmem:[#allocation4 + $0x858] sm:$0xff]
    %v831 = vld [vmem:[#allocation4 + $0x860] sm:$0xff]
    %v832 = vld [vmem:[#allocation4 + $0x868] sm:$0xff]
    %v833 = vld [vmem:[#allocation4 + $0x870] sm:$0xff]
    %v834 = vld [vmem:[#allocation4 + $0x878] sm:$0xff]
    %v835 = vld [vmem:[#allocation4 + $0x880] sm:$0xff]
    %v836 = vld [vmem:[#allocation4 + $0x888] sm:$0xff]
    %v837 = vld [vmem:[#allocation4 + $0x890] sm:$0xff]
    %v838 = vld [vmem:[#allocation4 + $0x898] sm:$0xff]
    %v839 = vld [vmem:[#allocation4 + $0x8a0] sm:$0xff]
    %v840 = vld [vmem:[#allocation4 + $0x8a8] sm:$0xff]
    %v841 = vld [vmem:[#allocation4 + $0x8b0] sm:$0xff]
    %v842 = vld [vmem:[#allocation4 + $0x8b8] sm:$0xff]
    %v843 = vld [vmem:[#allocation4 + $0x8c0] sm:$0xff]
    %v844 = vld [vmem:[#allocation4 + $0x8c8] sm:$0xff]
    %v845 = vld [vmem:[#allocation4 + $0x8d0] sm:$0xff]
    %v846 = vld [vmem:[#allocation4 + $0x8d8] sm:$0xff]
    %v847 = vld [vmem:[#allocation4 + $0x8e0] sm:$0xff]
    %v848 = vld [vmem:[#allocation4 + $0x8e8] sm:$0xff]
    %v849 = vld [vmem:[#allocation4 + $0x8f0] sm:$0xff]
    %v850 = vld [vmem:[#allocation4 + $0x8f8] sm:$0xff]
    %v851 = vld [vmem:[#allocation4 + $0x900] sm:$0xff]
    %v852 = vld [vmem:[#allocation4 + $0x908] sm:$0xff]
    %v853 = vld [vmem:[#allocation4 + $0x910] sm:$0xff]
    %v854 = vld [vmem:[#allocation4 + $0x918] sm:$0xff]
    %v855 = vld [vmem:[#allocation4 + $0x920] sm:$0xff]
    %v856 = vld [vmem:[#allocation4 + $0x928] sm:$0xff]
    %v857 = vld [vmem:[#allocation4 + $0x930] sm:$0xff]
    %v858 = vld [vmem:[#allocation4 + $0x938] sm:$0xff]
    %v859 = vld [vmem:[#allocation4 + $0x940] sm:$0xff]
    %v860 = vld [vmem:[#allocation4 + $0x948] sm:$0xff]
    %v861 = vld [vmem:[#allocation4 + $0x950] sm:$0xff]
    %v862 = vld [vmem:[#allocation4 + $0x958] sm:$0xff]
    %v863 = vld [vmem:[#allocation4 + $0x960] sm:$0xff]
    %v864 = vld [vmem:[#allocation4 + $0x968] sm:$0xff]
    %v865 = vld [vmem:[#allocation4 + $0x970] sm:$0xff]
    %v866 = vld [vmem:[#allocation4 + $0x978] sm:$0xff]
    %v867 = vld [vmem:[#allocation4 + $0x980] sm:$0xff]
    %v868 = vld [vmem:[#allocation4 + $0x988] sm:$0xff]
    %v869 = vld [vmem:[#allocation4 + $0x990] sm:$0xff]
    %v870 = vld [vmem:[#allocation4 + $0x998] sm:$0xff]
    %v871 = vld [vmem:[#allocation4 + $0x9a0] sm:$0xff]
    %v872 = vld [vmem:[#allocation4 + $0x9a8] sm:$0xff]
    %v873 = vld [vmem:[#allocation4 + $0x9b0] sm:$0xff]
    %v874 = vld [vmem:[#allocation4 + $0x9b8] sm:$0xff]
    %v875 = vld [vmem:[#allocation4 + $0x9c0] sm:$0xff]
    %v876 = vld [vmem:[#allocation4 + $0x9c8] sm:$0xff]
    %v877 = vld [vmem:[#allocation4 + $0x9d0] sm:$0xff]
    %v878 = vld [vmem:[#allocation4 + $0x9d8] sm:$0xff]
    %v879 = vld [vmem:[#allocation4 + $0x9e0] sm:$0xff]
    %v880 = vld [vmem:[#allocation4 + $0x9e8] sm:$0xff]
    %v881 = vld [vmem:[#allocation4 + $0x9f0] sm:$0xff]
    %v882 = vld [vmem:[#allocation4 + $0x9f8] sm:$0xff]
    %v883 = vld [vmem:[#allocation4 + $0xa00] sm:$0xff]
    %v884 = vld [vmem:[#allocation4 + $0xa08] sm:$0xff]
    %v885 = vld [vmem:[#allocation4 + $0xa10] sm:$0xff]
    %v886 = vld [vmem:[#allocation4 + $0xa18] sm:$0xff]
    %v887 = vld [vmem:[#allocation4 + $0xa20] sm:$0xff]
    %v888 = vld [vmem:[#allocation4 + $0xa28] sm:$0xff]
    %v889 = vld [vmem:[#allocation4 + $0xa30] sm:$0xff]
    %v890 = vld [vmem:[#allocation4 + $0xa38] sm:$0xff]
    %v891 = vld [vmem:[#allocation4 + $0xa40] sm:$0xff]
    %v892 = vld [vmem:[#allocation4 + $0xa48] sm:$0xff]
    %v893 = vld [vmem:[#allocation4 + $0xa50] sm:$0xff]
    %v894 = vld [vmem:[#allocation4 + $0xa58] sm:$0xff]
    %v895 = vld [vmem:[#allocation4 + $0xa60] sm:$0xff]
    %v896 = vld [vmem:[#allocation4 + $0xa68] sm:$0xff]
    %v897 = vld [vmem:[#allocation4 + $0xa70] sm:$0xff]
    %v898 = vld [vmem:[#allocation4 + $0xa78] sm:$0xff]
    %v899 = vld [vmem:[#allocation4 + $0xa80] sm:$0xff]
    %v900 = vld [vmem:[#allocation4 + $0xa88] sm:$0xff]
    %v901 = vld [vmem:[#allocation4 + $0xa90] sm:$0xff]
    %v902 = vld [vmem:[#allocation4 + $0xa98] sm:$0xff]
    %v903 = vld [vmem:[#allocation4 + $0xaa0] sm:$0xff]
    %v904 = vld [vmem:[#allocation4 + $0xaa8] sm:$0xff]
    %v905 = vld [vmem:[#allocation4 + $0xab0] sm:$0xff]
    %v906 = vld [vmem:[#allocation4 + $0xab8] sm:$0xff]
    %v907 = vld [vmem:[#allocation4 + $0xac0] sm:$0xff]
    %v908 = vld [vmem:[#allocation4 + $0xac8] sm:$0xff]
    %v909 = vld [vmem:[#allocation4 + $0xad0] sm:$0xff]
    %v910 = vld [vmem:[#allocation4 + $0xad8] sm:$0xff]
    %v911 = vld [vmem:[#allocation4 + $0xae0] sm:$0xff]
    %v912 = vld [vmem:[#allocation4 + $0xae8] sm:$0xff]
    %v913 = vld [vmem:[#allocation4 + $0xaf0] sm:$0xff]
    %v914 = vld [vmem:[#allocation4 + $0xaf8] sm:$0xff]
    %v915 = vld [vmem:[#allocation4 + $0xb00] sm:$0xff]
    %v916 = vld [vmem:[#allocation4 + $0xb08] sm:$0xff]
    %v917 = vld [vmem:[#allocation4 + $0xb10] sm:$0xff]
    %v918 = vld [vmem:[#allocation4 + $0xb18] sm:$0xff]
    %v919 = vld [vmem:[#allocation4 + $0xb20] sm:$0xff]
    %v920 = vld [vmem:[#allocation4 + $0xb28] sm:$0xff]
    %v921 = vld [vmem:[#allocation4 + $0xb30] sm:$0xff]
    %v922 = vld [vmem:[#allocation4 + $0xb38] sm:$0xff]
    %v923 = vld [vmem:[#allocation4 + $0xb40] sm:$0xff]
    %v924 = vld [vmem:[#allocation4 + $0xb48] sm:$0xff]
    %v925 = vld [vmem:[#allocation4 + $0xb50] sm:$0xff]
    %v926 = vld [vmem:[#allocation4 + $0xb58] sm:$0xff]
    %v927 = vld [vmem:[#allocation4 + $0xb60] sm:$0xff]
    %v928 = vld [vmem:[#allocation4 + $0xb68] sm:$0xff]
    %v929 = vld [vmem:[#allocation4 + $0xb70] sm:$0xff]
    %v930 = vld [vmem:[#allocation4 + $0xb78] sm:$0xff]
    %v931 = vld [vmem:[#allocation4 + $0xb80] sm:$0xff]
    %v932 = vld [vmem:[#allocation4 + $0xb88] sm:$0xff]
    %v933 = vld [vmem:[#allocation4 + $0xb90] sm:$0xff]
    %v934 = vld [vmem:[#allocation4 + $0xb98] sm:$0xff]
    %v935 = vld [vmem:[#allocation4 + $0xba0] sm:$0xff]
    %v936 = vld [vmem:[#allocation4 + $0xba8] sm:$0xff]
    %v937 = vld [vmem:[#allocation4 + $0xbb0] sm:$0xff]
    %v938 = vld [vmem:[#allocation4 + $0xbb8] sm:$0xff]
    %v939 = vld [vmem:[#allocation4 + $0xbc0] sm:$0xff]
    %v940 = vld [vmem:[#allocation4 + $0xbc8] sm:$0xff]
    %v941 = vld [vmem:[#allocation4 + $0xbd0] sm:$0xff]
    %v942 = vld [vmem:[#allocation4 + $0xbd8] sm:$0xff]
    %v943 = vld [vmem:[#allocation4 + $0xbe0] sm:$0xff]
    %v944 = vld [vmem:[#allocation4 + $0xbe8] sm:$0xff]
    %v945 = vld [vmem:[#allocation4 + $0xbf0] sm:$0xff]
    %v946 = vld [vmem:[#allocation4 + $0xbf8] sm:$0xff]
    %v947 = vld [vmem:[#allocation4 + $0xc00] sm:$0xff]
    %v948 = vld [vmem:[#allocation4 + $0xc08] sm:$0xff]
    %v949 = vld [vmem:[#allocation4 + $0xc10] sm:$0xff]
    %v950 = vld [vmem:[#allocation4 + $0xc18] sm:$0xff]
    %v951 = vld [vmem:[#allocation4 + $0xc20] sm:$0xff]
    %v952 = vld [vmem:[#allocation4 + $0xc28] sm:$0xff]
    %v953 = vld [vmem:[#allocation4 + $0xc30] sm:$0xff]
    %v954 = vld [vmem:[#allocation4 + $0xc38] sm:$0xff]
    %v955 = vld [vmem:[#allocation4 + $0xc40] sm:$0xff]
    %v956 = vld [vmem:[#allocation4 + $0xc48] sm:$0xff]
    %v957 = vld [vmem:[#allocation4 + $0xc50] sm:$0xff]
    %v958 = vld [vmem:[#allocation4 + $0xc58] sm:$0xff]
    %v959 = vld [vmem:[#allocation4 + $0xc60] sm:$0xff]
    %v960 = vld [vmem:[#allocation4 + $0xc68] sm:$0xff]
    %v961 = vld [vmem:[#allocation4 + $0xc70] sm:$0xff]
    %v962 = vld [vmem:[#allocation4 + $0xc78] sm:$0xff]
    %v963 = vld [vmem:[#allocation4 + $0xc80] sm:$0xff]
    %v964 = vld [vmem:[#allocation4 + $0xc88] sm:$0xff]
    %v965 = vld [vmem:[#allocation4 + $0xc90] sm:$0xff]
    %v966 = vld [vmem:[#allocation4 + $0xc98] sm:$0xff]
    %v967 = vld [vmem:[#allocation4 + $0xca0] sm:$0xff]
    %v968 = vld [vmem:[#allocation4 + $0xca8] sm:$0xff]
    %v969 = vld [vmem:[#allocation4 + $0xcb0] sm:$0xff]
    %v970 = vld [vmem:[#allocation4 + $0xcb8] sm:$0xff]
    %v971 = vld [vmem:[#allocation4 + $0xcc0] sm:$0xff]
    %v972 = vld [vmem:[#allocation4 + $0xcc8] sm:$0xff]
    %v973 = vld [vmem:[#allocation4 + $0xcd0] sm:$0xff]
    %v974 = vld [vmem:[#allocation4 + $0xcd8] sm:$0xff]
    %v975 = vld [vmem:[#allocation4 + $0xce0] sm:$0xff]
    %v976 = vld [vmem:[#allocation4 + $0xce8] sm:$0xff]
    %v977 = vld [vmem:[#allocation4 + $0xcf0] sm:$0xff]
    %v978 = vld [vmem:[#allocation4 + $0xcf8] sm:$0xff]
    %v979 = vld [vmem:[#allocation4 + $0xd00] sm:$0xff]
    %v980 = vld [vmem:[#allocation4 + $0xd08] sm:$0xff]
    %v981 = vld [vmem:[#allocation4 + $0xd10] sm:$0xff]
    %v982 = vld [vmem:[#allocation4 + $0xd18] sm:$0xff]
    %v983 = vld [vmem:[#allocation4 + $0xd20] sm:$0xff]
    %v984 = vld [vmem:[#allocation4 + $0xd28] sm:$0xff]
    %v985 = vld [vmem:[#allocation4 + $0xd30] sm:$0xff]
    %v986 = vld [vmem:[#allocation4 + $0xd38] sm:$0xff]
    %v987 = vld [vmem:[#allocation4 + $0xd40] sm:$0xff]
    %v988 = vld [vmem:[#allocation4 + $0xd48] sm:$0xff]
    %v989 = vld [vmem:[#allocation4 + $0xd50] sm:$0xff]
    %v990 = vld [vmem:[#allocation4 + $0xd58] sm:$0xff]
    %v991 = vld [vmem:[#allocation4 + $0xd60] sm:$0xff]
    %v992 = vld [vmem:[#allocation4 + $0xd68] sm:$0xff]
    %v993 = vld [vmem:[#allocation4 + $0xd70] sm:$0xff]
    %v994 = vld [vmem:[#allocation4 + $0xd78] sm:$0xff]
    %v995 = vld [vmem:[#allocation4 + $0xd80] sm:$0xff]
    %v996 = vld [vmem:[#allocation4 + $0xd88] sm:$0xff]
    %v997 = vld [vmem:[#allocation4 + $0xd90] sm:$0xff]
    %v998 = vld [vmem:[#allocation4 + $0xd98] sm:$0xff]
    %v999 = vld [vmem:[#allocation4 + $0xda0] sm:$0xff]
    %v1000 = vld [vmem:[#allocation4 + $0xda8] sm:$0xff]
    %v1001 = vld [vmem:[#allocation4 + $0xdb0] sm:$0xff]
    %v1002 = vld [vmem:[#allocation4 + $0xdb8] sm:$0xff]
    %v1003 = vld [vmem:[#allocation4 + $0xdc0] sm:$0xff]
    %v1004 = vld [vmem:[#allocation4 + $0xdc8] sm:$0xff]
    %v1005 = vld [vmem:[#allocation4 + $0xdd0] sm:$0xff]
    %v1006 = vld [vmem:[#allocation4 + $0xdd8] sm:$0xff]
    %v1007 = vld [vmem:[#allocation4 + $0xde0] sm:$0xff]
    %v1008 = vld [vmem:[#allocation4 + $0xde8] sm:$0xff]
    %v1009 = vld [vmem:[#allocation4 + $0xdf0] sm:$0xff]
    %v1010 = vld [vmem:[#allocation4 + $0xdf8] sm:$0xff]
    %v1011 = vld [vmem:[#allocation4 + $0xe00] sm:$0xff]
    %v1012 = vld [vmem:[#allocation4 + $0xe08] sm:$0xff]
    %v1013 = vld [vmem:[#allocation4 + $0xe10] sm:$0xff]
    %v1014 = vld [vmem:[#allocation4 + $0xe18] sm:$0xff]
    %v1015 = vld [vmem:[#allocation4 + $0xe20] sm:$0xff]
    %v1016 = vld [vmem:[#allocation4 + $0xe28] sm:$0xff]
    %v1017 = vld [vmem:[#allocation4 + $0xe30] sm:$0xff]
    %v1018 = vld [vmem:[#allocation4 + $0xe38] sm:$0xff]
    %v1019 = vld [vmem:[#allocation4 + $0xe40] sm:$0xff]
    %v1020 = vld [vmem:[#allocation4 + $0xe48] sm:$0xff]
    %v1021 = vld [vmem:[#allocation4 + $0xe50] sm:$0xff]
    %v1022 = vld [vmem:[#allocation4 + $0xe58] sm:$0xff]
    %v1023 = vld [vmem:[#allocation4 + $0xe60] sm:$0xff]
    %v1024 = vld [vmem:[#allocation4 + $0xe68] sm:$0xff]
    %v1025 = vld [vmem:[#allocation4 + $0xe70] sm:$0xff]
    %v1026 = vld [vmem:[#allocation4 + $0xe78] sm:$0xff]
    %v1027 = vld [vmem:[#allocation4 + $0xe80] sm:$0xff]
    %v1028 = vld [vmem:[#allocation4 + $0xe88] sm:$0xff]
    %v1029 = vld [vmem:[#allocation4 + $0xe90] sm:$0xff]
    %v1030 = vld [vmem:[#allocation4 + $0xe98] sm:$0xff]
    %v1031 = vld [vmem:[#allocation4 + $0xea0] sm:$0xff]
    %v1032 = vld [vmem:[#allocation4 + $0xea8] sm:$0xff]
    %v1033 = vld [vmem:[#allocation4 + $0xeb0] sm:$0xff]
    %v1034 = vld [vmem:[#allocation4 + $0xeb8] sm:$0xff]
    %v1035 = vld [vmem:[#allocation4 + $0xec0] sm:$0xff]
    %v1036 = vld [vmem:[#allocation4 + $0xec8] sm:$0xff]
    %v1037 = vld [vmem:[#allocation4 + $0xed0] sm:$0xff]
    %v1038 = vld [vmem:[#allocation4 + $0xed8] sm:$0xff]
    %v1039 = vld [vmem:[#allocation4 + $0xee0] sm:$0xff]
    %v1040 = vld [vmem:[#allocation4 + $0xee8] sm:$0xff]
    %v1041 = vld [vmem:[#allocation4 + $0xef0] sm:$0xff]
    %v1042 = vld [vmem:[#allocation4 + $0xef8] sm:$0xff]
    %v1043 = vunpack.c.0.s8 %v563
    %v1044 = vunpack.c.0.s8 %v564
    %v1045 = vunpack.c.0.s8 %v565
    %v1046 = vunpack.c.0.s8 %v566
    %v1047 = vunpack.c.1.s8 %v563
    %v1048 = vunpack.c.1.s8 %v564
    %v1049 = vunpack.c.1.s8 %v565
    %v1050 = vunpack.c.1.s8 %v566
    %v1051 = vunpack.c.2.s8 %v563
    %v1052 = vunpack.c.2.s8 %v564
    %v1053 = vunpack.c.2.s8 %v565
    %v1054 = vunpack.c.2.s8 %v566
    %v1055 = vunpack.c.3.s8 %v563
    %v1056 = vunpack.c.3.s8 %v564
    %v1057 = vunpack.c.3.s8 %v565
    %v1058 = vunpack.c.3.s8 %v566
    %v1059 = vunpack.c.0.s8 %v567
    %v1060 = vunpack.c.0.s8 %v568
    %v1061 = vunpack.c.0.s8 %v569
    %v1062 = vunpack.c.0.s8 %v570
    %v1063 = vunpack.c.1.s8 %v567
    %v1064 = vunpack.c.1.s8 %v568
    %v1065 = vunpack.c.1.s8 %v569
    %v1066 = vunpack.c.1.s8 %v570
    %v1067 = vunpack.c.2.s8 %v567
    %v1068 = vunpack.c.2.s8 %v568
    %v1069 = vunpack.c.2.s8 %v569
    %v1070 = vunpack.c.2.s8 %v570
    %v1071 = vunpack.c.3.s8 %v567
    %v1072 = vunpack.c.3.s8 %v568
    %v1073 = vunpack.c.3.s8 %v569
    %v1074 = vunpack.c.3.s8 %v570
    %v1075 = vunpack.c.0.s8 %v571
    %v1076 = vunpack.c.0.s8 %v572
    %v1077 = vunpack.c.0.s8 %v573
    %v1078 = vunpack.c.0.s8 %v574
    %v1079 = vunpack.c.1.s8 %v571
    %v1080 = vunpack.c.1.s8 %v572
    %v1081 = vunpack.c.1.s8 %v573
    %v1082 = vunpack.c.1.s8 %v574
    %v1083 = vunpack.c.2.s8 %v571
    %v1084 = vunpack.c.2.s8 %v572
    %v1085 = vunpack.c.2.s8 %v573
    %v1086 = vunpack.c.2.s8 %v574
    %v1087 = vunpack.c.3.s8 %v571
    %v1088 = vunpack.c.3.s8 %v572
    %v1089 = vunpack.c.3.s8 %v573
    %v1090 = vunpack.c.3.s8 %v574
    %v1091 = vunpack.c.0.s8 %v575
    %v1092 = vunpack.c.0.s8 %v576
    %v1093 = vunpack.c.0.s8 %v577
    %v1094 = vunpack.c.0.s8 %v578
    %v1095 = vunpack.c.1.s8 %v575
    %v1096 = vunpack.c.1.s8 %v576
    %v1097 = vunpack.c.1.s8 %v577
    %v1098 = vunpack.c.1.s8 %v578
    %v1099 = vunpack.c.2.s8 %v575
    %v1100 = vunpack.c.2.s8 %v576
    %v1101 = vunpack.c.2.s8 %v577
    %v1102 = vunpack.c.2.s8 %v578
    %v1103 = vunpack.c.3.s8 %v575
    %v1104 = vunpack.c.3.s8 %v576
    %v1105 = vunpack.c.3.s8 %v577
    %v1106 = vunpack.c.3.s8 %v578
    %v1107 = vunpack.c.0.s8 %v579
    %v1108 = vunpack.c.0.s8 %v580
    %v1109 = vunpack.c.0.s8 %v581
    %v1110 = vunpack.c.0.s8 %v582
    %v1111 = vunpack.c.1.s8 %v579
    %v1112 = vunpack.c.1.s8 %v580
    %v1113 = vunpack.c.1.s8 %v581
    %v1114 = vunpack.c.1.s8 %v582
    %v1115 = vunpack.c.2.s8 %v579
    %v1116 = vunpack.c.2.s8 %v580
    %v1117 = vunpack.c.2.s8 %v581
    %v1118 = vunpack.c.2.s8 %v582
    %v1119 = vunpack.c.3.s8 %v579
    %v1120 = vunpack.c.3.s8 %v580
    %v1121 = vunpack.c.3.s8 %v581
    %v1122 = vunpack.c.3.s8 %v582
    %v1123 = vunpack.c.0.s8 %v583
    %v1124 = vunpack.c.0.s8 %v584
    %v1125 = vunpack.c.0.s8 %v585
    %v1126 = vunpack.c.0.s8 %v586
    %v1127 = vunpack.c.1.s8 %v583
    %v1128 = vunpack.c.1.s8 %v584
    %v1129 = vunpack.c.1.s8 %v585
    %v1130 = vunpack.c.1.s8 %v586
    %v1131 = vunpack.c.2.s8 %v583
    %v1132 = vunpack.c.2.s8 %v584
    %v1133 = vunpack.c.2.s8 %v585
    %v1134 = vunpack.c.2.s8 %v586
    %v1135 = vunpack.c.3.s8 %v583
    %v1136 = vunpack.c.3.s8 %v584
    %v1137 = vunpack.c.3.s8 %v585
    %v1138 = vunpack.c.3.s8 %v586
    %v1139 = vunpack.c.0.s8 %v587
    %v1140 = vunpack.c.0.s8 %v588
    %v1141 = vunpack.c.0.s8 %v589
    %v1142 = vunpack.c.0.s8 %v590
    %v1143 = vunpack.c.1.s8 %v587
    %v1144 = vunpack.c.1.s8 %v588
    %v1145 = vunpack.c.1.s8 %v589
    %v1146 = vunpack.c.1.s8 %v590
    %v1147 = vunpack.c.2.s8 %v587
    %v1148 = vunpack.c.2.s8 %v588
    %v1149 = vunpack.c.2.s8 %v589
    %v1150 = vunpack.c.2.s8 %v590
    %v1151 = vunpack.c.3.s8 %v587
    %v1152 = vunpack.c.3.s8 %v588
    %v1153 = vunpack.c.3.s8 %v589
    %v1154 = vunpack.c.3.s8 %v590
    %v1155 = vunpack.c.0.s8 %v591
    %v1156 = vunpack.c.0.s8 %v592
    %v1157 = vunpack.c.0.s8 %v593
    %v1158 = vunpack.c.0.s8 %v594
    %v1159 = vunpack.c.1.s8 %v591
    %v1160 = vunpack.c.1.s8 %v592
    %v1161 = vunpack.c.1.s8 %v593
    %v1162 = vunpack.c.1.s8 %v594
    %v1163 = vunpack.c.2.s8 %v591
    %v1164 = vunpack.c.2.s8 %v592
    %v1165 = vunpack.c.2.s8 %v593
    %v1166 = vunpack.c.2.s8 %v594
    %v1167 = vunpack.c.3.s8 %v591
    %v1168 = vunpack.c.3.s8 %v592
    %v1169 = vunpack.c.3.s8 %v593
    %v1170 = vunpack.c.3.s8 %v594
    %v1171 = vunpack.c.0.s8 %v595
    %v1172 = vunpack.c.0.s8 %v596
    %v1173 = vunpack.c.0.s8 %v597
    %v1174 = vunpack.c.0.s8 %v598
    %v1175 = vunpack.c.1.s8 %v595
    %v1176 = vunpack.c.1.s8 %v596
    %v1177 = vunpack.c.1.s8 %v597
    %v1178 = vunpack.c.1.s8 %v598
    %v1179 = vunpack.c.2.s8 %v595
    %v1180 = vunpack.c.2.s8 %v596
    %v1181 = vunpack.c.2.s8 %v597
    %v1182 = vunpack.c.2.s8 %v598
    %v1183 = vunpack.c.3.s8 %v595
    %v1184 = vunpack.c.3.s8 %v596
    %v1185 = vunpack.c.3.s8 %v597
    %v1186 = vunpack.c.3.s8 %v598
    %v1187 = vunpack.c.0.s8 %v599
    %v1188 = vunpack.c.0.s8 %v600
    %v1189 = vunpack.c.0.s8 %v601
    %v1190 = vunpack.c.0.s8 %v602
    %v1191 = vunpack.c.1.s8 %v599
    %v1192 = vunpack.c.1.s8 %v600
    %v1193 = vunpack.c.1.s8 %v601
    %v1194 = vunpack.c.1.s8 %v602
    %v1195 = vunpack.c.2.s8 %v599
    %v1196 = vunpack.c.2.s8 %v600
    %v1197 = vunpack.c.2.s8 %v601
    %v1198 = vunpack.c.2.s8 %v602
    %v1199 = vunpack.c.3.s8 %v599
    %v1200 = vunpack.c.3.s8 %v600
    %v1201 = vunpack.c.3.s8 %v601
    %v1202 = vunpack.c.3.s8 %v602
    %v1203 = vunpack.c.0.s8 %v603
    %v1204 = vunpack.c.0.s8 %v604
    %v1205 = vunpack.c.0.s8 %v605
    %v1206 = vunpack.c.0.s8 %v606
    %v1207 = vunpack.c.1.s8 %v603
    %v1208 = vunpack.c.1.s8 %v604
    %v1209 = vunpack.c.1.s8 %v605
    %v1210 = vunpack.c.1.s8 %v606
    %v1211 = vunpack.c.2.s8 %v603
    %v1212 = vunpack.c.2.s8 %v604
    %v1213 = vunpack.c.2.s8 %v605
    %v1214 = vunpack.c.2.s8 %v606
    %v1215 = vunpack.c.3.s8 %v603
    %v1216 = vunpack.c.3.s8 %v604
    %v1217 = vunpack.c.3.s8 %v605
    %v1218 = vunpack.c.3.s8 %v606
    %v1219 = vunpack.c.0.s8 %v607
    %v1220 = vunpack.c.0.s8 %v608
    %v1221 = vunpack.c.0.s8 %v609
    %v1222 = vunpack.c.0.s8 %v610
    %v1223 = vunpack.c.1.s8 %v607
    %v1224 = vunpack.c.1.s8 %v608
    %v1225 = vunpack.c.1.s8 %v609
    %v1226 = vunpack.c.1.s8 %v610
    %v1227 = vunpack.c.2.s8 %v607
    %v1228 = vunpack.c.2.s8 %v608
    %v1229 = vunpack.c.2.s8 %v609
    %v1230 = vunpack.c.2.s8 %v610
    %v1231 = vunpack.c.3.s8 %v607
    %v1232 = vunpack.c.3.s8 %v608
    %v1233 = vunpack.c.3.s8 %v609
    %v1234 = vunpack.c.3.s8 %v610
    %v1235 = vunpack.c.0.s8 %v611
    %v1236 = vunpack.c.0.s8 %v612
    %v1237 = vunpack.c.0.s8 %v613
    %v1238 = vunpack.c.0.s8 %v614
    %v1239 = vunpack.c.1.s8 %v611
    %v1240 = vunpack.c.1.s8 %v612
    %v1241 = vunpack.c.1.s8 %v613
    %v1242 = vunpack.c.1.s8 %v614
    %v1243 = vunpack.c.2.s8 %v611
    %v1244 = vunpack.c.2.s8 %v612
    %v1245 = vunpack.c.2.s8 %v613
    %v1246 = vunpack.c.2.s8 %v614
    %v1247 = vunpack.c.3.s8 %v611
    %v1248 = vunpack.c.3.s8 %v612
    %v1249 = vunpack.c.3.s8 %v613
    %v1250 = vunpack.c.3.s8 %v614
    %v1251 = vunpack.c.0.s8 %v615
    %v1252 = vunpack.c.0.s8 %v616
    %v1253 = vunpack.c.0.s8 %v617
    %v1254 = vunpack.c.0.s8 %v618
    %v1255 = vunpack.c.1.s8 %v615
    %v1256 = vunpack.c.1.s8 %v616
    %v1257 = vunpack.c.1.s8 %v617
    %v1258 = vunpack.c.1.s8 %v618
    %v1259 = vunpack.c.2.s8 %v615
    %v1260 = vunpack.c.2.s8 %v616
    %v1261 = vunpack.c.2.s8 %v617
    %v1262 = vunpack.c.2.s8 %v618
    %v1263 = vunpack.c.3.s8 %v615
    %v1264 = vunpack.c.3.s8 %v616
    %v1265 = vunpack.c.3.s8 %v617
    %v1266 = vunpack.c.3.s8 %v618
    %v1267 = vunpack.c.0.s8 %v619
    %v1268 = vunpack.c.0.s8 %v620
    %v1269 = vunpack.c.0.s8 %v621
    %v1270 = vunpack.c.0.s8 %v622
    %v1271 = vunpack.c.1.s8 %v619
    %v1272 = vunpack.c.1.s8 %v620
    %v1273 = vunpack.c.1.s8 %v621
    %v1274 = vunpack.c.1.s8 %v622
    %v1275 = vunpack.c.2.s8 %v619
    %v1276 = vunpack.c.2.s8 %v620
    %v1277 = vunpack.c.2.s8 %v621
    %v1278 = vunpack.c.2.s8 %v622
    %v1279 = vunpack.c.3.s8 %v619
    %v1280 = vunpack.c.3.s8 %v620
    %v1281 = vunpack.c.3.s8 %v621
    %v1282 = vunpack.c.3.s8 %v622
    %v1283 = vunpack.c.0.s8 %v623
    %v1284 = vunpack.c.0.s8 %v624
    %v1285 = vunpack.c.0.s8 %v625
    %v1286 = vunpack.c.0.s8 %v626
    %v1287 = vunpack.c.1.s8 %v623
    %v1288 = vunpack.c.1.s8 %v624
    %v1289 = vunpack.c.1.s8 %v625
    %v1290 = vunpack.c.1.s8 %v626
    %v1291 = vunpack.c.2.s8 %v623
    %v1292 = vunpack.c.2.s8 %v624
    %v1293 = vunpack.c.2.s8 %v625
    %v1294 = vunpack.c.2.s8 %v626
    %v1295 = vunpack.c.3.s8 %v623
    %v1296 = vunpack.c.3.s8 %v624
    %v1297 = vunpack.c.3.s8 %v625
    %v1298 = vunpack.c.3.s8 %v626
    %v1299 = vunpack.c.0.s8 %v627
    %v1300 = vunpack.c.0.s8 %v628
    %v1301 = vunpack.c.0.s8 %v629
    %v1302 = vunpack.c.0.s8 %v630
    %v1303 = vunpack.c.1.s8 %v627
    %v1304 = vunpack.c.1.s8 %v628
    %v1305 = vunpack.c.1.s8 %v629
    %v1306 = vunpack.c.1.s8 %v630
    %v1307 = vunpack.c.2.s8 %v627
    %v1308 = vunpack.c.2.s8 %v628
    %v1309 = vunpack.c.2.s8 %v629
    %v1310 = vunpack.c.2.s8 %v630
    %v1311 = vunpack.c.3.s8 %v627
    %v1312 = vunpack.c.3.s8 %v628
    %v1313 = vunpack.c.3.s8 %v629
    %v1314 = vunpack.c.3.s8 %v630
    %v1315 = vunpack.c.0.s8 %v631
    %v1316 = vunpack.c.0.s8 %v632
    %v1317 = vunpack.c.0.s8 %v633
    %v1318 = vunpack.c.0.s8 %v634
    %v1319 = vunpack.c.1.s8 %v631
    %v1320 = vunpack.c.1.s8 %v632
    %v1321 = vunpack.c.1.s8 %v633
    %v1322 = vunpack.c.1.s8 %v634
    %v1323 = vunpack.c.2.s8 %v631
    %v1324 = vunpack.c.2.s8 %v632
    %v1325 = vunpack.c.2.s8 %v633
    %v1326 = vunpack.c.2.s8 %v634
    %v1327 = vunpack.c.3.s8 %v631
    %v1328 = vunpack.c.3.s8 %v632
    %v1329 = vunpack.c.3.s8 %v633
    %v1330 = vunpack.c.3.s8 %v634
    %v1331 = vunpack.c.0.s8 %v635
    %v1332 = vunpack.c.0.s8 %v636
    %v1333 = vunpack.c.0.s8 %v637
    %v1334 = vunpack.c.0.s8 %v638
    %v1335 = vunpack.c.1.s8 %v635
    %v1336 = vunpack.c.1.s8 %v636
    %v1337 = vunpack.c.1.s8 %v637
    %v1338 = vunpack.c.1.s8 %v638
    %v1339 = vunpack.c.2.s8 %v635
    %v1340 = vunpack.c.2.s8 %v636
    %v1341 = vunpack.c.2.s8 %v637
    %v1342 = vunpack.c.2.s8 %v638
    %v1343 = vunpack.c.3.s8 %v635
    %v1344 = vunpack.c.3.s8 %v636
    %v1345 = vunpack.c.3.s8 %v637
    %v1346 = vunpack.c.3.s8 %v638
    %v1347 = vunpack.c.0.s8 %v639
    %v1348 = vunpack.c.0.s8 %v640
    %v1349 = vunpack.c.0.s8 %v641
    %v1350 = vunpack.c.0.s8 %v642
    %v1351 = vunpack.c.1.s8 %v639
    %v1352 = vunpack.c.1.s8 %v640
    %v1353 = vunpack.c.1.s8 %v641
    %v1354 = vunpack.c.1.s8 %v642
    %v1355 = vunpack.c.2.s8 %v639
    %v1356 = vunpack.c.2.s8 %v640
    %v1357 = vunpack.c.2.s8 %v641
    %v1358 = vunpack.c.2.s8 %v642
    %v1359 = vunpack.c.3.s8 %v639
    %v1360 = vunpack.c.3.s8 %v640
    %v1361 = vunpack.c.3.s8 %v641
    %v1362 = vunpack.c.3.s8 %v642
    %v1363 = vunpack.c.0.s8 %v643
    %v1364 = vunpack.c.0.s8 %v644
    %v1365 = vunpack.c.0.s8 %v645
    %v1366 = vunpack.c.0.s8 %v646
    %v1367 = vunpack.c.1.s8 %v643
    %v1368 = vunpack.c.1.s8 %v644
    %v1369 = vunpack.c.1.s8 %v645
    %v1370 = vunpack.c.1.s8 %v646
    %v1371 = vunpack.c.2.s8 %v643
    %v1372 = vunpack.c.2.s8 %v644
    %v1373 = vunpack.c.2.s8 %v645
    %v1374 = vunpack.c.2.s8 %v646
    %v1375 = vunpack.c.3.s8 %v643
    %v1376 = vunpack.c.3.s8 %v644
    %v1377 = vunpack.c.3.s8 %v645
    %v1378 = vunpack.c.3.s8 %v646
    %v1379 = vunpack.c.0.s8 %v647
    %v1380 = vunpack.c.0.s8 %v648
    %v1381 = vunpack.c.0.s8 %v649
    %v1382 = vunpack.c.0.s8 %v650
    %v1383 = vunpack.c.1.s8 %v647
    %v1384 = vunpack.c.1.s8 %v648
    %v1385 = vunpack.c.1.s8 %v649
    %v1386 = vunpack.c.1.s8 %v650
    %v1387 = vunpack.c.2.s8 %v647
    %v1388 = vunpack.c.2.s8 %v648
    %v1389 = vunpack.c.2.s8 %v649
    %v1390 = vunpack.c.2.s8 %v650
    %v1391 = vunpack.c.3.s8 %v647
    %v1392 = vunpack.c.3.s8 %v648
    %v1393 = vunpack.c.3.s8 %v649
    %v1394 = vunpack.c.3.s8 %v650
    %v1395 = vunpack.c.0.s8 %v651
    %v1396 = vunpack.c.0.s8 %v652
    %v1397 = vunpack.c.0.s8 %v653
    %v1398 = vunpack.c.0.s8 %v654
    %v1399 = vunpack.c.1.s8 %v651
    %v1400 = vunpack.c.1.s8 %v652
    %v1401 = vunpack.c.1.s8 %v653
    %v1402 = vunpack.c.1.s8 %v654
    %v1403 = vunpack.c.2.s8 %v651
    %v1404 = vunpack.c.2.s8 %v652
    %v1405 = vunpack.c.2.s8 %v653
    %v1406 = vunpack.c.2.s8 %v654
    %v1407 = vunpack.c.3.s8 %v651
    %v1408 = vunpack.c.3.s8 %v652
    %v1409 = vunpack.c.3.s8 %v653
    %v1410 = vunpack.c.3.s8 %v654
    %v1411 = vunpack.c.0.s8 %v655
    %v1412 = vunpack.c.0.s8 %v656
    %v1413 = vunpack.c.0.s8 %v657
    %v1414 = vunpack.c.0.s8 %v658
    %v1415 = vunpack.c.1.s8 %v655
    %v1416 = vunpack.c.1.s8 %v656
    %v1417 = vunpack.c.1.s8 %v657
    %v1418 = vunpack.c.1.s8 %v658
    %v1419 = vunpack.c.2.s8 %v655
    %v1420 = vunpack.c.2.s8 %v656
    %v1421 = vunpack.c.2.s8 %v657
    %v1422 = vunpack.c.2.s8 %v658
    %v1423 = vunpack.c.3.s8 %v655
    %v1424 = vunpack.c.3.s8 %v656
    %v1425 = vunpack.c.3.s8 %v657
    %v1426 = vunpack.c.3.s8 %v658
    %v1427 = vunpack.c.0.s8 %v659
    %v1428 = vunpack.c.0.s8 %v660
    %v1429 = vunpack.c.0.s8 %v661
    %v1430 = vunpack.c.0.s8 %v662
    %v1431 = vunpack.c.1.s8 %v659
    %v1432 = vunpack.c.1.s8 %v660
    %v1433 = vunpack.c.1.s8 %v661
    %v1434 = vunpack.c.1.s8 %v662
    %v1435 = vunpack.c.2.s8 %v659
    %v1436 = vunpack.c.2.s8 %v660
    %v1437 = vunpack.c.2.s8 %v661
    %v1438 = vunpack.c.2.s8 %v662
    %v1439 = vunpack.c.3.s8 %v659
    %v1440 = vunpack.c.3.s8 %v660
    %v1441 = vunpack.c.3.s8 %v661
    %v1442 = vunpack.c.3.s8 %v662
    %v1443 = vunpack.c.0.s8 %v663
    %v1444 = vunpack.c.0.s8 %v664
    %v1445 = vunpack.c.0.s8 %v665
    %v1446 = vunpack.c.0.s8 %v666
    %v1447 = vunpack.c.1.s8 %v663
    %v1448 = vunpack.c.1.s8 %v664
    %v1449 = vunpack.c.1.s8 %v665
    %v1450 = vunpack.c.1.s8 %v666
    %v1451 = vunpack.c.2.s8 %v663
    %v1452 = vunpack.c.2.s8 %v664
    %v1453 = vunpack.c.2.s8 %v665
    %v1454 = vunpack.c.2.s8 %v666
    %v1455 = vunpack.c.3.s8 %v663
    %v1456 = vunpack.c.3.s8 %v664
    %v1457 = vunpack.c.3.s8 %v665
    %v1458 = vunpack.c.3.s8 %v666
    %v1459 = vunpack.c.0.s8 %v667
    %v1460 = vunpack.c.0.s8 %v668
    %v1461 = vunpack.c.0.s8 %v669
    %v1462 = vunpack.c.0.s8 %v670
    %v1463 = vunpack.c.1.s8 %v667
    %v1464 = vunpack.c.1.s8 %v668
    %v1465 = vunpack.c.1.s8 %v669
    %v1466 = vunpack.c.1.s8 %v670
    %v1467 = vunpack.c.2.s8 %v667
    %v1468 = vunpack.c.2.s8 %v668
    %v1469 = vunpack.c.2.s8 %v669
    %v1470 = vunpack.c.2.s8 %v670
    %v1471 = vunpack.c.3.s8 %v667
    %v1472 = vunpack.c.3.s8 %v668
    %v1473 = vunpack.c.3.s8 %v669
    %v1474 = vunpack.c.3.s8 %v670
    %v1475 = vunpack.c.0.s8 %v671
    %v1476 = vunpack.c.0.s8 %v672
    %v1477 = vunpack.c.0.s8 %v673
    %v1478 = vunpack.c.0.s8 %v674
    %v1479 = vunpack.c.1.s8 %v671
    %v1480 = vunpack.c.1.s8 %v672
    %v1481 = vunpack.c.1.s8 %v673
    %v1482 = vunpack.c.1.s8 %v674
    %v1483 = vunpack.c.2.s8 %v671
    %v1484 = vunpack.c.2.s8 %v672
    %v1485 = vunpack.c.2.s8 %v673
    %v1486 = vunpack.c.2.s8 %v674
    %v1487 = vunpack.c.3.s8 %v671
    %v1488 = vunpack.c.3.s8 %v672
    %v1489 = vunpack.c.3.s8 %v673
    %v1490 = vunpack.c.3.s8 %v674
    %v1491 = vunpack.c.0.s8 %v675
    %v1492 = vunpack.c.0.s8 %v676
    %v1493 = vunpack.c.0.s8 %v677
    %v1494 = vunpack.c.0.s8 %v678
    %v1495 = vunpack.c.1.s8 %v675
    %v1496 = vunpack.c.1.s8 %v676
    %v1497 = vunpack.c.1.s8 %v677
    %v1498 = vunpack.c.1.s8 %v678
    %v1499 = vunpack.c.2.s8 %v675
    %v1500 = vunpack.c.2.s8 %v676
    %v1501 = vunpack.c.2.s8 %v677
    %v1502 = vunpack.c.2.s8 %v678
    %v1503 = vunpack.c.3.s8 %v675
    %v1504 = vunpack.c.3.s8 %v676
    %v1505 = vunpack.c.3.s8 %v677
    %v1506 = vunpack.c.3.s8 %v678
    %v1507 = vunpack.c.0.s8 %v679
    %v1508 = vunpack.c.0.s8 %v680
    %v1509 = vunpack.c.0.s8 %v681
    %v1510 = vunpack.c.0.s8 %v682
    %v1511 = vunpack.c.1.s8 %v679
    %v1512 = vunpack.c.1.s8 %v680
    %v1513 = vunpack.c.1.s8 %v681
    %v1514 = vunpack.c.1.s8 %v682
    %v1515 = vunpack.c.2.s8 %v679
    %v1516 = vunpack.c.2.s8 %v680
    %v1517 = vunpack.c.2.s8 %v681
    %v1518 = vunpack.c.2.s8 %v682
    %v1519 = vunpack.c.3.s8 %v679
    %v1520 = vunpack.c.3.s8 %v680
    %v1521 = vunpack.c.3.s8 %v681
    %v1522 = vunpack.c.3.s8 %v682
    %v1523 = vunpack.c.0.s8 %v683
    %v1524 = vunpack.c.0.s8 %v684
    %v1525 = vunpack.c.0.s8 %v685
    %v1526 = vunpack.c.0.s8 %v686
    %v1527 = vunpack.c.1.s8 %v683
    %v1528 = vunpack.c.1.s8 %v684
    %v1529 = vunpack.c.1.s8 %v685
    %v1530 = vunpack.c.1.s8 %v686
    %v1531 = vunpack.c.2.s8 %v683
    %v1532 = vunpack.c.2.s8 %v684
    %v1533 = vunpack.c.2.s8 %v685
    %v1534 = vunpack.c.2.s8 %v686
    %v1535 = vunpack.c.3.s8 %v683
    %v1536 = vunpack.c.3.s8 %v684
    %v1537 = vunpack.c.3.s8 %v685
    %v1538 = vunpack.c.3.s8 %v686
    %v1539 = vunpack.c.0.s8 %v687
    %v1540 = vunpack.c.0.s8 %v688
    %v1541 = vunpack.c.0.s8 %v689
    %v1542 = vunpack.c.0.s8 %v690
    %v1543 = vunpack.c.1.s8 %v687
    %v1544 = vunpack.c.1.s8 %v688
    %v1545 = vunpack.c.1.s8 %v689
    %v1546 = vunpack.c.1.s8 %v690
    %v1547 = vunpack.c.2.s8 %v687
    %v1548 = vunpack.c.2.s8 %v688
    %v1549 = vunpack.c.2.s8 %v689
    %v1550 = vunpack.c.2.s8 %v690
    %v1551 = vunpack.c.3.s8 %v687
    %v1552 = vunpack.c.3.s8 %v688
    %v1553 = vunpack.c.3.s8 %v689
    %v1554 = vunpack.c.3.s8 %v690
    %v1555 = vunpack.c.0.s8 %v691
    %v1556 = vunpack.c.0.s8 %v692
    %v1557 = vunpack.c.0.s8 %v693
    %v1558 = vunpack.c.0.s8 %v694
    %v1559 = vunpack.c.1.s8 %v691
    %v1560 = vunpack.c.1.s8 %v692
    %v1561 = vunpack.c.1.s8 %v693
    %v1562 = vunpack.c.1.s8 %v694
    %v1563 = vunpack.c.2.s8 %v691
    %v1564 = vunpack.c.2.s8 %v692
    %v1565 = vunpack.c.2.s8 %v693
    %v1566 = vunpack.c.2.s8 %v694
    %v1567 = vunpack.c.3.s8 %v691
    %v1568 = vunpack.c.3.s8 %v692
    %v1569 = vunpack.c.3.s8 %v693
    %v1570 = vunpack.c.3.s8 %v694
    %v1571 = vunpack.c.0.s8 %v695
    %v1572 = vunpack.c.0.s8 %v696
    %v1573 = vunpack.c.0.s8 %v697
    %v1574 = vunpack.c.0.s8 %v698
    %v1575 = vunpack.c.1.s8 %v695
    %v1576 = vunpack.c.1.s8 %v696
    %v1577 = vunpack.c.1.s8 %v697
    %v1578 = vunpack.c.1.s8 %v698
    %v1579 = vunpack.c.2.s8 %v695
    %v1580 = vunpack.c.2.s8 %v696
    %v1581 = vunpack.c.2.s8 %v697
    %v1582 = vunpack.c.2.s8 %v698
    %v1583 = vunpack.c.3.s8 %v695
    %v1584 = vunpack.c.3.s8 %v696
    %v1585 = vunpack.c.3.s8 %v697
    %v1586 = vunpack.c.3.s8 %v698
    %v1587 = vunpack.c.0.s8 %v699
    %v1588 = vunpack.c.0.s8 %v700
    %v1589 = vunpack.c.0.s8 %v701
    %v1590 = vunpack.c.0.s8 %v702
    %v1591 = vunpack.c.1.s8 %v699
    %v1592 = vunpack.c.1.s8 %v700
    %v1593 = vunpack.c.1.s8 %v701
    %v1594 = vunpack.c.1.s8 %v702
    %v1595 = vunpack.c.2.s8 %v699
    %v1596 = vunpack.c.2.s8 %v700
    %v1597 = vunpack.c.2.s8 %v701
    %v1598 = vunpack.c.2.s8 %v702
    %v1599 = vunpack.c.3.s8 %v699
    %v1600 = vunpack.c.3.s8 %v700
    %v1601 = vunpack.c.3.s8 %v701
    %v1602 = vunpack.c.3.s8 %v702
    %v1603 = vunpack.c.0.s8 %v703
    %v1604 = vunpack.c.0.s8 %v704
    %v1605 = vunpack.c.0.s8 %v705
    %v1606 = vunpack.c.0.s8 %v706
    %v1607 = vunpack.c.1.s8 %v703
    %v1608 = vunpack.c.1.s8 %v704
    %v1609 = vunpack.c.1.s8 %v705
    %v1610 = vunpack.c.1.s8 %v706
    %v1611 = vunpack.c.2.s8 %v703
    %v1612 = vunpack.c.2.s8 %v704
    %v1613 = vunpack.c.2.s8 %v705
    %v1614 = vunpack.c.2.s8 %v706
    %v1615 = vunpack.c.3.s8 %v703
    %v1616 = vunpack.c.3.s8 %v704
    %v1617 = vunpack.c.3.s8 %v705
    %v1618 = vunpack.c.3.s8 %v706
    %v1619 = vunpack.c.0.s8 %v707
    %v1620 = vunpack.c.0.s8 %v708
    %v1621 = vunpack.c.0.s8 %v709
    %v1622 = vunpack.c.0.s8 %v710
    %v1623 = vunpack.c.1.s8 %v707
    %v1624 = vunpack.c.1.s8 %v708
    %v1625 = vunpack.c.1.s8 %v709
    %v1626 = vunpack.c.1.s8 %v710
    %v1627 = vunpack.c.2.s8 %v707
    %v1628 = vunpack.c.2.s8 %v708
    %v1629 = vunpack.c.2.s8 %v709
    %v1630 = vunpack.c.2.s8 %v710
    %v1631 = vunpack.c.3.s8 %v707
    %v1632 = vunpack.c.3.s8 %v708
    %v1633 = vunpack.c.3.s8 %v709
    %v1634 = vunpack.c.3.s8 %v710
    %v1635 = vunpack.c.0.s8 %v711
    %v1636 = vunpack.c.0.s8 %v712
    %v1637 = vunpack.c.0.s8 %v713
    %v1638 = vunpack.c.0.s8 %v714
    %v1639 = vunpack.c.1.s8 %v711
    %v1640 = vunpack.c.1.s8 %v712
    %v1641 = vunpack.c.1.s8 %v713
    %v1642 = vunpack.c.1.s8 %v714
    %v1643 = vunpack.c.2.s8 %v711
    %v1644 = vunpack.c.2.s8 %v712
    %v1645 = vunpack.c.2.s8 %v713
    %v1646 = vunpack.c.2.s8 %v714
    %v1647 = vunpack.c.3.s8 %v711
    %v1648 = vunpack.c.3.s8 %v712
    %v1649 = vunpack.c.3.s8 %v713
    %v1650 = vunpack.c.3.s8 %v714
    %v1651 = vunpack.c.0.s8 %v715
    %v1652 = vunpack.c.0.s8 %v716
    %v1653 = vunpack.c.0.s8 %v717
    %v1654 = vunpack.c.0.s8 %v718
    %v1655 = vunpack.c.1.s8 %v715
    %v1656 = vunpack.c.1.s8 %v716
    %v1657 = vunpack.c.1.s8 %v717
    %v1658 = vunpack.c.1.s8 %v718
    %v1659 = vunpack.c.2.s8 %v715
    %v1660 = vunpack.c.2.s8 %v716
    %v1661 = vunpack.c.2.s8 %v717
    %v1662 = vunpack.c.2.s8 %v718
    %v1663 = vunpack.c.3.s8 %v715
    %v1664 = vunpack.c.3.s8 %v716
    %v1665 = vunpack.c.3.s8 %v717
    %v1666 = vunpack.c.3.s8 %v718
    %v1667 = vunpack.c.0.s8 %v719
    %v1668 = vunpack.c.0.s8 %v720
    %v1669 = vunpack.c.0.s8 %v721
    %v1670 = vunpack.c.0.s8 %v722
    %v1671 = vunpack.c.1.s8 %v719
    %v1672 = vunpack.c.1.s8 %v720
    %v1673 = vunpack.c.1.s8 %v721
    %v1674 = vunpack.c.1.s8 %v722
    %v1675 = vunpack.c.2.s8 %v719
    %v1676 = vunpack.c.2.s8 %v720
    %v1677 = vunpack.c.2.s8 %v721
    %v1678 = vunpack.c.2.s8 %v722
    %v1679 = vunpack.c.3.s8 %v719
    %v1680 = vunpack.c.3.s8 %v720
    %v1681 = vunpack.c.3.s8 %v721
    %v1682 = vunpack.c.3.s8 %v722
    %v1683 = vunpack.c.0.s8 %v723
    %v1684 = vunpack.c.0.s8 %v724
    %v1685 = vunpack.c.0.s8 %v725
    %v1686 = vunpack.c.0.s8 %v726
    %v1687 = vunpack.c.1.s8 %v723
    %v1688 = vunpack.c.1.s8 %v724
    %v1689 = vunpack.c.1.s8 %v725
    %v1690 = vunpack.c.1.s8 %v726
    %v1691 = vunpack.c.2.s8 %v723
    %v1692 = vunpack.c.2.s8 %v724
    %v1693 = vunpack.c.2.s8 %v725
    %v1694 = vunpack.c.2.s8 %v726
    %v1695 = vunpack.c.3.s8 %v723
    %v1696 = vunpack.c.3.s8 %v724
    %v1697 = vunpack.c.3.s8 %v725
    %v1698 = vunpack.c.3.s8 %v726
    %v1699 = vunpack.c.0.s8 %v727
    %v1700 = vunpack.c.0.s8 %v728
    %v1701 = vunpack.c.0.s8 %v729
    %v1702 = vunpack.c.0.s8 %v730
    %v1703 = vunpack.c.1.s8 %v727
    %v1704 = vunpack.c.1.s8 %v728
    %v1705 = vunpack.c.1.s8 %v729
    %v1706 = vunpack.c.1.s8 %v730
    %v1707 = vunpack.c.2.s8 %v727
    %v1708 = vunpack.c.2.s8 %v728
    %v1709 = vunpack.c.2.s8 %v729
    %v1710 = vunpack.c.2.s8 %v730
    %v1711 = vunpack.c.3.s8 %v727
    %v1712 = vunpack.c.3.s8 %v728
    %v1713 = vunpack.c.3.s8 %v729
    %v1714 = vunpack.c.3.s8 %v730
    %v1715 = vunpack.c.0.s8 %v731
    %v1716 = vunpack.c.0.s8 %v732
    %v1717 = vunpack.c.0.s8 %v733
    %v1718 = vunpack.c.0.s8 %v734
    %v1719 = vunpack.c.1.s8 %v731
    %v1720 = vunpack.c.1.s8 %v732
    %v1721 = vunpack.c.1.s8 %v733
    %v1722 = vunpack.c.1.s8 %v734
    %v1723 = vunpack.c.2.s8 %v731
    %v1724 = vunpack.c.2.s8 %v732
    %v1725 = vunpack.c.2.s8 %v733
    %v1726 = vunpack.c.2.s8 %v734
    %v1727 = vunpack.c.3.s8 %v731
    %v1728 = vunpack.c.3.s8 %v732
    %v1729 = vunpack.c.3.s8 %v733
    %v1730 = vunpack.c.3.s8 %v734
    %v1731 = vunpack.c.0.s8 %v735
    %v1732 = vunpack.c.0.s8 %v736
    %v1733 = vunpack.c.0.s8 %v737
    %v1734 = vunpack.c.0.s8 %v738
    %v1735 = vunpack.c.1.s8 %v735
    %v1736 = vunpack.c.1.s8 %v736
    %v1737 = vunpack.c.1.s8 %v737
    %v1738 = vunpack.c.1.s8 %v738
    %v1739 = vunpack.c.2.s8 %v735
    %v1740 = vunpack.c.2.s8 %v736
    %v1741 = vunpack.c.2.s8 %v737
    %v1742 = vunpack.c.2.s8 %v738
    %v1743 = vunpack.c.3.s8 %v735
    %v1744 = vunpack.c.3.s8 %v736
    %v1745 = vunpack.c.3.s8 %v737
    %v1746 = vunpack.c.3.s8 %v738
    %v1747 = vunpack.c.0.s8 %v739
    %v1748 = vunpack.c.0.s8 %v740
    %v1749 = vunpack.c.0.s8 %v741
    %v1750 = vunpack.c.0.s8 %v742
    %v1751 = vunpack.c.1.s8 %v739
    %v1752 = vunpack.c.1.s8 %v740
    %v1753 = vunpack.c.1.s8 %v741
    %v1754 = vunpack.c.1.s8 %v742
    %v1755 = vunpack.c.2.s8 %v739
    %v1756 = vunpack.c.2.s8 %v740
    %v1757 = vunpack.c.2.s8 %v741
    %v1758 = vunpack.c.2.s8 %v742
    %v1759 = vunpack.c.3.s8 %v739
    %v1760 = vunpack.c.3.s8 %v740
    %v1761 = vunpack.c.3.s8 %v741
    %v1762 = vunpack.c.3.s8 %v742
    %v1763 = vunpack.c.0.s8 %v743
    %v1764 = vunpack.c.0.s8 %v744
    %v1765 = vunpack.c.0.s8 %v745
    %v1766 = vunpack.c.0.s8 %v746
    %v1767 = vunpack.c.1.s8 %v743
    %v1768 = vunpack.c.1.s8 %v744
    %v1769 = vunpack.c.1.s8 %v745
    %v1770 = vunpack.c.1.s8 %v746
    %v1771 = vunpack.c.2.s8 %v743
    %v1772 = vunpack.c.2.s8 %v744
    %v1773 = vunpack.c.2.s8 %v745
    %v1774 = vunpack.c.2.s8 %v746
    %v1775 = vunpack.c.3.s8 %v743
    %v1776 = vunpack.c.3.s8 %v744
    %v1777 = vunpack.c.3.s8 %v745
    %v1778 = vunpack.c.3.s8 %v746
    %v1779 = vunpack.c.0.s8 %v747
    %v1780 = vunpack.c.0.s8 %v748
    %v1781 = vunpack.c.0.s8 %v749
    %v1782 = vunpack.c.0.s8 %v750
    %v1783 = vunpack.c.1.s8 %v747
    %v1784 = vunpack.c.1.s8 %v748
    %v1785 = vunpack.c.1.s8 %v749
    %v1786 = vunpack.c.1.s8 %v750
    %v1787 = vunpack.c.2.s8 %v747
    %v1788 = vunpack.c.2.s8 %v748
    %v1789 = vunpack.c.2.s8 %v749
    %v1790 = vunpack.c.2.s8 %v750
    %v1791 = vunpack.c.3.s8 %v747
    %v1792 = vunpack.c.3.s8 %v748
    %v1793 = vunpack.c.3.s8 %v749
    %v1794 = vunpack.c.3.s8 %v750
    %v1795 = vunpack.c.0.s8 %v751
    %v1796 = vunpack.c.0.s8 %v752
    %v1797 = vunpack.c.0.s8 %v753
    %v1798 = vunpack.c.0.s8 %v754
    %v1799 = vunpack.c.1.s8 %v751
    %v1800 = vunpack.c.1.s8 %v752
    %v1801 = vunpack.c.1.s8 %v753
    %v1802 = vunpack.c.1.s8 %v754
    %v1803 = vunpack.c.2.s8 %v751
    %v1804 = vunpack.c.2.s8 %v752
    %v1805 = vunpack.c.2.s8 %v753
    %v1806 = vunpack.c.2.s8 %v754
    %v1807 = vunpack.c.3.s8 %v751
    %v1808 = vunpack.c.3.s8 %v752
    %v1809 = vunpack.c.3.s8 %v753
    %v1810 = vunpack.c.3.s8 %v754
    %v1811 = vunpack.c.0.s8 %v755
    %v1812 = vunpack.c.0.s8 %v756
    %v1813 = vunpack.c.0.s8 %v757
    %v1814 = vunpack.c.0.s8 %v758
    %v1815 = vunpack.c.1.s8 %v755
    %v1816 = vunpack.c.1.s8 %v756
    %v1817 = vunpack.c.1.s8 %v757
    %v1818 = vunpack.c.1.s8 %v758
    %v1819 = vunpack.c.2.s8 %v755
    %v1820 = vunpack.c.2.s8 %v756
    %v1821 = vunpack.c.2.s8 %v757
    %v1822 = vunpack.c.2.s8 %v758
    %v1823 = vunpack.c.3.s8 %v755
    %v1824 = vunpack.c.3.s8 %v756
    %v1825 = vunpack.c.3.s8 %v757
    %v1826 = vunpack.c.3.s8 %v758
    %v1827 = vunpack.c.0.s8 %v759
    %v1828 = vunpack.c.0.s8 %v760
    %v1829 = vunpack.c.0.s8 %v761
    %v1830 = vunpack.c.0.s8 %v762
    %v1831 = vunpack.c.1.s8 %v759
    %v1832 = vunpack.c.1.s8 %v760
    %v1833 = vunpack.c.1.s8 %v761
    %v1834 = vunpack.c.1.s8 %v762
    %v1835 = vunpack.c.2.s8 %v759
    %v1836 = vunpack.c.2.s8 %v760
    %v1837 = vunpack.c.2.s8 %v761
    %v1838 = vunpack.c.2.s8 %v762
    %v1839 = vunpack.c.3.s8 %v759
    %v1840 = vunpack.c.3.s8 %v760
    %v1841 = vunpack.c.3.s8 %v761
    %v1842 = vunpack.c.3.s8 %v762
    %v1843 = vunpack.c.0.s8 %v763
    %v1844 = vunpack.c.0.s8 %v764
    %v1845 = vunpack.c.0.s8 %v765
    %v1846 = vunpack.c.0.s8 %v766
    %v1847 = vunpack.c.1.s8 %v763
    %v1848 = vunpack.c.1.s8 %v764
    %v1849 = vunpack.c.1.s8 %v765
    %v1850 = vunpack.c.1.s8 %v766
    %v1851 = vunpack.c.2.s8 %v763
    %v1852 = vunpack.c.2.s8 %v764
    %v1853 = vunpack.c.2.s8 %v765
    %v1854 = vunpack.c.2.s8 %v766
    %v1855 = vunpack.c.3.s8 %v763
    %v1856 = vunpack.c.3.s8 %v764
    %v1857 = vunpack.c.3.s8 %v765
    %v1858 = vunpack.c.3.s8 %v766
    %v1859 = vunpack.c.0.s8 %v767
    %v1860 = vunpack.c.0.s8 %v768
    %v1861 = vunpack.c.0.s8 %v769
    %v1862 = vunpack.c.0.s8 %v770
    %v1863 = vunpack.c.1.s8 %v767
    %v1864 = vunpack.c.1.s8 %v768
    %v1865 = vunpack.c.1.s8 %v769
    %v1866 = vunpack.c.1.s8 %v770
    %v1867 = vunpack.c.2.s8 %v767
    %v1868 = vunpack.c.2.s8 %v768
    %v1869 = vunpack.c.2.s8 %v769
    %v1870 = vunpack.c.2.s8 %v770
    %v1871 = vunpack.c.3.s8 %v767
    %v1872 = vunpack.c.3.s8 %v768
    %v1873 = vunpack.c.3.s8 %v769
    %v1874 = vunpack.c.3.s8 %v770
    %v1875 = vunpack.c.0.s8 %v771
    %v1876 = vunpack.c.0.s8 %v772
    %v1877 = vunpack.c.0.s8 %v773
    %v1878 = vunpack.c.0.s8 %v774
    %v1879 = vunpack.c.1.s8 %v771
    %v1880 = vunpack.c.1.s8 %v772
    %v1881 = vunpack.c.1.s8 %v773
    %v1882 = vunpack.c.1.s8 %v774
    %v1883 = vunpack.c.2.s8 %v771
    %v1884 = vunpack.c.2.s8 %v772
    %v1885 = vunpack.c.2.s8 %v773
    %v1886 = vunpack.c.2.s8 %v774
    %v1887 = vunpack.c.3.s8 %v771
    %v1888 = vunpack.c.3.s8 %v772
    %v1889 = vunpack.c.3.s8 %v773
    %v1890 = vunpack.c.3.s8 %v774
    %v1891 = vunpack.c.0.s8 %v775
    %v1892 = vunpack.c.0.s8 %v776
    %v1893 = vunpack.c.0.s8 %v777
    %v1894 = vunpack.c.0.s8 %v778
    %v1895 = vunpack.c.1.s8 %v775
    %v1896 = vunpack.c.1.s8 %v776
    %v1897 = vunpack.c.1.s8 %v777
    %v1898 = vunpack.c.1.s8 %v778
    %v1899 = vunpack.c.2.s8 %v775
    %v1900 = vunpack.c.2.s8 %v776
    %v1901 = vunpack.c.2.s8 %v777
    %v1902 = vunpack.c.2.s8 %v778
    %v1903 = vunpack.c.3.s8 %v775
    %v1904 = vunpack.c.3.s8 %v776
    %v1905 = vunpack.c.3.s8 %v777
    %v1906 = vunpack.c.3.s8 %v778
    %v1907 = vunpack.c.0.s8 %v779
    %v1908 = vunpack.c.0.s8 %v780
    %v1909 = vunpack.c.0.s8 %v781
    %v1910 = vunpack.c.0.s8 %v782
    %v1911 = vunpack.c.1.s8 %v779
    %v1912 = vunpack.c.1.s8 %v780
    %v1913 = vunpack.c.1.s8 %v781
    %v1914 = vunpack.c.1.s8 %v782
    %v1915 = vunpack.c.2.s8 %v779
    %v1916 = vunpack.c.2.s8 %v780
    %v1917 = vunpack.c.2.s8 %v781
    %v1918 = vunpack.c.2.s8 %v782
    %v1919 = vunpack.c.3.s8 %v779
    %v1920 = vunpack.c.3.s8 %v780
    %v1921 = vunpack.c.3.s8 %v781
    %v1922 = vunpack.c.3.s8 %v782
    %v1923 = vunpack.c.0.s8 %v783
    %v1924 = vunpack.c.0.s8 %v784
    %v1925 = vunpack.c.0.s8 %v785
    %v1926 = vunpack.c.0.s8 %v786
    %v1927 = vunpack.c.1.s8 %v783
    %v1928 = vunpack.c.1.s8 %v784
    %v1929 = vunpack.c.1.s8 %v785
    %v1930 = vunpack.c.1.s8 %v786
    %v1931 = vunpack.c.2.s8 %v783
    %v1932 = vunpack.c.2.s8 %v784
    %v1933 = vunpack.c.2.s8 %v785
    %v1934 = vunpack.c.2.s8 %v786
    %v1935 = vunpack.c.3.s8 %v783
    %v1936 = vunpack.c.3.s8 %v784
    %v1937 = vunpack.c.3.s8 %v785
    %v1938 = vunpack.c.3.s8 %v786
    %v1939 = vunpack.c.0.s8 %v787
    %v1940 = vunpack.c.0.s8 %v788
    %v1941 = vunpack.c.0.s8 %v789
    %v1942 = vunpack.c.0.s8 %v790
    %v1943 = vunpack.c.1.s8 %v787
    %v1944 = vunpack.c.1.s8 %v788
    %v1945 = vunpack.c.1.s8 %v789
    %v1946 = vunpack.c.1.s8 %v790
    %v1947 = vunpack.c.2.s8 %v787
    %v1948 = vunpack.c.2.s8 %v788
    %v1949 = vunpack.c.2.s8 %v789
    %v1950 = vunpack.c.2.s8 %v790
    %v1951 = vunpack.c.3.s8 %v787
    %v1952 = vunpack.c.3.s8 %v788
    %v1953 = vunpack.c.3.s8 %v789
    %v1954 = vunpack.c.3.s8 %v790
    %v1955 = vunpack.c.0.s8 %v791
    %v1956 = vunpack.c.0.s8 %v792
    %v1957 = vunpack.c.0.s8 %v793
    %v1958 = vunpack.c.0.s8 %v794
    %v1959 = vunpack.c.1.s8 %v791
    %v1960 = vunpack.c.1.s8 %v792
    %v1961 = vunpack.c.1.s8 %v793
    %v1962 = vunpack.c.1.s8 %v794
    %v1963 = vunpack.c.2.s8 %v791
    %v1964 = vunpack.c.2.s8 %v792
    %v1965 = vunpack.c.2.s8 %v793
    %v1966 = vunpack.c.2.s8 %v794
    %v1967 = vunpack.c.3.s8 %v791
    %v1968 = vunpack.c.3.s8 %v792
    %v1969 = vunpack.c.3.s8 %v793
    %v1970 = vunpack.c.3.s8 %v794
    %v1971 = vunpack.c.0.s8 %v795
    %v1972 = vunpack.c.0.s8 %v796
    %v1973 = vunpack.c.0.s8 %v797
    %v1974 = vunpack.c.0.s8 %v798
    %v1975 = vunpack.c.1.s8 %v795
    %v1976 = vunpack.c.1.s8 %v796
    %v1977 = vunpack.c.1.s8 %v797
    %v1978 = vunpack.c.1.s8 %v798
    %v1979 = vunpack.c.2.s8 %v795
    %v1980 = vunpack.c.2.s8 %v796
    %v1981 = vunpack.c.2.s8 %v797
    %v1982 = vunpack.c.2.s8 %v798
    %v1983 = vunpack.c.3.s8 %v795
    %v1984 = vunpack.c.3.s8 %v796
    %v1985 = vunpack.c.3.s8 %v797
    %v1986 = vunpack.c.3.s8 %v798
    %v1987 = vunpack.c.0.s8 %v799
    %v1988 = vunpack.c.0.s8 %v800
    %v1989 = vunpack.c.0.s8 %v801
    %v1990 = vunpack.c.0.s8 %v802
    %v1991 = vunpack.c.1.s8 %v799
    %v1992 = vunpack.c.1.s8 %v800
    %v1993 = vunpack.c.1.s8 %v801
    %v1994 = vunpack.c.1.s8 %v802
    %v1995 = vunpack.c.2.s8 %v799
    %v1996 = vunpack.c.2.s8 %v800
    %v1997 = vunpack.c.2.s8 %v801
    %v1998 = vunpack.c.2.s8 %v802
    %v1999 = vunpack.c.3.s8 %v799
    %v2000 = vunpack.c.3.s8 %v800
    %v2001 = vunpack.c.3.s8 %v801
    %v2002 = vunpack.c.3.s8 %v802
    %v2003 = vunpack.c.0.s8 %v803
    %v2004 = vunpack.c.0.s8 %v804
    %v2005 = vunpack.c.0.s8 %v805
    %v2006 = vunpack.c.0.s8 %v806
    %v2007 = vunpack.c.1.s8 %v803
    %v2008 = vunpack.c.1.s8 %v804
    %v2009 = vunpack.c.1.s8 %v805
    %v2010 = vunpack.c.1.s8 %v806
    %v2011 = vunpack.c.2.s8 %v803
    %v2012 = vunpack.c.2.s8 %v804
    %v2013 = vunpack.c.2.s8 %v805
    %v2014 = vunpack.c.2.s8 %v806
    %v2015 = vunpack.c.3.s8 %v803
    %v2016 = vunpack.c.3.s8 %v804
    %v2017 = vunpack.c.3.s8 %v805
    %v2018 = vunpack.c.3.s8 %v806
    %v2019 = vunpack.c.0.s8 %v807
    %v2020 = vunpack.c.0.s8 %v808
    %v2021 = vunpack.c.0.s8 %v809
    %v2022 = vunpack.c.0.s8 %v810
    %v2023 = vunpack.c.1.s8 %v807
    %v2024 = vunpack.c.1.s8 %v808
    %v2025 = vunpack.c.1.s8 %v809
    %v2026 = vunpack.c.1.s8 %v810
    %v2027 = vunpack.c.2.s8 %v807
    %v2028 = vunpack.c.2.s8 %v808
    %v2029 = vunpack.c.2.s8 %v809
    %v2030 = vunpack.c.2.s8 %v810
    %v2031 = vunpack.c.3.s8 %v807
    %v2032 = vunpack.c.3.s8 %v808
    %v2033 = vunpack.c.3.s8 %v809
    %v2034 = vunpack.c.3.s8 %v810
    %v2035 = vunpack.c.0.s8 %v811
    %v2036 = vunpack.c.0.s8 %v812
    %v2037 = vunpack.c.0.s8 %v813
    %v2038 = vunpack.c.0.s8 %v814
    %v2039 = vunpack.c.1.s8 %v811
    %v2040 = vunpack.c.1.s8 %v812
    %v2041 = vunpack.c.1.s8 %v813
    %v2042 = vunpack.c.1.s8 %v814
    %v2043 = vunpack.c.2.s8 %v811
    %v2044 = vunpack.c.2.s8 %v812
    %v2045 = vunpack.c.2.s8 %v813
    %v2046 = vunpack.c.2.s8 %v814
    %v2047 = vunpack.c.3.s8 %v811
    %v2048 = vunpack.c.3.s8 %v812
    %v2049 = vunpack.c.3.s8 %v813
    %v2050 = vunpack.c.3.s8 %v814
    %v2051 = vunpack.c.0.s8 %v815
    %v2052 = vunpack.c.0.s8 %v816
    %v2053 = vunpack.c.0.s8 %v817
    %v2054 = vunpack.c.0.s8 %v818
    %v2055 = vunpack.c.1.s8 %v815
    %v2056 = vunpack.c.1.s8 %v816
    %v2057 = vunpack.c.1.s8 %v817
    %v2058 = vunpack.c.1.s8 %v818
    %v2059 = vunpack.c.2.s8 %v815
    %v2060 = vunpack.c.2.s8 %v816
    %v2061 = vunpack.c.2.s8 %v817
    %v2062 = vunpack.c.2.s8 %v818
    %v2063 = vunpack.c.3.s8 %v815
    %v2064 = vunpack.c.3.s8 %v816
    %v2065 = vunpack.c.3.s8 %v817
    %v2066 = vunpack.c.3.s8 %v818
    %v2067 = vunpack.c.0.s8 %v819
    %v2068 = vunpack.c.0.s8 %v820
    %v2069 = vunpack.c.0.s8 %v821
    %v2070 = vunpack.c.0.s8 %v822
    %v2071 = vunpack.c.1.s8 %v819
    %v2072 = vunpack.c.1.s8 %v820
    %v2073 = vunpack.c.1.s8 %v821
    %v2074 = vunpack.c.1.s8 %v822
    %v2075 = vunpack.c.2.s8 %v819
    %v2076 = vunpack.c.2.s8 %v820
    %v2077 = vunpack.c.2.s8 %v821
    %v2078 = vunpack.c.2.s8 %v822
    %v2079 = vunpack.c.3.s8 %v819
    %v2080 = vunpack.c.3.s8 %v820
    %v2081 = vunpack.c.3.s8 %v821
    %v2082 = vunpack.c.3.s8 %v822
    %v2083 = vunpack.c.0.s8 %v823
    %v2084 = vunpack.c.0.s8 %v824
    %v2085 = vunpack.c.0.s8 %v825
    %v2086 = vunpack.c.0.s8 %v826
    %v2087 = vunpack.c.1.s8 %v823
    %v2088 = vunpack.c.1.s8 %v824
    %v2089 = vunpack.c.1.s8 %v825
    %v2090 = vunpack.c.1.s8 %v826
    %v2091 = vunpack.c.2.s8 %v823
    %v2092 = vunpack.c.2.s8 %v824
    %v2093 = vunpack.c.2.s8 %v825
    %v2094 = vunpack.c.2.s8 %v826
    %v2095 = vunpack.c.3.s8 %v823
    %v2096 = vunpack.c.3.s8 %v824
    %v2097 = vunpack.c.3.s8 %v825
    %v2098 = vunpack.c.3.s8 %v826
    %v2099 = vunpack.c.0.s8 %v827
    %v2100 = vunpack.c.0.s8 %v828
    %v2101 = vunpack.c.0.s8 %v829
    %v2102 = vunpack.c.0.s8 %v830
    %v2103 = vunpack.c.1.s8 %v827
    %v2104 = vunpack.c.1.s8 %v828
    %v2105 = vunpack.c.1.s8 %v829
    %v2106 = vunpack.c.1.s8 %v830
    %v2107 = vunpack.c.2.s8 %v827
    %v2108 = vunpack.c.2.s8 %v828
    %v2109 = vunpack.c.2.s8 %v829
    %v2110 = vunpack.c.2.s8 %v830
    %v2111 = vunpack.c.3.s8 %v827
    %v2112 = vunpack.c.3.s8 %v828
    %v2113 = vunpack.c.3.s8 %v829
    %v2114 = vunpack.c.3.s8 %v830
    %v2115 = vunpack.c.0.s8 %v831
    %v2116 = vunpack.c.0.s8 %v832
    %v2117 = vunpack.c.0.s8 %v833
    %v2118 = vunpack.c.0.s8 %v834
    %v2119 = vunpack.c.1.s8 %v831
    %v2120 = vunpack.c.1.s8 %v832
    %v2121 = vunpack.c.1.s8 %v833
    %v2122 = vunpack.c.1.s8 %v834
    %v2123 = vunpack.c.2.s8 %v831
    %v2124 = vunpack.c.2.s8 %v832
    %v2125 = vunpack.c.2.s8 %v833
    %v2126 = vunpack.c.2.s8 %v834
    %v2127 = vunpack.c.3.s8 %v831
    %v2128 = vunpack.c.3.s8 %v832
    %v2129 = vunpack.c.3.s8 %v833
    %v2130 = vunpack.c.3.s8 %v834
    %v2131 = vunpack.c.0.s8 %v835
    %v2132 = vunpack.c.0.s8 %v836
    %v2133 = vunpack.c.0.s8 %v837
    %v2134 = vunpack.c.0.s8 %v838
    %v2135 = vunpack.c.1.s8 %v835
    %v2136 = vunpack.c.1.s8 %v836
    %v2137 = vunpack.c.1.s8 %v837
    %v2138 = vunpack.c.1.s8 %v838
    %v2139 = vunpack.c.2.s8 %v835
    %v2140 = vunpack.c.2.s8 %v836
    %v2141 = vunpack.c.2.s8 %v837
    %v2142 = vunpack.c.2.s8 %v838
    %v2143 = vunpack.c.3.s8 %v835
    %v2144 = vunpack.c.3.s8 %v836
    %v2145 = vunpack.c.3.s8 %v837
    %v2146 = vunpack.c.3.s8 %v838
    %v2147 = vunpack.c.0.s8 %v839
    %v2148 = vunpack.c.0.s8 %v840
    %v2149 = vunpack.c.0.s8 %v841
    %v2150 = vunpack.c.0.s8 %v842
    %v2151 = vunpack.c.1.s8 %v839
    %v2152 = vunpack.c.1.s8 %v840
    %v2153 = vunpack.c.1.s8 %v841
    %v2154 = vunpack.c.1.s8 %v842
    %v2155 = vunpack.c.2.s8 %v839
    %v2156 = vunpack.c.2.s8 %v840
    %v2157 = vunpack.c.2.s8 %v841
    %v2158 = vunpack.c.2.s8 %v842
    %v2159 = vunpack.c.3.s8 %v839
    %v2160 = vunpack.c.3.s8 %v840
    %v2161 = vunpack.c.3.s8 %v841
    %v2162 = vunpack.c.3.s8 %v842
    %v2163 = vunpack.c.0.s8 %v843
    %v2164 = vunpack.c.0.s8 %v844
    %v2165 = vunpack.c.0.s8 %v845
    %v2166 = vunpack.c.0.s8 %v846
    %v2167 = vunpack.c.1.s8 %v843
    %v2168 = vunpack.c.1.s8 %v844
    %v2169 = vunpack.c.1.s8 %v845
    %v2170 = vunpack.c.1.s8 %v846
    %v2171 = vunpack.c.2.s8 %v843
    %v2172 = vunpack.c.2.s8 %v844
    %v2173 = vunpack.c.2.s8 %v845
    %v2174 = vunpack.c.2.s8 %v846
    %v2175 = vunpack.c.3.s8 %v843
    %v2176 = vunpack.c.3.s8 %v844
    %v2177 = vunpack.c.3.s8 %v845
    %v2178 = vunpack.c.3.s8 %v846
    %v2179 = vunpack.c.0.s8 %v847
    %v2180 = vunpack.c.0.s8 %v848
    %v2181 = vunpack.c.0.s8 %v849
    %v2182 = vunpack.c.0.s8 %v850
    %v2183 = vunpack.c.1.s8 %v847
    %v2184 = vunpack.c.1.s8 %v848
    %v2185 = vunpack.c.1.s8 %v849
    %v2186 = vunpack.c.1.s8 %v850
    %v2187 = vunpack.c.2.s8 %v847
    %v2188 = vunpack.c.2.s8 %v848
    %v2189 = vunpack.c.2.s8 %v849
    %v2190 = vunpack.c.2.s8 %v850
    %v2191 = vunpack.c.3.s8 %v847
    %v2192 = vunpack.c.3.s8 %v848
    %v2193 = vunpack.c.3.s8 %v849
    %v2194 = vunpack.c.3.s8 %v850
    %v2195 = vunpack.c.0.s8 %v851
    %v2196 = vunpack.c.0.s8 %v852
    %v2197 = vunpack.c.0.s8 %v853
    %v2198 = vunpack.c.0.s8 %v854
    %v2199 = vunpack.c.1.s8 %v851
    %v2200 = vunpack.c.1.s8 %v852
    %v2201 = vunpack.c.1.s8 %v853
    %v2202 = vunpack.c.1.s8 %v854
    %v2203 = vunpack.c.2.s8 %v851
    %v2204 = vunpack.c.2.s8 %v852
    %v2205 = vunpack.c.2.s8 %v853
    %v2206 = vunpack.c.2.s8 %v854
    %v2207 = vunpack.c.3.s8 %v851
    %v2208 = vunpack.c.3.s8 %v852
    %v2209 = vunpack.c.3.s8 %v853
    %v2210 = vunpack.c.3.s8 %v854
    %v2211 = vunpack.c.0.s8 %v855
    %v2212 = vunpack.c.0.s8 %v856
    %v2213 = vunpack.c.0.s8 %v857
    %v2214 = vunpack.c.0.s8 %v858
    %v2215 = vunpack.c.1.s8 %v855
    %v2216 = vunpack.c.1.s8 %v856
    %v2217 = vunpack.c.1.s8 %v857
    %v2218 = vunpack.c.1.s8 %v858
    %v2219 = vunpack.c.2.s8 %v855
    %v2220 = vunpack.c.2.s8 %v856
    %v2221 = vunpack.c.2.s8 %v857
    %v2222 = vunpack.c.2.s8 %v858
    %v2223 = vunpack.c.3.s8 %v855
    %v2224 = vunpack.c.3.s8 %v856
    %v2225 = vunpack.c.3.s8 %v857
    %v2226 = vunpack.c.3.s8 %v858
    %v2227 = vunpack.c.0.s8 %v859
    %v2228 = vunpack.c.0.s8 %v860
    %v2229 = vunpack.c.0.s8 %v861
    %v2230 = vunpack.c.0.s8 %v862
    %v2231 = vunpack.c.1.s8 %v859
    %v2232 = vunpack.c.1.s8 %v860
    %v2233 = vunpack.c.1.s8 %v861
    %v2234 = vunpack.c.1.s8 %v862
    %v2235 = vunpack.c.2.s8 %v859
    %v2236 = vunpack.c.2.s8 %v860
    %v2237 = vunpack.c.2.s8 %v861
    %v2238 = vunpack.c.2.s8 %v862
    %v2239 = vunpack.c.3.s8 %v859
    %v2240 = vunpack.c.3.s8 %v860
    %v2241 = vunpack.c.3.s8 %v861
    %v2242 = vunpack.c.3.s8 %v862
    %v2243 = vunpack.c.0.s8 %v863
    %v2244 = vunpack.c.0.s8 %v864
    %v2245 = vunpack.c.0.s8 %v865
    %v2246 = vunpack.c.0.s8 %v866
    %v2247 = vunpack.c.1.s8 %v863
    %v2248 = vunpack.c.1.s8 %v864
    %v2249 = vunpack.c.1.s8 %v865
    %v2250 = vunpack.c.1.s8 %v866
    %v2251 = vunpack.c.2.s8 %v863
    %v2252 = vunpack.c.2.s8 %v864
    %v2253 = vunpack.c.2.s8 %v865
    %v2254 = vunpack.c.2.s8 %v866
    %v2255 = vunpack.c.3.s8 %v863
    %v2256 = vunpack.c.3.s8 %v864
    %v2257 = vunpack.c.3.s8 %v865
    %v2258 = vunpack.c.3.s8 %v866
    %v2259 = vunpack.c.0.s8 %v867
    %v2260 = vunpack.c.0.s8 %v868
    %v2261 = vunpack.c.0.s8 %v869
    %v2262 = vunpack.c.0.s8 %v870
    %v2263 = vunpack.c.1.s8 %v867
    %v2264 = vunpack.c.1.s8 %v868
    %v2265 = vunpack.c.1.s8 %v869
    %v2266 = vunpack.c.1.s8 %v870
    %v2267 = vunpack.c.2.s8 %v867
    %v2268 = vunpack.c.2.s8 %v868
    %v2269 = vunpack.c.2.s8 %v869
    %v2270 = vunpack.c.2.s8 %v870
    %v2271 = vunpack.c.3.s8 %v867
    %v2272 = vunpack.c.3.s8 %v868
    %v2273 = vunpack.c.3.s8 %v869
    %v2274 = vunpack.c.3.s8 %v870
    %v2275 = vunpack.c.0.s8 %v871
    %v2276 = vunpack.c.0.s8 %v872
    %v2277 = vunpack.c.0.s8 %v873
    %v2278 = vunpack.c.0.s8 %v874
    %v2279 = vunpack.c.1.s8 %v871
    %v2280 = vunpack.c.1.s8 %v872
    %v2281 = vunpack.c.1.s8 %v873
    %v2282 = vunpack.c.1.s8 %v874
    %v2283 = vunpack.c.2.s8 %v871
    %v2284 = vunpack.c.2.s8 %v872
    %v2285 = vunpack.c.2.s8 %v873
    %v2286 = vunpack.c.2.s8 %v874
    %v2287 = vunpack.c.3.s8 %v871
    %v2288 = vunpack.c.3.s8 %v872
    %v2289 = vunpack.c.3.s8 %v873
    %v2290 = vunpack.c.3.s8 %v874
    %v2291 = vunpack.c.0.s8 %v875
    %v2292 = vunpack.c.0.s8 %v876
    %v2293 = vunpack.c.0.s8 %v877
    %v2294 = vunpack.c.0.s8 %v878
    %v2295 = vunpack.c.1.s8 %v875
    %v2296 = vunpack.c.1.s8 %v876
    %v2297 = vunpack.c.1.s8 %v877
    %v2298 = vunpack.c.1.s8 %v878
    %v2299 = vunpack.c.2.s8 %v875
    %v2300 = vunpack.c.2.s8 %v876
    %v2301 = vunpack.c.2.s8 %v877
    %v2302 = vunpack.c.2.s8 %v878
    %v2303 = vunpack.c.3.s8 %v875
    %v2304 = vunpack.c.3.s8 %v876
    %v2305 = vunpack.c.3.s8 %v877
    %v2306 = vunpack.c.3.s8 %v878
    %v2307 = vunpack.c.0.s8 %v879
    %v2308 = vunpack.c.0.s8 %v880
    %v2309 = vunpack.c.0.s8 %v881
    %v2310 = vunpack.c.0.s8 %v882
    %v2311 = vunpack.c.1.s8 %v879
    %v2312 = vunpack.c.1.s8 %v880
    %v2313 = vunpack.c.1.s8 %v881
    %v2314 = vunpack.c.1.s8 %v882
    %v2315 = vunpack.c.2.s8 %v879
    %v2316 = vunpack.c.2.s8 %v880
    %v2317 = vunpack.c.2.s8 %v881
    %v2318 = vunpack.c.2.s8 %v882
    %v2319 = vunpack.c.3.s8 %v879
    %v2320 = vunpack.c.3.s8 %v880
    %v2321 = vunpack.c.3.s8 %v881
    %v2322 = vunpack.c.3.s8 %v882
    %v2323 = vunpack.c.0.s8 %v883
    %v2324 = vunpack.c.0.s8 %v884
    %v2325 = vunpack.c.0.s8 %v885
    %v2326 = vunpack.c.0.s8 %v886
    %v2327 = vunpack.c.1.s8 %v883
    %v2328 = vunpack.c.1.s8 %v884
    %v2329 = vunpack.c.1.s8 %v885
    %v2330 = vunpack.c.1.s8 %v886
    %v2331 = vunpack.c.2.s8 %v883
    %v2332 = vunpack.c.2.s8 %v884
    %v2333 = vunpack.c.2.s8 %v885
    %v2334 = vunpack.c.2.s8 %v886
    %v2335 = vunpack.c.3.s8 %v883
    %v2336 = vunpack.c.3.s8 %v884
    %v2337 = vunpack.c.3.s8 %v885
    %v2338 = vunpack.c.3.s8 %v886
    %v2339 = vunpack.c.0.s8 %v887
    %v2340 = vunpack.c.0.s8 %v888
    %v2341 = vunpack.c.0.s8 %v889
    %v2342 = vunpack.c.0.s8 %v890
    %v2343 = vunpack.c.1.s8 %v887
    %v2344 = vunpack.c.1.s8 %v888
    %v2345 = vunpack.c.1.s8 %v889
    %v2346 = vunpack.c.1.s8 %v890
    %v2347 = vunpack.c.2.s8 %v887
    %v2348 = vunpack.c.2.s8 %v888
    %v2349 = vunpack.c.2.s8 %v889
    %v2350 = vunpack.c.2.s8 %v890
    %v2351 = vunpack.c.3.s8 %v887
    %v2352 = vunpack.c.3.s8 %v888
    %v2353 = vunpack.c.3.s8 %v889
    %v2354 = vunpack.c.3.s8 %v890
    %v2355 = vunpack.c.0.s8 %v891
    %v2356 = vunpack.c.0.s8 %v892
    %v2357 = vunpack.c.0.s8 %v893
    %v2358 = vunpack.c.0.s8 %v894
    %v2359 = vunpack.c.1.s8 %v891
    %v2360 = vunpack.c.1.s8 %v892
    %v2361 = vunpack.c.1.s8 %v893
    %v2362 = vunpack.c.1.s8 %v894
    %v2363 = vunpack.c.2.s8 %v891
    %v2364 = vunpack.c.2.s8 %v892
    %v2365 = vunpack.c.2.s8 %v893
    %v2366 = vunpack.c.2.s8 %v894
    %v2367 = vunpack.c.3.s8 %v891
    %v2368 = vunpack.c.3.s8 %v892
    %v2369 = vunpack.c.3.s8 %v893
    %v2370 = vunpack.c.3.s8 %v894
    %v2371 = vunpack.c.0.s8 %v895
    %v2372 = vunpack.c.0.s8 %v896
    %v2373 = vunpack.c.0.s8 %v897
    %v2374 = vunpack.c.0.s8 %v898
    %v2375 = vunpack.c.1.s8 %v895
    %v2376 = vunpack.c.1.s8 %v896
    %v2377 = vunpack.c.1.s8 %v897
    %v2378 = vunpack.c.1.s8 %v898
    %v2379 = vunpack.c.2.s8 %v895
    %v2380 = vunpack.c.2.s8 %v896
    %v2381 = vunpack.c.2.s8 %v897
    %v2382 = vunpack.c.2.s8 %v898
    %v2383 = vunpack.c.3.s8 %v895
    %v2384 = vunpack.c.3.s8 %v896
    %v2385 = vunpack.c.3.s8 %v897
    %v2386 = vunpack.c.3.s8 %v898
    %v2387 = vunpack.c.0.s8 %v899
    %v2388 = vunpack.c.0.s8 %v900
    %v2389 = vunpack.c.0.s8 %v901
    %v2390 = vunpack.c.0.s8 %v902
    %v2391 = vunpack.c.1.s8 %v899
    %v2392 = vunpack.c.1.s8 %v900
    %v2393 = vunpack.c.1.s8 %v901
    %v2394 = vunpack.c.1.s8 %v902
    %v2395 = vunpack.c.2.s8 %v899
    %v2396 = vunpack.c.2.s8 %v900
    %v2397 = vunpack.c.2.s8 %v901
    %v2398 = vunpack.c.2.s8 %v902
    %v2399 = vunpack.c.3.s8 %v899
    %v2400 = vunpack.c.3.s8 %v900
    %v2401 = vunpack.c.3.s8 %v901
    %v2402 = vunpack.c.3.s8 %v902
    %v2403 = vunpack.c.0.s8 %v903
    %v2404 = vunpack.c.0.s8 %v904
    %v2405 = vunpack.c.0.s8 %v905
    %v2406 = vunpack.c.0.s8 %v906
    %v2407 = vunpack.c.1.s8 %v903
    %v2408 = vunpack.c.1.s8 %v904
    %v2409 = vunpack.c.1.s8 %v905
    %v2410 = vunpack.c.1.s8 %v906
    %v2411 = vunpack.c.2.s8 %v903
    %v2412 = vunpack.c.2.s8 %v904
    %v2413 = vunpack.c.2.s8 %v905
    %v2414 = vunpack.c.2.s8 %v906
    %v2415 = vunpack.c.3.s8 %v903
    %v2416 = vunpack.c.3.s8 %v904
    %v2417 = vunpack.c.3.s8 %v905
    %v2418 = vunpack.c.3.s8 %v906
    %v2419 = vunpack.c.0.s8 %v907
    %v2420 = vunpack.c.0.s8 %v908
    %v2421 = vunpack.c.0.s8 %v909
    %v2422 = vunpack.c.0.s8 %v910
    %v2423 = vunpack.c.1.s8 %v907
    %v2424 = vunpack.c.1.s8 %v908
    %v2425 = vunpack.c.1.s8 %v909
    %v2426 = vunpack.c.1.s8 %v910
    %v2427 = vunpack.c.2.s8 %v907
    %v2428 = vunpack.c.2.s8 %v908
    %v2429 = vunpack.c.2.s8 %v909
    %v2430 = vunpack.c.2.s8 %v910
    %v2431 = vunpack.c.3.s8 %v907
    %v2432 = vunpack.c.3.s8 %v908
    %v2433 = vunpack.c.3.s8 %v909
    %v2434 = vunpack.c.3.s8 %v910
    %v2435 = vunpack.c.0.s8 %v911
    %v2436 = vunpack.c.0.s8 %v912
    %v2437 = vunpack.c.0.s8 %v913
    %v2438 = vunpack.c.0.s8 %v914
    %v2439 = vunpack.c.1.s8 %v911
    %v2440 = vunpack.c.1.s8 %v912
    %v2441 = vunpack.c.1.s8 %v913
    %v2442 = vunpack.c.1.s8 %v914
    %v2443 = vunpack.c.2.s8 %v911
    %v2444 = vunpack.c.2.s8 %v912
    %v2445 = vunpack.c.2.s8 %v913
    %v2446 = vunpack.c.2.s8 %v914
    %v2447 = vunpack.c.3.s8 %v911
    %v2448 = vunpack.c.3.s8 %v912
    %v2449 = vunpack.c.3.s8 %v913
    %v2450 = vunpack.c.3.s8 %v914
    %v2451 = vunpack.c.0.s8 %v915
    %v2452 = vunpack.c.0.s8 %v916
    %v2453 = vunpack.c.0.s8 %v917
    %v2454 = vunpack.c.0.s8 %v918
    %v2455 = vunpack.c.1.s8 %v915
    %v2456 = vunpack.c.1.s8 %v916
    %v2457 = vunpack.c.1.s8 %v917
    %v2458 = vunpack.c.1.s8 %v918
    %v2459 = vunpack.c.2.s8 %v915
    %v2460 = vunpack.c.2.s8 %v916
    %v2461 = vunpack.c.2.s8 %v917
    %v2462 = vunpack.c.2.s8 %v918
    %v2463 = vunpack.c.3.s8 %v915
    %v2464 = vunpack.c.3.s8 %v916
    %v2465 = vunpack.c.3.s8 %v917
    %v2466 = vunpack.c.3.s8 %v918
    %v2467 = vunpack.c.0.s8 %v919
    %v2468 = vunpack.c.0.s8 %v920
    %v2469 = vunpack.c.0.s8 %v921
    %v2470 = vunpack.c.0.s8 %v922
    %v2471 = vunpack.c.1.s8 %v919
    %v2472 = vunpack.c.1.s8 %v920
    %v2473 = vunpack.c.1.s8 %v921
    %v2474 = vunpack.c.1.s8 %v922
    %v2475 = vunpack.c.2.s8 %v919
    %v2476 = vunpack.c.2.s8 %v920
    %v2477 = vunpack.c.2.s8 %v921
    %v2478 = vunpack.c.2.s8 %v922
    %v2479 = vunpack.c.3.s8 %v919
    %v2480 = vunpack.c.3.s8 %v920
    %v2481 = vunpack.c.3.s8 %v921
    %v2482 = vunpack.c.3.s8 %v922
    %v2483 = vunpack.c.0.s8 %v923
    %v2484 = vunpack.c.0.s8 %v924
    %v2485 = vunpack.c.0.s8 %v925
    %v2486 = vunpack.c.0.s8 %v926
    %v2487 = vunpack.c.1.s8 %v923
    %v2488 = vunpack.c.1.s8 %v924
    %v2489 = vunpack.c.1.s8 %v925
    %v2490 = vunpack.c.1.s8 %v926
    %v2491 = vunpack.c.2.s8 %v923
    %v2492 = vunpack.c.2.s8 %v924
    %v2493 = vunpack.c.2.s8 %v925
    %v2494 = vunpack.c.2.s8 %v926
    %v2495 = vunpack.c.3.s8 %v923
    %v2496 = vunpack.c.3.s8 %v924
    %v2497 = vunpack.c.3.s8 %v925
    %v2498 = vunpack.c.3.s8 %v926
    %v2499 = vunpack.c.0.s8 %v927
    %v2500 = vunpack.c.0.s8 %v928
    %v2501 = vunpack.c.0.s8 %v929
    %v2502 = vunpack.c.0.s8 %v930
    %v2503 = vunpack.c.1.s8 %v927
    %v2504 = vunpack.c.1.s8 %v928
    %v2505 = vunpack.c.1.s8 %v929
    %v2506 = vunpack.c.1.s8 %v930
    %v2507 = vunpack.c.2.s8 %v927
    %v2508 = vunpack.c.2.s8 %v928
    %v2509 = vunpack.c.2.s8 %v929
    %v2510 = vunpack.c.2.s8 %v930
    %v2511 = vunpack.c.3.s8 %v927
    %v2512 = vunpack.c.3.s8 %v928
    %v2513 = vunpack.c.3.s8 %v929
    %v2514 = vunpack.c.3.s8 %v930
    %v2515 = vunpack.c.0.s8 %v931
    %v2516 = vunpack.c.0.s8 %v932
    %v2517 = vunpack.c.0.s8 %v933
    %v2518 = vunpack.c.0.s8 %v934
    %v2519 = vunpack.c.1.s8 %v931
    %v2520 = vunpack.c.1.s8 %v932
    %v2521 = vunpack.c.1.s8 %v933
    %v2522 = vunpack.c.1.s8 %v934
    %v2523 = vunpack.c.2.s8 %v931
    %v2524 = vunpack.c.2.s8 %v932
    %v2525 = vunpack.c.2.s8 %v933
    %v2526 = vunpack.c.2.s8 %v934
    %v2527 = vunpack.c.3.s8 %v931
    %v2528 = vunpack.c.3.s8 %v932
    %v2529 = vunpack.c.3.s8 %v933
    %v2530 = vunpack.c.3.s8 %v934
    %v2531 = vunpack.c.0.s8 %v935
    %v2532 = vunpack.c.0.s8 %v936
    %v2533 = vunpack.c.0.s8 %v937
    %v2534 = vunpack.c.0.s8 %v938
    %v2535 = vunpack.c.1.s8 %v935
    %v2536 = vunpack.c.1.s8 %v936
    %v2537 = vunpack.c.1.s8 %v937
    %v2538 = vunpack.c.1.s8 %v938
    %v2539 = vunpack.c.2.s8 %v935
    %v2540 = vunpack.c.2.s8 %v936
    %v2541 = vunpack.c.2.s8 %v937
    %v2542 = vunpack.c.2.s8 %v938
    %v2543 = vunpack.c.3.s8 %v935
    %v2544 = vunpack.c.3.s8 %v936
    %v2545 = vunpack.c.3.s8 %v937
    %v2546 = vunpack.c.3.s8 %v938
    %v2547 = vunpack.c.0.s8 %v939
    %v2548 = vunpack.c.0.s8 %v940
    %v2549 = vunpack.c.0.s8 %v941
    %v2550 = vunpack.c.0.s8 %v942
    %v2551 = vunpack.c.1.s8 %v939
    %v2552 = vunpack.c.1.s8 %v940
    %v2553 = vunpack.c.1.s8 %v941
    %v2554 = vunpack.c.1.s8 %v942
    %v2555 = vunpack.c.2.s8 %v939
    %v2556 = vunpack.c.2.s8 %v940
    %v2557 = vunpack.c.2.s8 %v941
    %v2558 = vunpack.c.2.s8 %v942
    %v2559 = vunpack.c.3.s8 %v939
    %v2560 = vunpack.c.3.s8 %v940
    %v2561 = vunpack.c.3.s8 %v941
    %v2562 = vunpack.c.3.s8 %v942
    %v2563 = vunpack.c.0.s8 %v943
    %v2564 = vunpack.c.0.s8 %v944
    %v2565 = vunpack.c.0.s8 %v945
    %v2566 = vunpack.c.0.s8 %v946
    %v2567 = vunpack.c.1.s8 %v943
    %v2568 = vunpack.c.1.s8 %v944
    %v2569 = vunpack.c.1.s8 %v945
    %v2570 = vunpack.c.1.s8 %v946
    %v2571 = vunpack.c.2.s8 %v943
    %v2572 = vunpack.c.2.s8 %v944
    %v2573 = vunpack.c.2.s8 %v945
    %v2574 = vunpack.c.2.s8 %v946
    %v2575 = vunpack.c.3.s8 %v943
    %v2576 = vunpack.c.3.s8 %v944
    %v2577 = vunpack.c.3.s8 %v945
    %v2578 = vunpack.c.3.s8 %v946
    %v2579 = vunpack.c.0.s8 %v947
    %v2580 = vunpack.c.0.s8 %v948
    %v2581 = vunpack.c.0.s8 %v949
    %v2582 = vunpack.c.0.s8 %v950
    %v2583 = vunpack.c.1.s8 %v947
    %v2584 = vunpack.c.1.s8 %v948
    %v2585 = vunpack.c.1.s8 %v949
    %v2586 = vunpack.c.1.s8 %v950
    %v2587 = vunpack.c.2.s8 %v947
    %v2588 = vunpack.c.2.s8 %v948
    %v2589 = vunpack.c.2.s8 %v949
    %v2590 = vunpack.c.2.s8 %v950
    %v2591 = vunpack.c.3.s8 %v947
    %v2592 = vunpack.c.3.s8 %v948
    %v2593 = vunpack.c.3.s8 %v949
    %v2594 = vunpack.c.3.s8 %v950
    %v2595 = vunpack.c.0.s8 %v951
    %v2596 = vunpack.c.0.s8 %v952
    %v2597 = vunpack.c.0.s8 %v953
    %v2598 = vunpack.c.0.s8 %v954
    %v2599 = vunpack.c.1.s8 %v951
    %v2600 = vunpack.c.1.s8 %v952
    %v2601 = vunpack.c.1.s8 %v953
    %v2602 = vunpack.c.1.s8 %v954
    %v2603 = vunpack.c.2.s8 %v951
    %v2604 = vunpack.c.2.s8 %v952
    %v2605 = vunpack.c.2.s8 %v953
    %v2606 = vunpack.c.2.s8 %v954
    %v2607 = vunpack.c.3.s8 %v951
    %v2608 = vunpack.c.3.s8 %v952
    %v2609 = vunpack.c.3.s8 %v953
    %v2610 = vunpack.c.3.s8 %v954
    %v2611 = vunpack.c.0.s8 %v955
    %v2612 = vunpack.c.0.s8 %v956
    %v2613 = vunpack.c.0.s8 %v957
    %v2614 = vunpack.c.0.s8 %v958
    %v2615 = vunpack.c.1.s8 %v955
    %v2616 = vunpack.c.1.s8 %v956
    %v2617 = vunpack.c.1.s8 %v957
    %v2618 = vunpack.c.1.s8 %v958
    %v2619 = vunpack.c.2.s8 %v955
    %v2620 = vunpack.c.2.s8 %v956
    %v2621 = vunpack.c.2.s8 %v957
    %v2622 = vunpack.c.2.s8 %v958
    %v2623 = vunpack.c.3.s8 %v955
    %v2624 = vunpack.c.3.s8 %v956
    %v2625 = vunpack.c.3.s8 %v957
    %v2626 = vunpack.c.3.s8 %v958
    %v2627 = vunpack.c.0.s8 %v959
    %v2628 = vunpack.c.0.s8 %v960
    %v2629 = vunpack.c.0.s8 %v961
    %v2630 = vunpack.c.0.s8 %v962
    %v2631 = vunpack.c.1.s8 %v959
    %v2632 = vunpack.c.1.s8 %v960
    %v2633 = vunpack.c.1.s8 %v961
    %v2634 = vunpack.c.1.s8 %v962
    %v2635 = vunpack.c.2.s8 %v959
    %v2636 = vunpack.c.2.s8 %v960
    %v2637 = vunpack.c.2.s8 %v961
    %v2638 = vunpack.c.2.s8 %v962
    %v2639 = vunpack.c.3.s8 %v959
    %v2640 = vunpack.c.3.s8 %v960
    %v2641 = vunpack.c.3.s8 %v961
    %v2642 = vunpack.c.3.s8 %v962
    %v2643 = vunpack.c.0.s8 %v963
    %v2644 = vunpack.c.0.s8 %v964
    %v2645 = vunpack.c.0.s8 %v965
    %v2646 = vunpack.c.0.s8 %v966
    %v2647 = vunpack.c.1.s8 %v963
    %v2648 = vunpack.c.1.s8 %v964
    %v2649 = vunpack.c.1.s8 %v965
    %v2650 = vunpack.c.1.s8 %v966
    %v2651 = vunpack.c.2.s8 %v963
    %v2652 = vunpack.c.2.s8 %v964
    %v2653 = vunpack.c.2.s8 %v965
    %v2654 = vunpack.c.2.s8 %v966
    %v2655 = vunpack.c.3.s8 %v963
    %v2656 = vunpack.c.3.s8 %v964
    %v2657 = vunpack.c.3.s8 %v965
    %v2658 = vunpack.c.3.s8 %v966
    %v2659 = vunpack.c.0.s8 %v967
    %v2660 = vunpack.c.0.s8 %v968
    %v2661 = vunpack.c.0.s8 %v969
    %v2662 = vunpack.c.0.s8 %v970
    %v2663 = vunpack.c.1.s8 %v967
    %v2664 = vunpack.c.1.s8 %v968
    %v2665 = vunpack.c.1.s8 %v969
    %v2666 = vunpack.c.1.s8 %v970
    %v2667 = vunpack.c.2.s8 %v967
    %v2668 = vunpack.c.2.s8 %v968
    %v2669 = vunpack.c.2.s8 %v969
    %v2670 = vunpack.c.2.s8 %v970
    %v2671 = vunpack.c.3.s8 %v967
    %v2672 = vunpack.c.3.s8 %v968
    %v2673 = vunpack.c.3.s8 %v969
    %v2674 = vunpack.c.3.s8 %v970
    %v2675 = vunpack.c.0.s8 %v971
    %v2676 = vunpack.c.0.s8 %v972
    %v2677 = vunpack.c.0.s8 %v973
    %v2678 = vunpack.c.0.s8 %v974
    %v2679 = vunpack.c.1.s8 %v971
    %v2680 = vunpack.c.1.s8 %v972
    %v2681 = vunpack.c.1.s8 %v973
    %v2682 = vunpack.c.1.s8 %v974
    %v2683 = vunpack.c.2.s8 %v971
    %v2684 = vunpack.c.2.s8 %v972
    %v2685 = vunpack.c.2.s8 %v973
    %v2686 = vunpack.c.2.s8 %v974
    %v2687 = vunpack.c.3.s8 %v971
    %v2688 = vunpack.c.3.s8 %v972
    %v2689 = vunpack.c.3.s8 %v973
    %v2690 = vunpack.c.3.s8 %v974
    %v2691 = vunpack.c.0.s8 %v975
    %v2692 = vunpack.c.0.s8 %v976
    %v2693 = vunpack.c.0.s8 %v977
    %v2694 = vunpack.c.0.s8 %v978
    %v2695 = vunpack.c.1.s8 %v975
    %v2696 = vunpack.c.1.s8 %v976
    %v2697 = vunpack.c.1.s8 %v977
    %v2698 = vunpack.c.1.s8 %v978
    %v2699 = vunpack.c.2.s8 %v975
    %v2700 = vunpack.c.2.s8 %v976
    %v2701 = vunpack.c.2.s8 %v977
    %v2702 = vunpack.c.2.s8 %v978
    %v2703 = vunpack.c.3.s8 %v975
    %v2704 = vunpack.c.3.s8 %v976
    %v2705 = vunpack.c.3.s8 %v977
    %v2706 = vunpack.c.3.s8 %v978
    %v2707 = vunpack.c.0.s8 %v979
    %v2708 = vunpack.c.0.s8 %v980
    %v2709 = vunpack.c.0.s8 %v981
    %v2710 = vunpack.c.0.s8 %v982
    %v2711 = vunpack.c.1.s8 %v979
    %v2712 = vunpack.c.1.s8 %v980
    %v2713 = vunpack.c.1.s8 %v981
    %v2714 = vunpack.c.1.s8 %v982
    %v2715 = vunpack.c.2.s8 %v979
    %v2716 = vunpack.c.2.s8 %v980
    %v2717 = vunpack.c.2.s8 %v981
    %v2718 = vunpack.c.2.s8 %v982
    %v2719 = vunpack.c.3.s8 %v979
    %v2720 = vunpack.c.3.s8 %v980
    %v2721 = vunpack.c.3.s8 %v981
    %v2722 = vunpack.c.3.s8 %v982
    %v2723 = vunpack.c.0.s8 %v983
    %v2724 = vunpack.c.0.s8 %v984
    %v2725 = vunpack.c.0.s8 %v985
    %v2726 = vunpack.c.0.s8 %v986
    %v2727 = vunpack.c.1.s8 %v983
    %v2728 = vunpack.c.1.s8 %v984
    %v2729 = vunpack.c.1.s8 %v985
    %v2730 = vunpack.c.1.s8 %v986
    %v2731 = vunpack.c.2.s8 %v983
    %v2732 = vunpack.c.2.s8 %v984
    %v2733 = vunpack.c.2.s8 %v985
    %v2734 = vunpack.c.2.s8 %v986
    %v2735 = vunpack.c.3.s8 %v983
    %v2736 = vunpack.c.3.s8 %v984
    %v2737 = vunpack.c.3.s8 %v985
    %v2738 = vunpack.c.3.s8 %v986
    %v2739 = vunpack.c.0.s8 %v987
    %v2740 = vunpack.c.0.s8 %v988
    %v2741 = vunpack.c.0.s8 %v989
    %v2742 = vunpack.c.0.s8 %v990
    %v2743 = vunpack.c.1.s8 %v987
    %v2744 = vunpack.c.1.s8 %v988
    %v2745 = vunpack.c.1.s8 %v989
    %v2746 = vunpack.c.1.s8 %v990
    %v2747 = vunpack.c.2.s8 %v987
    %v2748 = vunpack.c.2.s8 %v988
    %v2749 = vunpack.c.2.s8 %v989
    %v2750 = vunpack.c.2.s8 %v990
    %v2751 = vunpack.c.3.s8 %v987
    %v2752 = vunpack.c.3.s8 %v988
    %v2753 = vunpack.c.3.s8 %v989
    %v2754 = vunpack.c.3.s8 %v990
    %v2755 = vunpack.c.0.s8 %v991
    %v2756 = vunpack.c.0.s8 %v992
    %v2757 = vunpack.c.0.s8 %v993
    %v2758 = vunpack.c.0.s8 %v994
    %v2759 = vunpack.c.1.s8 %v991
    %v2760 = vunpack.c.1.s8 %v992
    %v2761 = vunpack.c.1.s8 %v993
    %v2762 = vunpack.c.1.s8 %v994
    %v2763 = vunpack.c.2.s8 %v991
    %v2764 = vunpack.c.2.s8 %v992
    %v2765 = vunpack.c.2.s8 %v993
    %v2766 = vunpack.c.2.s8 %v994
    %v2767 = vunpack.c.3.s8 %v991
    %v2768 = vunpack.c.3.s8 %v992
    %v2769 = vunpack.c.3.s8 %v993
    %v2770 = vunpack.c.3.s8 %v994
    %v2771 = vunpack.c.0.s8 %v995
    %v2772 = vunpack.c.0.s8 %v996
    %v2773 = vunpack.c.0.s8 %v997
    %v2774 = vunpack.c.0.s8 %v998
    %v2775 = vunpack.c.1.s8 %v995
    %v2776 = vunpack.c.1.s8 %v996
    %v2777 = vunpack.c.1.s8 %v997
    %v2778 = vunpack.c.1.s8 %v998
    %v2779 = vunpack.c.2.s8 %v995
    %v2780 = vunpack.c.2.s8 %v996
    %v2781 = vunpack.c.2.s8 %v997
    %v2782 = vunpack.c.2.s8 %v998
    %v2783 = vunpack.c.3.s8 %v995
    %v2784 = vunpack.c.3.s8 %v996
    %v2785 = vunpack.c.3.s8 %v997
    %v2786 = vunpack.c.3.s8 %v998
    %v2787 = vunpack.c.0.s8 %v999
    %v2788 = vunpack.c.0.s8 %v1000
    %v2789 = vunpack.c.0.s8 %v1001
    %v2790 = vunpack.c.0.s8 %v1002
    %v2791 = vunpack.c.1.s8 %v999
    %v2792 = vunpack.c.1.s8 %v1000
    %v2793 = vunpack.c.1.s8 %v1001
    %v2794 = vunpack.c.1.s8 %v1002
    %v2795 = vunpack.c.2.s8 %v999
    %v2796 = vunpack.c.2.s8 %v1000
    %v2797 = vunpack.c.2.s8 %v1001
    %v2798 = vunpack.c.2.s8 %v1002
    %v2799 = vunpack.c.3.s8 %v999
    %v2800 = vunpack.c.3.s8 %v1000
    %v2801 = vunpack.c.3.s8 %v1001
    %v2802 = vunpack.c.3.s8 %v1002
    %v2803 = vunpack.c.0.s8 %v1003
    %v2804 = vunpack.c.0.s8 %v1004
    %v2805 = vunpack.c.0.s8 %v1005
    %v2806 = vunpack.c.0.s8 %v1006
    %v2807 = vunpack.c.1.s8 %v1003
    %v2808 = vunpack.c.1.s8 %v1004
    %v2809 = vunpack.c.1.s8 %v1005
    %v2810 = vunpack.c.1.s8 %v1006
    %v2811 = vunpack.c.2.s8 %v1003
    %v2812 = vunpack.c.2.s8 %v1004
    %v2813 = vunpack.c.2.s8 %v1005
    %v2814 = vunpack.c.2.s8 %v1006
    %v2815 = vunpack.c.3.s8 %v1003
    %v2816 = vunpack.c.3.s8 %v1004
    %v2817 = vunpack.c.3.s8 %v1005
    %v2818 = vunpack.c.3.s8 %v1006
    %v2819 = vunpack.c.0.s8 %v1007
    %v2820 = vunpack.c.0.s8 %v1008
    %v2821 = vunpack.c.0.s8 %v1009
    %v2822 = vunpack.c.0.s8 %v1010
    %v2823 = vunpack.c.1.s8 %v1007
    %v2824 = vunpack.c.1.s8 %v1008
    %v2825 = vunpack.c.1.s8 %v1009
    %v2826 = vunpack.c.1.s8 %v1010
    %v2827 = vunpack.c.2.s8 %v1007
    %v2828 = vunpack.c.2.s8 %v1008
    %v2829 = vunpack.c.2.s8 %v1009
    %v2830 = vunpack.c.2.s8 %v1010
    %v2831 = vunpack.c.3.s8 %v1007
    %v2832 = vunpack.c.3.s8 %v1008
    %v2833 = vunpack.c.3.s8 %v1009
    %v2834 = vunpack.c.3.s8 %v1010
    %v2835 = vunpack.c.0.s8 %v1011
    %v2836 = vunpack.c.0.s8 %v1012
    %v2837 = vunpack.c.0.s8 %v1013
    %v2838 = vunpack.c.0.s8 %v1014
    %v2839 = vunpack.c.1.s8 %v1011
    %v2840 = vunpack.c.1.s8 %v1012
    %v2841 = vunpack.c.1.s8 %v1013
    %v2842 = vunpack.c.1.s8 %v1014
    %v2843 = vunpack.c.2.s8 %v1011
    %v2844 = vunpack.c.2.s8 %v1012
    %v2845 = vunpack.c.2.s8 %v1013
    %v2846 = vunpack.c.2.s8 %v1014
    %v2847 = vunpack.c.3.s8 %v1011
    %v2848 = vunpack.c.3.s8 %v1012
    %v2849 = vunpack.c.3.s8 %v1013
    %v2850 = vunpack.c.3.s8 %v1014
    %v2851 = vunpack.c.0.s8 %v1015
    %v2852 = vunpack.c.0.s8 %v1016
    %v2853 = vunpack.c.0.s8 %v1017
    %v2854 = vunpack.c.0.s8 %v1018
    %v2855 = vunpack.c.1.s8 %v1015
    %v2856 = vunpack.c.1.s8 %v1016
    %v2857 = vunpack.c.1.s8 %v1017
    %v2858 = vunpack.c.1.s8 %v1018
    %v2859 = vunpack.c.2.s8 %v1015
    %v2860 = vunpack.c.2.s8 %v1016
    %v2861 = vunpack.c.2.s8 %v1017
    %v2862 = vunpack.c.2.s8 %v1018
    %v2863 = vunpack.c.3.s8 %v1015
    %v2864 = vunpack.c.3.s8 %v1016
    %v2865 = vunpack.c.3.s8 %v1017
    %v2866 = vunpack.c.3.s8 %v1018
    %v2867 = vunpack.c.0.s8 %v1019
    %v2868 = vunpack.c.0.s8 %v1020
    %v2869 = vunpack.c.0.s8 %v1021
    %v2870 = vunpack.c.0.s8 %v1022
    %v2871 = vunpack.c.1.s8 %v1019
    %v2872 = vunpack.c.1.s8 %v1020
    %v2873 = vunpack.c.1.s8 %v1021
    %v2874 = vunpack.c.1.s8 %v1022
    %v2875 = vunpack.c.2.s8 %v1019
    %v2876 = vunpack.c.2.s8 %v1020
    %v2877 = vunpack.c.2.s8 %v1021
    %v2878 = vunpack.c.2.s8 %v1022
    %v2879 = vunpack.c.3.s8 %v1019
    %v2880 = vunpack.c.3.s8 %v1020
    %v2881 = vunpack.c.3.s8 %v1021
    %v2882 = vunpack.c.3.s8 %v1022
    %v2883 = vunpack.c.0.s8 %v1023
    %v2884 = vunpack.c.0.s8 %v1024
    %v2885 = vunpack.c.0.s8 %v1025
    %v2886 = vunpack.c.0.s8 %v1026
    %v2887 = vunpack.c.1.s8 %v1023
    %v2888 = vunpack.c.1.s8 %v1024
    %v2889 = vunpack.c.1.s8 %v1025
    %v2890 = vunpack.c.1.s8 %v1026
    %v2891 = vunpack.c.2.s8 %v1023
    %v2892 = vunpack.c.2.s8 %v1024
    %v2893 = vunpack.c.2.s8 %v1025
    %v2894 = vunpack.c.2.s8 %v1026
    %v2895 = vunpack.c.3.s8 %v1023
    %v2896 = vunpack.c.3.s8 %v1024
    %v2897 = vunpack.c.3.s8 %v1025
    %v2898 = vunpack.c.3.s8 %v1026
    %v2899 = vunpack.c.0.s8 %v1027
    %v2900 = vunpack.c.0.s8 %v1028
    %v2901 = vunpack.c.0.s8 %v1029
    %v2902 = vunpack.c.0.s8 %v1030
    %v2903 = vunpack.c.1.s8 %v1027
    %v2904 = vunpack.c.1.s8 %v1028
    %v2905 = vunpack.c.1.s8 %v1029
    %v2906 = vunpack.c.1.s8 %v1030
    %v2907 = vunpack.c.2.s8 %v1027
    %v2908 = vunpack.c.2.s8 %v1028
    %v2909 = vunpack.c.2.s8 %v1029
    %v2910 = vunpack.c.2.s8 %v1030
    %v2911 = vunpack.c.3.s8 %v1027
    %v2912 = vunpack.c.3.s8 %v1028
    %v2913 = vunpack.c.3.s8 %v1029
    %v2914 = vunpack.c.3.s8 %v1030
    %v2915 = vunpack.c.0.s8 %v1031
    %v2916 = vunpack.c.0.s8 %v1032
    %v2917 = vunpack.c.0.s8 %v1033
    %v2918 = vunpack.c.0.s8 %v1034
    %v2919 = vunpack.c.1.s8 %v1031
    %v2920 = vunpack.c.1.s8 %v1032
    %v2921 = vunpack.c.1.s8 %v1033
    %v2922 = vunpack.c.1.s8 %v1034
    %v2923 = vunpack.c.2.s8 %v1031
    %v2924 = vunpack.c.2.s8 %v1032
    %v2925 = vunpack.c.2.s8 %v1033
    %v2926 = vunpack.c.2.s8 %v1034
    %v2927 = vunpack.c.3.s8 %v1031
    %v2928 = vunpack.c.3.s8 %v1032
    %v2929 = vunpack.c.3.s8 %v1033
    %v2930 = vunpack.c.3.s8 %v1034
    %v2931 = vunpack.c.0.s8 %v1035
    %v2932 = vunpack.c.0.s8 %v1036
    %v2933 = vunpack.c.0.s8 %v1037
    %v2934 = vunpack.c.0.s8 %v1038
    %v2935 = vunpack.c.1.s8 %v1035
    %v2936 = vunpack.c.1.s8 %v1036
    %v2937 = vunpack.c.1.s8 %v1037
    %v2938 = vunpack.c.1.s8 %v1038
    %v2939 = vunpack.c.2.s8 %v1035
    %v2940 = vunpack.c.2.s8 %v1036
    %v2941 = vunpack.c.2.s8 %v1037
    %v2942 = vunpack.c.2.s8 %v1038
    %v2943 = vunpack.c.3.s8 %v1035
    %v2944 = vunpack.c.3.s8 %v1036
    %v2945 = vunpack.c.3.s8 %v1037
    %v2946 = vunpack.c.3.s8 %v1038
    %v2947 = vunpack.c.0.s8 %v1039
    %v2948 = vunpack.c.0.s8 %v1040
    %v2949 = vunpack.c.0.s8 %v1041
    %v2950 = vunpack.c.0.s8 %v1042
    %v2951 = vunpack.c.1.s8 %v1039
    %v2952 = vunpack.c.1.s8 %v1040
    %v2953 = vunpack.c.1.s8 %v1041
    %v2954 = vunpack.c.1.s8 %v1042
    %v2955 = vunpack.c.2.s8 %v1039
    %v2956 = vunpack.c.2.s8 %v1040
    %v2957 = vunpack.c.2.s8 %v1041
    %v2958 = vunpack.c.2.s8 %v1042
    %v2959 = vunpack.c.3.s8 %v1039
    %v2960 = vunpack.c.3.s8 %v1040
    %v2961 = vunpack.c.3.s8 %v1041
    %v2962 = vunpack.c.3.s8 %v1042
    %v2963 = vcvt.s32.f32 %v1043
    %v2964 = vcvt.s32.f32 %v1044
    %v2965 = vcvt.s32.f32 %v1045
    %v2966 = vcvt.s32.f32 %v1046
    %v2967 = vcvt.s32.f32 %v1047
    %v2968 = vcvt.s32.f32 %v1048
    %v2969 = vcvt.s32.f32 %v1049
    %v2970 = vcvt.s32.f32 %v1050
    %v2971 = vcvt.s32.f32 %v1051
    %v2972 = vcvt.s32.f32 %v1052
    %v2973 = vcvt.s32.f32 %v1053
    %v2974 = vcvt.s32.f32 %v1054
    %v2975 = vcvt.s32.f32 %v1055
    %v2976 = vcvt.s32.f32 %v1056
    %v2977 = vcvt.s32.f32 %v1057
    %v2978 = vcvt.s32.f32 %v1058
    %v2979 = vcvt.s32.f32 %v1059
    %v2980 = vcvt.s32.f32 %v1060
    %v2981 = vcvt.s32.f32 %v1061
    %v2982 = vcvt.s32.f32 %v1062
    %v2983 = vcvt.s32.f32 %v1063
    %v2984 = vcvt.s32.f32 %v1064
    %v2985 = vcvt.s32.f32 %v1065
    %v2986 = vcvt.s32.f32 %v1066
    %v2987 = vcvt.s32.f32 %v1067
    %v2988 = vcvt.s32.f32 %v1068
    %v2989 = vcvt.s32.f32 %v1069
    %v2990 = vcvt.s32.f32 %v1070
    %v2991 = vcvt.s32.f32 %v1071
    %v2992 = vcvt.s32.f32 %v1072
    %v2993 = vcvt.s32.f32 %v1073
    %v2994 = vcvt.s32.f32 %v1074
    %v2995 = vcvt.s32.f32 %v1075
    %v2996 = vcvt.s32.f32 %v1076
    %v2997 = vcvt.s32.f32 %v1077
    %v2998 = vcvt.s32.f32 %v1078
    %v2999 = vcvt.s32.f32 %v1079
    %v3000 = vcvt.s32.f32 %v1080
    %v3001 = vcvt.s32.f32 %v1081
    %v3002 = vcvt.s32.f32 %v1082
    %v3003 = vcvt.s32.f32 %v1083
    %v3004 = vcvt.s32.f32 %v1084
    %v3005 = vcvt.s32.f32 %v1085
    %v3006 = vcvt.s32.f32 %v1086
    %v3007 = vcvt.s32.f32 %v1087
    %v3008 = vcvt.s32.f32 %v1088
    %v3009 = vcvt.s32.f32 %v1089
    %v3010 = vcvt.s32.f32 %v1090
    %v3011 = vcvt.s32.f32 %v1091
    %v3012 = vcvt.s32.f32 %v1092
    %v3013 = vcvt.s32.f32 %v1093
    %v3014 = vcvt.s32.f32 %v1094
    %v3015 = vcvt.s32.f32 %v1095
    %v3016 = vcvt.s32.f32 %v1096
    %v3017 = vcvt.s32.f32 %v1097
    %v3018 = vcvt.s32.f32 %v1098
    %v3019 = vcvt.s32.f32 %v1099
    %v3020 = vcvt.s32.f32 %v1100
    %v3021 = vcvt.s32.f32 %v1101
    %v3022 = vcvt.s32.f32 %v1102
    %v3023 = vcvt.s32.f32 %v1103
    %v3024 = vcvt.s32.f32 %v1104
    %v3025 = vcvt.s32.f32 %v1105
    %v3026 = vcvt.s32.f32 %v1106
    %v3027 = vcvt.s32.f32 %v1107
    %v3028 = vcvt.s32.f32 %v1108
    %v3029 = vcvt.s32.f32 %v1109
    %v3030 = vcvt.s32.f32 %v1110
    %v3031 = vcvt.s32.f32 %v1111
    %v3032 = vcvt.s32.f32 %v1112
    %v3033 = vcvt.s32.f32 %v1113
    %v3034 = vcvt.s32.f32 %v1114
    %v3035 = vcvt.s32.f32 %v1115
    %v3036 = vcvt.s32.f32 %v1116
    %v3037 = vcvt.s32.f32 %v1117
    %v3038 = vcvt.s32.f32 %v1118
    %v3039 = vcvt.s32.f32 %v1119
    %v3040 = vcvt.s32.f32 %v1120
    %v3041 = vcvt.s32.f32 %v1121
    %v3042 = vcvt.s32.f32 %v1122
    %v3043 = vcvt.s32.f32 %v1123
    %v3044 = vcvt.s32.f32 %v1124
    %v3045 = vcvt.s32.f32 %v1125
    %v3046 = vcvt.s32.f32 %v1126
    %v3047 = vcvt.s32.f32 %v1127
    %v3048 = vcvt.s32.f32 %v1128
    %v3049 = vcvt.s32.f32 %v1129
    %v3050 = vcvt.s32.f32 %v1130
    %v3051 = vcvt.s32.f32 %v1131
    %v3052 = vcvt.s32.f32 %v1132
    %v3053 = vcvt.s32.f32 %v1133
    %v3054 = vcvt.s32.f32 %v1134
    %v3055 = vcvt.s32.f32 %v1135
    %v3056 = vcvt.s32.f32 %v1136
    %v3057 = vcvt.s32.f32 %v1137
    %v3058 = vcvt.s32.f32 %v1138
    %v3059 = vcvt.s32.f32 %v1139
    %v3060 = vcvt.s32.f32 %v1140
    %v3061 = vcvt.s32.f32 %v1141
    %v3062 = vcvt.s32.f32 %v1142
    %v3063 = vcvt.s32.f32 %v1143
    %v3064 = vcvt.s32.f32 %v1144
    %v3065 = vcvt.s32.f32 %v1145
    %v3066 = vcvt.s32.f32 %v1146
    %v3067 = vcvt.s32.f32 %v1147
    %v3068 = vcvt.s32.f32 %v1148
    %v3069 = vcvt.s32.f32 %v1149
    %v3070 = vcvt.s32.f32 %v1150
    %v3071 = vcvt.s32.f32 %v1151
    %v3072 = vcvt.s32.f32 %v1152
    %v3073 = vcvt.s32.f32 %v1153
    %v3074 = vcvt.s32.f32 %v1154
    %v3075 = vcvt.s32.f32 %v1155
    %v3076 = vcvt.s32.f32 %v1156
    %v3077 = vcvt.s32.f32 %v1157
    %v3078 = vcvt.s32.f32 %v1158
    %v3079 = vcvt.s32.f32 %v1159
    %v3080 = vcvt.s32.f32 %v1160
    %v3081 = vcvt.s32.f32 %v1161
    %v3082 = vcvt.s32.f32 %v1162
    %v3083 = vcvt.s32.f32 %v1163
    %v3084 = vcvt.s32.f32 %v1164
    %v3085 = vcvt.s32.f32 %v1165
    %v3086 = vcvt.s32.f32 %v1166
    %v3087 = vcvt.s32.f32 %v1167
    %v3088 = vcvt.s32.f32 %v1168
    %v3089 = vcvt.s32.f32 %v1169
    %v3090 = vcvt.s32.f32 %v1170
    %v3091 = vcvt.s32.f32 %v1171
    %v3092 = vcvt.s32.f32 %v1172
    %v3093 = vcvt.s32.f32 %v1173
    %v3094 = vcvt.s32.f32 %v1174
    %v3095 = vcvt.s32.f32 %v1175
    %v3096 = vcvt.s32.f32 %v1176
    %v3097 = vcvt.s32.f32 %v1177
    %v3098 = vcvt.s32.f32 %v1178
    %v3099 = vcvt.s32.f32 %v1179
    %v3100 = vcvt.s32.f32 %v1180
    %v3101 = vcvt.s32.f32 %v1181
    %v3102 = vcvt.s32.f32 %v1182
    %v3103 = vcvt.s32.f32 %v1183
    %v3104 = vcvt.s32.f32 %v1184
    %v3105 = vcvt.s32.f32 %v1185
    %v3106 = vcvt.s32.f32 %v1186
    %v3107 = vcvt.s32.f32 %v1187
    %v3108 = vcvt.s32.f32 %v1188
    %v3109 = vcvt.s32.f32 %v1189
    %v3110 = vcvt.s32.f32 %v1190
    %v3111 = vcvt.s32.f32 %v1191
    %v3112 = vcvt.s32.f32 %v1192
    %v3113 = vcvt.s32.f32 %v1193
    %v3114 = vcvt.s32.f32 %v1194
    %v3115 = vcvt.s32.f32 %v1195
    %v3116 = vcvt.s32.f32 %v1196
    %v3117 = vcvt.s32.f32 %v1197
    %v3118 = vcvt.s32.f32 %v1198
    %v3119 = vcvt.s32.f32 %v1199
    %v3120 = vcvt.s32.f32 %v1200
    %v3121 = vcvt.s32.f32 %v1201
    %v3122 = vcvt.s32.f32 %v1202
    %v3123 = vcvt.s32.f32 %v1203
    %v3124 = vcvt.s32.f32 %v1204
    %v3125 = vcvt.s32.f32 %v1205
    %v3126 = vcvt.s32.f32 %v1206
    %v3127 = vcvt.s32.f32 %v1207
    %v3128 = vcvt.s32.f32 %v1208
    %v3129 = vcvt.s32.f32 %v1209
    %v3130 = vcvt.s32.f32 %v1210
    %v3131 = vcvt.s32.f32 %v1211
    %v3132 = vcvt.s32.f32 %v1212
    %v3133 = vcvt.s32.f32 %v1213
    %v3134 = vcvt.s32.f32 %v1214
    %v3135 = vcvt.s32.f32 %v1215
    %v3136 = vcvt.s32.f32 %v1216
    %v3137 = vcvt.s32.f32 %v1217
    %v3138 = vcvt.s32.f32 %v1218
    %v3139 = vcvt.s32.f32 %v1219
    %v3140 = vcvt.s32.f32 %v1220
    %v3141 = vcvt.s32.f32 %v1221
    %v3142 = vcvt.s32.f32 %v1222
    %v3143 = vcvt.s32.f32 %v1223
    %v3144 = vcvt.s32.f32 %v1224
    %v3145 = vcvt.s32.f32 %v1225
    %v3146 = vcvt.s32.f32 %v1226
    %v3147 = vcvt.s32.f32 %v1227
    %v3148 = vcvt.s32.f32 %v1228
    %v3149 = vcvt.s32.f32 %v1229
    %v3150 = vcvt.s32.f32 %v1230
    %v3151 = vcvt.s32.f32 %v1231
    %v3152 = vcvt.s32.f32 %v1232
    %v3153 = vcvt.s32.f32 %v1233
    %v3154 = vcvt.s32.f32 %v1234
    %v3155 = vcvt.s32.f32 %v1235
    %v3156 = vcvt.s32.f32 %v1236
    %v3157 = vcvt.s32.f32 %v1237
    %v3158 = vcvt.s32.f32 %v1238
    %v3159 = vcvt.s32.f32 %v1239
    %v3160 = vcvt.s32.f32 %v1240
    %v3161 = vcvt.s32.f32 %v1241
    %v3162 = vcvt.s32.f32 %v1242
    %v3163 = vcvt.s32.f32 %v1243
    %v3164 = vcvt.s32.f32 %v1244
    %v3165 = vcvt.s32.f32 %v1245
    %v3166 = vcvt.s32.f32 %v1246
    %v3167 = vcvt.s32.f32 %v1247
    %v3168 = vcvt.s32.f32 %v1248
    %v3169 = vcvt.s32.f32 %v1249
    %v3170 = vcvt.s32.f32 %v1250
    %v3171 = vcvt.s32.f32 %v1251
    %v3172 = vcvt.s32.f32 %v1252
    %v3173 = vcvt.s32.f32 %v1253
    %v3174 = vcvt.s32.f32 %v1254
    %v3175 = vcvt.s32.f32 %v1255
    %v3176 = vcvt.s32.f32 %v1256
    %v3177 = vcvt.s32.f32 %v1257
    %v3178 = vcvt.s32.f32 %v1258
    %v3179 = vcvt.s32.f32 %v1259
    %v3180 = vcvt.s32.f32 %v1260
    %v3181 = vcvt.s32.f32 %v1261
    %v3182 = vcvt.s32.f32 %v1262
    %v3183 = vcvt.s32.f32 %v1263
    %v3184 = vcvt.s32.f32 %v1264
    %v3185 = vcvt.s32.f32 %v1265
    %v3186 = vcvt.s32.f32 %v1266
    %v3187 = vcvt.s32.f32 %v1267
    %v3188 = vcvt.s32.f32 %v1268
    %v3189 = vcvt.s32.f32 %v1269
    %v3190 = vcvt.s32.f32 %v1270
    %v3191 = vcvt.s32.f32 %v1271
    %v3192 = vcvt.s32.f32 %v1272
    %v3193 = vcvt.s32.f32 %v1273
    %v3194 = vcvt.s32.f32 %v1274
    %v3195 = vcvt.s32.f32 %v1275
    %v3196 = vcvt.s32.f32 %v1276
    %v3197 = vcvt.s32.f32 %v1277
    %v3198 = vcvt.s32.f32 %v1278
    %v3199 = vcvt.s32.f32 %v1279
    %v3200 = vcvt.s32.f32 %v1280
    %v3201 = vcvt.s32.f32 %v1281
    %v3202 = vcvt.s32.f32 %v1282
    %v3203 = vcvt.s32.f32 %v1283
    %v3204 = vcvt.s32.f32 %v1284
    %v3205 = vcvt.s32.f32 %v1285
    %v3206 = vcvt.s32.f32 %v1286
    %v3207 = vcvt.s32.f32 %v1287
    %v3208 = vcvt.s32.f32 %v1288
    %v3209 = vcvt.s32.f32 %v1289
    %v3210 = vcvt.s32.f32 %v1290
    %v3211 = vcvt.s32.f32 %v1291
    %v3212 = vcvt.s32.f32 %v1292
    %v3213 = vcvt.s32.f32 %v1293
    %v3214 = vcvt.s32.f32 %v1294
    %v3215 = vcvt.s32.f32 %v1295
    %v3216 = vcvt.s32.f32 %v1296
    %v3217 = vcvt.s32.f32 %v1297
    %v3218 = vcvt.s32.f32 %v1298
    %v3219 = vcvt.s32.f32 %v1299
    %v3220 = vcvt.s32.f32 %v1300
    %v3221 = vcvt.s32.f32 %v1301
    %v3222 = vcvt.s32.f32 %v1302
    %v3223 = vcvt.s32.f32 %v1303
    %v3224 = vcvt.s32.f32 %v1304
    %v3225 = vcvt.s32.f32 %v1305
    %v3226 = vcvt.s32.f32 %v1306
    %v3227 = vcvt.s32.f32 %v1307
    %v3228 = vcvt.s32.f32 %v1308
    %v3229 = vcvt.s32.f32 %v1309
    %v3230 = vcvt.s32.f32 %v1310
    %v3231 = vcvt.s32.f32 %v1311
    %v3232 = vcvt.s32.f32 %v1312
    %v3233 = vcvt.s32.f32 %v1313
    %v3234 = vcvt.s32.f32 %v1314
    %v3235 = vcvt.s32.f32 %v1315
    %v3236 = vcvt.s32.f32 %v1316
    %v3237 = vcvt.s32.f32 %v1317
    %v3238 = vcvt.s32.f32 %v1318
    %v3239 = vcvt.s32.f32 %v1319
    %v3240 = vcvt.s32.f32 %v1320
    %v3241 = vcvt.s32.f32 %v1321
    %v3242 = vcvt.s32.f32 %v1322
    %v3243 = vcvt.s32.f32 %v1323
    %v3244 = vcvt.s32.f32 %v1324
    %v3245 = vcvt.s32.f32 %v1325
    %v3246 = vcvt.s32.f32 %v1326
    %v3247 = vcvt.s32.f32 %v1327
    %v3248 = vcvt.s32.f32 %v1328
    %v3249 = vcvt.s32.f32 %v1329
    %v3250 = vcvt.s32.f32 %v1330
    %v3251 = vcvt.s32.f32 %v1331
    %v3252 = vcvt.s32.f32 %v1332
    %v3253 = vcvt.s32.f32 %v1333
    %v3254 = vcvt.s32.f32 %v1334
    %v3255 = vcvt.s32.f32 %v1335
    %v3256 = vcvt.s32.f32 %v1336
    %v3257 = vcvt.s32.f32 %v1337
    %v3258 = vcvt.s32.f32 %v1338
    %v3259 = vcvt.s32.f32 %v1339
    %v3260 = vcvt.s32.f32 %v1340
    %v3261 = vcvt.s32.f32 %v1341
    %v3262 = vcvt.s32.f32 %v1342
    %v3263 = vcvt.s32.f32 %v1343
    %v3264 = vcvt.s32.f32 %v1344
    %v3265 = vcvt.s32.f32 %v1345
    %v3266 = vcvt.s32.f32 %v1346
    %v3267 = vcvt.s32.f32 %v1347
    %v3268 = vcvt.s32.f32 %v1348
    %v3269 = vcvt.s32.f32 %v1349
    %v3270 = vcvt.s32.f32 %v1350
    %v3271 = vcvt.s32.f32 %v1351
    %v3272 = vcvt.s32.f32 %v1352
    %v3273 = vcvt.s32.f32 %v1353
    %v3274 = vcvt.s32.f32 %v1354
    %v3275 = vcvt.s32.f32 %v1355
    %v3276 = vcvt.s32.f32 %v1356
    %v3277 = vcvt.s32.f32 %v1357
    %v3278 = vcvt.s32.f32 %v1358
    %v3279 = vcvt.s32.f32 %v1359
    %v3280 = vcvt.s32.f32 %v1360
    %v3281 = vcvt.s32.f32 %v1361
    %v3282 = vcvt.s32.f32 %v1362
    %v3283 = vcvt.s32.f32 %v1363
    %v3284 = vcvt.s32.f32 %v1364
    %v3285 = vcvt.s32.f32 %v1365
    %v3286 = vcvt.s32.f32 %v1366
    %v3287 = vcvt.s32.f32 %v1367
    %v3288 = vcvt.s32.f32 %v1368
    %v3289 = vcvt.s32.f32 %v1369
    %v3290 = vcvt.s32.f32 %v1370
    %v3291 = vcvt.s32.f32 %v1371
    %v3292 = vcvt.s32.f32 %v1372
    %v3293 = vcvt.s32.f32 %v1373
    %v3294 = vcvt.s32.f32 %v1374
    %v3295 = vcvt.s32.f32 %v1375
    %v3296 = vcvt.s32.f32 %v1376
    %v3297 = vcvt.s32.f32 %v1377
    %v3298 = vcvt.s32.f32 %v1378
    %v3299 = vcvt.s32.f32 %v1379
    %v3300 = vcvt.s32.f32 %v1380
    %v3301 = vcvt.s32.f32 %v1381
    %v3302 = vcvt.s32.f32 %v1382
    %v3303 = vcvt.s32.f32 %v1383
    %v3304 = vcvt.s32.f32 %v1384
    %v3305 = vcvt.s32.f32 %v1385
    %v3306 = vcvt.s32.f32 %v1386
    %v3307 = vcvt.s32.f32 %v1387
    %v3308 = vcvt.s32.f32 %v1388
    %v3309 = vcvt.s32.f32 %v1389
    %v3310 = vcvt.s32.f32 %v1390
    %v3311 = vcvt.s32.f32 %v1391
    %v3312 = vcvt.s32.f32 %v1392
    %v3313 = vcvt.s32.f32 %v1393
    %v3314 = vcvt.s32.f32 %v1394
    %v3315 = vcvt.s32.f32 %v1395
    %v3316 = vcvt.s32.f32 %v1396
    %v3317 = vcvt.s32.f32 %v1397
    %v3318 = vcvt.s32.f32 %v1398
    %v3319 = vcvt.s32.f32 %v1399
    %v3320 = vcvt.s32.f32 %v1400
    %v3321 = vcvt.s32.f32 %v1401
    %v3322 = vcvt.s32.f32 %v1402
    %v3323 = vcvt.s32.f32 %v1403
    %v3324 = vcvt.s32.f32 %v1404
    %v3325 = vcvt.s32.f32 %v1405
    %v3326 = vcvt.s32.f32 %v1406
    %v3327 = vcvt.s32.f32 %v1407
    %v3328 = vcvt.s32.f32 %v1408
    %v3329 = vcvt.s32.f32 %v1409
    %v3330 = vcvt.s32.f32 %v1410
    %v3331 = vcvt.s32.f32 %v1411
    %v3332 = vcvt.s32.f32 %v1412
    %v3333 = vcvt.s32.f32 %v1413
    %v3334 = vcvt.s32.f32 %v1414
    %v3335 = vcvt.s32.f32 %v1415
    %v3336 = vcvt.s32.f32 %v1416
    %v3337 = vcvt.s32.f32 %v1417
    %v3338 = vcvt.s32.f32 %v1418
    %v3339 = vcvt.s32.f32 %v1419
    %v3340 = vcvt.s32.f32 %v1420
    %v3341 = vcvt.s32.f32 %v1421
    %v3342 = vcvt.s32.f32 %v1422
    %v3343 = vcvt.s32.f32 %v1423
    %v3344 = vcvt.s32.f32 %v1424
    %v3345 = vcvt.s32.f32 %v1425
    %v3346 = vcvt.s32.f32 %v1426
    %v3347 = vcvt.s32.f32 %v1427
    %v3348 = vcvt.s32.f32 %v1428
    %v3349 = vcvt.s32.f32 %v1429
    %v3350 = vcvt.s32.f32 %v1430
    %v3351 = vcvt.s32.f32 %v1431
    %v3352 = vcvt.s32.f32 %v1432
    %v3353 = vcvt.s32.f32 %v1433
    %v3354 = vcvt.s32.f32 %v1434
    %v3355 = vcvt.s32.f32 %v1435
    %v3356 = vcvt.s32.f32 %v1436
    %v3357 = vcvt.s32.f32 %v1437
    %v3358 = vcvt.s32.f32 %v1438
    %v3359 = vcvt.s32.f32 %v1439
    %v3360 = vcvt.s32.f32 %v1440
    %v3361 = vcvt.s32.f32 %v1441
    %v3362 = vcvt.s32.f32 %v1442
    %v3363 = vcvt.s32.f32 %v1443
    %v3364 = vcvt.s32.f32 %v1444
    %v3365 = vcvt.s32.f32 %v1445
    %v3366 = vcvt.s32.f32 %v1446
    %v3367 = vcvt.s32.f32 %v1447
    %v3368 = vcvt.s32.f32 %v1448
    %v3369 = vcvt.s32.f32 %v1449
    %v3370 = vcvt.s32.f32 %v1450
    %v3371 = vcvt.s32.f32 %v1451
    %v3372 = vcvt.s32.f32 %v1452
    %v3373 = vcvt.s32.f32 %v1453
    %v3374 = vcvt.s32.f32 %v1454
    %v3375 = vcvt.s32.f32 %v1455
    %v3376 = vcvt.s32.f32 %v1456
    %v3377 = vcvt.s32.f32 %v1457
    %v3378 = vcvt.s32.f32 %v1458
    %v3379 = vcvt.s32.f32 %v1459
    %v3380 = vcvt.s32.f32 %v1460
    %v3381 = vcvt.s32.f32 %v1461
    %v3382 = vcvt.s32.f32 %v1462
    %v3383 = vcvt.s32.f32 %v1463
    %v3384 = vcvt.s32.f32 %v1464
    %v3385 = vcvt.s32.f32 %v1465
    %v3386 = vcvt.s32.f32 %v1466
    %v3387 = vcvt.s32.f32 %v1467
    %v3388 = vcvt.s32.f32 %v1468
    %v3389 = vcvt.s32.f32 %v1469
    %v3390 = vcvt.s32.f32 %v1470
    %v3391 = vcvt.s32.f32 %v1471
    %v3392 = vcvt.s32.f32 %v1472
    %v3393 = vcvt.s32.f32 %v1473
    %v3394 = vcvt.s32.f32 %v1474
    %v3395 = vcvt.s32.f32 %v1475
    %v3396 = vcvt.s32.f32 %v1476
    %v3397 = vcvt.s32.f32 %v1477
    %v3398 = vcvt.s32.f32 %v1478
    %v3399 = vcvt.s32.f32 %v1479
    %v3400 = vcvt.s32.f32 %v1480
    %v3401 = vcvt.s32.f32 %v1481
    %v3402 = vcvt.s32.f32 %v1482
    %v3403 = vcvt.s32.f32 %v1483
    %v3404 = vcvt.s32.f32 %v1484
    %v3405 = vcvt.s32.f32 %v1485
    %v3406 = vcvt.s32.f32 %v1486
    %v3407 = vcvt.s32.f32 %v1487
    %v3408 = vcvt.s32.f32 %v1488
    %v3409 = vcvt.s32.f32 %v1489
    %v3410 = vcvt.s32.f32 %v1490
    %v3411 = vcvt.s32.f32 %v1491
    %v3412 = vcvt.s32.f32 %v1492
    %v3413 = vcvt.s32.f32 %v1493
    %v3414 = vcvt.s32.f32 %v1494
    %v3415 = vcvt.s32.f32 %v1495
    %v3416 = vcvt.s32.f32 %v1496
    %v3417 = vcvt.s32.f32 %v1497
    %v3418 = vcvt.s32.f32 %v1498
    %v3419 = vcvt.s32.f32 %v1499
    %v3420 = vcvt.s32.f32 %v1500
    %v3421 = vcvt.s32.f32 %v1501
    %v3422 = vcvt.s32.f32 %v1502
    %v3423 = vcvt.s32.f32 %v1503
    %v3424 = vcvt.s32.f32 %v1504
    %v3425 = vcvt.s32.f32 %v1505
    %v3426 = vcvt.s32.f32 %v1506
    %v3427 = vcvt.s32.f32 %v1507
    %v3428 = vcvt.s32.f32 %v1508
    %v3429 = vcvt.s32.f32 %v1509
    %v3430 = vcvt.s32.f32 %v1510
    %v3431 = vcvt.s32.f32 %v1511
    %v3432 = vcvt.s32.f32 %v1512
    %v3433 = vcvt.s32.f32 %v1513
    %v3434 = vcvt.s32.f32 %v1514
    %v3435 = vcvt.s32.f32 %v1515
    %v3436 = vcvt.s32.f32 %v1516
    %v3437 = vcvt.s32.f32 %v1517
    %v3438 = vcvt.s32.f32 %v1518
    %v3439 = vcvt.s32.f32 %v1519
    %v3440 = vcvt.s32.f32 %v1520
    %v3441 = vcvt.s32.f32 %v1521
    %v3442 = vcvt.s32.f32 %v1522
    %v3443 = vcvt.s32.f32 %v1523
    %v3444 = vcvt.s32.f32 %v1524
    %v3445 = vcvt.s32.f32 %v1525
    %v3446 = vcvt.s32.f32 %v1526
    %v3447 = vcvt.s32.f32 %v1527
    %v3448 = vcvt.s32.f32 %v1528
    %v3449 = vcvt.s32.f32 %v1529
    %v3450 = vcvt.s32.f32 %v1530
    %v3451 = vcvt.s32.f32 %v1531
    %v3452 = vcvt.s32.f32 %v1532
    %v3453 = vcvt.s32.f32 %v1533
    %v3454 = vcvt.s32.f32 %v1534
    %v3455 = vcvt.s32.f32 %v1535
    %v3456 = vcvt.s32.f32 %v1536
    %v3457 = vcvt.s32.f32 %v1537
    %v3458 = vcvt.s32.f32 %v1538
    %v3459 = vcvt.s32.f32 %v1539
    %v3460 = vcvt.s32.f32 %v1540
    %v3461 = vcvt.s32.f32 %v1541
    %v3462 = vcvt.s32.f32 %v1542
    %v3463 = vcvt.s32.f32 %v1543
    %v3464 = vcvt.s32.f32 %v1544
    %v3465 = vcvt.s32.f32 %v1545
    %v3466 = vcvt.s32.f32 %v1546
    %v3467 = vcvt.s32.f32 %v1547
    %v3468 = vcvt.s32.f32 %v1548
    %v3469 = vcvt.s32.f32 %v1549
    %v3470 = vcvt.s32.f32 %v1550
    %v3471 = vcvt.s32.f32 %v1551
    %v3472 = vcvt.s32.f32 %v1552
    %v3473 = vcvt.s32.f32 %v1553
    %v3474 = vcvt.s32.f32 %v1554
    %v3475 = vcvt.s32.f32 %v1555
    %v3476 = vcvt.s32.f32 %v1556
    %v3477 = vcvt.s32.f32 %v1557
    %v3478 = vcvt.s32.f32 %v1558
    %v3479 = vcvt.s32.f32 %v1559
    %v3480 = vcvt.s32.f32 %v1560
    %v3481 = vcvt.s32.f32 %v1561
    %v3482 = vcvt.s32.f32 %v1562
    %v3483 = vcvt.s32.f32 %v1563
    %v3484 = vcvt.s32.f32 %v1564
    %v3485 = vcvt.s32.f32 %v1565
    %v3486 = vcvt.s32.f32 %v1566
    %v3487 = vcvt.s32.f32 %v1567
    %v3488 = vcvt.s32.f32 %v1568
    %v3489 = vcvt.s32.f32 %v1569
    %v3490 = vcvt.s32.f32 %v1570
    %v3491 = vcvt.s32.f32 %v1571
    %v3492 = vcvt.s32.f32 %v1572
    %v3493 = vcvt.s32.f32 %v1573
    %v3494 = vcvt.s32.f32 %v1574
    %v3495 = vcvt.s32.f32 %v1575
    %v3496 = vcvt.s32.f32 %v1576
    %v3497 = vcvt.s32.f32 %v1577
    %v3498 = vcvt.s32.f32 %v1578
    %v3499 = vcvt.s32.f32 %v1579
    %v3500 = vcvt.s32.f32 %v1580
    %v3501 = vcvt.s32.f32 %v1581
    %v3502 = vcvt.s32.f32 %v1582
    %v3503 = vcvt.s32.f32 %v1583
    %v3504 = vcvt.s32.f32 %v1584
    %v3505 = vcvt.s32.f32 %v1585
    %v3506 = vcvt.s32.f32 %v1586
    %v3507 = vcvt.s32.f32 %v1587
    %v3508 = vcvt.s32.f32 %v1588
    %v3509 = vcvt.s32.f32 %v1589
    %v3510 = vcvt.s32.f32 %v1590
    %v3511 = vcvt.s32.f32 %v1591
    %v3512 = vcvt.s32.f32 %v1592
    %v3513 = vcvt.s32.f32 %v1593
    %v3514 = vcvt.s32.f32 %v1594
    %v3515 = vcvt.s32.f32 %v1595
    %v3516 = vcvt.s32.f32 %v1596
    %v3517 = vcvt.s32.f32 %v1597
    %v3518 = vcvt.s32.f32 %v1598
    %v3519 = vcvt.s32.f32 %v1599
    %v3520 = vcvt.s32.f32 %v1600
    %v3521 = vcvt.s32.f32 %v1601
    %v3522 = vcvt.s32.f32 %v1602
    %v3523 = vcvt.s32.f32 %v1603
    %v3524 = vcvt.s32.f32 %v1604
    %v3525 = vcvt.s32.f32 %v1605
    %v3526 = vcvt.s32.f32 %v1606
    %v3527 = vcvt.s32.f32 %v1607
    %v3528 = vcvt.s32.f32 %v1608
    %v3529 = vcvt.s32.f32 %v1609
    %v3530 = vcvt.s32.f32 %v1610
    %v3531 = vcvt.s32.f32 %v1611
    %v3532 = vcvt.s32.f32 %v1612
    %v3533 = vcvt.s32.f32 %v1613
    %v3534 = vcvt.s32.f32 %v1614
    %v3535 = vcvt.s32.f32 %v1615
    %v3536 = vcvt.s32.f32 %v1616
    %v3537 = vcvt.s32.f32 %v1617
    %v3538 = vcvt.s32.f32 %v1618
    %v3539 = vcvt.s32.f32 %v1619
    %v3540 = vcvt.s32.f32 %v1620
    %v3541 = vcvt.s32.f32 %v1621
    %v3542 = vcvt.s32.f32 %v1622
    %v3543 = vcvt.s32.f32 %v1623
    %v3544 = vcvt.s32.f32 %v1624
    %v3545 = vcvt.s32.f32 %v1625
    %v3546 = vcvt.s32.f32 %v1626
    %v3547 = vcvt.s32.f32 %v1627
    %v3548 = vcvt.s32.f32 %v1628
    %v3549 = vcvt.s32.f32 %v1629
    %v3550 = vcvt.s32.f32 %v1630
    %v3551 = vcvt.s32.f32 %v1631
    %v3552 = vcvt.s32.f32 %v1632
    %v3553 = vcvt.s32.f32 %v1633
    %v3554 = vcvt.s32.f32 %v1634
    %v3555 = vcvt.s32.f32 %v1635
    %v3556 = vcvt.s32.f32 %v1636
    %v3557 = vcvt.s32.f32 %v1637
    %v3558 = vcvt.s32.f32 %v1638
    %v3559 = vcvt.s32.f32 %v1639
    %v3560 = vcvt.s32.f32 %v1640
    %v3561 = vcvt.s32.f32 %v1641
    %v3562 = vcvt.s32.f32 %v1642
    %v3563 = vcvt.s32.f32 %v1643
    %v3564 = vcvt.s32.f32 %v1644
    %v3565 = vcvt.s32.f32 %v1645
    %v3566 = vcvt.s32.f32 %v1646
    %v3567 = vcvt.s32.f32 %v1647
    %v3568 = vcvt.s32.f32 %v1648
    %v3569 = vcvt.s32.f32 %v1649
    %v3570 = vcvt.s32.f32 %v1650
    %v3571 = vcvt.s32.f32 %v1651
    %v3572 = vcvt.s32.f32 %v1652
    %v3573 = vcvt.s32.f32 %v1653
    %v3574 = vcvt.s32.f32 %v1654
    %v3575 = vcvt.s32.f32 %v1655
    %v3576 = vcvt.s32.f32 %v1656
    %v3577 = vcvt.s32.f32 %v1657
    %v3578 = vcvt.s32.f32 %v1658
    %v3579 = vcvt.s32.f32 %v1659
    %v3580 = vcvt.s32.f32 %v1660
    %v3581 = vcvt.s32.f32 %v1661
    %v3582 = vcvt.s32.f32 %v1662
    %v3583 = vcvt.s32.f32 %v1663
    %v3584 = vcvt.s32.f32 %v1664
    %v3585 = vcvt.s32.f32 %v1665
    %v3586 = vcvt.s32.f32 %v1666
    %v3587 = vcvt.s32.f32 %v1667
    %v3588 = vcvt.s32.f32 %v1668
    %v3589 = vcvt.s32.f32 %v1669
    %v3590 = vcvt.s32.f32 %v1670
    %v3591 = vcvt.s32.f32 %v1671
    %v3592 = vcvt.s32.f32 %v1672
    %v3593 = vcvt.s32.f32 %v1673
    %v3594 = vcvt.s32.f32 %v1674
    %v3595 = vcvt.s32.f32 %v1675
    %v3596 = vcvt.s32.f32 %v1676
    %v3597 = vcvt.s32.f32 %v1677
    %v3598 = vcvt.s32.f32 %v1678
    %v3599 = vcvt.s32.f32 %v1679
    %v3600 = vcvt.s32.f32 %v1680
    %v3601 = vcvt.s32.f32 %v1681
    %v3602 = vcvt.s32.f32 %v1682
    %v3603 = vcvt.s32.f32 %v1683
    %v3604 = vcvt.s32.f32 %v1684
    %v3605 = vcvt.s32.f32 %v1685
    %v3606 = vcvt.s32.f32 %v1686
    %v3607 = vcvt.s32.f32 %v1687
    %v3608 = vcvt.s32.f32 %v1688
    %v3609 = vcvt.s32.f32 %v1689
    %v3610 = vcvt.s32.f32 %v1690
    %v3611 = vcvt.s32.f32 %v1691
    %v3612 = vcvt.s32.f32 %v1692
    %v3613 = vcvt.s32.f32 %v1693
    %v3614 = vcvt.s32.f32 %v1694
    %v3615 = vcvt.s32.f32 %v1695
    %v3616 = vcvt.s32.f32 %v1696
    %v3617 = vcvt.s32.f32 %v1697
    %v3618 = vcvt.s32.f32 %v1698
    %v3619 = vcvt.s32.f32 %v1699
    %v3620 = vcvt.s32.f32 %v1700
    %v3621 = vcvt.s32.f32 %v1701
    %v3622 = vcvt.s32.f32 %v1702
    %v3623 = vcvt.s32.f32 %v1703
    %v3624 = vcvt.s32.f32 %v1704
    %v3625 = vcvt.s32.f32 %v1705
    %v3626 = vcvt.s32.f32 %v1706
    %v3627 = vcvt.s32.f32 %v1707
    %v3628 = vcvt.s32.f32 %v1708
    %v3629 = vcvt.s32.f32 %v1709
    %v3630 = vcvt.s32.f32 %v1710
    %v3631 = vcvt.s32.f32 %v1711
    %v3632 = vcvt.s32.f32 %v1712
    %v3633 = vcvt.s32.f32 %v1713
    %v3634 = vcvt.s32.f32 %v1714
    %v3635 = vcvt.s32.f32 %v1715
    %v3636 = vcvt.s32.f32 %v1716
    %v3637 = vcvt.s32.f32 %v1717
    %v3638 = vcvt.s32.f32 %v1718
    %v3639 = vcvt.s32.f32 %v1719
    %v3640 = vcvt.s32.f32 %v1720
    %v3641 = vcvt.s32.f32 %v1721
    %v3642 = vcvt.s32.f32 %v1722
    %v3643 = vcvt.s32.f32 %v1723
    %v3644 = vcvt.s32.f32 %v1724
    %v3645 = vcvt.s32.f32 %v1725
    %v3646 = vcvt.s32.f32 %v1726
    %v3647 = vcvt.s32.f32 %v1727
    %v3648 = vcvt.s32.f32 %v1728
    %v3649 = vcvt.s32.f32 %v1729
    %v3650 = vcvt.s32.f32 %v1730
    %v3651 = vcvt.s32.f32 %v1731
    %v3652 = vcvt.s32.f32 %v1732
    %v3653 = vcvt.s32.f32 %v1733
    %v3654 = vcvt.s32.f32 %v1734
    %v3655 = vcvt.s32.f32 %v1735
    %v3656 = vcvt.s32.f32 %v1736
    %v3657 = vcvt.s32.f32 %v1737
    %v3658 = vcvt.s32.f32 %v1738
    %v3659 = vcvt.s32.f32 %v1739
    %v3660 = vcvt.s32.f32 %v1740
    %v3661 = vcvt.s32.f32 %v1741
    %v3662 = vcvt.s32.f32 %v1742
    %v3663 = vcvt.s32.f32 %v1743
    %v3664 = vcvt.s32.f32 %v1744
    %v3665 = vcvt.s32.f32 %v1745
    %v3666 = vcvt.s32.f32 %v1746
    %v3667 = vcvt.s32.f32 %v1747
    %v3668 = vcvt.s32.f32 %v1748
    %v3669 = vcvt.s32.f32 %v1749
    %v3670 = vcvt.s32.f32 %v1750
    %v3671 = vcvt.s32.f32 %v1751
    %v3672 = vcvt.s32.f32 %v1752
    %v3673 = vcvt.s32.f32 %v1753
    %v3674 = vcvt.s32.f32 %v1754
    %v3675 = vcvt.s32.f32 %v1755
    %v3676 = vcvt.s32.f32 %v1756
    %v3677 = vcvt.s32.f32 %v1757
    %v3678 = vcvt.s32.f32 %v1758
    %v3679 = vcvt.s32.f32 %v1759
    %v3680 = vcvt.s32.f32 %v1760
    %v3681 = vcvt.s32.f32 %v1761
    %v3682 = vcvt.s32.f32 %v1762
    %v3683 = vcvt.s32.f32 %v1763
    %v3684 = vcvt.s32.f32 %v1764
    %v3685 = vcvt.s32.f32 %v1765
    %v3686 = vcvt.s32.f32 %v1766
    %v3687 = vcvt.s32.f32 %v1767
    %v3688 = vcvt.s32.f32 %v1768
    %v3689 = vcvt.s32.f32 %v1769
    %v3690 = vcvt.s32.f32 %v1770
    %v3691 = vcvt.s32.f32 %v1771
    %v3692 = vcvt.s32.f32 %v1772
    %v3693 = vcvt.s32.f32 %v1773
    %v3694 = vcvt.s32.f32 %v1774
    %v3695 = vcvt.s32.f32 %v1775
    %v3696 = vcvt.s32.f32 %v1776
    %v3697 = vcvt.s32.f32 %v1777
    %v3698 = vcvt.s32.f32 %v1778
    %v3699 = vcvt.s32.f32 %v1779
    %v3700 = vcvt.s32.f32 %v1780
    %v3701 = vcvt.s32.f32 %v1781
    %v3702 = vcvt.s32.f32 %v1782
    %v3703 = vcvt.s32.f32 %v1783
    %v3704 = vcvt.s32.f32 %v1784
    %v3705 = vcvt.s32.f32 %v1785
    %v3706 = vcvt.s32.f32 %v1786
    %v3707 = vcvt.s32.f32 %v1787
    %v3708 = vcvt.s32.f32 %v1788
    %v3709 = vcvt.s32.f32 %v1789
    %v3710 = vcvt.s32.f32 %v1790
    %v3711 = vcvt.s32.f32 %v1791
    %v3712 = vcvt.s32.f32 %v1792
    %v3713 = vcvt.s32.f32 %v1793
    %v3714 = vcvt.s32.f32 %v1794
    %v3715 = vcvt.s32.f32 %v1795
    %v3716 = vcvt.s32.f32 %v1796
    %v3717 = vcvt.s32.f32 %v1797
    %v3718 = vcvt.s32.f32 %v1798
    %v3719 = vcvt.s32.f32 %v1799
    %v3720 = vcvt.s32.f32 %v1800
    %v3721 = vcvt.s32.f32 %v1801
    %v3722 = vcvt.s32.f32 %v1802
    %v3723 = vcvt.s32.f32 %v1803
    %v3724 = vcvt.s32.f32 %v1804
    %v3725 = vcvt.s32.f32 %v1805
    %v3726 = vcvt.s32.f32 %v1806
    %v3727 = vcvt.s32.f32 %v1807
    %v3728 = vcvt.s32.f32 %v1808
    %v3729 = vcvt.s32.f32 %v1809
    %v3730 = vcvt.s32.f32 %v1810
    %v3731 = vcvt.s32.f32 %v1811
    %v3732 = vcvt.s32.f32 %v1812
    %v3733 = vcvt.s32.f32 %v1813
    %v3734 = vcvt.s32.f32 %v1814
    %v3735 = vcvt.s32.f32 %v1815
    %v3736 = vcvt.s32.f32 %v1816
    %v3737 = vcvt.s32.f32 %v1817
    %v3738 = vcvt.s32.f32 %v1818
    %v3739 = vcvt.s32.f32 %v1819
    %v3740 = vcvt.s32.f32 %v1820
    %v3741 = vcvt.s32.f32 %v1821
    %v3742 = vcvt.s32.f32 %v1822
    %v3743 = vcvt.s32.f32 %v1823
    %v3744 = vcvt.s32.f32 %v1824
    %v3745 = vcvt.s32.f32 %v1825
    %v3746 = vcvt.s32.f32 %v1826
    %v3747 = vcvt.s32.f32 %v1827
    %v3748 = vcvt.s32.f32 %v1828
    %v3749 = vcvt.s32.f32 %v1829
    %v3750 = vcvt.s32.f32 %v1830
    %v3751 = vcvt.s32.f32 %v1831
    %v3752 = vcvt.s32.f32 %v1832
    %v3753 = vcvt.s32.f32 %v1833
    %v3754 = vcvt.s32.f32 %v1834
    %v3755 = vcvt.s32.f32 %v1835
    %v3756 = vcvt.s32.f32 %v1836
    %v3757 = vcvt.s32.f32 %v1837
    %v3758 = vcvt.s32.f32 %v1838
    %v3759 = vcvt.s32.f32 %v1839
    %v3760 = vcvt.s32.f32 %v1840
    %v3761 = vcvt.s32.f32 %v1841
    %v3762 = vcvt.s32.f32 %v1842
    %v3763 = vcvt.s32.f32 %v1843
    %v3764 = vcvt.s32.f32 %v1844
    %v3765 = vcvt.s32.f32 %v1845
    %v3766 = vcvt.s32.f32 %v1846
    %v3767 = vcvt.s32.f32 %v1847
    %v3768 = vcvt.s32.f32 %v1848
    %v3769 = vcvt.s32.f32 %v1849
    %v3770 = vcvt.s32.f32 %v1850
    %v3771 = vcvt.s32.f32 %v1851
    %v3772 = vcvt.s32.f32 %v1852
    %v3773 = vcvt.s32.f32 %v1853
    %v3774 = vcvt.s32.f32 %v1854
    %v3775 = vcvt.s32.f32 %v1855
    %v3776 = vcvt.s32.f32 %v1856
    %v3777 = vcvt.s32.f32 %v1857
    %v3778 = vcvt.s32.f32 %v1858
    %v3779 = vcvt.s32.f32 %v1859
    %v3780 = vcvt.s32.f32 %v1860
    %v3781 = vcvt.s32.f32 %v1861
    %v3782 = vcvt.s32.f32 %v1862
    %v3783 = vcvt.s32.f32 %v1863
    %v3784 = vcvt.s32.f32 %v1864
    %v3785 = vcvt.s32.f32 %v1865
    %v3786 = vcvt.s32.f32 %v1866
    %v3787 = vcvt.s32.f32 %v1867
    %v3788 = vcvt.s32.f32 %v1868
    %v3789 = vcvt.s32.f32 %v1869
    %v3790 = vcvt.s32.f32 %v1870
    %v3791 = vcvt.s32.f32 %v1871
    %v3792 = vcvt.s32.f32 %v1872
    %v3793 = vcvt.s32.f32 %v1873
    %v3794 = vcvt.s32.f32 %v1874
    %v3795 = vcvt.s32.f32 %v1875
    %v3796 = vcvt.s32.f32 %v1876
    %v3797 = vcvt.s32.f32 %v1877
    %v3798 = vcvt.s32.f32 %v1878
    %v3799 = vcvt.s32.f32 %v1879
    %v3800 = vcvt.s32.f32 %v1880
    %v3801 = vcvt.s32.f32 %v1881
    %v3802 = vcvt.s32.f32 %v1882
    %v3803 = vcvt.s32.f32 %v1883
    %v3804 = vcvt.s32.f32 %v1884
    %v3805 = vcvt.s32.f32 %v1885
    %v3806 = vcvt.s32.f32 %v1886
    %v3807 = vcvt.s32.f32 %v1887
    %v3808 = vcvt.s32.f32 %v1888
    %v3809 = vcvt.s32.f32 %v1889
    %v3810 = vcvt.s32.f32 %v1890
    %v3811 = vcvt.s32.f32 %v1891
    %v3812 = vcvt.s32.f32 %v1892
    %v3813 = vcvt.s32.f32 %v1893
    %v3814 = vcvt.s32.f32 %v1894
    %v3815 = vcvt.s32.f32 %v1895
    %v3816 = vcvt.s32.f32 %v1896
    %v3817 = vcvt.s32.f32 %v1897
    %v3818 = vcvt.s32.f32 %v1898
    %v3819 = vcvt.s32.f32 %v1899
    %v3820 = vcvt.s32.f32 %v1900
    %v3821 = vcvt.s32.f32 %v1901
    %v3822 = vcvt.s32.f32 %v1902
    %v3823 = vcvt.s32.f32 %v1903
    %v3824 = vcvt.s32.f32 %v1904
    %v3825 = vcvt.s32.f32 %v1905
    %v3826 = vcvt.s32.f32 %v1906
    %v3827 = vcvt.s32.f32 %v1907
    %v3828 = vcvt.s32.f32 %v1908
    %v3829 = vcvt.s32.f32 %v1909
    %v3830 = vcvt.s32.f32 %v1910
    %v3831 = vcvt.s32.f32 %v1911
    %v3832 = vcvt.s32.f32 %v1912
    %v3833 = vcvt.s32.f32 %v1913
    %v3834 = vcvt.s32.f32 %v1914
    %v3835 = vcvt.s32.f32 %v1915
    %v3836 = vcvt.s32.f32 %v1916
    %v3837 = vcvt.s32.f32 %v1917
    %v3838 = vcvt.s32.f32 %v1918
    %v3839 = vcvt.s32.f32 %v1919
    %v3840 = vcvt.s32.f32 %v1920
    %v3841 = vcvt.s32.f32 %v1921
    %v3842 = vcvt.s32.f32 %v1922
    %v3843 = vcvt.s32.f32 %v1923
    %v3844 = vcvt.s32.f32 %v1924
    %v3845 = vcvt.s32.f32 %v1925
    %v3846 = vcvt.s32.f32 %v1926
    %v3847 = vcvt.s32.f32 %v1927
    %v3848 = vcvt.s32.f32 %v1928
    %v3849 = vcvt.s32.f32 %v1929
    %v3850 = vcvt.s32.f32 %v1930
    %v3851 = vcvt.s32.f32 %v1931
    %v3852 = vcvt.s32.f32 %v1932
    %v3853 = vcvt.s32.f32 %v1933
    %v3854 = vcvt.s32.f32 %v1934
    %v3855 = vcvt.s32.f32 %v1935
    %v3856 = vcvt.s32.f32 %v1936
    %v3857 = vcvt.s32.f32 %v1937
    %v3858 = vcvt.s32.f32 %v1938
    %v3859 = vcvt.s32.f32 %v1939
    %v3860 = vcvt.s32.f32 %v1940
    %v3861 = vcvt.s32.f32 %v1941
    %v3862 = vcvt.s32.f32 %v1942
    %v3863 = vcvt.s32.f32 %v1943
    %v3864 = vcvt.s32.f32 %v1944
    %v3865 = vcvt.s32.f32 %v1945
    %v3866 = vcvt.s32.f32 %v1946
    %v3867 = vcvt.s32.f32 %v1947
    %v3868 = vcvt.s32.f32 %v1948
    %v3869 = vcvt.s32.f32 %v1949
    %v3870 = vcvt.s32.f32 %v1950
    %v3871 = vcvt.s32.f32 %v1951
    %v3872 = vcvt.s32.f32 %v1952
    %v3873 = vcvt.s32.f32 %v1953
    %v3874 = vcvt.s32.f32 %v1954
    %v3875 = vcvt.s32.f32 %v1955
    %v3876 = vcvt.s32.f32 %v1956
    %v3877 = vcvt.s32.f32 %v1957
    %v3878 = vcvt.s32.f32 %v1958
    %v3879 = vcvt.s32.f32 %v1959
    %v3880 = vcvt.s32.f32 %v1960
    %v3881 = vcvt.s32.f32 %v1961
    %v3882 = vcvt.s32.f32 %v1962
    %v3883 = vcvt.s32.f32 %v1963
    %v3884 = vcvt.s32.f32 %v1964
    %v3885 = vcvt.s32.f32 %v1965
    %v3886 = vcvt.s32.f32 %v1966
    %v3887 = vcvt.s32.f32 %v1967
    %v3888 = vcvt.s32.f32 %v1968
    %v3889 = vcvt.s32.f32 %v1969
    %v3890 = vcvt.s32.f32 %v1970
    %v3891 = vcvt.s32.f32 %v1971
    %v3892 = vcvt.s32.f32 %v1972
    %v3893 = vcvt.s32.f32 %v1973
    %v3894 = vcvt.s32.f32 %v1974
    %v3895 = vcvt.s32.f32 %v1975
    %v3896 = vcvt.s32.f32 %v1976
    %v3897 = vcvt.s32.f32 %v1977
    %v3898 = vcvt.s32.f32 %v1978
    %v3899 = vcvt.s32.f32 %v1979
    %v3900 = vcvt.s32.f32 %v1980
    %v3901 = vcvt.s32.f32 %v1981
    %v3902 = vcvt.s32.f32 %v1982
    %v3903 = vcvt.s32.f32 %v1983
    %v3904 = vcvt.s32.f32 %v1984
    %v3905 = vcvt.s32.f32 %v1985
    %v3906 = vcvt.s32.f32 %v1986
    %v3907 = vcvt.s32.f32 %v1987
    %v3908 = vcvt.s32.f32 %v1988
    %v3909 = vcvt.s32.f32 %v1989
    %v3910 = vcvt.s32.f32 %v1990
    %v3911 = vcvt.s32.f32 %v1991
    %v3912 = vcvt.s32.f32 %v1992
    %v3913 = vcvt.s32.f32 %v1993
    %v3914 = vcvt.s32.f32 %v1994
    %v3915 = vcvt.s32.f32 %v1995
    %v3916 = vcvt.s32.f32 %v1996
    %v3917 = vcvt.s32.f32 %v1997
    %v3918 = vcvt.s32.f32 %v1998
    %v3919 = vcvt.s32.f32 %v1999
    %v3920 = vcvt.s32.f32 %v2000
    %v3921 = vcvt.s32.f32 %v2001
    %v3922 = vcvt.s32.f32 %v2002
    %v3923 = vcvt.s32.f32 %v2003
    %v3924 = vcvt.s32.f32 %v2004
    %v3925 = vcvt.s32.f32 %v2005
    %v3926 = vcvt.s32.f32 %v2006
    %v3927 = vcvt.s32.f32 %v2007
    %v3928 = vcvt.s32.f32 %v2008
    %v3929 = vcvt.s32.f32 %v2009
    %v3930 = vcvt.s32.f32 %v2010
    %v3931 = vcvt.s32.f32 %v2011
    %v3932 = vcvt.s32.f32 %v2012
    %v3933 = vcvt.s32.f32 %v2013
    %v3934 = vcvt.s32.f32 %v2014
    %v3935 = vcvt.s32.f32 %v2015
    %v3936 = vcvt.s32.f32 %v2016
    %v3937 = vcvt.s32.f32 %v2017
    %v3938 = vcvt.s32.f32 %v2018
    %v3939 = vcvt.s32.f32 %v2019
    %v3940 = vcvt.s32.f32 %v2020
    %v3941 = vcvt.s32.f32 %v2021
    %v3942 = vcvt.s32.f32 %v2022
    %v3943 = vcvt.s32.f32 %v2023
    %v3944 = vcvt.s32.f32 %v2024
    %v3945 = vcvt.s32.f32 %v2025
    %v3946 = vcvt.s32.f32 %v2026
    %v3947 = vcvt.s32.f32 %v2027
    %v3948 = vcvt.s32.f32 %v2028
    %v3949 = vcvt.s32.f32 %v2029
    %v3950 = vcvt.s32.f32 %v2030
    %v3951 = vcvt.s32.f32 %v2031
    %v3952 = vcvt.s32.f32 %v2032
    %v3953 = vcvt.s32.f32 %v2033
    %v3954 = vcvt.s32.f32 %v2034
    %v3955 = vcvt.s32.f32 %v2035
    %v3956 = vcvt.s32.f32 %v2036
    %v3957 = vcvt.s32.f32 %v2037
    %v3958 = vcvt.s32.f32 %v2038
    %v3959 = vcvt.s32.f32 %v2039
    %v3960 = vcvt.s32.f32 %v2040
    %v3961 = vcvt.s32.f32 %v2041
    %v3962 = vcvt.s32.f32 %v2042
    %v3963 = vcvt.s32.f32 %v2043
    %v3964 = vcvt.s32.f32 %v2044
    %v3965 = vcvt.s32.f32 %v2045
    %v3966 = vcvt.s32.f32 %v2046
    %v3967 = vcvt.s32.f32 %v2047
    %v3968 = vcvt.s32.f32 %v2048
    %v3969 = vcvt.s32.f32 %v2049
    %v3970 = vcvt.s32.f32 %v2050
    %v3971 = vcvt.s32.f32 %v2051
    %v3972 = vcvt.s32.f32 %v2052
    %v3973 = vcvt.s32.f32 %v2053
    %v3974 = vcvt.s32.f32 %v2054
    %v3975 = vcvt.s32.f32 %v2055
    %v3976 = vcvt.s32.f32 %v2056
    %v3977 = vcvt.s32.f32 %v2057
    %v3978 = vcvt.s32.f32 %v2058
    %v3979 = vcvt.s32.f32 %v2059
    %v3980 = vcvt.s32.f32 %v2060
    %v3981 = vcvt.s32.f32 %v2061
    %v3982 = vcvt.s32.f32 %v2062
    %v3983 = vcvt.s32.f32 %v2063
    %v3984 = vcvt.s32.f32 %v2064
    %v3985 = vcvt.s32.f32 %v2065
    %v3986 = vcvt.s32.f32 %v2066
    %v3987 = vcvt.s32.f32 %v2067
    %v3988 = vcvt.s32.f32 %v2068
    %v3989 = vcvt.s32.f32 %v2069
    %v3990 = vcvt.s32.f32 %v2070
    %v3991 = vcvt.s32.f32 %v2071
    %v3992 = vcvt.s32.f32 %v2072
    %v3993 = vcvt.s32.f32 %v2073
    %v3994 = vcvt.s32.f32 %v2074
    %v3995 = vcvt.s32.f32 %v2075
    %v3996 = vcvt.s32.f32 %v2076
    %v3997 = vcvt.s32.f32 %v2077
    %v3998 = vcvt.s32.f32 %v2078
    %v3999 = vcvt.s32.f32 %v2079
    %v4000 = vcvt.s32.f32 %v2080
    %v4001 = vcvt.s32.f32 %v2081
    %v4002 = vcvt.s32.f32 %v2082
    %v4003 = vcvt.s32.f32 %v2083
    %v4004 = vcvt.s32.f32 %v2084
    %v4005 = vcvt.s32.f32 %v2085
    %v4006 = vcvt.s32.f32 %v2086
    %v4007 = vcvt.s32.f32 %v2087
    %v4008 = vcvt.s32.f32 %v2088
    %v4009 = vcvt.s32.f32 %v2089
    %v4010 = vcvt.s32.f32 %v2090
    %v4011 = vcvt.s32.f32 %v2091
    %v4012 = vcvt.s32.f32 %v2092
    %v4013 = vcvt.s32.f32 %v2093
    %v4014 = vcvt.s32.f32 %v2094
    %v4015 = vcvt.s32.f32 %v2095
    %v4016 = vcvt.s32.f32 %v2096
    %v4017 = vcvt.s32.f32 %v2097
    %v4018 = vcvt.s32.f32 %v2098
    %v4019 = vcvt.s32.f32 %v2099
    %v4020 = vcvt.s32.f32 %v2100
    %v4021 = vcvt.s32.f32 %v2101
    %v4022 = vcvt.s32.f32 %v2102
    %v4023 = vcvt.s32.f32 %v2103
    %v4024 = vcvt.s32.f32 %v2104
    %v4025 = vcvt.s32.f32 %v2105
    %v4026 = vcvt.s32.f32 %v2106
    %v4027 = vcvt.s32.f32 %v2107
    %v4028 = vcvt.s32.f32 %v2108
    %v4029 = vcvt.s32.f32 %v2109
    %v4030 = vcvt.s32.f32 %v2110
    %v4031 = vcvt.s32.f32 %v2111
    %v4032 = vcvt.s32.f32 %v2112
    %v4033 = vcvt.s32.f32 %v2113
    %v4034 = vcvt.s32.f32 %v2114
    %v4035 = vcvt.s32.f32 %v2115
    %v4036 = vcvt.s32.f32 %v2116
    %v4037 = vcvt.s32.f32 %v2117
    %v4038 = vcvt.s32.f32 %v2118
    %v4039 = vcvt.s32.f32 %v2119
    %v4040 = vcvt.s32.f32 %v2120
    %v4041 = vcvt.s32.f32 %v2121
    %v4042 = vcvt.s32.f32 %v2122
    %v4043 = vcvt.s32.f32 %v2123
    %v4044 = vcvt.s32.f32 %v2124
    %v4045 = vcvt.s32.f32 %v2125
    %v4046 = vcvt.s32.f32 %v2126
    %v4047 = vcvt.s32.f32 %v2127
    %v4048 = vcvt.s32.f32 %v2128
    %v4049 = vcvt.s32.f32 %v2129
    %v4050 = vcvt.s32.f32 %v2130
    %v4051 = vcvt.s32.f32 %v2131
    %v4052 = vcvt.s32.f32 %v2132
    %v4053 = vcvt.s32.f32 %v2133
    %v4054 = vcvt.s32.f32 %v2134
    %v4055 = vcvt.s32.f32 %v2135
    %v4056 = vcvt.s32.f32 %v2136
    %v4057 = vcvt.s32.f32 %v2137
    %v4058 = vcvt.s32.f32 %v2138
    %v4059 = vcvt.s32.f32 %v2139
    %v4060 = vcvt.s32.f32 %v2140
    %v4061 = vcvt.s32.f32 %v2141
    %v4062 = vcvt.s32.f32 %v2142
    %v4063 = vcvt.s32.f32 %v2143
    %v4064 = vcvt.s32.f32 %v2144
    %v4065 = vcvt.s32.f32 %v2145
    %v4066 = vcvt.s32.f32 %v2146
    %v4067 = vcvt.s32.f32 %v2147
    %v4068 = vcvt.s32.f32 %v2148
    %v4069 = vcvt.s32.f32 %v2149
    %v4070 = vcvt.s32.f32 %v2150
    %v4071 = vcvt.s32.f32 %v2151
    %v4072 = vcvt.s32.f32 %v2152
    %v4073 = vcvt.s32.f32 %v2153
    %v4074 = vcvt.s32.f32 %v2154
    %v4075 = vcvt.s32.f32 %v2155
    %v4076 = vcvt.s32.f32 %v2156
    %v4077 = vcvt.s32.f32 %v2157
    %v4078 = vcvt.s32.f32 %v2158
    %v4079 = vcvt.s32.f32 %v2159
    %v4080 = vcvt.s32.f32 %v2160
    %v4081 = vcvt.s32.f32 %v2161
    %v4082 = vcvt.s32.f32 %v2162
    %v4083 = vcvt.s32.f32 %v2163
    %v4084 = vcvt.s32.f32 %v2164
    %v4085 = vcvt.s32.f32 %v2165
    %v4086 = vcvt.s32.f32 %v2166
    %v4087 = vcvt.s32.f32 %v2167
    %v4088 = vcvt.s32.f32 %v2168
    %v4089 = vcvt.s32.f32 %v2169
    %v4090 = vcvt.s32.f32 %v2170
    %v4091 = vcvt.s32.f32 %v2171
    %v4092 = vcvt.s32.f32 %v2172
    %v4093 = vcvt.s32.f32 %v2173
    %v4094 = vcvt.s32.f32 %v2174
    %v4095 = vcvt.s32.f32 %v2175
    %v4096 = vcvt.s32.f32 %v2176
    %v4097 = vcvt.s32.f32 %v2177
    %v4098 = vcvt.s32.f32 %v2178
    %v4099 = vcvt.s32.f32 %v2179
    %v4100 = vcvt.s32.f32 %v2180
    %v4101 = vcvt.s32.f32 %v2181
    %v4102 = vcvt.s32.f32 %v2182
    %v4103 = vcvt.s32.f32 %v2183
    %v4104 = vcvt.s32.f32 %v2184
    %v4105 = vcvt.s32.f32 %v2185
    %v4106 = vcvt.s32.f32 %v2186
    %v4107 = vcvt.s32.f32 %v2187
    %v4108 = vcvt.s32.f32 %v2188
    %v4109 = vcvt.s32.f32 %v2189
    %v4110 = vcvt.s32.f32 %v2190
    %v4111 = vcvt.s32.f32 %v2191
    %v4112 = vcvt.s32.f32 %v2192
    %v4113 = vcvt.s32.f32 %v2193
    %v4114 = vcvt.s32.f32 %v2194
    %v4115 = vcvt.s32.f32 %v2195
    %v4116 = vcvt.s32.f32 %v2196
    %v4117 = vcvt.s32.f32 %v2197
    %v4118 = vcvt.s32.f32 %v2198
    %v4119 = vcvt.s32.f32 %v2199
    %v4120 = vcvt.s32.f32 %v2200
    %v4121 = vcvt.s32.f32 %v2201
    %v4122 = vcvt.s32.f32 %v2202
    %v4123 = vcvt.s32.f32 %v2203
    %v4124 = vcvt.s32.f32 %v2204
    %v4125 = vcvt.s32.f32 %v2205
    %v4126 = vcvt.s32.f32 %v2206
    %v4127 = vcvt.s32.f32 %v2207
    %v4128 = vcvt.s32.f32 %v2208
    %v4129 = vcvt.s32.f32 %v2209
    %v4130 = vcvt.s32.f32 %v2210
    %v4131 = vcvt.s32.f32 %v2211
    %v4132 = vcvt.s32.f32 %v2212
    %v4133 = vcvt.s32.f32 %v2213
    %v4134 = vcvt.s32.f32 %v2214
    %v4135 = vcvt.s32.f32 %v2215
    %v4136 = vcvt.s32.f32 %v2216
    %v4137 = vcvt.s32.f32 %v2217
    %v4138 = vcvt.s32.f32 %v2218
    %v4139 = vcvt.s32.f32 %v2219
    %v4140 = vcvt.s32.f32 %v2220
    %v4141 = vcvt.s32.f32 %v2221
    %v4142 = vcvt.s32.f32 %v2222
    %v4143 = vcvt.s32.f32 %v2223
    %v4144 = vcvt.s32.f32 %v2224
    %v4145 = vcvt.s32.f32 %v2225
    %v4146 = vcvt.s32.f32 %v2226
    %v4147 = vcvt.s32.f32 %v2227
    %v4148 = vcvt.s32.f32 %v2228
    %v4149 = vcvt.s32.f32 %v2229
    %v4150 = vcvt.s32.f32 %v2230
    %v4151 = vcvt.s32.f32 %v2231
    %v4152 = vcvt.s32.f32 %v2232
    %v4153 = vcvt.s32.f32 %v2233
    %v4154 = vcvt.s32.f32 %v2234
    %v4155 = vcvt.s32.f32 %v2235
    %v4156 = vcvt.s32.f32 %v2236
    %v4157 = vcvt.s32.f32 %v2237
    %v4158 = vcvt.s32.f32 %v2238
    %v4159 = vcvt.s32.f32 %v2239
    %v4160 = vcvt.s32.f32 %v2240
    %v4161 = vcvt.s32.f32 %v2241
    %v4162 = vcvt.s32.f32 %v2242
    %v4163 = vcvt.s32.f32 %v2243
    %v4164 = vcvt.s32.f32 %v2244
    %v4165 = vcvt.s32.f32 %v2245
    %v4166 = vcvt.s32.f32 %v2246
    %v4167 = vcvt.s32.f32 %v2247
    %v4168 = vcvt.s32.f32 %v2248
    %v4169 = vcvt.s32.f32 %v2249
    %v4170 = vcvt.s32.f32 %v2250
    %v4171 = vcvt.s32.f32 %v2251
    %v4172 = vcvt.s32.f32 %v2252
    %v4173 = vcvt.s32.f32 %v2253
    %v4174 = vcvt.s32.f32 %v2254
    %v4175 = vcvt.s32.f32 %v2255
    %v4176 = vcvt.s32.f32 %v2256
    %v4177 = vcvt.s32.f32 %v2257
    %v4178 = vcvt.s32.f32 %v2258
    %v4179 = vcvt.s32.f32 %v2259
    %v4180 = vcvt.s32.f32 %v2260
    %v4181 = vcvt.s32.f32 %v2261
    %v4182 = vcvt.s32.f32 %v2262
    %v4183 = vcvt.s32.f32 %v2263
    %v4184 = vcvt.s32.f32 %v2264
    %v4185 = vcvt.s32.f32 %v2265
    %v4186 = vcvt.s32.f32 %v2266
    %v4187 = vcvt.s32.f32 %v2267
    %v4188 = vcvt.s32.f32 %v2268
    %v4189 = vcvt.s32.f32 %v2269
    %v4190 = vcvt.s32.f32 %v2270
    %v4191 = vcvt.s32.f32 %v2271
    %v4192 = vcvt.s32.f32 %v2272
    %v4193 = vcvt.s32.f32 %v2273
    %v4194 = vcvt.s32.f32 %v2274
    %v4195 = vcvt.s32.f32 %v2275
    %v4196 = vcvt.s32.f32 %v2276
    %v4197 = vcvt.s32.f32 %v2277
    %v4198 = vcvt.s32.f32 %v2278
    %v4199 = vcvt.s32.f32 %v2279
    %v4200 = vcvt.s32.f32 %v2280
    %v4201 = vcvt.s32.f32 %v2281
    %v4202 = vcvt.s32.f32 %v2282
    %v4203 = vcvt.s32.f32 %v2283
    %v4204 = vcvt.s32.f32 %v2284
    %v4205 = vcvt.s32.f32 %v2285
    %v4206 = vcvt.s32.f32 %v2286
    %v4207 = vcvt.s32.f32 %v2287
    %v4208 = vcvt.s32.f32 %v2288
    %v4209 = vcvt.s32.f32 %v2289
    %v4210 = vcvt.s32.f32 %v2290
    %v4211 = vcvt.s32.f32 %v2291
    %v4212 = vcvt.s32.f32 %v2292
    %v4213 = vcvt.s32.f32 %v2293
    %v4214 = vcvt.s32.f32 %v2294
    %v4215 = vcvt.s32.f32 %v2295
    %v4216 = vcvt.s32.f32 %v2296
    %v4217 = vcvt.s32.f32 %v2297
    %v4218 = vcvt.s32.f32 %v2298
    %v4219 = vcvt.s32.f32 %v2299
    %v4220 = vcvt.s32.f32 %v2300
    %v4221 = vcvt.s32.f32 %v2301
    %v4222 = vcvt.s32.f32 %v2302
    %v4223 = vcvt.s32.f32 %v2303
    %v4224 = vcvt.s32.f32 %v2304
    %v4225 = vcvt.s32.f32 %v2305
    %v4226 = vcvt.s32.f32 %v2306
    %v4227 = vcvt.s32.f32 %v2307
    %v4228 = vcvt.s32.f32 %v2308
    %v4229 = vcvt.s32.f32 %v2309
    %v4230 = vcvt.s32.f32 %v2310
    %v4231 = vcvt.s32.f32 %v2311
    %v4232 = vcvt.s32.f32 %v2312
    %v4233 = vcvt.s32.f32 %v2313
    %v4234 = vcvt.s32.f32 %v2314
    %v4235 = vcvt.s32.f32 %v2315
    %v4236 = vcvt.s32.f32 %v2316
    %v4237 = vcvt.s32.f32 %v2317
    %v4238 = vcvt.s32.f32 %v2318
    %v4239 = vcvt.s32.f32 %v2319
    %v4240 = vcvt.s32.f32 %v2320
    %v4241 = vcvt.s32.f32 %v2321
    %v4242 = vcvt.s32.f32 %v2322
    %v4243 = vcvt.s32.f32 %v2323
    %v4244 = vcvt.s32.f32 %v2324
    %v4245 = vcvt.s32.f32 %v2325
    %v4246 = vcvt.s32.f32 %v2326
    %v4247 = vcvt.s32.f32 %v2327
    %v4248 = vcvt.s32.f32 %v2328
    %v4249 = vcvt.s32.f32 %v2329
    %v4250 = vcvt.s32.f32 %v2330
    %v4251 = vcvt.s32.f32 %v2331
    %v4252 = vcvt.s32.f32 %v2332
    %v4253 = vcvt.s32.f32 %v2333
    %v4254 = vcvt.s32.f32 %v2334
    %v4255 = vcvt.s32.f32 %v2335
    %v4256 = vcvt.s32.f32 %v2336
    %v4257 = vcvt.s32.f32 %v2337
    %v4258 = vcvt.s32.f32 %v2338
    %v4259 = vcvt.s32.f32 %v2339
    %v4260 = vcvt.s32.f32 %v2340
    %v4261 = vcvt.s32.f32 %v2341
    %v4262 = vcvt.s32.f32 %v2342
    %v4263 = vcvt.s32.f32 %v2343
    %v4264 = vcvt.s32.f32 %v2344
    %v4265 = vcvt.s32.f32 %v2345
    %v4266 = vcvt.s32.f32 %v2346
    %v4267 = vcvt.s32.f32 %v2347
    %v4268 = vcvt.s32.f32 %v2348
    %v4269 = vcvt.s32.f32 %v2349
    %v4270 = vcvt.s32.f32 %v2350
    %v4271 = vcvt.s32.f32 %v2351
    %v4272 = vcvt.s32.f32 %v2352
    %v4273 = vcvt.s32.f32 %v2353
    %v4274 = vcvt.s32.f32 %v2354
    %v4275 = vcvt.s32.f32 %v2355
    %v4276 = vcvt.s32.f32 %v2356
    %v4277 = vcvt.s32.f32 %v2357
    %v4278 = vcvt.s32.f32 %v2358
    %v4279 = vcvt.s32.f32 %v2359
    %v4280 = vcvt.s32.f32 %v2360
    %v4281 = vcvt.s32.f32 %v2361
    %v4282 = vcvt.s32.f32 %v2362
    %v4283 = vcvt.s32.f32 %v2363
    %v4284 = vcvt.s32.f32 %v2364
    %v4285 = vcvt.s32.f32 %v2365
    %v4286 = vcvt.s32.f32 %v2366
    %v4287 = vcvt.s32.f32 %v2367
    %v4288 = vcvt.s32.f32 %v2368
    %v4289 = vcvt.s32.f32 %v2369
    %v4290 = vcvt.s32.f32 %v2370
    %v4291 = vcvt.s32.f32 %v2371
    %v4292 = vcvt.s32.f32 %v2372
    %v4293 = vcvt.s32.f32 %v2373
    %v4294 = vcvt.s32.f32 %v2374
    %v4295 = vcvt.s32.f32 %v2375
    %v4296 = vcvt.s32.f32 %v2376
    %v4297 = vcvt.s32.f32 %v2377
    %v4298 = vcvt.s32.f32 %v2378
    %v4299 = vcvt.s32.f32 %v2379
    %v4300 = vcvt.s32.f32 %v2380
    %v4301 = vcvt.s32.f32 %v2381
    %v4302 = vcvt.s32.f32 %v2382
    %v4303 = vcvt.s32.f32 %v2383
    %v4304 = vcvt.s32.f32 %v2384
    %v4305 = vcvt.s32.f32 %v2385
    %v4306 = vcvt.s32.f32 %v2386
    %v4307 = vcvt.s32.f32 %v2387
    %v4308 = vcvt.s32.f32 %v2388
    %v4309 = vcvt.s32.f32 %v2389
    %v4310 = vcvt.s32.f32 %v2390
    %v4311 = vcvt.s32.f32 %v2391
    %v4312 = vcvt.s32.f32 %v2392
    %v4313 = vcvt.s32.f32 %v2393
    %v4314 = vcvt.s32.f32 %v2394
    %v4315 = vcvt.s32.f32 %v2395
    %v4316 = vcvt.s32.f32 %v2396
    %v4317 = vcvt.s32.f32 %v2397
    %v4318 = vcvt.s32.f32 %v2398
    %v4319 = vcvt.s32.f32 %v2399
    %v4320 = vcvt.s32.f32 %v2400
    %v4321 = vcvt.s32.f32 %v2401
    %v4322 = vcvt.s32.f32 %v2402
    %v4323 = vcvt.s32.f32 %v2403
    %v4324 = vcvt.s32.f32 %v2404
    %v4325 = vcvt.s32.f32 %v2405
    %v4326 = vcvt.s32.f32 %v2406
    %v4327 = vcvt.s32.f32 %v2407
    %v4328 = vcvt.s32.f32 %v2408
    %v4329 = vcvt.s32.f32 %v2409
    %v4330 = vcvt.s32.f32 %v2410
    %v4331 = vcvt.s32.f32 %v2411
    %v4332 = vcvt.s32.f32 %v2412
    %v4333 = vcvt.s32.f32 %v2413
    %v4334 = vcvt.s32.f32 %v2414
    %v4335 = vcvt.s32.f32 %v2415
    %v4336 = vcvt.s32.f32 %v2416
    %v4337 = vcvt.s32.f32 %v2417
    %v4338 = vcvt.s32.f32 %v2418
    %v4339 = vcvt.s32.f32 %v2419
    %v4340 = vcvt.s32.f32 %v2420
    %v4341 = vcvt.s32.f32 %v2421
    %v4342 = vcvt.s32.f32 %v2422
    %v4343 = vcvt.s32.f32 %v2423
    %v4344 = vcvt.s32.f32 %v2424
    %v4345 = vcvt.s32.f32 %v2425
    %v4346 = vcvt.s32.f32 %v2426
    %v4347 = vcvt.s32.f32 %v2427
    %v4348 = vcvt.s32.f32 %v2428
    %v4349 = vcvt.s32.f32 %v2429
    %v4350 = vcvt.s32.f32 %v2430
    %v4351 = vcvt.s32.f32 %v2431
    %v4352 = vcvt.s32.f32 %v2432
    %v4353 = vcvt.s32.f32 %v2433
    %v4354 = vcvt.s32.f32 %v2434
    %v4355 = vcvt.s32.f32 %v2435
    %v4356 = vcvt.s32.f32 %v2436
    %v4357 = vcvt.s32.f32 %v2437
    %v4358 = vcvt.s32.f32 %v2438
    %v4359 = vcvt.s32.f32 %v2439
    %v4360 = vcvt.s32.f32 %v2440
    %v4361 = vcvt.s32.f32 %v2441
    %v4362 = vcvt.s32.f32 %v2442
    %v4363 = vcvt.s32.f32 %v2443
    %v4364 = vcvt.s32.f32 %v2444
    %v4365 = vcvt.s32.f32 %v2445
    %v4366 = vcvt.s32.f32 %v2446
    %v4367 = vcvt.s32.f32 %v2447
    %v4368 = vcvt.s32.f32 %v2448
    %v4369 = vcvt.s32.f32 %v2449
    %v4370 = vcvt.s32.f32 %v2450
    %v4371 = vcvt.s32.f32 %v2451
    %v4372 = vcvt.s32.f32 %v2452
    %v4373 = vcvt.s32.f32 %v2453
    %v4374 = vcvt.s32.f32 %v2454
    %v4375 = vcvt.s32.f32 %v2455
    %v4376 = vcvt.s32.f32 %v2456
    %v4377 = vcvt.s32.f32 %v2457
    %v4378 = vcvt.s32.f32 %v2458
    %v4379 = vcvt.s32.f32 %v2459
    %v4380 = vcvt.s32.f32 %v2460
    %v4381 = vcvt.s32.f32 %v2461
    %v4382 = vcvt.s32.f32 %v2462
    %v4383 = vcvt.s32.f32 %v2463
    %v4384 = vcvt.s32.f32 %v2464
    %v4385 = vcvt.s32.f32 %v2465
    %v4386 = vcvt.s32.f32 %v2466
    %v4387 = vcvt.s32.f32 %v2467
    %v4388 = vcvt.s32.f32 %v2468
    %v4389 = vcvt.s32.f32 %v2469
    %v4390 = vcvt.s32.f32 %v2470
    %v4391 = vcvt.s32.f32 %v2471
    %v4392 = vcvt.s32.f32 %v2472
    %v4393 = vcvt.s32.f32 %v2473
    %v4394 = vcvt.s32.f32 %v2474
    %v4395 = vcvt.s32.f32 %v2475
    %v4396 = vcvt.s32.f32 %v2476
    %v4397 = vcvt.s32.f32 %v2477
    %v4398 = vcvt.s32.f32 %v2478
    %v4399 = vcvt.s32.f32 %v2479
    %v4400 = vcvt.s32.f32 %v2480
    %v4401 = vcvt.s32.f32 %v2481
    %v4402 = vcvt.s32.f32 %v2482
    %v4403 = vcvt.s32.f32 %v2483
    %v4404 = vcvt.s32.f32 %v2484
    %v4405 = vcvt.s32.f32 %v2485
    %v4406 = vcvt.s32.f32 %v2486
    %v4407 = vcvt.s32.f32 %v2487
    %v4408 = vcvt.s32.f32 %v2488
    %v4409 = vcvt.s32.f32 %v2489
    %v4410 = vcvt.s32.f32 %v2490
    %v4411 = vcvt.s32.f32 %v2491
    %v4412 = vcvt.s32.f32 %v2492
    %v4413 = vcvt.s32.f32 %v2493
    %v4414 = vcvt.s32.f32 %v2494
    %v4415 = vcvt.s32.f32 %v2495
    %v4416 = vcvt.s32.f32 %v2496
    %v4417 = vcvt.s32.f32 %v2497
    %v4418 = vcvt.s32.f32 %v2498
    %v4419 = vcvt.s32.f32 %v2499
    %v4420 = vcvt.s32.f32 %v2500
    %v4421 = vcvt.s32.f32 %v2501
    %v4422 = vcvt.s32.f32 %v2502
    %v4423 = vcvt.s32.f32 %v2503
    %v4424 = vcvt.s32.f32 %v2504
    %v4425 = vcvt.s32.f32 %v2505
    %v4426 = vcvt.s32.f32 %v2506
    %v4427 = vcvt.s32.f32 %v2507
    %v4428 = vcvt.s32.f32 %v2508
    %v4429 = vcvt.s32.f32 %v2509
    %v4430 = vcvt.s32.f32 %v2510
    %v4431 = vcvt.s32.f32 %v2511
    %v4432 = vcvt.s32.f32 %v2512
    %v4433 = vcvt.s32.f32 %v2513
    %v4434 = vcvt.s32.f32 %v2514
    %v4435 = vcvt.s32.f32 %v2515
    %v4436 = vcvt.s32.f32 %v2516
    %v4437 = vcvt.s32.f32 %v2517
    %v4438 = vcvt.s32.f32 %v2518
    %v4439 = vcvt.s32.f32 %v2519
    %v4440 = vcvt.s32.f32 %v2520
    %v4441 = vcvt.s32.f32 %v2521
    %v4442 = vcvt.s32.f32 %v2522
    %v4443 = vcvt.s32.f32 %v2523
    %v4444 = vcvt.s32.f32 %v2524
    %v4445 = vcvt.s32.f32 %v2525
    %v4446 = vcvt.s32.f32 %v2526
    %v4447 = vcvt.s32.f32 %v2527
    %v4448 = vcvt.s32.f32 %v2528
    %v4449 = vcvt.s32.f32 %v2529
    %v4450 = vcvt.s32.f32 %v2530
    %v4451 = vcvt.s32.f32 %v2531
    %v4452 = vcvt.s32.f32 %v2532
    %v4453 = vcvt.s32.f32 %v2533
    %v4454 = vcvt.s32.f32 %v2534
    %v4455 = vcvt.s32.f32 %v2535
    %v4456 = vcvt.s32.f32 %v2536
    %v4457 = vcvt.s32.f32 %v2537
    %v4458 = vcvt.s32.f32 %v2538
    %v4459 = vcvt.s32.f32 %v2539
    %v4460 = vcvt.s32.f32 %v2540
    %v4461 = vcvt.s32.f32 %v2541
    %v4462 = vcvt.s32.f32 %v2542
    %v4463 = vcvt.s32.f32 %v2543
    %v4464 = vcvt.s32.f32 %v2544
    %v4465 = vcvt.s32.f32 %v2545
    %v4466 = vcvt.s32.f32 %v2546
    %v4467 = vcvt.s32.f32 %v2547
    %v4468 = vcvt.s32.f32 %v2548
    %v4469 = vcvt.s32.f32 %v2549
    %v4470 = vcvt.s32.f32 %v2550
    %v4471 = vcvt.s32.f32 %v2551
    %v4472 = vcvt.s32.f32 %v2552
    %v4473 = vcvt.s32.f32 %v2553
    %v4474 = vcvt.s32.f32 %v2554
    %v4475 = vcvt.s32.f32 %v2555
    %v4476 = vcvt.s32.f32 %v2556
    %v4477 = vcvt.s32.f32 %v2557
    %v4478 = vcvt.s32.f32 %v2558
    %v4479 = vcvt.s32.f32 %v2559
    %v4480 = vcvt.s32.f32 %v2560
    %v4481 = vcvt.s32.f32 %v2561
    %v4482 = vcvt.s32.f32 %v2562
    %v4483 = vcvt.s32.f32 %v2563
    %v4484 = vcvt.s32.f32 %v2564
    %v4485 = vcvt.s32.f32 %v2565
    %v4486 = vcvt.s32.f32 %v2566
    %v4487 = vcvt.s32.f32 %v2567
    %v4488 = vcvt.s32.f32 %v2568
    %v4489 = vcvt.s32.f32 %v2569
    %v4490 = vcvt.s32.f32 %v2570
    %v4491 = vcvt.s32.f32 %v2571
    %v4492 = vcvt.s32.f32 %v2572
    %v4493 = vcvt.s32.f32 %v2573
    %v4494 = vcvt.s32.f32 %v2574
    %v4495 = vcvt.s32.f32 %v2575
    %v4496 = vcvt.s32.f32 %v2576
    %v4497 = vcvt.s32.f32 %v2577
    %v4498 = vcvt.s32.f32 %v2578
    %v4499 = vcvt.s32.f32 %v2579
    %v4500 = vcvt.s32.f32 %v2580
    %v4501 = vcvt.s32.f32 %v2581
    %v4502 = vcvt.s32.f32 %v2582
    %v4503 = vcvt.s32.f32 %v2583
    %v4504 = vcvt.s32.f32 %v2584
    %v4505 = vcvt.s32.f32 %v2585
    %v4506 = vcvt.s32.f32 %v2586
    %v4507 = vcvt.s32.f32 %v2587
    %v4508 = vcvt.s32.f32 %v2588
    %v4509 = vcvt.s32.f32 %v2589
    %v4510 = vcvt.s32.f32 %v2590
    %v4511 = vcvt.s32.f32 %v2591
    %v4512 = vcvt.s32.f32 %v2592
    %v4513 = vcvt.s32.f32 %v2593
    %v4514 = vcvt.s32.f32 %v2594
    %v4515 = vcvt.s32.f32 %v2595
    %v4516 = vcvt.s32.f32 %v2596
    %v4517 = vcvt.s32.f32 %v2597
    %v4518 = vcvt.s32.f32 %v2598
    %v4519 = vcvt.s32.f32 %v2599
    %v4520 = vcvt.s32.f32 %v2600
    %v4521 = vcvt.s32.f32 %v2601
    %v4522 = vcvt.s32.f32 %v2602
    %v4523 = vcvt.s32.f32 %v2603
    %v4524 = vcvt.s32.f32 %v2604
    %v4525 = vcvt.s32.f32 %v2605
    %v4526 = vcvt.s32.f32 %v2606
    %v4527 = vcvt.s32.f32 %v2607
    %v4528 = vcvt.s32.f32 %v2608
    %v4529 = vcvt.s32.f32 %v2609
    %v4530 = vcvt.s32.f32 %v2610
    %v4531 = vcvt.s32.f32 %v2611
    %v4532 = vcvt.s32.f32 %v2612
    %v4533 = vcvt.s32.f32 %v2613
    %v4534 = vcvt.s32.f32 %v2614
    %v4535 = vcvt.s32.f32 %v2615
    %v4536 = vcvt.s32.f32 %v2616
    %v4537 = vcvt.s32.f32 %v2617
    %v4538 = vcvt.s32.f32 %v2618
    %v4539 = vcvt.s32.f32 %v2619
    %v4540 = vcvt.s32.f32 %v2620
    %v4541 = vcvt.s32.f32 %v2621
    %v4542 = vcvt.s32.f32 %v2622
    %v4543 = vcvt.s32.f32 %v2623
    %v4544 = vcvt.s32.f32 %v2624
    %v4545 = vcvt.s32.f32 %v2625
    %v4546 = vcvt.s32.f32 %v2626
    %v4547 = vcvt.s32.f32 %v2627
    %v4548 = vcvt.s32.f32 %v2628
    %v4549 = vcvt.s32.f32 %v2629
    %v4550 = vcvt.s32.f32 %v2630
    %v4551 = vcvt.s32.f32 %v2631
    %v4552 = vcvt.s32.f32 %v2632
    %v4553 = vcvt.s32.f32 %v2633
    %v4554 = vcvt.s32.f32 %v2634
    %v4555 = vcvt.s32.f32 %v2635
    %v4556 = vcvt.s32.f32 %v2636
    %v4557 = vcvt.s32.f32 %v2637
    %v4558 = vcvt.s32.f32 %v2638
    %v4559 = vcvt.s32.f32 %v2639
    %v4560 = vcvt.s32.f32 %v2640
    %v4561 = vcvt.s32.f32 %v2641
    %v4562 = vcvt.s32.f32 %v2642
    %v4563 = vcvt.s32.f32 %v2643
    %v4564 = vcvt.s32.f32 %v2644
    %v4565 = vcvt.s32.f32 %v2645
    %v4566 = vcvt.s32.f32 %v2646
    %v4567 = vcvt.s32.f32 %v2647
    %v4568 = vcvt.s32.f32 %v2648
    %v4569 = vcvt.s32.f32 %v2649
    %v4570 = vcvt.s32.f32 %v2650
    %v4571 = vcvt.s32.f32 %v2651
    %v4572 = vcvt.s32.f32 %v2652
    %v4573 = vcvt.s32.f32 %v2653
    %v4574 = vcvt.s32.f32 %v2654
    %v4575 = vcvt.s32.f32 %v2655
    %v4576 = vcvt.s32.f32 %v2656
    %v4577 = vcvt.s32.f32 %v2657
    %v4578 = vcvt.s32.f32 %v2658
    %v4579 = vcvt.s32.f32 %v2659
    %v4580 = vcvt.s32.f32 %v2660
    %v4581 = vcvt.s32.f32 %v2661
    %v4582 = vcvt.s32.f32 %v2662
    %v4583 = vcvt.s32.f32 %v2663
    %v4584 = vcvt.s32.f32 %v2664
    %v4585 = vcvt.s32.f32 %v2665
    %v4586 = vcvt.s32.f32 %v2666
    %v4587 = vcvt.s32.f32 %v2667
    %v4588 = vcvt.s32.f32 %v2668
    %v4589 = vcvt.s32.f32 %v2669
    %v4590 = vcvt.s32.f32 %v2670
    %v4591 = vcvt.s32.f32 %v2671
    %v4592 = vcvt.s32.f32 %v2672
    %v4593 = vcvt.s32.f32 %v2673
    %v4594 = vcvt.s32.f32 %v2674
    %v4595 = vcvt.s32.f32 %v2675
    %v4596 = vcvt.s32.f32 %v2676
    %v4597 = vcvt.s32.f32 %v2677
    %v4598 = vcvt.s32.f32 %v2678
    %v4599 = vcvt.s32.f32 %v2679
    %v4600 = vcvt.s32.f32 %v2680
    %v4601 = vcvt.s32.f32 %v2681
    %v4602 = vcvt.s32.f32 %v2682
    %v4603 = vcvt.s32.f32 %v2683
    %v4604 = vcvt.s32.f32 %v2684
    %v4605 = vcvt.s32.f32 %v2685
    %v4606 = vcvt.s32.f32 %v2686
    %v4607 = vcvt.s32.f32 %v2687
    %v4608 = vcvt.s32.f32 %v2688
    %v4609 = vcvt.s32.f32 %v2689
    %v4610 = vcvt.s32.f32 %v2690
    %v4611 = vcvt.s32.f32 %v2691
    %v4612 = vcvt.s32.f32 %v2692
    %v4613 = vcvt.s32.f32 %v2693
    %v4614 = vcvt.s32.f32 %v2694
    %v4615 = vcvt.s32.f32 %v2695
    %v4616 = vcvt.s32.f32 %v2696
    %v4617 = vcvt.s32.f32 %v2697
    %v4618 = vcvt.s32.f32 %v2698
    %v4619 = vcvt.s32.f32 %v2699
    %v4620 = vcvt.s32.f32 %v2700
    %v4621 = vcvt.s32.f32 %v2701
    %v4622 = vcvt.s32.f32 %v2702
    %v4623 = vcvt.s32.f32 %v2703
    %v4624 = vcvt.s32.f32 %v2704
    %v4625 = vcvt.s32.f32 %v2705
    %v4626 = vcvt.s32.f32 %v2706
    %v4627 = vcvt.s32.f32 %v2707
    %v4628 = vcvt.s32.f32 %v2708
    %v4629 = vcvt.s32.f32 %v2709
    %v4630 = vcvt.s32.f32 %v2710
    %v4631 = vcvt.s32.f32 %v2711
    %v4632 = vcvt.s32.f32 %v2712
    %v4633 = vcvt.s32.f32 %v2713
    %v4634 = vcvt.s32.f32 %v2714
    %v4635 = vcvt.s32.f32 %v2715
    %v4636 = vcvt.s32.f32 %v2716
    %v4637 = vcvt.s32.f32 %v2717
    %v4638 = vcvt.s32.f32 %v2718
    %v4639 = vcvt.s32.f32 %v2719
    %v4640 = vcvt.s32.f32 %v2720
    %v4641 = vcvt.s32.f32 %v2721
    %v4642 = vcvt.s32.f32 %v2722
    %v4643 = vcvt.s32.f32 %v2723
    %v4644 = vcvt.s32.f32 %v2724
    %v4645 = vcvt.s32.f32 %v2725
    %v4646 = vcvt.s32.f32 %v2726
    %v4647 = vcvt.s32.f32 %v2727
    %v4648 = vcvt.s32.f32 %v2728
    %v4649 = vcvt.s32.f32 %v2729
    %v4650 = vcvt.s32.f32 %v2730
    %v4651 = vcvt.s32.f32 %v2731
    %v4652 = vcvt.s32.f32 %v2732
    %v4653 = vcvt.s32.f32 %v2733
    %v4654 = vcvt.s32.f32 %v2734
    %v4655 = vcvt.s32.f32 %v2735
    %v4656 = vcvt.s32.f32 %v2736
    %v4657 = vcvt.s32.f32 %v2737
    %v4658 = vcvt.s32.f32 %v2738
    %v4659 = vcvt.s32.f32 %v2739
    %v4660 = vcvt.s32.f32 %v2740
    %v4661 = vcvt.s32.f32 %v2741
    %v4662 = vcvt.s32.f32 %v2742
    %v4663 = vcvt.s32.f32 %v2743
    %v4664 = vcvt.s32.f32 %v2744
    %v4665 = vcvt.s32.f32 %v2745
    %v4666 = vcvt.s32.f32 %v2746
    %v4667 = vcvt.s32.f32 %v2747
    %v4668 = vcvt.s32.f32 %v2748
    %v4669 = vcvt.s32.f32 %v2749
    %v4670 = vcvt.s32.f32 %v2750
    %v4671 = vcvt.s32.f32 %v2751
    %v4672 = vcvt.s32.f32 %v2752
    %v4673 = vcvt.s32.f32 %v2753
    %v4674 = vcvt.s32.f32 %v2754
    %v4675 = vcvt.s32.f32 %v2755
    %v4676 = vcvt.s32.f32 %v2756
    %v4677 = vcvt.s32.f32 %v2757
    %v4678 = vcvt.s32.f32 %v2758
    %v4679 = vcvt.s32.f32 %v2759
    %v4680 = vcvt.s32.f32 %v2760
    %v4681 = vcvt.s32.f32 %v2761
    %v4682 = vcvt.s32.f32 %v2762
    %v4683 = vcvt.s32.f32 %v2763
    %v4684 = vcvt.s32.f32 %v2764
    %v4685 = vcvt.s32.f32 %v2765
    %v4686 = vcvt.s32.f32 %v2766
    %v4687 = vcvt.s32.f32 %v2767
    %v4688 = vcvt.s32.f32 %v2768
    %v4689 = vcvt.s32.f32 %v2769
    %v4690 = vcvt.s32.f32 %v2770
    %v4691 = vcvt.s32.f32 %v2771
    %v4692 = vcvt.s32.f32 %v2772
    %v4693 = vcvt.s32.f32 %v2773
    %v4694 = vcvt.s32.f32 %v2774
    %v4695 = vcvt.s32.f32 %v2775
    %v4696 = vcvt.s32.f32 %v2776
    %v4697 = vcvt.s32.f32 %v2777
    %v4698 = vcvt.s32.f32 %v2778
    %v4699 = vcvt.s32.f32 %v2779
    %v4700 = vcvt.s32.f32 %v2780
    %v4701 = vcvt.s32.f32 %v2781
    %v4702 = vcvt.s32.f32 %v2782
    %v4703 = vcvt.s32.f32 %v2783
    %v4704 = vcvt.s32.f32 %v2784
    %v4705 = vcvt.s32.f32 %v2785
    %v4706 = vcvt.s32.f32 %v2786
    %v4707 = vcvt.s32.f32 %v2787
    %v4708 = vcvt.s32.f32 %v2788
    %v4709 = vcvt.s32.f32 %v2789
    %v4710 = vcvt.s32.f32 %v2790
    %v4711 = vcvt.s32.f32 %v2791
    %v4712 = vcvt.s32.f32 %v2792
    %v4713 = vcvt.s32.f32 %v2793
    %v4714 = vcvt.s32.f32 %v2794
    %v4715 = vcvt.s32.f32 %v2795
    %v4716 = vcvt.s32.f32 %v2796
    %v4717 = vcvt.s32.f32 %v2797
    %v4718 = vcvt.s32.f32 %v2798
    %v4719 = vcvt.s32.f32 %v2799
    %v4720 = vcvt.s32.f32 %v2800
    %v4721 = vcvt.s32.f32 %v2801
    %v4722 = vcvt.s32.f32 %v2802
    %v4723 = vcvt.s32.f32 %v2803
    %v4724 = vcvt.s32.f32 %v2804
    %v4725 = vcvt.s32.f32 %v2805
    %v4726 = vcvt.s32.f32 %v2806
    %v4727 = vcvt.s32.f32 %v2807
    %v4728 = vcvt.s32.f32 %v2808
    %v4729 = vcvt.s32.f32 %v2809
    %v4730 = vcvt.s32.f32 %v2810
    %v4731 = vcvt.s32.f32 %v2811
    %v4732 = vcvt.s32.f32 %v2812
    %v4733 = vcvt.s32.f32 %v2813
    %v4734 = vcvt.s32.f32 %v2814
    %v4735 = vcvt.s32.f32 %v2815
    %v4736 = vcvt.s32.f32 %v2816
    %v4737 = vcvt.s32.f32 %v2817
    %v4738 = vcvt.s32.f32 %v2818
    %v4739 = vcvt.s32.f32 %v2819
    %v4740 = vcvt.s32.f32 %v2820
    %v4741 = vcvt.s32.f32 %v2821
    %v4742 = vcvt.s32.f32 %v2822
    %v4743 = vcvt.s32.f32 %v2823
    %v4744 = vcvt.s32.f32 %v2824
    %v4745 = vcvt.s32.f32 %v2825
    %v4746 = vcvt.s32.f32 %v2826
    %v4747 = vcvt.s32.f32 %v2827
    %v4748 = vcvt.s32.f32 %v2828
    %v4749 = vcvt.s32.f32 %v2829
    %v4750 = vcvt.s32.f32 %v2830
    %v4751 = vcvt.s32.f32 %v2831
    %v4752 = vcvt.s32.f32 %v2832
    %v4753 = vcvt.s32.f32 %v2833
    %v4754 = vcvt.s32.f32 %v2834
    %v4755 = vcvt.s32.f32 %v2835
    %v4756 = vcvt.s32.f32 %v2836
    %v4757 = vcvt.s32.f32 %v2837
    %v4758 = vcvt.s32.f32 %v2838
    %v4759 = vcvt.s32.f32 %v2839
    %v4760 = vcvt.s32.f32 %v2840
    %v4761 = vcvt.s32.f32 %v2841
    %v4762 = vcvt.s32.f32 %v2842
    %v4763 = vcvt.s32.f32 %v2843
    %v4764 = vcvt.s32.f32 %v2844
    %v4765 = vcvt.s32.f32 %v2845
    %v4766 = vcvt.s32.f32 %v2846
    %v4767 = vcvt.s32.f32 %v2847
    %v4768 = vcvt.s32.f32 %v2848
    %v4769 = vcvt.s32.f32 %v2849
    %v4770 = vcvt.s32.f32 %v2850
    %v4771 = vcvt.s32.f32 %v2851
    %v4772 = vcvt.s32.f32 %v2852
    %v4773 = vcvt.s32.f32 %v2853
    %v4774 = vcvt.s32.f32 %v2854
    %v4775 = vcvt.s32.f32 %v2855
    %v4776 = vcvt.s32.f32 %v2856
    %v4777 = vcvt.s32.f32 %v2857
    %v4778 = vcvt.s32.f32 %v2858
    %v4779 = vcvt.s32.f32 %v2859
    %v4780 = vcvt.s32.f32 %v2860
    %v4781 = vcvt.s32.f32 %v2861
    %v4782 = vcvt.s32.f32 %v2862
    %v4783 = vcvt.s32.f32 %v2863
    %v4784 = vcvt.s32.f32 %v2864
    %v4785 = vcvt.s32.f32 %v2865
    %v4786 = vcvt.s32.f32 %v2866
    %v4787 = vcvt.s32.f32 %v2867
    %v4788 = vcvt.s32.f32 %v2868
    %v4789 = vcvt.s32.f32 %v2869
    %v4790 = vcvt.s32.f32 %v2870
    %v4791 = vcvt.s32.f32 %v2871
    %v4792 = vcvt.s32.f32 %v2872
    %v4793 = vcvt.s32.f32 %v2873
    %v4794 = vcvt.s32.f32 %v2874
    %v4795 = vcvt.s32.f32 %v2875
    %v4796 = vcvt.s32.f32 %v2876
    %v4797 = vcvt.s32.f32 %v2877
    %v4798 = vcvt.s32.f32 %v2878
    %v4799 = vcvt.s32.f32 %v2879
    %v4800 = vcvt.s32.f32 %v2880
    %v4801 = vcvt.s32.f32 %v2881
    %v4802 = vcvt.s32.f32 %v2882
    %v4803 = vcvt.s32.f32 %v2883
    %v4804 = vcvt.s32.f32 %v2884
    %v4805 = vcvt.s32.f32 %v2885
    %v4806 = vcvt.s32.f32 %v2886
    %v4807 = vcvt.s32.f32 %v2887
    %v4808 = vcvt.s32.f32 %v2888
    %v4809 = vcvt.s32.f32 %v2889
    %v4810 = vcvt.s32.f32 %v2890
    %v4811 = vcvt.s32.f32 %v2891
    %v4812 = vcvt.s32.f32 %v2892
    %v4813 = vcvt.s32.f32 %v2893
    %v4814 = vcvt.s32.f32 %v2894
    %v4815 = vcvt.s32.f32 %v2895
    %v4816 = vcvt.s32.f32 %v2896
    %v4817 = vcvt.s32.f32 %v2897
    %v4818 = vcvt.s32.f32 %v2898
    %v4819 = vcvt.s32.f32 %v2899
    %v4820 = vcvt.s32.f32 %v2900
    %v4821 = vcvt.s32.f32 %v2901
    %v4822 = vcvt.s32.f32 %v2902
    %v4823 = vcvt.s32.f32 %v2903
    %v4824 = vcvt.s32.f32 %v2904
    %v4825 = vcvt.s32.f32 %v2905
    %v4826 = vcvt.s32.f32 %v2906
    %v4827 = vcvt.s32.f32 %v2907
    %v4828 = vcvt.s32.f32 %v2908
    %v4829 = vcvt.s32.f32 %v2909
    %v4830 = vcvt.s32.f32 %v2910
    %v4831 = vcvt.s32.f32 %v2911
    %v4832 = vcvt.s32.f32 %v2912
    %v4833 = vcvt.s32.f32 %v2913
    %v4834 = vcvt.s32.f32 %v2914
    %v4835 = vcvt.s32.f32 %v2915
    %v4836 = vcvt.s32.f32 %v2916
    %v4837 = vcvt.s32.f32 %v2917
    %v4838 = vcvt.s32.f32 %v2918
    %v4839 = vcvt.s32.f32 %v2919
    %v4840 = vcvt.s32.f32 %v2920
    %v4841 = vcvt.s32.f32 %v2921
    %v4842 = vcvt.s32.f32 %v2922
    %v4843 = vcvt.s32.f32 %v2923
    %v4844 = vcvt.s32.f32 %v2924
    %v4845 = vcvt.s32.f32 %v2925
    %v4846 = vcvt.s32.f32 %v2926
    %v4847 = vcvt.s32.f32 %v2927
    %v4848 = vcvt.s32.f32 %v2928
    %v4849 = vcvt.s32.f32 %v2929
    %v4850 = vcvt.s32.f32 %v2930
    %v4851 = vcvt.s32.f32 %v2931
    %v4852 = vcvt.s32.f32 %v2932
    %v4853 = vcvt.s32.f32 %v2933
    %v4854 = vcvt.s32.f32 %v2934
    %v4855 = vcvt.s32.f32 %v2935
    %v4856 = vcvt.s32.f32 %v2936
    %v4857 = vcvt.s32.f32 %v2937
    %v4858 = vcvt.s32.f32 %v2938
    %v4859 = vcvt.s32.f32 %v2939
    %v4860 = vcvt.s32.f32 %v2940
    %v4861 = vcvt.s32.f32 %v2941
    %v4862 = vcvt.s32.f32 %v2942
    %v4863 = vcvt.s32.f32 %v2943
    %v4864 = vcvt.s32.f32 %v2944
    %v4865 = vcvt.s32.f32 %v2945
    %v4866 = vcvt.s32.f32 %v2946
    %v4867 = vcvt.s32.f32 %v2947
    %v4868 = vcvt.s32.f32 %v2948
    %v4869 = vcvt.s32.f32 %v2949
    %v4870 = vcvt.s32.f32 %v2950
    %v4871 = vcvt.s32.f32 %v2951
    %v4872 = vcvt.s32.f32 %v2952
    %v4873 = vcvt.s32.f32 %v2953
    %v4874 = vcvt.s32.f32 %v2954
    %v4875 = vcvt.s32.f32 %v2955
    %v4876 = vcvt.s32.f32 %v2956
    %v4877 = vcvt.s32.f32 %v2957
    %v4878 = vcvt.s32.f32 %v2958
    %v4879 = vcvt.s32.f32 %v2959
    %v4880 = vcvt.s32.f32 %v2960
    %v4881 = vcvt.s32.f32 %v2961
    %v4882 = vcvt.s32.f32 %v2962
    %v4883 = vpack.c.bf16 %v2967, %v2963
    %v4884 = vpack.c.bf16 %v2968, %v2964
    %v4885 = vpack.c.bf16 %v2969, %v2965
    %v4886 = vpack.c.bf16 %v2970, %v2966
    %v4887 = vpack.c.bf16 %v2975, %v2971
    %v4888 = vpack.c.bf16 %v2976, %v2972
    %v4889 = vpack.c.bf16 %v2977, %v2973
    %v4890 = vpack.c.bf16 %v2978, %v2974
    %v4891 = vpack.c.bf16 %v2983, %v2979
    %v4892 = vpack.c.bf16 %v2984, %v2980
    %v4893 = vpack.c.bf16 %v2985, %v2981
    %v4894 = vpack.c.bf16 %v2986, %v2982
    %v4895 = vpack.c.bf16 %v2991, %v2987
    %v4896 = vpack.c.bf16 %v2992, %v2988
    %v4897 = vpack.c.bf16 %v2993, %v2989
    %v4898 = vpack.c.bf16 %v2994, %v2990
    %v4899 = vpack.c.bf16 %v2999, %v2995
    %v4900 = vpack.c.bf16 %v3000, %v2996
    %v4901 = vpack.c.bf16 %v3001, %v2997
    %v4902 = vpack.c.bf16 %v3002, %v2998
    %v4903 = vpack.c.bf16 %v3007, %v3003
    %v4904 = vpack.c.bf16 %v3008, %v3004
    %v4905 = vpack.c.bf16 %v3009, %v3005
    %v4906 = vpack.c.bf16 %v3010, %v3006
    %v4907 = vpack.c.bf16 %v3015, %v3011
    %v4908 = vpack.c.bf16 %v3016, %v3012
    %v4909 = vpack.c.bf16 %v3017, %v3013
    %v4910 = vpack.c.bf16 %v3018, %v3014
    %v4911 = vpack.c.bf16 %v3023, %v3019
    %v4912 = vpack.c.bf16 %v3024, %v3020
    %v4913 = vpack.c.bf16 %v3025, %v3021
    %v4914 = vpack.c.bf16 %v3026, %v3022
    %v4915 = vpack.c.bf16 %v3031, %v3027
    %v4916 = vpack.c.bf16 %v3032, %v3028
    %v4917 = vpack.c.bf16 %v3033, %v3029
    %v4918 = vpack.c.bf16 %v3034, %v3030
    %v4919 = vpack.c.bf16 %v3039, %v3035
    %v4920 = vpack.c.bf16 %v3040, %v3036
    %v4921 = vpack.c.bf16 %v3041, %v3037
    %v4922 = vpack.c.bf16 %v3042, %v3038
    %v4923 = vpack.c.bf16 %v3047, %v3043
    %v4924 = vpack.c.bf16 %v3048, %v3044
    %v4925 = vpack.c.bf16 %v3049, %v3045
    %v4926 = vpack.c.bf16 %v3050, %v3046
    %v4927 = vpack.c.bf16 %v3055, %v3051
    %v4928 = vpack.c.bf16 %v3056, %v3052
    %v4929 = vpack.c.bf16 %v3057, %v3053
    %v4930 = vpack.c.bf16 %v3058, %v3054
    %v4931 = vpack.c.bf16 %v3063, %v3059
    %v4932 = vpack.c.bf16 %v3064, %v3060
    %v4933 = vpack.c.bf16 %v3065, %v3061
    %v4934 = vpack.c.bf16 %v3066, %v3062
    %v4935 = vpack.c.bf16 %v3071, %v3067
    %v4936 = vpack.c.bf16 %v3072, %v3068
    %v4937 = vpack.c.bf16 %v3073, %v3069
    %v4938 = vpack.c.bf16 %v3074, %v3070
    %v4939 = vpack.c.bf16 %v3079, %v3075
    %v4940 = vpack.c.bf16 %v3080, %v3076
    %v4941 = vpack.c.bf16 %v3081, %v3077
    %v4942 = vpack.c.bf16 %v3082, %v3078
    %v4943 = vpack.c.bf16 %v3087, %v3083
    %v4944 = vpack.c.bf16 %v3088, %v3084
    %v4945 = vpack.c.bf16 %v3089, %v3085
    %v4946 = vpack.c.bf16 %v3090, %v3086
    %v4947 = vpack.c.bf16 %v3095, %v3091
    %v4948 = vpack.c.bf16 %v3096, %v3092
    %v4949 = vpack.c.bf16 %v3097, %v3093
    %v4950 = vpack.c.bf16 %v3098, %v3094
    %v4951 = vpack.c.bf16 %v3103, %v3099
    %v4952 = vpack.c.bf16 %v3104, %v3100
    %v4953 = vpack.c.bf16 %v3105, %v3101
    %v4954 = vpack.c.bf16 %v3106, %v3102
    %v4955 = vpack.c.bf16 %v3111, %v3107
    %v4956 = vpack.c.bf16 %v3112, %v3108
    %v4957 = vpack.c.bf16 %v3113, %v3109
    %v4958 = vpack.c.bf16 %v3114, %v3110
    %v4959 = vpack.c.bf16 %v3119, %v3115
    %v4960 = vpack.c.bf16 %v3120, %v3116
    %v4961 = vpack.c.bf16 %v3121, %v3117
    %v4962 = vpack.c.bf16 %v3122, %v3118
    %v4963 = vpack.c.bf16 %v3127, %v3123
    %v4964 = vpack.c.bf16 %v3128, %v3124
    %v4965 = vpack.c.bf16 %v3129, %v3125
    %v4966 = vpack.c.bf16 %v3130, %v3126
    %v4967 = vpack.c.bf16 %v3135, %v3131
    %v4968 = vpack.c.bf16 %v3136, %v3132
    %v4969 = vpack.c.bf16 %v3137, %v3133
    %v4970 = vpack.c.bf16 %v3138, %v3134
    %v4971 = vpack.c.bf16 %v3143, %v3139
    %v4972 = vpack.c.bf16 %v3144, %v3140
    %v4973 = vpack.c.bf16 %v3145, %v3141
    %v4974 = vpack.c.bf16 %v3146, %v3142
    %v4975 = vpack.c.bf16 %v3151, %v3147
    %v4976 = vpack.c.bf16 %v3152, %v3148
    %v4977 = vpack.c.bf16 %v3153, %v3149
    %v4978 = vpack.c.bf16 %v3154, %v3150
    %v4979 = vpack.c.bf16 %v3159, %v3155
    %v4980 = vpack.c.bf16 %v3160, %v3156
    %v4981 = vpack.c.bf16 %v3161, %v3157
    %v4982 = vpack.c.bf16 %v3162, %v3158
    %v4983 = vpack.c.bf16 %v3167, %v3163
    %v4984 = vpack.c.bf16 %v3168, %v3164
    %v4985 = vpack.c.bf16 %v3169, %v3165
    %v4986 = vpack.c.bf16 %v3170, %v3166
    %v4987 = vpack.c.bf16 %v3175, %v3171
    %v4988 = vpack.c.bf16 %v3176, %v3172
    %v4989 = vpack.c.bf16 %v3177, %v3173
    %v4990 = vpack.c.bf16 %v3178, %v3174
    %v4991 = vpack.c.bf16 %v3183, %v3179
    %v4992 = vpack.c.bf16 %v3184, %v3180
    %v4993 = vpack.c.bf16 %v3185, %v3181
    %v4994 = vpack.c.bf16 %v3186, %v3182
    %v4995 = vpack.c.bf16 %v3191, %v3187
    %v4996 = vpack.c.bf16 %v3192, %v3188
    %v4997 = vpack.c.bf16 %v3193, %v3189
    %v4998 = vpack.c.bf16 %v3194, %v3190
    %v4999 = vpack.c.bf16 %v3199, %v3195
    %v5000 = vpack.c.bf16 %v3200, %v3196
    %v5001 = vpack.c.bf16 %v3201, %v3197
    %v5002 = vpack.c.bf16 %v3202, %v3198
    %v5003 = vpack.c.bf16 %v3207, %v3203
    %v5004 = vpack.c.bf16 %v3208, %v3204
    %v5005 = vpack.c.bf16 %v3209, %v3205
    %v5006 = vpack.c.bf16 %v3210, %v3206
    %v5007 = vpack.c.bf16 %v3215, %v3211
    %v5008 = vpack.c.bf16 %v3216, %v3212
    %v5009 = vpack.c.bf16 %v3217, %v3213
    %v5010 = vpack.c.bf16 %v3218, %v3214
    %v5011 = vpack.c.bf16 %v3223, %v3219
    %v5012 = vpack.c.bf16 %v3224, %v3220
    %v5013 = vpack.c.bf16 %v3225, %v3221
    %v5014 = vpack.c.bf16 %v3226, %v3222
    %v5015 = vpack.c.bf16 %v3231, %v3227
    %v5016 = vpack.c.bf16 %v3232, %v3228
    %v5017 = vpack.c.bf16 %v3233, %v3229
    %v5018 = vpack.c.bf16 %v3234, %v3230
    %v5019 = vpack.c.bf16 %v3239, %v3235
    %v5020 = vpack.c.bf16 %v3240, %v3236
    %v5021 = vpack.c.bf16 %v3241, %v3237
    %v5022 = vpack.c.bf16 %v3242, %v3238
    %v5023 = vpack.c.bf16 %v3247, %v3243
    %v5024 = vpack.c.bf16 %v3248, %v3244
    %v5025 = vpack.c.bf16 %v3249, %v3245
    %v5026 = vpack.c.bf16 %v3250, %v3246
    %v5027 = vpack.c.bf16 %v3255, %v3251
    %v5028 = vpack.c.bf16 %v3256, %v3252
    %v5029 = vpack.c.bf16 %v3257, %v3253
    %v5030 = vpack.c.bf16 %v3258, %v3254
    %v5031 = vpack.c.bf16 %v3263, %v3259
    %v5032 = vpack.c.bf16 %v3264, %v3260
    %v5033 = vpack.c.bf16 %v3265, %v3261
    %v5034 = vpack.c.bf16 %v3266, %v3262
    %v5035 = vpack.c.bf16 %v3271, %v3267
    %v5036 = vpack.c.bf16 %v3272, %v3268
    %v5037 = vpack.c.bf16 %v3273, %v3269
    %v5038 = vpack.c.bf16 %v3274, %v3270
    %v5039 = vpack.c.bf16 %v3279, %v3275
    %v5040 = vpack.c.bf16 %v3280, %v3276
    %v5041 = vpack.c.bf16 %v3281, %v3277
    %v5042 = vpack.c.bf16 %v3282, %v3278
    %v5043 = vpack.c.bf16 %v3287, %v3283
    %v5044 = vpack.c.bf16 %v3288, %v3284
    %v5045 = vpack.c.bf16 %v3289, %v3285
    %v5046 = vpack.c.bf16 %v3290, %v3286
    %v5047 = vpack.c.bf16 %v3295, %v3291
    %v5048 = vpack.c.bf16 %v3296, %v3292
    %v5049 = vpack.c.bf16 %v3297, %v3293
    %v5050 = vpack.c.bf16 %v3298, %v3294
    %v5051 = vpack.c.bf16 %v3303, %v3299
    %v5052 = vpack.c.bf16 %v3304, %v3300
    %v5053 = vpack.c.bf16 %v3305, %v3301
    %v5054 = vpack.c.bf16 %v3306, %v3302
    %v5055 = vpack.c.bf16 %v3311, %v3307
    %v5056 = vpack.c.bf16 %v3312, %v3308
    %v5057 = vpack.c.bf16 %v3313, %v3309
    %v5058 = vpack.c.bf16 %v3314, %v3310
    %v5059 = vpack.c.bf16 %v3319, %v3315
    %v5060 = vpack.c.bf16 %v3320, %v3316
    %v5061 = vpack.c.bf16 %v3321, %v3317
    %v5062 = vpack.c.bf16 %v3322, %v3318
    %v5063 = vpack.c.bf16 %v3327, %v3323
    %v5064 = vpack.c.bf16 %v3328, %v3324
    %v5065 = vpack.c.bf16 %v3329, %v3325
    %v5066 = vpack.c.bf16 %v3330, %v3326
    %v5067 = vpack.c.bf16 %v3335, %v3331
    %v5068 = vpack.c.bf16 %v3336, %v3332
    %v5069 = vpack.c.bf16 %v3337, %v3333
    %v5070 = vpack.c.bf16 %v3338, %v3334
    %v5071 = vpack.c.bf16 %v3343, %v3339
    %v5072 = vpack.c.bf16 %v3344, %v3340
    %v5073 = vpack.c.bf16 %v3345, %v3341
    %v5074 = vpack.c.bf16 %v3346, %v3342
    %v5075 = vpack.c.bf16 %v3351, %v3347
    %v5076 = vpack.c.bf16 %v3352, %v3348
    %v5077 = vpack.c.bf16 %v3353, %v3349
    %v5078 = vpack.c.bf16 %v3354, %v3350
    %v5079 = vpack.c.bf16 %v3359, %v3355
    %v5080 = vpack.c.bf16 %v3360, %v3356
    %v5081 = vpack.c.bf16 %v3361, %v3357
    %v5082 = vpack.c.bf16 %v3362, %v3358
    %v5083 = vpack.c.bf16 %v3367, %v3363
    %v5084 = vpack.c.bf16 %v3368, %v3364
    %v5085 = vpack.c.bf16 %v3369, %v3365
    %v5086 = vpack.c.bf16 %v3370, %v3366
    %v5087 = vpack.c.bf16 %v3375, %v3371
    %v5088 = vpack.c.bf16 %v3376, %v3372
    %v5089 = vpack.c.bf16 %v3377, %v3373
    %v5090 = vpack.c.bf16 %v3378, %v3374
    %v5091 = vpack.c.bf16 %v3383, %v3379
    %v5092 = vpack.c.bf16 %v3384, %v3380
    %v5093 = vpack.c.bf16 %v3385, %v3381
    %v5094 = vpack.c.bf16 %v3386, %v3382
    %v5095 = vpack.c.bf16 %v3391, %v3387
    %v5096 = vpack.c.bf16 %v3392, %v3388
    %v5097 = vpack.c.bf16 %v3393, %v3389
    %v5098 = vpack.c.bf16 %v3394, %v3390
    %v5099 = vpack.c.bf16 %v3399, %v3395
    %v5100 = vpack.c.bf16 %v3400, %v3396
    %v5101 = vpack.c.bf16 %v3401, %v3397
    %v5102 = vpack.c.bf16 %v3402, %v3398
    %v5103 = vpack.c.bf16 %v3407, %v3403
    %v5104 = vpack.c.bf16 %v3408, %v3404
    %v5105 = vpack.c.bf16 %v3409, %v3405
    %v5106 = vpack.c.bf16 %v3410, %v3406
    %v5107 = vpack.c.bf16 %v3415, %v3411
    %v5108 = vpack.c.bf16 %v3416, %v3412
    %v5109 = vpack.c.bf16 %v3417, %v3413
    %v5110 = vpack.c.bf16 %v3418, %v3414
    %v5111 = vpack.c.bf16 %v3423, %v3419
    %v5112 = vpack.c.bf16 %v3424, %v3420
    %v5113 = vpack.c.bf16 %v3425, %v3421
    %v5114 = vpack.c.bf16 %v3426, %v3422
    %v5115 = vpack.c.bf16 %v3431, %v3427
    %v5116 = vpack.c.bf16 %v3432, %v3428
    %v5117 = vpack.c.bf16 %v3433, %v3429
    %v5118 = vpack.c.bf16 %v3434, %v3430
    %v5119 = vpack.c.bf16 %v3439, %v3435
    %v5120 = vpack.c.bf16 %v3440, %v3436
    %v5121 = vpack.c.bf16 %v3441, %v3437
    %v5122 = vpack.c.bf16 %v3442, %v3438
    %v5123 = vpack.c.bf16 %v3447, %v3443
    %v5124 = vpack.c.bf16 %v3448, %v3444
    %v5125 = vpack.c.bf16 %v3449, %v3445
    %v5126 = vpack.c.bf16 %v3450, %v3446
    %v5127 = vpack.c.bf16 %v3455, %v3451
    %v5128 = vpack.c.bf16 %v3456, %v3452
    %v5129 = vpack.c.bf16 %v3457, %v3453
    %v5130 = vpack.c.bf16 %v3458, %v3454
    %v5131 = vpack.c.bf16 %v3463, %v3459
    %v5132 = vpack.c.bf16 %v3464, %v3460
    %v5133 = vpack.c.bf16 %v3465, %v3461
    %v5134 = vpack.c.bf16 %v3466, %v3462
    %v5135 = vpack.c.bf16 %v3471, %v3467
    %v5136 = vpack.c.bf16 %v3472, %v3468
    %v5137 = vpack.c.bf16 %v3473, %v3469
    %v5138 = vpack.c.bf16 %v3474, %v3470
    %v5139 = vpack.c.bf16 %v3479, %v3475
    %v5140 = vpack.c.bf16 %v3480, %v3476
    %v5141 = vpack.c.bf16 %v3481, %v3477
    %v5142 = vpack.c.bf16 %v3482, %v3478
    %v5143 = vpack.c.bf16 %v3487, %v3483
    %v5144 = vpack.c.bf16 %v3488, %v3484
    %v5145 = vpack.c.bf16 %v3489, %v3485
    %v5146 = vpack.c.bf16 %v3490, %v3486
    %v5147 = vpack.c.bf16 %v3495, %v3491
    %v5148 = vpack.c.bf16 %v3496, %v3492
    %v5149 = vpack.c.bf16 %v3497, %v3493
    %v5150 = vpack.c.bf16 %v3498, %v3494
    %v5151 = vpack.c.bf16 %v3503, %v3499
    %v5152 = vpack.c.bf16 %v3504, %v3500
    %v5153 = vpack.c.bf16 %v3505, %v3501
    %v5154 = vpack.c.bf16 %v3506, %v3502
    %v5155 = vpack.c.bf16 %v3511, %v3507
    %v5156 = vpack.c.bf16 %v3512, %v3508
    %v5157 = vpack.c.bf16 %v3513, %v3509
    %v5158 = vpack.c.bf16 %v3514, %v3510
    %v5159 = vpack.c.bf16 %v3519, %v3515
    %v5160 = vpack.c.bf16 %v3520, %v3516
    %v5161 = vpack.c.bf16 %v3521, %v3517
    %v5162 = vpack.c.bf16 %v3522, %v3518
    %v5163 = vpack.c.bf16 %v3527, %v3523
    %v5164 = vpack.c.bf16 %v3528, %v3524
    %v5165 = vpack.c.bf16 %v3529, %v3525
    %v5166 = vpack.c.bf16 %v3530, %v3526
    %v5167 = vpack.c.bf16 %v3535, %v3531
    %v5168 = vpack.c.bf16 %v3536, %v3532
    %v5169 = vpack.c.bf16 %v3537, %v3533
    %v5170 = vpack.c.bf16 %v3538, %v3534
    %v5171 = vpack.c.bf16 %v3543, %v3539
    %v5172 = vpack.c.bf16 %v3544, %v3540
    %v5173 = vpack.c.bf16 %v3545, %v3541
    %v5174 = vpack.c.bf16 %v3546, %v3542
    %v5175 = vpack.c.bf16 %v3551, %v3547
    %v5176 = vpack.c.bf16 %v3552, %v3548
    %v5177 = vpack.c.bf16 %v3553, %v3549
    %v5178 = vpack.c.bf16 %v3554, %v3550
    %v5179 = vpack.c.bf16 %v3559, %v3555
    %v5180 = vpack.c.bf16 %v3560, %v3556
    %v5181 = vpack.c.bf16 %v3561, %v3557
    %v5182 = vpack.c.bf16 %v3562, %v3558
    %v5183 = vpack.c.bf16 %v3567, %v3563
    %v5184 = vpack.c.bf16 %v3568, %v3564
    %v5185 = vpack.c.bf16 %v3569, %v3565
    %v5186 = vpack.c.bf16 %v3570, %v3566
    %v5187 = vpack.c.bf16 %v3575, %v3571
    %v5188 = vpack.c.bf16 %v3576, %v3572
    %v5189 = vpack.c.bf16 %v3577, %v3573
    %v5190 = vpack.c.bf16 %v3578, %v3574
    %v5191 = vpack.c.bf16 %v3583, %v3579
    %v5192 = vpack.c.bf16 %v3584, %v3580
    %v5193 = vpack.c.bf16 %v3585, %v3581
    %v5194 = vpack.c.bf16 %v3586, %v3582
    %v5195 = vpack.c.bf16 %v3591, %v3587
    %v5196 = vpack.c.bf16 %v3592, %v3588
    %v5197 = vpack.c.bf16 %v3593, %v3589
    %v5198 = vpack.c.bf16 %v3594, %v3590
    %v5199 = vpack.c.bf16 %v3599, %v3595
    %v5200 = vpack.c.bf16 %v3600, %v3596
    %v5201 = vpack.c.bf16 %v3601, %v3597
    %v5202 = vpack.c.bf16 %v3602, %v3598
    %v5203 = vpack.c.bf16 %v3607, %v3603
    %v5204 = vpack.c.bf16 %v3608, %v3604
    %v5205 = vpack.c.bf16 %v3609, %v3605
    %v5206 = vpack.c.bf16 %v3610, %v3606
    %v5207 = vpack.c.bf16 %v3615, %v3611
    %v5208 = vpack.c.bf16 %v3616, %v3612
    %v5209 = vpack.c.bf16 %v3617, %v3613
    %v5210 = vpack.c.bf16 %v3618, %v3614
    %v5211 = vpack.c.bf16 %v3623, %v3619
    %v5212 = vpack.c.bf16 %v3624, %v3620
    %v5213 = vpack.c.bf16 %v3625, %v3621
    %v5214 = vpack.c.bf16 %v3626, %v3622
    %v5215 = vpack.c.bf16 %v3631, %v3627
    %v5216 = vpack.c.bf16 %v3632, %v3628
    %v5217 = vpack.c.bf16 %v3633, %v3629
    %v5218 = vpack.c.bf16 %v3634, %v3630
    %v5219 = vpack.c.bf16 %v3639, %v3635
    %v5220 = vpack.c.bf16 %v3640, %v3636
    %v5221 = vpack.c.bf16 %v3641, %v3637
    %v5222 = vpack.c.bf16 %v3642, %v3638
    %v5223 = vpack.c.bf16 %v3647, %v3643
    %v5224 = vpack.c.bf16 %v3648, %v3644
    %v5225 = vpack.c.bf16 %v3649, %v3645
    %v5226 = vpack.c.bf16 %v3650, %v3646
    %v5227 = vpack.c.bf16 %v3655, %v3651
    %v5228 = vpack.c.bf16 %v3656, %v3652
    %v5229 = vpack.c.bf16 %v3657, %v3653
    %v5230 = vpack.c.bf16 %v3658, %v3654
    %v5231 = vpack.c.bf16 %v3663, %v3659
    %v5232 = vpack.c.bf16 %v3664, %v3660
    %v5233 = vpack.c.bf16 %v3665, %v3661
    %v5234 = vpack.c.bf16 %v3666, %v3662
    %v5235 = vpack.c.bf16 %v3671, %v3667
    %v5236 = vpack.c.bf16 %v3672, %v3668
    %v5237 = vpack.c.bf16 %v3673, %v3669
    %v5238 = vpack.c.bf16 %v3674, %v3670
    %v5239 = vpack.c.bf16 %v3679, %v3675
    %v5240 = vpack.c.bf16 %v3680, %v3676
    %v5241 = vpack.c.bf16 %v3681, %v3677
    %v5242 = vpack.c.bf16 %v3682, %v3678
    %v5243 = vpack.c.bf16 %v3687, %v3683
    %v5244 = vpack.c.bf16 %v3688, %v3684
    %v5245 = vpack.c.bf16 %v3689, %v3685
    %v5246 = vpack.c.bf16 %v3690, %v3686
    %v5247 = vpack.c.bf16 %v3695, %v3691
    %v5248 = vpack.c.bf16 %v3696, %v3692
    %v5249 = vpack.c.bf16 %v3697, %v3693
    %v5250 = vpack.c.bf16 %v3698, %v3694
    %v5251 = vpack.c.bf16 %v3703, %v3699
    %v5252 = vpack.c.bf16 %v3704, %v3700
    %v5253 = vpack.c.bf16 %v3705, %v3701
    %v5254 = vpack.c.bf16 %v3706, %v3702
    %v5255 = vpack.c.bf16 %v3711, %v3707
    %v5256 = vpack.c.bf16 %v3712, %v3708
    %v5257 = vpack.c.bf16 %v3713, %v3709
    %v5258 = vpack.c.bf16 %v3714, %v3710
    %v5259 = vpack.c.bf16 %v3719, %v3715
    %v5260 = vpack.c.bf16 %v3720, %v3716
    %v5261 = vpack.c.bf16 %v3721, %v3717
    %v5262 = vpack.c.bf16 %v3722, %v3718
    %v5263 = vpack.c.bf16 %v3727, %v3723
    %v5264 = vpack.c.bf16 %v3728, %v3724
    %v5265 = vpack.c.bf16 %v3729, %v3725
    %v5266 = vpack.c.bf16 %v3730, %v3726
    %v5267 = vpack.c.bf16 %v3735, %v3731
    %v5268 = vpack.c.bf16 %v3736, %v3732
    %v5269 = vpack.c.bf16 %v3737, %v3733
    %v5270 = vpack.c.bf16 %v3738, %v3734
    %v5271 = vpack.c.bf16 %v3743, %v3739
    %v5272 = vpack.c.bf16 %v3744, %v3740
    %v5273 = vpack.c.bf16 %v3745, %v3741
    %v5274 = vpack.c.bf16 %v3746, %v3742
    %v5275 = vpack.c.bf16 %v3751, %v3747
    %v5276 = vpack.c.bf16 %v3752, %v3748
    %v5277 = vpack.c.bf16 %v3753, %v3749
    %v5278 = vpack.c.bf16 %v3754, %v3750
    %v5279 = vpack.c.bf16 %v3759, %v3755
    %v5280 = vpack.c.bf16 %v3760, %v3756
    %v5281 = vpack.c.bf16 %v3761, %v3757
    %v5282 = vpack.c.bf16 %v3762, %v3758
    %v5283 = vpack.c.bf16 %v3767, %v3763
    %v5284 = vpack.c.bf16 %v3768, %v3764
    %v5285 = vpack.c.bf16 %v3769, %v3765
    %v5286 = vpack.c.bf16 %v3770, %v3766
    %v5287 = vpack.c.bf16 %v3775, %v3771
    %v5288 = vpack.c.bf16 %v3776, %v3772
    %v5289 = vpack.c.bf16 %v3777, %v3773
    %v5290 = vpack.c.bf16 %v3778, %v3774
    %v5291 = vpack.c.bf16 %v3783, %v3779
    %v5292 = vpack.c.bf16 %v3784, %v3780
    %v5293 = vpack.c.bf16 %v3785, %v3781
    %v5294 = vpack.c.bf16 %v3786, %v3782
    %v5295 = vpack.c.bf16 %v3791, %v3787
    %v5296 = vpack.c.bf16 %v3792, %v3788
    %v5297 = vpack.c.bf16 %v3793, %v3789
    %v5298 = vpack.c.bf16 %v3794, %v3790
    %v5299 = vpack.c.bf16 %v3799, %v3795
    %v5300 = vpack.c.bf16 %v3800, %v3796
    %v5301 = vpack.c.bf16 %v3801, %v3797
    %v5302 = vpack.c.bf16 %v3802, %v3798
    %v5303 = vpack.c.bf16 %v3807, %v3803
    %v5304 = vpack.c.bf16 %v3808, %v3804
    %v5305 = vpack.c.bf16 %v3809, %v3805
    %v5306 = vpack.c.bf16 %v3810, %v3806
    %v5307 = vpack.c.bf16 %v3815, %v3811
    %v5308 = vpack.c.bf16 %v3816, %v3812
    %v5309 = vpack.c.bf16 %v3817, %v3813
    %v5310 = vpack.c.bf16 %v3818, %v3814
    %v5311 = vpack.c.bf16 %v3823, %v3819
    %v5312 = vpack.c.bf16 %v3824, %v3820
    %v5313 = vpack.c.bf16 %v3825, %v3821
    %v5314 = vpack.c.bf16 %v3826, %v3822
    %v5315 = vpack.c.bf16 %v3831, %v3827
    %v5316 = vpack.c.bf16 %v3832, %v3828
    %v5317 = vpack.c.bf16 %v3833, %v3829
    %v5318 = vpack.c.bf16 %v3834, %v3830
    %v5319 = vpack.c.bf16 %v3839, %v3835
    %v5320 = vpack.c.bf16 %v3840, %v3836
    %v5321 = vpack.c.bf16 %v3841, %v3837
    %v5322 = vpack.c.bf16 %v3842, %v3838
    %v5323 = vpack.c.bf16 %v3847, %v3843
    %v5324 = vpack.c.bf16 %v3848, %v3844
    %v5325 = vpack.c.bf16 %v3849, %v3845
    %v5326 = vpack.c.bf16 %v3850, %v3846
    %v5327 = vpack.c.bf16 %v3855, %v3851
    %v5328 = vpack.c.bf16 %v3856, %v3852
    %v5329 = vpack.c.bf16 %v3857, %v3853
    %v5330 = vpack.c.bf16 %v3858, %v3854
    %v5331 = vpack.c.bf16 %v3863, %v3859
    %v5332 = vpack.c.bf16 %v3864, %v3860
    %v5333 = vpack.c.bf16 %v3865, %v3861
    %v5334 = vpack.c.bf16 %v3866, %v3862
    %v5335 = vpack.c.bf16 %v3871, %v3867
    %v5336 = vpack.c.bf16 %v3872, %v3868
    %v5337 = vpack.c.bf16 %v3873, %v3869
    %v5338 = vpack.c.bf16 %v3874, %v3870
    %v5339 = vpack.c.bf16 %v3879, %v3875
    %v5340 = vpack.c.bf16 %v3880, %v3876
    %v5341 = vpack.c.bf16 %v3881, %v3877
    %v5342 = vpack.c.bf16 %v3882, %v3878
    %v5343 = vpack.c.bf16 %v3887, %v3883
    %v5344 = vpack.c.bf16 %v3888, %v3884
    %v5345 = vpack.c.bf16 %v3889, %v3885
    %v5346 = vpack.c.bf16 %v3890, %v3886
    %v5347 = vpack.c.bf16 %v3895, %v3891
    %v5348 = vpack.c.bf16 %v3896, %v3892
    %v5349 = vpack.c.bf16 %v3897, %v3893
    %v5350 = vpack.c.bf16 %v3898, %v3894
    %v5351 = vpack.c.bf16 %v3903, %v3899
    %v5352 = vpack.c.bf16 %v3904, %v3900
    %v5353 = vpack.c.bf16 %v3905, %v3901
    %v5354 = vpack.c.bf16 %v3906, %v3902
    %v5355 = vpack.c.bf16 %v3911, %v3907
    %v5356 = vpack.c.bf16 %v3912, %v3908
    %v5357 = vpack.c.bf16 %v3913, %v3909
    %v5358 = vpack.c.bf16 %v3914, %v3910
    %v5359 = vpack.c.bf16 %v3919, %v3915
    %v5360 = vpack.c.bf16 %v3920, %v3916
    %v5361 = vpack.c.bf16 %v3921, %v3917
    %v5362 = vpack.c.bf16 %v3922, %v3918
    %v5363 = vpack.c.bf16 %v3927, %v3923
    %v5364 = vpack.c.bf16 %v3928, %v3924
    %v5365 = vpack.c.bf16 %v3929, %v3925
    %v5366 = vpack.c.bf16 %v3930, %v3926
    %v5367 = vpack.c.bf16 %v3935, %v3931
    %v5368 = vpack.c.bf16 %v3936, %v3932
    %v5369 = vpack.c.bf16 %v3937, %v3933
    %v5370 = vpack.c.bf16 %v3938, %v3934
    %v5371 = vpack.c.bf16 %v3943, %v3939
    %v5372 = vpack.c.bf16 %v3944, %v3940
    %v5373 = vpack.c.bf16 %v3945, %v3941
    %v5374 = vpack.c.bf16 %v3946, %v3942
    %v5375 = vpack.c.bf16 %v3951, %v3947
    %v5376 = vpack.c.bf16 %v3952, %v3948
    %v5377 = vpack.c.bf16 %v3953, %v3949
    %v5378 = vpack.c.bf16 %v3954, %v3950
    %v5379 = vpack.c.bf16 %v3959, %v3955
    %v5380 = vpack.c.bf16 %v3960, %v3956
    %v5381 = vpack.c.bf16 %v3961, %v3957
    %v5382 = vpack.c.bf16 %v3962, %v3958
    %v5383 = vpack.c.bf16 %v3967, %v3963
    %v5384 = vpack.c.bf16 %v3968, %v3964
    %v5385 = vpack.c.bf16 %v3969, %v3965
    %v5386 = vpack.c.bf16 %v3970, %v3966
    %v5387 = vpack.c.bf16 %v3975, %v3971
    %v5388 = vpack.c.bf16 %v3976, %v3972
    %v5389 = vpack.c.bf16 %v3977, %v3973
    %v5390 = vpack.c.bf16 %v3978, %v3974
    %v5391 = vpack.c.bf16 %v3983, %v3979
    %v5392 = vpack.c.bf16 %v3984, %v3980
    %v5393 = vpack.c.bf16 %v3985, %v3981
    %v5394 = vpack.c.bf16 %v3986, %v3982
    %v5395 = vpack.c.bf16 %v3991, %v3987
    %v5396 = vpack.c.bf16 %v3992, %v3988
    %v5397 = vpack.c.bf16 %v3993, %v3989
    %v5398 = vpack.c.bf16 %v3994, %v3990
    %v5399 = vpack.c.bf16 %v3999, %v3995
    %v5400 = vpack.c.bf16 %v4000, %v3996
    %v5401 = vpack.c.bf16 %v4001, %v3997
    %v5402 = vpack.c.bf16 %v4002, %v3998
    %v5403 = vpack.c.bf16 %v4007, %v4003
    %v5404 = vpack.c.bf16 %v4008, %v4004
    %v5405 = vpack.c.bf16 %v4009, %v4005
    %v5406 = vpack.c.bf16 %v4010, %v4006
    %v5407 = vpack.c.bf16 %v4015, %v4011
    %v5408 = vpack.c.bf16 %v4016, %v4012
    %v5409 = vpack.c.bf16 %v4017, %v4013
    %v5410 = vpack.c.bf16 %v4018, %v4014
    %v5411 = vpack.c.bf16 %v4023, %v4019
    %v5412 = vpack.c.bf16 %v4024, %v4020
    %v5413 = vpack.c.bf16 %v4025, %v4021
    %v5414 = vpack.c.bf16 %v4026, %v4022
    %v5415 = vpack.c.bf16 %v4031, %v4027
    %v5416 = vpack.c.bf16 %v4032, %v4028
    %v5417 = vpack.c.bf16 %v4033, %v4029
    %v5418 = vpack.c.bf16 %v4034, %v4030
    %v5419 = vpack.c.bf16 %v4039, %v4035
    %v5420 = vpack.c.bf16 %v4040, %v4036
    %v5421 = vpack.c.bf16 %v4041, %v4037
    %v5422 = vpack.c.bf16 %v4042, %v4038
    %v5423 = vpack.c.bf16 %v4047, %v4043
    %v5424 = vpack.c.bf16 %v4048, %v4044
    %v5425 = vpack.c.bf16 %v4049, %v4045
    %v5426 = vpack.c.bf16 %v4050, %v4046
    %v5427 = vpack.c.bf16 %v4055, %v4051
    %v5428 = vpack.c.bf16 %v4056, %v4052
    %v5429 = vpack.c.bf16 %v4057, %v4053
    %v5430 = vpack.c.bf16 %v4058, %v4054
    %v5431 = vpack.c.bf16 %v4063, %v4059
    %v5432 = vpack.c.bf16 %v4064, %v4060
    %v5433 = vpack.c.bf16 %v4065, %v4061
    %v5434 = vpack.c.bf16 %v4066, %v4062
    %v5435 = vpack.c.bf16 %v4071, %v4067
    %v5436 = vpack.c.bf16 %v4072, %v4068
    %v5437 = vpack.c.bf16 %v4073, %v4069
    %v5438 = vpack.c.bf16 %v4074, %v4070
    %v5439 = vpack.c.bf16 %v4079, %v4075
    %v5440 = vpack.c.bf16 %v4080, %v4076
    %v5441 = vpack.c.bf16 %v4081, %v4077
    %v5442 = vpack.c.bf16 %v4082, %v4078
    %v5443 = vpack.c.bf16 %v4087, %v4083
    %v5444 = vpack.c.bf16 %v4088, %v4084
    %v5445 = vpack.c.bf16 %v4089, %v4085
    %v5446 = vpack.c.bf16 %v4090, %v4086
    %v5447 = vpack.c.bf16 %v4095, %v4091
    %v5448 = vpack.c.bf16 %v4096, %v4092
    %v5449 = vpack.c.bf16 %v4097, %v4093
    %v5450 = vpack.c.bf16 %v4098, %v4094
    %v5451 = vpack.c.bf16 %v4103, %v4099
    %v5452 = vpack.c.bf16 %v4104, %v4100
    %v5453 = vpack.c.bf16 %v4105, %v4101
    %v5454 = vpack.c.bf16 %v4106, %v4102
    %v5455 = vpack.c.bf16 %v4111, %v4107
    %v5456 = vpack.c.bf16 %v4112, %v4108
    %v5457 = vpack.c.bf16 %v4113, %v4109
    %v5458 = vpack.c.bf16 %v4114, %v4110
    %v5459 = vpack.c.bf16 %v4119, %v4115
    %v5460 = vpack.c.bf16 %v4120, %v4116
    %v5461 = vpack.c.bf16 %v4121, %v4117
    %v5462 = vpack.c.bf16 %v4122, %v4118
    %v5463 = vpack.c.bf16 %v4127, %v4123
    %v5464 = vpack.c.bf16 %v4128, %v4124
    %v5465 = vpack.c.bf16 %v4129, %v4125
    %v5466 = vpack.c.bf16 %v4130, %v4126
    %v5467 = vpack.c.bf16 %v4135, %v4131
    %v5468 = vpack.c.bf16 %v4136, %v4132
    %v5469 = vpack.c.bf16 %v4137, %v4133
    %v5470 = vpack.c.bf16 %v4138, %v4134
    %v5471 = vpack.c.bf16 %v4143, %v4139
    %v5472 = vpack.c.bf16 %v4144, %v4140
    %v5473 = vpack.c.bf16 %v4145, %v4141
    %v5474 = vpack.c.bf16 %v4146, %v4142
    %v5475 = vpack.c.bf16 %v4151, %v4147
    %v5476 = vpack.c.bf16 %v4152, %v4148
    %v5477 = vpack.c.bf16 %v4153, %v4149
    %v5478 = vpack.c.bf16 %v4154, %v4150
    %v5479 = vpack.c.bf16 %v4159, %v4155
    %v5480 = vpack.c.bf16 %v4160, %v4156
    %v5481 = vpack.c.bf16 %v4161, %v4157
    %v5482 = vpack.c.bf16 %v4162, %v4158
    %v5483 = vpack.c.bf16 %v4167, %v4163
    %v5484 = vpack.c.bf16 %v4168, %v4164
    %v5485 = vpack.c.bf16 %v4169, %v4165
    %v5486 = vpack.c.bf16 %v4170, %v4166
    %v5487 = vpack.c.bf16 %v4175, %v4171
    %v5488 = vpack.c.bf16 %v4176, %v4172
    %v5489 = vpack.c.bf16 %v4177, %v4173
    %v5490 = vpack.c.bf16 %v4178, %v4174
    %v5491 = vpack.c.bf16 %v4183, %v4179
    %v5492 = vpack.c.bf16 %v4184, %v4180
    %v5493 = vpack.c.bf16 %v4185, %v4181
    %v5494 = vpack.c.bf16 %v4186, %v4182
    %v5495 = vpack.c.bf16 %v4191, %v4187
    %v5496 = vpack.c.bf16 %v4192, %v4188
    %v5497 = vpack.c.bf16 %v4193, %v4189
    %v5498 = vpack.c.bf16 %v4194, %v4190
    %v5499 = vpack.c.bf16 %v4199, %v4195
    %v5500 = vpack.c.bf16 %v4200, %v4196
    %v5501 = vpack.c.bf16 %v4201, %v4197
    %v5502 = vpack.c.bf16 %v4202, %v4198
    %v5503 = vpack.c.bf16 %v4207, %v4203
    %v5504 = vpack.c.bf16 %v4208, %v4204
    %v5505 = vpack.c.bf16 %v4209, %v4205
    %v5506 = vpack.c.bf16 %v4210, %v4206
    %v5507 = vpack.c.bf16 %v4215, %v4211
    %v5508 = vpack.c.bf16 %v4216, %v4212
    %v5509 = vpack.c.bf16 %v4217, %v4213
    %v5510 = vpack.c.bf16 %v4218, %v4214
    %v5511 = vpack.c.bf16 %v4223, %v4219
    %v5512 = vpack.c.bf16 %v4224, %v4220
    %v5513 = vpack.c.bf16 %v4225, %v4221
    %v5514 = vpack.c.bf16 %v4226, %v4222
    %v5515 = vpack.c.bf16 %v4231, %v4227
    %v5516 = vpack.c.bf16 %v4232, %v4228
    %v5517 = vpack.c.bf16 %v4233, %v4229
    %v5518 = vpack.c.bf16 %v4234, %v4230
    %v5519 = vpack.c.bf16 %v4239, %v4235
    %v5520 = vpack.c.bf16 %v4240, %v4236
    %v5521 = vpack.c.bf16 %v4241, %v4237
    %v5522 = vpack.c.bf16 %v4242, %v4238
    %v5523 = vpack.c.bf16 %v4247, %v4243
    %v5524 = vpack.c.bf16 %v4248, %v4244
    %v5525 = vpack.c.bf16 %v4249, %v4245
    %v5526 = vpack.c.bf16 %v4250, %v4246
    %v5527 = vpack.c.bf16 %v4255, %v4251
    %v5528 = vpack.c.bf16 %v4256, %v4252
    %v5529 = vpack.c.bf16 %v4257, %v4253
    %v5530 = vpack.c.bf16 %v4258, %v4254
    %v5531 = vpack.c.bf16 %v4263, %v4259
    %v5532 = vpack.c.bf16 %v4264, %v4260
    %v5533 = vpack.c.bf16 %v4265, %v4261
    %v5534 = vpack.c.bf16 %v4266, %v4262
    %v5535 = vpack.c.bf16 %v4271, %v4267
    %v5536 = vpack.c.bf16 %v4272, %v4268
    %v5537 = vpack.c.bf16 %v4273, %v4269
    %v5538 = vpack.c.bf16 %v4274, %v4270
    %v5539 = vpack.c.bf16 %v4279, %v4275
    %v5540 = vpack.c.bf16 %v4280, %v4276
    %v5541 = vpack.c.bf16 %v4281, %v4277
    %v5542 = vpack.c.bf16 %v4282, %v4278
    %v5543 = vpack.c.bf16 %v4287, %v4283
    %v5544 = vpack.c.bf16 %v4288, %v4284
    %v5545 = vpack.c.bf16 %v4289, %v4285
    %v5546 = vpack.c.bf16 %v4290, %v4286
    %v5547 = vpack.c.bf16 %v4295, %v4291
    %v5548 = vpack.c.bf16 %v4296, %v4292
    %v5549 = vpack.c.bf16 %v4297, %v4293
    %v5550 = vpack.c.bf16 %v4298, %v4294
    %v5551 = vpack.c.bf16 %v4303, %v4299
    %v5552 = vpack.c.bf16 %v4304, %v4300
    %v5553 = vpack.c.bf16 %v4305, %v4301
    %v5554 = vpack.c.bf16 %v4306, %v4302
    %v5555 = vpack.c.bf16 %v4311, %v4307
    %v5556 = vpack.c.bf16 %v4312, %v4308
    %v5557 = vpack.c.bf16 %v4313, %v4309
    %v5558 = vpack.c.bf16 %v4314, %v4310
    %v5559 = vpack.c.bf16 %v4319, %v4315
    %v5560 = vpack.c.bf16 %v4320, %v4316
    %v5561 = vpack.c.bf16 %v4321, %v4317
    %v5562 = vpack.c.bf16 %v4322, %v4318
    %v5563 = vpack.c.bf16 %v4327, %v4323
    %v5564 = vpack.c.bf16 %v4328, %v4324
    %v5565 = vpack.c.bf16 %v4329, %v4325
    %v5566 = vpack.c.bf16 %v4330, %v4326
    %v5567 = vpack.c.bf16 %v4335, %v4331
    %v5568 = vpack.c.bf16 %v4336, %v4332
    %v5569 = vpack.c.bf16 %v4337, %v4333
    %v5570 = vpack.c.bf16 %v4338, %v4334
    %v5571 = vpack.c.bf16 %v4343, %v4339
    %v5572 = vpack.c.bf16 %v4344, %v4340
    %v5573 = vpack.c.bf16 %v4345, %v4341
    %v5574 = vpack.c.bf16 %v4346, %v4342
    %v5575 = vpack.c.bf16 %v4351, %v4347
    %v5576 = vpack.c.bf16 %v4352, %v4348
    %v5577 = vpack.c.bf16 %v4353, %v4349
    %v5578 = vpack.c.bf16 %v4354, %v4350
    %v5579 = vpack.c.bf16 %v4359, %v4355
    %v5580 = vpack.c.bf16 %v4360, %v4356
    %v5581 = vpack.c.bf16 %v4361, %v4357
    %v5582 = vpack.c.bf16 %v4362, %v4358
    %v5583 = vpack.c.bf16 %v4367, %v4363
    %v5584 = vpack.c.bf16 %v4368, %v4364
    %v5585 = vpack.c.bf16 %v4369, %v4365
    %v5586 = vpack.c.bf16 %v4370, %v4366
    %v5587 = vpack.c.bf16 %v4375, %v4371
    %v5588 = vpack.c.bf16 %v4376, %v4372
    %v5589 = vpack.c.bf16 %v4377, %v4373
    %v5590 = vpack.c.bf16 %v4378, %v4374
    %v5591 = vpack.c.bf16 %v4383, %v4379
    %v5592 = vpack.c.bf16 %v4384, %v4380
    %v5593 = vpack.c.bf16 %v4385, %v4381
    %v5594 = vpack.c.bf16 %v4386, %v4382
    %v5595 = vpack.c.bf16 %v4391, %v4387
    %v5596 = vpack.c.bf16 %v4392, %v4388
    %v5597 = vpack.c.bf16 %v4393, %v4389
    %v5598 = vpack.c.bf16 %v4394, %v4390
    %v5599 = vpack.c.bf16 %v4399, %v4395
    %v5600 = vpack.c.bf16 %v4400, %v4396
    %v5601 = vpack.c.bf16 %v4401, %v4397
    %v5602 = vpack.c.bf16 %v4402, %v4398
    %v5603 = vpack.c.bf16 %v4407, %v4403
    %v5604 = vpack.c.bf16 %v4408, %v4404
    %v5605 = vpack.c.bf16 %v4409, %v4405
    %v5606 = vpack.c.bf16 %v4410, %v4406
    %v5607 = vpack.c.bf16 %v4415, %v4411
    %v5608 = vpack.c.bf16 %v4416, %v4412
    %v5609 = vpack.c.bf16 %v4417, %v4413
    %v5610 = vpack.c.bf16 %v4418, %v4414
    %v5611 = vpack.c.bf16 %v4423, %v4419
    %v5612 = vpack.c.bf16 %v4424, %v4420
    %v5613 = vpack.c.bf16 %v4425, %v4421
    %v5614 = vpack.c.bf16 %v4426, %v4422
    %v5615 = vpack.c.bf16 %v4431, %v4427
    %v5616 = vpack.c.bf16 %v4432, %v4428
    %v5617 = vpack.c.bf16 %v4433, %v4429
    %v5618 = vpack.c.bf16 %v4434, %v4430
    %v5619 = vpack.c.bf16 %v4439, %v4435
    %v5620 = vpack.c.bf16 %v4440, %v4436
    %v5621 = vpack.c.bf16 %v4441, %v4437
    %v5622 = vpack.c.bf16 %v4442, %v4438
    %v5623 = vpack.c.bf16 %v4447, %v4443
    %v5624 = vpack.c.bf16 %v4448, %v4444
    %v5625 = vpack.c.bf16 %v4449, %v4445
    %v5626 = vpack.c.bf16 %v4450, %v4446
    %v5627 = vpack.c.bf16 %v4455, %v4451
    %v5628 = vpack.c.bf16 %v4456, %v4452
    %v5629 = vpack.c.bf16 %v4457, %v4453
    %v5630 = vpack.c.bf16 %v4458, %v4454
    %v5631 = vpack.c.bf16 %v4463, %v4459
    %v5632 = vpack.c.bf16 %v4464, %v4460
    %v5633 = vpack.c.bf16 %v4465, %v4461
    %v5634 = vpack.c.bf16 %v4466, %v4462
    %v5635 = vpack.c.bf16 %v4471, %v4467
    %v5636 = vpack.c.bf16 %v4472, %v4468
    %v5637 = vpack.c.bf16 %v4473, %v4469
    %v5638 = vpack.c.bf16 %v4474, %v4470
    %v5639 = vpack.c.bf16 %v4479, %v4475
    %v5640 = vpack.c.bf16 %v4480, %v4476
    %v5641 = vpack.c.bf16 %v4481, %v4477
    %v5642 = vpack.c.bf16 %v4482, %v4478
    %v5643 = vpack.c.bf16 %v4487, %v4483
    %v5644 = vpack.c.bf16 %v4488, %v4484
    %v5645 = vpack.c.bf16 %v4489, %v4485
    %v5646 = vpack.c.bf16 %v4490, %v4486
    %v5647 = vpack.c.bf16 %v4495, %v4491
    %v5648 = vpack.c.bf16 %v4496, %v4492
    %v5649 = vpack.c.bf16 %v4497, %v4493
    %v5650 = vpack.c.bf16 %v4498, %v4494
    %v5651 = vpack.c.bf16 %v4503, %v4499
    %v5652 = vpack.c.bf16 %v4504, %v4500
    %v5653 = vpack.c.bf16 %v4505, %v4501
    %v5654 = vpack.c.bf16 %v4506, %v4502
    %v5655 = vpack.c.bf16 %v4511, %v4507
    %v5656 = vpack.c.bf16 %v4512, %v4508
    %v5657 = vpack.c.bf16 %v4513, %v4509
    %v5658 = vpack.c.bf16 %v4514, %v4510
    %v5659 = vpack.c.bf16 %v4519, %v4515
    %v5660 = vpack.c.bf16 %v4520, %v4516
    %v5661 = vpack.c.bf16 %v4521, %v4517
    %v5662 = vpack.c.bf16 %v4522, %v4518
    %v5663 = vpack.c.bf16 %v4527, %v4523
    %v5664 = vpack.c.bf16 %v4528, %v4524
    %v5665 = vpack.c.bf16 %v4529, %v4525
    %v5666 = vpack.c.bf16 %v4530, %v4526
    %v5667 = vpack.c.bf16 %v4535, %v4531
    %v5668 = vpack.c.bf16 %v4536, %v4532
    %v5669 = vpack.c.bf16 %v4537, %v4533
    %v5670 = vpack.c.bf16 %v4538, %v4534
    %v5671 = vpack.c.bf16 %v4543, %v4539
    %v5672 = vpack.c.bf16 %v4544, %v4540
    %v5673 = vpack.c.bf16 %v4545, %v4541
    %v5674 = vpack.c.bf16 %v4546, %v4542
    %v5675 = vpack.c.bf16 %v4551, %v4547
    %v5676 = vpack.c.bf16 %v4552, %v4548
    %v5677 = vpack.c.bf16 %v4553, %v4549
    %v5678 = vpack.c.bf16 %v4554, %v4550
    %v5679 = vpack.c.bf16 %v4559, %v4555
    %v5680 = vpack.c.bf16 %v4560, %v4556
    %v5681 = vpack.c.bf16 %v4561, %v4557
    %v5682 = vpack.c.bf16 %v4562, %v4558
    %v5683 = vpack.c.bf16 %v4567, %v4563
    %v5684 = vpack.c.bf16 %v4568, %v4564
    %v5685 = vpack.c.bf16 %v4569, %v4565
    %v5686 = vpack.c.bf16 %v4570, %v4566
    %v5687 = vpack.c.bf16 %v4575, %v4571
    %v5688 = vpack.c.bf16 %v4576, %v4572
    %v5689 = vpack.c.bf16 %v4577, %v4573
    %v5690 = vpack.c.bf16 %v4578, %v4574
    %v5691 = vpack.c.bf16 %v4583, %v4579
    %v5692 = vpack.c.bf16 %v4584, %v4580
    %v5693 = vpack.c.bf16 %v4585, %v4581
    %v5694 = vpack.c.bf16 %v4586, %v4582
    %v5695 = vpack.c.bf16 %v4591, %v4587
    %v5696 = vpack.c.bf16 %v4592, %v4588
    %v5697 = vpack.c.bf16 %v4593, %v4589
    %v5698 = vpack.c.bf16 %v4594, %v4590
    %v5699 = vpack.c.bf16 %v4599, %v4595
    %v5700 = vpack.c.bf16 %v4600, %v4596
    %v5701 = vpack.c.bf16 %v4601, %v4597
    %v5702 = vpack.c.bf16 %v4602, %v4598
    %v5703 = vpack.c.bf16 %v4607, %v4603
    %v5704 = vpack.c.bf16 %v4608, %v4604
    %v5705 = vpack.c.bf16 %v4609, %v4605
    %v5706 = vpack.c.bf16 %v4610, %v4606
    %v5707 = vpack.c.bf16 %v4615, %v4611
    %v5708 = vpack.c.bf16 %v4616, %v4612
    %v5709 = vpack.c.bf16 %v4617, %v4613
    %v5710 = vpack.c.bf16 %v4618, %v4614
    %v5711 = vpack.c.bf16 %v4623, %v4619
    %v5712 = vpack.c.bf16 %v4624, %v4620
    %v5713 = vpack.c.bf16 %v4625, %v4621
    %v5714 = vpack.c.bf16 %v4626, %v4622
    %v5715 = vpack.c.bf16 %v4631, %v4627
    %v5716 = vpack.c.bf16 %v4632, %v4628
    %v5717 = vpack.c.bf16 %v4633, %v4629
    %v5718 = vpack.c.bf16 %v4634, %v4630
    %v5719 = vpack.c.bf16 %v4639, %v4635
    %v5720 = vpack.c.bf16 %v4640, %v4636
    %v5721 = vpack.c.bf16 %v4641, %v4637
    %v5722 = vpack.c.bf16 %v4642, %v4638
    %v5723 = vpack.c.bf16 %v4647, %v4643
    %v5724 = vpack.c.bf16 %v4648, %v4644
    %v5725 = vpack.c.bf16 %v4649, %v4645
    %v5726 = vpack.c.bf16 %v4650, %v4646
    %v5727 = vpack.c.bf16 %v4655, %v4651
    %v5728 = vpack.c.bf16 %v4656, %v4652
    %v5729 = vpack.c.bf16 %v4657, %v4653
    %v5730 = vpack.c.bf16 %v4658, %v4654
    %v5731 = vpack.c.bf16 %v4663, %v4659
    %v5732 = vpack.c.bf16 %v4664, %v4660
    %v5733 = vpack.c.bf16 %v4665, %v4661
    %v5734 = vpack.c.bf16 %v4666, %v4662
    %v5735 = vpack.c.bf16 %v4671, %v4667
    %v5736 = vpack.c.bf16 %v4672, %v4668
    %v5737 = vpack.c.bf16 %v4673, %v4669
    %v5738 = vpack.c.bf16 %v4674, %v4670
    %v5739 = vpack.c.bf16 %v4679, %v4675
    %v5740 = vpack.c.bf16 %v4680, %v4676
    %v5741 = vpack.c.bf16 %v4681, %v4677
    %v5742 = vpack.c.bf16 %v4682, %v4678
    %v5743 = vpack.c.bf16 %v4687, %v4683
    %v5744 = vpack.c.bf16 %v4688, %v4684
    %v5745 = vpack.c.bf16 %v4689, %v4685
    %v5746 = vpack.c.bf16 %v4690, %v4686
    %v5747 = vpack.c.bf16 %v4695, %v4691
    %v5748 = vpack.c.bf16 %v4696, %v4692
    %v5749 = vpack.c.bf16 %v4697, %v4693
    %v5750 = vpack.c.bf16 %v4698, %v4694
    %v5751 = vpack.c.bf16 %v4703, %v4699
    %v5752 = vpack.c.bf16 %v4704, %v4700
    %v5753 = vpack.c.bf16 %v4705, %v4701
    %v5754 = vpack.c.bf16 %v4706, %v4702
    %v5755 = vpack.c.bf16 %v4711, %v4707
    %v5756 = vpack.c.bf16 %v4712, %v4708
    %v5757 = vpack.c.bf16 %v4713, %v4709
    %v5758 = vpack.c.bf16 %v4714, %v4710
    %v5759 = vpack.c.bf16 %v4719, %v4715
    %v5760 = vpack.c.bf16 %v4720, %v4716
    %v5761 = vpack.c.bf16 %v4721, %v4717
    %v5762 = vpack.c.bf16 %v4722, %v4718
    %v5763 = vpack.c.bf16 %v4727, %v4723
    %v5764 = vpack.c.bf16 %v4728, %v4724
    %v5765 = vpack.c.bf16 %v4729, %v4725
    %v5766 = vpack.c.bf16 %v4730, %v4726
    %v5767 = vpack.c.bf16 %v4735, %v4731
    %v5768 = vpack.c.bf16 %v4736, %v4732
    %v5769 = vpack.c.bf16 %v4737, %v4733
    %v5770 = vpack.c.bf16 %v4738, %v4734
    %v5771 = vpack.c.bf16 %v4743, %v4739
    %v5772 = vpack.c.bf16 %v4744, %v4740
    %v5773 = vpack.c.bf16 %v4745, %v4741
    %v5774 = vpack.c.bf16 %v4746, %v4742
    %v5775 = vpack.c.bf16 %v4751, %v4747
    %v5776 = vpack.c.bf16 %v4752, %v4748
    %v5777 = vpack.c.bf16 %v4753, %v4749
    %v5778 = vpack.c.bf16 %v4754, %v4750
    %v5779 = vpack.c.bf16 %v4759, %v4755
    %v5780 = vpack.c.bf16 %v4760, %v4756
    %v5781 = vpack.c.bf16 %v4761, %v4757
    %v5782 = vpack.c.bf16 %v4762, %v4758
    %v5783 = vpack.c.bf16 %v4767, %v4763
    %v5784 = vpack.c.bf16 %v4768, %v4764
    %v5785 = vpack.c.bf16 %v4769, %v4765
    %v5786 = vpack.c.bf16 %v4770, %v4766
    %v5787 = vpack.c.bf16 %v4775, %v4771
    %v5788 = vpack.c.bf16 %v4776, %v4772
    %v5789 = vpack.c.bf16 %v4777, %v4773
    %v5790 = vpack.c.bf16 %v4778, %v4774
    %v5791 = vpack.c.bf16 %v4783, %v4779
    %v5792 = vpack.c.bf16 %v4784, %v4780
    %v5793 = vpack.c.bf16 %v4785, %v4781
    %v5794 = vpack.c.bf16 %v4786, %v4782
    %v5795 = vpack.c.bf16 %v4791, %v4787
    %v5796 = vpack.c.bf16 %v4792, %v4788
    %v5797 = vpack.c.bf16 %v4793, %v4789
    %v5798 = vpack.c.bf16 %v4794, %v4790
    %v5799 = vpack.c.bf16 %v4799, %v4795
    %v5800 = vpack.c.bf16 %v4800, %v4796
    %v5801 = vpack.c.bf16 %v4801, %v4797
    %v5802 = vpack.c.bf16 %v4802, %v4798
    %v5803 = vpack.c.bf16 %v4807, %v4803
    %v5804 = vpack.c.bf16 %v4808, %v4804
    %v5805 = vpack.c.bf16 %v4809, %v4805
    %v5806 = vpack.c.bf16 %v4810, %v4806
    %v5807 = vpack.c.bf16 %v4815, %v4811
    %v5808 = vpack.c.bf16 %v4816, %v4812
    %v5809 = vpack.c.bf16 %v4817, %v4813
    %v5810 = vpack.c.bf16 %v4818, %v4814
    %v5811 = vpack.c.bf16 %v4823, %v4819
    %v5812 = vpack.c.bf16 %v4824, %v4820
    %v5813 = vpack.c.bf16 %v4825, %v4821
    %v5814 = vpack.c.bf16 %v4826, %v4822
    %v5815 = vpack.c.bf16 %v4831, %v4827
    %v5816 = vpack.c.bf16 %v4832, %v4828
    %v5817 = vpack.c.bf16 %v4833, %v4829
    %v5818 = vpack.c.bf16 %v4834, %v4830
    %v5819 = vpack.c.bf16 %v4839, %v4835
    %v5820 = vpack.c.bf16 %v4840, %v4836
    %v5821 = vpack.c.bf16 %v4841, %v4837
    %v5822 = vpack.c.bf16 %v4842, %v4838
    %v5823 = vpack.c.bf16 %v4847, %v4843
    %v5824 = vpack.c.bf16 %v4848, %v4844
    %v5825 = vpack.c.bf16 %v4849, %v4845
    %v5826 = vpack.c.bf16 %v4850, %v4846
    %v5827 = vpack.c.bf16 %v4855, %v4851
    %v5828 = vpack.c.bf16 %v4856, %v4852
    %v5829 = vpack.c.bf16 %v4857, %v4853
    %v5830 = vpack.c.bf16 %v4858, %v4854
    %v5831 = vpack.c.bf16 %v4863, %v4859
    %v5832 = vpack.c.bf16 %v4864, %v4860
    %v5833 = vpack.c.bf16 %v4865, %v4861
    %v5834 = vpack.c.bf16 %v4866, %v4862
    %v5835 = vpack.c.bf16 %v4871, %v4867
    %v5836 = vpack.c.bf16 %v4872, %v4868
    %v5837 = vpack.c.bf16 %v4873, %v4869
    %v5838 = vpack.c.bf16 %v4874, %v4870
    %v5839 = vpack.c.bf16 %v4879, %v4875
    %v5840 = vpack.c.bf16 %v4880, %v4876
    %v5841 = vpack.c.bf16 %v4881, %v4877
    %v5842 = vpack.c.bf16 %v4882, %v4878
    %v5843 = vld [vmem:[#allocation2] sm:$0xff]
    %v5844 = vld [vmem:[#allocation2 + $0x8] sm:$0xff]
    %v5845 = vld [vmem:[#allocation2 + $0x10] sm:$0xff]
    %v5846 = vld [vmem:[#allocation2 + $0x18] sm:$0x3f]
    %5848 = vst [vmem:[#allocation1] ss:$9 sm:$0xff] %v5843
    %v5849 = vld [vmem:[#allocation1] sm:$0xff]
    %v5850 = vld [vmem:[#allocation1 + $0x9] sm:$0xff]
    %v5851 = vld [vmem:[#allocation1 + $0x12] sm:$0xff]
    %v5852 = vld [vmem:[#allocation1 + $0x1b] sm:$0xff]
    %v5853 = vld [vmem:[#allocation1 + $0x24] sm:$0xff]
    %v5854 = vld [vmem:[#allocation1 + $0x2d] sm:$0xff]
    %v5855 = vld [vmem:[#allocation1 + $0x36] sm:$0xff]
    %v5856 = vld [vmem:[#allocation1 + $0x3f] sm:$0xff]
    %5858 = vst [vmem:[#allocation1] ss:$9 sm:$0xff] %v5844
    %v5859 = vld [vmem:[#allocation1] sm:$0xff]
    %v5860 = vld [vmem:[#allocation1 + $0x9] sm:$0xff]
    %v5861 = vld [vmem:[#allocation1 + $0x12] sm:$0xff]
    %v5862 = vld [vmem:[#allocation1 + $0x1b] sm:$0xff]
    %v5863 = vld [vmem:[#allocation1 + $0x24] sm:$0xff]
    %v5864 = vld [vmem:[#allocation1 + $0x2d] sm:$0xff]
    %v5865 = vld [vmem:[#allocation1 + $0x36] sm:$0xff]
    %v5866 = vld [vmem:[#allocation1 + $0x3f] sm:$0xff]
    %5868 = vst [vmem:[#allocation1] ss:$9 sm:$0xff] %v5845
    %v5869 = vld [vmem:[#allocation1] sm:$0xff]
    %v5870 = vld [vmem:[#allocation1 + $0x9] sm:$0xff]
    %v5871 = vld [vmem:[#allocation1 + $0x12] sm:$0xff]
    %v5872 = vld [vmem:[#allocation1 + $0x1b] sm:$0xff]
    %v5873 = vld [vmem:[#allocation1 + $0x24] sm:$0xff]
    %v5874 = vld [vmem:[#allocation1 + $0x2d] sm:$0xff]
    %v5875 = vld [vmem:[#allocation1 + $0x36] sm:$0xff]
    %v5876 = vld [vmem:[#allocation1 + $0x3f] sm:$0xff]
    %5878 = vst [vmem:[#allocation1] ss:$9 sm:$0xff] %v5846
    %v5879 = vld [vmem:[#allocation1] sm:$0xff]
    %v5880 = vld [vmem:[#allocation1 + $0x9] sm:$0xff]
    %v5881 = vld [vmem:[#allocation1 + $0x12] sm:$0xff]
    %v5882 = vld [vmem:[#allocation1 + $0x1b] sm:$0xff]
    %v5883 = vld [vmem:[#allocation1 + $0x24] sm:$0xff]
    %v5884 = vld [vmem:[#allocation1 + $0x2d] sm:$0xff]
    %5915 = vmatpush.bf16.msra.mxu0 %v4911
    %5916 = vmatpush.bf16.msra.mxu0 %v4907
    %5917 = vmatpush.bf16.msra.mxu0 %v4903
    %5918 = vmatpush.bf16.msra.mxu0 %v4899
    %5919 = vmatpush.bf16.msra.mxu0 %v4895
    %5920 = vmatpush.bf16.msra.mxu0 %v4891
    %5921 = vmatpush.bf16.msra.mxu0 %v4887
    %5922 = vmatpush.bf16.msra.mxu0 %v4883
    %5923 = vmatmul.bf16.gmra.mxu0 %v5849
    %v5924 = vpop.f32.mrf.mxu0
    %v5925 = vadd.f32 0.0, %v5924
    %v5926 = vpop.f32.mrf.mxu0
    %5927 = vdwg.mxu0
    %5928 = vmatpush.bf16.msra.mxu0 %v4943
    %5929 = vmatpush.bf16.msra.mxu0 %v4939
    %5930 = vmatpush.bf16.msra.mxu0 %v4935
    %5931 = vmatpush.bf16.msra.mxu0 %v4931
    %5932 = vmatpush.bf16.msra.mxu0 %v4927
    %5933 = vmatpush.bf16.msra.mxu0 %v4923
    %5934 = vmatpush.bf16.msra.mxu0 %v4919
    %5935 = vmatpush.bf16.msra.mxu0 %v4915
    %5936 = vmatmul.bf16.gmra.mxu0 %v5850
    %v5937 = vpop.f32.mrf.mxu0
    %v5938 = vadd.f32 %v5925, %v5937
    %v5939 = vpop.f32.mrf.mxu0
    %5940 = vdwg.mxu0
    %5941 = vmatpush.bf16.msra.mxu0 %v4975
    %5942 = vmatpush.bf16.msra.mxu0 %v4971
    %5943 = vmatpush.bf16.msra.mxu0 %v4967
    %5944 = vmatpush.bf16.msra.mxu0 %v4963
    %5945 = vmatpush.bf16.msra.mxu0 %v4959
    %5946 = vmatpush.bf16.msra.mxu0 %v4955
    %5947 = vmatpush.bf16.msra.mxu0 %v4951
    %5948 = vmatpush.bf16.msra.mxu0 %v4947
    %5949 = vmatmul.bf16.gmra.mxu0 %v5851
    %v5950 = vpop.f32.mrf.mxu0
    %v5951 = vadd.f32 %v5938, %v5950
    %v5952 = vpop.f32.mrf.mxu0
    %5953 = vdwg.mxu0
    %5954 = vmatpush.bf16.msra.mxu0 %v5007
    %5955 = vmatpush.bf16.msra.mxu0 %v5003
    %5956 = vmatpush.bf16.msra.mxu0 %v4999
    %5957 = vmatpush.bf16.msra.mxu0 %v4995
    %5958 = vmatpush.bf16.msra.mxu0 %v4991
    %5959 = vmatpush.bf16.msra.mxu0 %v4987
    %5960 = vmatpush.bf16.msra.mxu0 %v4983
    %5961 = vmatpush.bf16.msra.mxu0 %v4979
    %5962 = vmatmul.bf16.gmra.mxu0 %v5852
    %v5963 = vpop.f32.mrf.mxu0
    %v5964 = vadd.f32 %v5951, %v5963
    %v5965 = vpop.f32.mrf.mxu0
    %5966 = vdwg.mxu0
    %5967 = vmatpush.bf16.msra.mxu0 %v5039
    %5968 = vmatpush.bf16.msra.mxu0 %v5035
    %5969 = vmatpush.bf16.msra.mxu0 %v5031
    %5970 = vmatpush.bf16.msra.mxu0 %v5027
    %5971 = vmatpush.bf16.msra.mxu0 %v5023
    %5972 = vmatpush.bf16.msra.mxu0 %v5019
    %5973 = vmatpush.bf16.msra.mxu0 %v5015
    %5974 = vmatpush.bf16.msra.mxu0 %v5011
    %5975 = vmatmul.bf16.gmra.mxu0 %v5853
    %v5976 = vpop.f32.mrf.mxu0
    %v5977 = vadd.f32 %v5964, %v5976
    %v5978 = vpop.f32.mrf.mxu0
    %5979 = vdwg.mxu0
    %5980 = vmatpush.bf16.msra.mxu0 %v5071
    %5981 = vmatpush.bf16.msra.mxu0 %v5067
    %5982 = vmatpush.bf16.msra.mxu0 %v5063
    %5983 = vmatpush.bf16.msra.mxu0 %v5059
    %5984 = vmatpush.bf16.msra.mxu0 %v5055
    %5985 = vmatpush.bf16.msra.mxu0 %v5051
    %5986 = vmatpush.bf16.msra.mxu0 %v5047
    %5987 = vmatpush.bf16.msra.mxu0 %v5043
    %5988 = vmatmul.bf16.gmra.mxu0 %v5854
    %v5989 = vpop.f32.mrf.mxu0
    %v5990 = vadd.f32 %v5977, %v5989
    %v5991 = vpop.f32.mrf.mxu0
    %5992 = vdwg.mxu0
    %5993 = vmatpush.bf16.msra.mxu0 %v5103
    %5994 = vmatpush.bf16.msra.mxu0 %v5099
    %5995 = vmatpush.bf16.msra.mxu0 %v5095
    %5996 = vmatpush.bf16.msra.mxu0 %v5091
    %5997 = vmatpush.bf16.msra.mxu0 %v5087
    %5998 = vmatpush.bf16.msra.mxu0 %v5083
    %5999 = vmatpush.bf16.msra.mxu0 %v5079
    %6000 = vmatpush.bf16.msra.mxu0 %v5075
    %6001 = vmatmul.bf16.gmra.mxu0 %v5855
    %v6002 = vpop.f32.mrf.mxu0
    %v6003 = vadd.f32 %v5990, %v6002
    %v6004 = vpop.f32.mrf.mxu0
    %6005 = vdwg.mxu0
    %6006 = vmatpush.bf16.msra.mxu0 %v5135
    %6007 = vmatpush.bf16.msra.mxu0 %v5131
    %6008 = vmatpush.bf16.msra.mxu0 %v5127
    %6009 = vmatpush.bf16.msra.mxu0 %v5123
    %6010 = vmatpush.bf16.msra.mxu0 %v5119
    %6011 = vmatpush.bf16.msra.mxu0 %v5115
    %6012 = vmatpush.bf16.msra.mxu0 %v5111
    %6013 = vmatpush.bf16.msra.mxu0 %v5107
    %6014 = vmatmul.bf16.gmra.mxu0 %v5856
    %v6015 = vpop.f32.mrf.mxu0
    %v6016 = vadd.f32 %v6003, %v6015
    %v6017 = vpop.f32.mrf.mxu0
    %6018 = vdwg.mxu0
    %6019 = vmatpush.bf16.msra.mxu0 %v5167
    %6020 = vmatpush.bf16.msra.mxu0 %v5163
    %6021 = vmatpush.bf16.msra.mxu0 %v5159
    %6022 = vmatpush.bf16.msra.mxu0 %v5155
    %6023 = vmatpush.bf16.msra.mxu0 %v5151
    %6024 = vmatpush.bf16.msra.mxu0 %v5147
    %6025 = vmatpush.bf16.msra.mxu0 %v5143
    %6026 = vmatpush.bf16.msra.mxu0 %v5139
    %6027 = vmatmul.bf16.gmra.mxu0 %v5859
    %v6028 = vpop.f32.mrf.mxu0
    %v6029 = vadd.f32 %v6016, %v6028
    %v6030 = vpop.f32.mrf.mxu0
    %6031 = vdwg.mxu0
    %6032 = vmatpush.bf16.msra.mxu0 %v5199
    %6033 = vmatpush.bf16.msra.mxu0 %v5195
    %6034 = vmatpush.bf16.msra.mxu0 %v5191
    %6035 = vmatpush.bf16.msra.mxu0 %v5187
    %6036 = vmatpush.bf16.msra.mxu0 %v5183
    %6037 = vmatpush.bf16.msra.mxu0 %v5179
    %6038 = vmatpush.bf16.msra.mxu0 %v5175
    %6039 = vmatpush.bf16.msra.mxu0 %v5171
    %6040 = vmatmul.bf16.gmra.mxu0 %v5860
    %v6041 = vpop.f32.mrf.mxu0
    %v6042 = vadd.f32 %v6029, %v6041
    %v6043 = vpop.f32.mrf.mxu0
    %6044 = vdwg.mxu0
    %6045 = vmatpush.bf16.msra.mxu0 %v5231
    %6046 = vmatpush.bf16.msra.mxu0 %v5227
    %6047 = vmatpush.bf16.msra.mxu0 %v5223
    %6048 = vmatpush.bf16.msra.mxu0 %v5219
    %6049 = vmatpush.bf16.msra.mxu0 %v5215
    %6050 = vmatpush.bf16.msra.mxu0 %v5211
    %6051 = vmatpush.bf16.msra.mxu0 %v5207
    %6052 = vmatpush.bf16.msra.mxu0 %v5203
    %6053 = vmatmul.bf16.gmra.mxu0 %v5861
    %v6054 = vpop.f32.mrf.mxu0
    %v6055 = vadd.f32 %v6042, %v6054
    %v6056 = vpop.f32.mrf.mxu0
    %6057 = vdwg.mxu0
    %6058 = vmatpush.bf16.msra.mxu0 %v5263
    %6059 = vmatpush.bf16.msra.mxu0 %v5259
    %6060 = vmatpush.bf16.msra.mxu0 %v5255
    %6061 = vmatpush.bf16.msra.mxu0 %v5251
    %6062 = vmatpush.bf16.msra.mxu0 %v5247
    %6063 = vmatpush.bf16.msra.mxu0 %v5243
    %6064 = vmatpush.bf16.msra.mxu0 %v5239
    %6065 = vmatpush.bf16.msra.mxu0 %v5235
    %6066 = vmatmul.bf16.gmra.mxu0 %v5862
    %v6067 = vpop.f32.mrf.mxu0
    %v6068 = vadd.f32 %v6055, %v6067
    %v6069 = vpop.f32.mrf.mxu0
    %6070 = vdwg.mxu0
    %6071 = vmatpush.bf16.msra.mxu0 %v5295
    %6072 = vmatpush.bf16.msra.mxu0 %v5291
    %6073 = vmatpush.bf16.msra.mxu0 %v5287
    %6074 = vmatpush.bf16.msra.mxu0 %v5283
    %6075 = vmatpush.bf16.msra.mxu0 %v5279
    %6076 = vmatpush.bf16.msra.mxu0 %v5275
    %6077 = vmatpush.bf16.msra.mxu0 %v5271
    %6078 = vmatpush.bf16.msra.mxu0 %v5267
    %6079 = vmatmul.bf16.gmra.mxu0 %v5863
    %v6080 = vpop.f32.mrf.mxu0
    %v6081 = vadd.f32 %v6068, %v6080
    %v6082 = vpop.f32.mrf.mxu0
    %6083 = vdwg.mxu0
    %6084 = vmatpush.bf16.msra.mxu0 %v5327
    %6085 = vmatpush.bf16.msra.mxu0 %v5323
    %6086 = vmatpush.bf16.msra.mxu0 %v5319
    %6087 = vmatpush.bf16.msra.mxu0 %v5315
    %6088 = vmatpush.bf16.msra.mxu0 %v5311
    %6089 = vmatpush.bf16.msra.mxu0 %v5307
    %6090 = vmatpush.bf16.msra.mxu0 %v5303
    %6091 = vmatpush.bf16.msra.mxu0 %v5299
    %6092 = vmatmul.bf16.gmra.mxu0 %v5864
    %v6093 = vpop.f32.mrf.mxu0
    %v6094 = vadd.f32 %v6081, %v6093
    %v6095 = vpop.f32.mrf.mxu0
    %6096 = vdwg.mxu0
    %6097 = vmatpush.bf16.msra.mxu0 %v5359
    %6098 = vmatpush.bf16.msra.mxu0 %v5355
    %6099 = vmatpush.bf16.msra.mxu0 %v5351
    %6100 = vmatpush.bf16.msra.mxu0 %v5347
    %6101 = vmatpush.bf16.msra.mxu0 %v5343
    %6102 = vmatpush.bf16.msra.mxu0 %v5339
    %6103 = vmatpush.bf16.msra.mxu0 %v5335
    %6104 = vmatpush.bf16.msra.mxu0 %v5331
    %6105 = vmatmul.bf16.gmra.mxu0 %v5865
    %v6106 = vpop.f32.mrf.mxu0
    %v6107 = vadd.f32 %v6094, %v6106
    %v6108 = vpop.f32.mrf.mxu0
    %6109 = vdwg.mxu0
    %6110 = vmatpush.bf16.msra.mxu0 %v5391
    %6111 = vmatpush.bf16.msra.mxu0 %v5387
    %6112 = vmatpush.bf16.msra.mxu0 %v5383
    %6113 = vmatpush.bf16.msra.mxu0 %v5379
    %6114 = vmatpush.bf16.msra.mxu0 %v5375
    %6115 = vmatpush.bf16.msra.mxu0 %v5371
    %6116 = vmatpush.bf16.msra.mxu0 %v5367
    %6117 = vmatpush.bf16.msra.mxu0 %v5363
    %6118 = vmatmul.bf16.gmra.mxu0 %v5866
    %v6119 = vpop.f32.mrf.mxu0
    %v6120 = vadd.f32 %v6107, %v6119
    %v6121 = vpop.f32.mrf.mxu0
    %6122 = vdwg.mxu0
    %6123 = vmatpush.bf16.msra.mxu0 %v5423
    %6124 = vmatpush.bf16.msra.mxu0 %v5419
    %6125 = vmatpush.bf16.msra.mxu0 %v5415
    %6126 = vmatpush.bf16.msra.mxu0 %v5411
    %6127 = vmatpush.bf16.msra.mxu0 %v5407
    %6128 = vmatpush.bf16.msra.mxu0 %v5403
    %6129 = vmatpush.bf16.msra.mxu0 %v5399
    %6130 = vmatpush.bf16.msra.mxu0 %v5395
    %6131 = vmatmul.bf16.gmra.mxu0 %v5869
    %v6132 = vpop.f32.mrf.mxu0
    %v6133 = vadd.f32 %v6120, %v6132
    %v6134 = vpop.f32.mrf.mxu0
    %6135 = vdwg.mxu0
    %6136 = vmatpush.bf16.msra.mxu0 %v5455
    %6137 = vmatpush.bf16.msra.mxu0 %v5451
    %6138 = vmatpush.bf16.msra.mxu0 %v5447
    %6139 = vmatpush.bf16.msra.mxu0 %v5443
    %6140 = vmatpush.bf16.msra.mxu0 %v5439
    %6141 = vmatpush.bf16.msra.mxu0 %v5435
    %6142 = vmatpush.bf16.msra.mxu0 %v5431
    %6143 = vmatpush.bf16.msra.mxu0 %v5427
    %6144 = vmatmul.bf16.gmra.mxu0 %v5870
    %v6145 = vpop.f32.mrf.mxu0
    %v6146 = vadd.f32 %v6133, %v6145
    %v6147 = vpop.f32.mrf.mxu0
    %6148 = vdwg.mxu0
    %6149 = vmatpush.bf16.msra.mxu0 %v5487
    %6150 = vmatpush.bf16.msra.mxu0 %v5483
    %6151 = vmatpush.bf16.msra.mxu0 %v5479
    %6152 = vmatpush.bf16.msra.mxu0 %v5475
    %6153 = vmatpush.bf16.msra.mxu0 %v5471
    %6154 = vmatpush.bf16.msra.mxu0 %v5467
    %6155 = vmatpush.bf16.msra.mxu0 %v5463
    %6156 = vmatpush.bf16.msra.mxu0 %v5459
    %6157 = vmatmul.bf16.gmra.mxu0 %v5871
    %v6158 = vpop.f32.mrf.mxu0
    %v6159 = vadd.f32 %v6146, %v6158
    %v6160 = vpop.f32.mrf.mxu0
    %6161 = vdwg.mxu0
    %6162 = vmatpush.bf16.msra.mxu0 %v5519
    %6163 = vmatpush.bf16.msra.mxu0 %v5515
    %6164 = vmatpush.bf16.msra.mxu0 %v5511
    %6165 = vmatpush.bf16.msra.mxu0 %v5507
    %6166 = vmatpush.bf16.msra.mxu0 %v5503
    %6167 = vmatpush.bf16.msra.mxu0 %v5499
    %6168 = vmatpush.bf16.msra.mxu0 %v5495
    %6169 = vmatpush.bf16.msra.mxu0 %v5491
    %6170 = vmatmul.bf16.gmra.mxu0 %v5872
    %v6171 = vpop.f32.mrf.mxu0
    %v6172 = vadd.f32 %v6159, %v6171
    %v6173 = vpop.f32.mrf.mxu0
    %6174 = vdwg.mxu0
    %6175 = vmatpush.bf16.msra.mxu0 %v5551
    %6176 = vmatpush.bf16.msra.mxu0 %v5547
    %6177 = vmatpush.bf16.msra.mxu0 %v5543
    %6178 = vmatpush.bf16.msra.mxu0 %v5539
    %6179 = vmatpush.bf16.msra.mxu0 %v5535
    %6180 = vmatpush.bf16.msra.mxu0 %v5531
    %6181 = vmatpush.bf16.msra.mxu0 %v5527
    %6182 = vmatpush.bf16.msra.mxu0 %v5523
    %6183 = vmatmul.bf16.gmra.mxu0 %v5873
    %v6184 = vpop.f32.mrf.mxu0
    %v6185 = vadd.f32 %v6172, %v6184
    %v6186 = vpop.f32.mrf.mxu0
    %6187 = vdwg.mxu0
    %6188 = vmatpush.bf16.msra.mxu0 %v5583
    %6189 = vmatpush.bf16.msra.mxu0 %v5579
    %6190 = vmatpush.bf16.msra.mxu0 %v5575
    %6191 = vmatpush.bf16.msra.mxu0 %v5571
    %6192 = vmatpush.bf16.msra.mxu0 %v5567
    %6193 = vmatpush.bf16.msra.mxu0 %v5563
    %6194 = vmatpush.bf16.msra.mxu0 %v5559
    %6195 = vmatpush.bf16.msra.mxu0 %v5555
    %6196 = vmatmul.bf16.gmra.mxu0 %v5874
    %v6197 = vpop.f32.mrf.mxu0
    %v6198 = vadd.f32 %v6185, %v6197
    %v6199 = vpop.f32.mrf.mxu0
    %6200 = vdwg.mxu0
    %6201 = vmatpush.bf16.msra.mxu0 %v5615
    %6202 = vmatpush.bf16.msra.mxu0 %v5611
    %6203 = vmatpush.bf16.msra.mxu0 %v5607
    %6204 = vmatpush.bf16.msra.mxu0 %v5603
    %6205 = vmatpush.bf16.msra.mxu0 %v5599
    %6206 = vmatpush.bf16.msra.mxu0 %v5595
    %6207 = vmatpush.bf16.msra.mxu0 %v5591
    %6208 = vmatpush.bf16.msra.mxu0 %v5587
    %6209 = vmatmul.bf16.gmra.mxu0 %v5875
    %v6210 = vpop.f32.mrf.mxu0
    %v6211 = vadd.f32 %v6198, %v6210
    %v6212 = vpop.f32.mrf.mxu0
    %6213 = vdwg.mxu0
    %6214 = vmatpush.bf16.msra.mxu0 %v5647
    %6215 = vmatpush.bf16.msra.mxu0 %v5643
    %6216 = vmatpush.bf16.msra.mxu0 %v5639
    %6217 = vmatpush.bf16.msra.mxu0 %v5635
    %6218 = vmatpush.bf16.msra.mxu0 %v5631
    %6219 = vmatpush.bf16.msra.mxu0 %v5627
    %6220 = vmatpush.bf16.msra.mxu0 %v5623
    %6221 = vmatpush.bf16.msra.mxu0 %v5619
    %6222 = vmatmul.bf16.gmra.mxu0 %v5876
    %v6223 = vpop.f32.mrf.mxu0
    %v6224 = vadd.f32 %v6211, %v6223
    %v6225 = vpop.f32.mrf.mxu0
    %6226 = vdwg.mxu0
    %6227 = vmatpush.bf16.msra.mxu0 %v5679
    %6228 = vmatpush.bf16.msra.mxu0 %v5675
    %6229 = vmatpush.bf16.msra.mxu0 %v5671
    %6230 = vmatpush.bf16.msra.mxu0 %v5667
    %6231 = vmatpush.bf16.msra.mxu0 %v5663
    %6232 = vmatpush.bf16.msra.mxu0 %v5659
    %6233 = vmatpush.bf16.msra.mxu0 %v5655
    %6234 = vmatpush.bf16.msra.mxu0 %v5651
    %6235 = vmatmul.bf16.gmra.mxu0 %v5879
    %v6236 = vpop.f32.mrf.mxu0
    %v6237 = vadd.f32 %v6224, %v6236
    %v6238 = vpop.f32.mrf.mxu0
    %6239 = vdwg.mxu0
    %6240 = vmatpush.bf16.msra.mxu0 %v5711
    %6241 = vmatpush.bf16.msra.mxu0 %v5707
    %6242 = vmatpush.bf16.msra.mxu0 %v5703
    %6243 = vmatpush.bf16.msra.mxu0 %v5699
    %6244 = vmatpush.bf16.msra.mxu0 %v5695
    %6245 = vmatpush.bf16.msra.mxu0 %v5691
    %6246 = vmatpush.bf16.msra.mxu0 %v5687
    %6247 = vmatpush.bf16.msra.mxu0 %v5683
    %6248 = vmatmul.bf16.gmra.mxu0 %v5880
    %v6249 = vpop.f32.mrf.mxu0
    %v6250 = vadd.f32 %v6237, %v6249
    %v6251 = vpop.f32.mrf.mxu0
    %6252 = vdwg.mxu0
    %6253 = vmatpush.bf16.msra.mxu0 %v5743
    %6254 = vmatpush.bf16.msra.mxu0 %v5739
    %6255 = vmatpush.bf16.msra.mxu0 %v5735
    %6256 = vmatpush.bf16.msra.mxu0 %v5731
    %6257 = vmatpush.bf16.msra.mxu0 %v5727
    %6258 = vmatpush.bf16.msra.mxu0 %v5723
    %6259 = vmatpush.bf16.msra.mxu0 %v5719
    %6260 = vmatpush.bf16.msra.mxu0 %v5715
    %6261 = vmatmul.bf16.gmra.mxu0 %v5881
    %v6262 = vpop.f32.mrf.mxu0
    %v6263 = vadd.f32 %v6250, %v6262
    %v6264 = vpop.f32.mrf.mxu0
    %6265 = vdwg.mxu0
    %6266 = vmatpush.bf16.msra.mxu0 %v5775
    %6267 = vmatpush.bf16.msra.mxu0 %v5771
    %6268 = vmatpush.bf16.msra.mxu0 %v5767
    %6269 = vmatpush.bf16.msra.mxu0 %v5763
    %6270 = vmatpush.bf16.msra.mxu0 %v5759
    %6271 = vmatpush.bf16.msra.mxu0 %v5755
    %6272 = vmatpush.bf16.msra.mxu0 %v5751
    %6273 = vmatpush.bf16.msra.mxu0 %v5747
    %6274 = vmatmul.bf16.gmra.mxu0 %v5882
    %v6275 = vpop.f32.mrf.mxu0
    %v6276 = vadd.f32 %v6263, %v6275
    %v6277 = vpop.f32.mrf.mxu0
    %6278 = vdwg.mxu0
    %6279 = vmatpush.bf16.msra.mxu0 %v5807
    %6280 = vmatpush.bf16.msra.mxu0 %v5803
    %6281 = vmatpush.bf16.msra.mxu0 %v5799
    %6282 = vmatpush.bf16.msra.mxu0 %v5795
    %6283 = vmatpush.bf16.msra.mxu0 %v5791
    %6284 = vmatpush.bf16.msra.mxu0 %v5787
    %6285 = vmatpush.bf16.msra.mxu0 %v5783
    %6286 = vmatpush.bf16.msra.mxu0 %v5779
    %6287 = vmatmul.bf16.gmra.mxu0 %v5883
    %v6288 = vpop.f32.mrf.mxu0
    %v6289 = vadd.f32 %v6276, %v6288
    %v6290 = vpop.f32.mrf.mxu0
    %6291 = vdwg.mxu0
    %6292 = vmatpush.bf16.msra.mxu0 %v5839
    %6293 = vmatpush.bf16.msra.mxu0 %v5835
    %6294 = vmatpush.bf16.msra.mxu0 %v5831
    %6295 = vmatpush.bf16.msra.mxu0 %v5827
    %6296 = vmatpush.bf16.msra.mxu0 %v5823
    %6297 = vmatpush.bf16.msra.mxu0 %v5819
    %6298 = vmatpush.bf16.msra.mxu0 %v5815
    %6299 = vmatpush.bf16.msra.mxu0 %v5811
    %6300 = vmatmul.bf16.gmra.mxu0 %v5884
    %v6301 = vpop.f32.mrf.mxu0
    %v6302 = vadd.f32 %v6289, %v6301
    %v6303 = vpop.f32.mrf.mxu0
    %6304 = vdwg.mxu0
    %6305 = vmatpush.bf16.msra.mxu0 %v4912
    %6306 = vmatpush.bf16.msra.mxu0 %v4908
    %6307 = vmatpush.bf16.msra.mxu0 %v4904
    %6308 = vmatpush.bf16.msra.mxu0 %v4900
    %6309 = vmatpush.bf16.msra.mxu0 %v4896
    %6310 = vmatpush.bf16.msra.mxu0 %v4892
    %6311 = vmatpush.bf16.msra.mxu0 %v4888
    %6312 = vmatpush.bf16.msra.mxu0 %v4884
    %6313 = vmatmul.bf16.gmra.mxu0 %v5849
    %v6314 = vpop.f32.mrf.mxu0
    %v6315 = vadd.f32 0.0, %v6314
    %v6316 = vpop.f32.mrf.mxu0
    %6317 = vdwg.mxu0
    %6318 = vmatpush.bf16.msra.mxu0 %v4944
    %6319 = vmatpush.bf16.msra.mxu0 %v4940
    %6320 = vmatpush.bf16.msra.mxu0 %v4936
    %6321 = vmatpush.bf16.msra.mxu0 %v4932
    %6322 = vmatpush.bf16.msra.mxu0 %v4928
    %6323 = vmatpush.bf16.msra.mxu0 %v4924
    %6324 = vmatpush.bf16.msra.mxu0 %v4920
    %6325 = vmatpush.bf16.msra.mxu0 %v4916
    %6326 = vmatmul.bf16.gmra.mxu0 %v5850
    %v6327 = vpop.f32.mrf.mxu0
    %v6328 = vadd.f32 %v6315, %v6327
    %v6329 = vpop.f32.mrf.mxu0
    %6330 = vdwg.mxu0
    %6331 = vmatpush.bf16.msra.mxu0 %v4976
    %6332 = vmatpush.bf16.msra.mxu0 %v4972
    %6333 = vmatpush.bf16.msra.mxu0 %v4968
    %6334 = vmatpush.bf16.msra.mxu0 %v4964
    %6335 = vmatpush.bf16.msra.mxu0 %v4960
    %6336 = vmatpush.bf16.msra.mxu0 %v4956
    %6337 = vmatpush.bf16.msra.mxu0 %v4952
    %6338 = vmatpush.bf16.msra.mxu0 %v4948
    %6339 = vmatmul.bf16.gmra.mxu0 %v5851
    %v6340 = vpop.f32.mrf.mxu0
    %v6341 = vadd.f32 %v6328, %v6340
    %v6342 = vpop.f32.mrf.mxu0
    %6343 = vdwg.mxu0
    %6344 = vmatpush.bf16.msra.mxu0 %v5008
    %6345 = vmatpush.bf16.msra.mxu0 %v5004
    %6346 = vmatpush.bf16.msra.mxu0 %v5000
    %6347 = vmatpush.bf16.msra.mxu0 %v4996
    %6348 = vmatpush.bf16.msra.mxu0 %v4992
    %6349 = vmatpush.bf16.msra.mxu0 %v4988
    %6350 = vmatpush.bf16.msra.mxu0 %v4984
    %6351 = vmatpush.bf16.msra.mxu0 %v4980
    %6352 = vmatmul.bf16.gmra.mxu0 %v5852
    %v6353 = vpop.f32.mrf.mxu0
    %v6354 = vadd.f32 %v6341, %v6353
    %v6355 = vpop.f32.mrf.mxu0
    %6356 = vdwg.mxu0
    %6357 = vmatpush.bf16.msra.mxu0 %v5040
    %6358 = vmatpush.bf16.msra.mxu0 %v5036
    %6359 = vmatpush.bf16.msra.mxu0 %v5032
    %6360 = vmatpush.bf16.msra.mxu0 %v5028
    %6361 = vmatpush.bf16.msra.mxu0 %v5024
    %6362 = vmatpush.bf16.msra.mxu0 %v5020
    %6363 = vmatpush.bf16.msra.mxu0 %v5016
    %6364 = vmatpush.bf16.msra.mxu0 %v5012
    %6365 = vmatmul.bf16.gmra.mxu0 %v5853
    %v6366 = vpop.f32.mrf.mxu0
    %v6367 = vadd.f32 %v6354, %v6366
    %v6368 = vpop.f32.mrf.mxu0
    %6369 = vdwg.mxu0
    %6370 = vmatpush.bf16.msra.mxu0 %v5072
    %6371 = vmatpush.bf16.msra.mxu0 %v5068
    %6372 = vmatpush.bf16.msra.mxu0 %v5064
    %6373 = vmatpush.bf16.msra.mxu0 %v5060
    %6374 = vmatpush.bf16.msra.mxu0 %v5056
    %6375 = vmatpush.bf16.msra.mxu0 %v5052
    %6376 = vmatpush.bf16.msra.mxu0 %v5048
    %6377 = vmatpush.bf16.msra.mxu0 %v5044
    %6378 = vmatmul.bf16.gmra.mxu0 %v5854
    %v6379 = vpop.f32.mrf.mxu0
    %v6380 = vadd.f32 %v6367, %v6379
    %v6381 = vpop.f32.mrf.mxu0
    %6382 = vdwg.mxu0
    %6383 = vmatpush.bf16.msra.mxu0 %v5104
    %6384 = vmatpush.bf16.msra.mxu0 %v5100
    %6385 = vmatpush.bf16.msra.mxu0 %v5096
    %6386 = vmatpush.bf16.msra.mxu0 %v5092
    %6387 = vmatpush.bf16.msra.mxu0 %v5088
    %6388 = vmatpush.bf16.msra.mxu0 %v5084
    %6389 = vmatpush.bf16.msra.mxu0 %v5080
    %6390 = vmatpush.bf16.msra.mxu0 %v5076
    %6391 = vmatmul.bf16.gmra.mxu0 %v5855
    %v6392 = vpop.f32.mrf.mxu0
    %v6393 = vadd.f32 %v6380, %v6392
    %v6394 = vpop.f32.mrf.mxu0
    %6395 = vdwg.mxu0
    %6396 = vmatpush.bf16.msra.mxu0 %v5136
    %6397 = vmatpush.bf16.msra.mxu0 %v5132
    %6398 = vmatpush.bf16.msra.mxu0 %v5128
    %6399 = vmatpush.bf16.msra.mxu0 %v5124
    %6400 = vmatpush.bf16.msra.mxu0 %v5120
    %6401 = vmatpush.bf16.msra.mxu0 %v5116
    %6402 = vmatpush.bf16.msra.mxu0 %v5112
    %6403 = vmatpush.bf16.msra.mxu0 %v5108
    %6404 = vmatmul.bf16.gmra.mxu0 %v5856
    %v6405 = vpop.f32.mrf.mxu0
    %v6406 = vadd.f32 %v6393, %v6405
    %v6407 = vpop.f32.mrf.mxu0
    %6408 = vdwg.mxu0
    %6409 = vmatpush.bf16.msra.mxu0 %v5168
    %6410 = vmatpush.bf16.msra.mxu0 %v5164
    %6411 = vmatpush.bf16.msra.mxu0 %v5160
    %6412 = vmatpush.bf16.msra.mxu0 %v5156
    %6413 = vmatpush.bf16.msra.mxu0 %v5152
    %6414 = vmatpush.bf16.msra.mxu0 %v5148
    %6415 = vmatpush.bf16.msra.mxu0 %v5144
    %6416 = vmatpush.bf16.msra.mxu0 %v5140
    %6417 = vmatmul.bf16.gmra.mxu0 %v5859
    %v6418 = vpop.f32.mrf.mxu0
    %v6419 = vadd.f32 %v6406, %v6418
    %v6420 = vpop.f32.mrf.mxu0
    %6421 = vdwg.mxu0
    %6422 = vmatpush.bf16.msra.mxu0 %v5200
    %6423 = vmatpush.bf16.msra.mxu0 %v5196
    %6424 = vmatpush.bf16.msra.mxu0 %v5192
    %6425 = vmatpush.bf16.msra.mxu0 %v5188
    %6426 = vmatpush.bf16.msra.mxu0 %v5184
    %6427 = vmatpush.bf16.msra.mxu0 %v5180
    %6428 = vmatpush.bf16.msra.mxu0 %v5176
    %6429 = vmatpush.bf16.msra.mxu0 %v5172
    %6430 = vmatmul.bf16.gmra.mxu0 %v5860
    %v6431 = vpop.f32.mrf.mxu0
    %v6432 = vadd.f32 %v6419, %v6431
    %v6433 = vpop.f32.mrf.mxu0
    %6434 = vdwg.mxu0
    %6435 = vmatpush.bf16.msra.mxu0 %v5232
    %6436 = vmatpush.bf16.msra.mxu0 %v5228
    %6437 = vmatpush.bf16.msra.mxu0 %v5224
    %6438 = vmatpush.bf16.msra.mxu0 %v5220
    %6439 = vmatpush.bf16.msra.mxu0 %v5216
    %6440 = vmatpush.bf16.msra.mxu0 %v5212
    %6441 = vmatpush.bf16.msra.mxu0 %v5208
    %6442 = vmatpush.bf16.msra.mxu0 %v5204
    %6443 = vmatmul.bf16.gmra.mxu0 %v5861
    %v6444 = vpop.f32.mrf.mxu0
    %v6445 = vadd.f32 %v6432, %v6444
    %v6446 = vpop.f32.mrf.mxu0
    %6447 = vdwg.mxu0
    %6448 = vmatpush.bf16.msra.mxu0 %v5264
    %6449 = vmatpush.bf16.msra.mxu0 %v5260
    %6450 = vmatpush.bf16.msra.mxu0 %v5256
    %6451 = vmatpush.bf16.msra.mxu0 %v5252
    %6452 = vmatpush.bf16.msra.mxu0 %v5248
    %6453 = vmatpush.bf16.msra.mxu0 %v5244
    %6454 = vmatpush.bf16.msra.mxu0 %v5240
    %6455 = vmatpush.bf16.msra.mxu0 %v5236
    %6456 = vmatmul.bf16.gmra.mxu0 %v5862
    %v6457 = vpop.f32.mrf.mxu0
    %v6458 = vadd.f32 %v6445, %v6457
    %v6459 = vpop.f32.mrf.mxu0
    %6460 = vdwg.mxu0
    %6461 = vmatpush.bf16.msra.mxu0 %v5296
    %6462 = vmatpush.bf16.msra.mxu0 %v5292
    %6463 = vmatpush.bf16.msra.mxu0 %v5288
    %6464 = vmatpush.bf16.msra.mxu0 %v5284
    %6465 = vmatpush.bf16.msra.mxu0 %v5280
    %6466 = vmatpush.bf16.msra.mxu0 %v5276
    %6467 = vmatpush.bf16.msra.mxu0 %v5272
    %6468 = vmatpush.bf16.msra.mxu0 %v5268
    %6469 = vmatmul.bf16.gmra.mxu0 %v5863
    %v6470 = vpop.f32.mrf.mxu0
    %v6471 = vadd.f32 %v6458, %v6470
    %v6472 = vpop.f32.mrf.mxu0
    %6473 = vdwg.mxu0
    %6474 = vmatpush.bf16.msra.mxu0 %v5328
    %6475 = vmatpush.bf16.msra.mxu0 %v5324
    %6476 = vmatpush.bf16.msra.mxu0 %v5320
    %6477 = vmatpush.bf16.msra.mxu0 %v5316
    %6478 = vmatpush.bf16.msra.mxu0 %v5312
    %6479 = vmatpush.bf16.msra.mxu0 %v5308
    %6480 = vmatpush.bf16.msra.mxu0 %v5304
    %6481 = vmatpush.bf16.msra.mxu0 %v5300
    %6482 = vmatmul.bf16.gmra.mxu0 %v5864
    %v6483 = vpop.f32.mrf.mxu0
    %v6484 = vadd.f32 %v6471, %v6483
    %v6485 = vpop.f32.mrf.mxu0
    %6486 = vdwg.mxu0
    %6487 = vmatpush.bf16.msra.mxu0 %v5360
    %6488 = vmatpush.bf16.msra.mxu0 %v5356
    %6489 = vmatpush.bf16.msra.mxu0 %v5352
    %6490 = vmatpush.bf16.msra.mxu0 %v5348
    %6491 = vmatpush.bf16.msra.mxu0 %v5344
    %6492 = vmatpush.bf16.msra.mxu0 %v5340
    %6493 = vmatpush.bf16.msra.mxu0 %v5336
    %6494 = vmatpush.bf16.msra.mxu0 %v5332
    %6495 = vmatmul.bf16.gmra.mxu0 %v5865
    %v6496 = vpop.f32.mrf.mxu0
    %v6497 = vadd.f32 %v6484, %v6496
    %v6498 = vpop.f32.mrf.mxu0
    %6499 = vdwg.mxu0
    %6500 = vmatpush.bf16.msra.mxu0 %v5392
    %6501 = vmatpush.bf16.msra.mxu0 %v5388
    %6502 = vmatpush.bf16.msra.mxu0 %v5384
    %6503 = vmatpush.bf16.msra.mxu0 %v5380
    %6504 = vmatpush.bf16.msra.mxu0 %v5376
    %6505 = vmatpush.bf16.msra.mxu0 %v5372
    %6506 = vmatpush.bf16.msra.mxu0 %v5368
    %6507 = vmatpush.bf16.msra.mxu0 %v5364
    %6508 = vmatmul.bf16.gmra.mxu0 %v5866
    %v6509 = vpop.f32.mrf.mxu0
    %v6510 = vadd.f32 %v6497, %v6509
    %v6511 = vpop.f32.mrf.mxu0
    %6512 = vdwg.mxu0
    %6513 = vmatpush.bf16.msra.mxu0 %v5424
    %6514 = vmatpush.bf16.msra.mxu0 %v5420
    %6515 = vmatpush.bf16.msra.mxu0 %v5416
    %6516 = vmatpush.bf16.msra.mxu0 %v5412
    %6517 = vmatpush.bf16.msra.mxu0 %v5408
    %6518 = vmatpush.bf16.msra.mxu0 %v5404
    %6519 = vmatpush.bf16.msra.mxu0 %v5400
    %6520 = vmatpush.bf16.msra.mxu0 %v5396
    %6521 = vmatmul.bf16.gmra.mxu0 %v5869
    %v6522 = vpop.f32.mrf.mxu0
    %v6523 = vadd.f32 %v6510, %v6522
    %v6524 = vpop.f32.mrf.mxu0
    %6525 = vdwg.mxu0
    %6526 = vmatpush.bf16.msra.mxu0 %v5456
    %6527 = vmatpush.bf16.msra.mxu0 %v5452
    %6528 = vmatpush.bf16.msra.mxu0 %v5448
    %6529 = vmatpush.bf16.msra.mxu0 %v5444
    %6530 = vmatpush.bf16.msra.mxu0 %v5440
    %6531 = vmatpush.bf16.msra.mxu0 %v5436
    %6532 = vmatpush.bf16.msra.mxu0 %v5432
    %6533 = vmatpush.bf16.msra.mxu0 %v5428
    %6534 = vmatmul.bf16.gmra.mxu0 %v5870
    %v6535 = vpop.f32.mrf.mxu0
    %v6536 = vadd.f32 %v6523, %v6535
    %v6537 = vpop.f32.mrf.mxu0
    %6538 = vdwg.mxu0
    %6539 = vmatpush.bf16.msra.mxu0 %v5488
    %6540 = vmatpush.bf16.msra.mxu0 %v5484
    %6541 = vmatpush.bf16.msra.mxu0 %v5480
    %6542 = vmatpush.bf16.msra.mxu0 %v5476
    %6543 = vmatpush.bf16.msra.mxu0 %v5472
    %6544 = vmatpush.bf16.msra.mxu0 %v5468
    %6545 = vmatpush.bf16.msra.mxu0 %v5464
    %6546 = vmatpush.bf16.msra.mxu0 %v5460
    %6547 = vmatmul.bf16.gmra.mxu0 %v5871
    %v6548 = vpop.f32.mrf.mxu0
    %v6549 = vadd.f32 %v6536, %v6548
    %v6550 = vpop.f32.mrf.mxu0
    %6551 = vdwg.mxu0
    %6552 = vmatpush.bf16.msra.mxu0 %v5520
    %6553 = vmatpush.bf16.msra.mxu0 %v5516
    %6554 = vmatpush.bf16.msra.mxu0 %v5512
    %6555 = vmatpush.bf16.msra.mxu0 %v5508
    %6556 = vmatpush.bf16.msra.mxu0 %v5504
    %6557 = vmatpush.bf16.msra.mxu0 %v5500
    %6558 = vmatpush.bf16.msra.mxu0 %v5496
    %6559 = vmatpush.bf16.msra.mxu0 %v5492
    %6560 = vmatmul.bf16.gmra.mxu0 %v5872
    %v6561 = vpop.f32.mrf.mxu0
    %v6562 = vadd.f32 %v6549, %v6561
    %v6563 = vpop.f32.mrf.mxu0
    %6564 = vdwg.mxu0
    %6565 = vmatpush.bf16.msra.mxu0 %v5552
    %6566 = vmatpush.bf16.msra.mxu0 %v5548
    %6567 = vmatpush.bf16.msra.mxu0 %v5544
    %6568 = vmatpush.bf16.msra.mxu0 %v5540
    %6569 = vmatpush.bf16.msra.mxu0 %v5536
    %6570 = vmatpush.bf16.msra.mxu0 %v5532
    %6571 = vmatpush.bf16.msra.mxu0 %v5528
    %6572 = vmatpush.bf16.msra.mxu0 %v5524
    %6573 = vmatmul.bf16.gmra.mxu0 %v5873
    %v6574 = vpop.f32.mrf.mxu0
    %v6575 = vadd.f32 %v6562, %v6574
    %v6576 = vpop.f32.mrf.mxu0
    %6577 = vdwg.mxu0
    %6578 = vmatpush.bf16.msra.mxu0 %v5584
    %6579 = vmatpush.bf16.msra.mxu0 %v5580
    %6580 = vmatpush.bf16.msra.mxu0 %v5576
    %6581 = vmatpush.bf16.msra.mxu0 %v5572
    %6582 = vmatpush.bf16.msra.mxu0 %v5568
    %6583 = vmatpush.bf16.msra.mxu0 %v5564
    %6584 = vmatpush.bf16.msra.mxu0 %v5560
    %6585 = vmatpush.bf16.msra.mxu0 %v5556
    %6586 = vmatmul.bf16.gmra.mxu0 %v5874
    %v6587 = vpop.f32.mrf.mxu0
    %v6588 = vadd.f32 %v6575, %v6587
    %v6589 = vpop.f32.mrf.mxu0
    %6590 = vdwg.mxu0
    %6591 = vmatpush.bf16.msra.mxu0 %v5616
    %6592 = vmatpush.bf16.msra.mxu0 %v5612
    %6593 = vmatpush.bf16.msra.mxu0 %v5608
    %6594 = vmatpush.bf16.msra.mxu0 %v5604
    %6595 = vmatpush.bf16.msra.mxu0 %v5600
    %6596 = vmatpush.bf16.msra.mxu0 %v5596
    %6597 = vmatpush.bf16.msra.mxu0 %v5592
    %6598 = vmatpush.bf16.msra.mxu0 %v5588
    %6599 = vmatmul.bf16.gmra.mxu0 %v5875
    %v6600 = vpop.f32.mrf.mxu0
    %v6601 = vadd.f32 %v6588, %v6600
    %v6602 = vpop.f32.mrf.mxu0
    %6603 = vdwg.mxu0
    %6604 = vmatpush.bf16.msra.mxu0 %v5648
    %6605 = vmatpush.bf16.msra.mxu0 %v5644
    %6606 = vmatpush.bf16.msra.mxu0 %v5640
    %6607 = vmatpush.bf16.msra.mxu0 %v5636
    %6608 = vmatpush.bf16.msra.mxu0 %v5632
    %6609 = vmatpush.bf16.msra.mxu0 %v5628
    %6610 = vmatpush.bf16.msra.mxu0 %v5624
    %6611 = vmatpush.bf16.msra.mxu0 %v5620
    %6612 = vmatmul.bf16.gmra.mxu0 %v5876
    %v6613 = vpop.f32.mrf.mxu0
    %v6614 = vadd.f32 %v6601, %v6613
    %v6615 = vpop.f32.mrf.mxu0
    %6616 = vdwg.mxu0
    %6617 = vmatpush.bf16.msra.mxu0 %v5680
    %6618 = vmatpush.bf16.msra.mxu0 %v5676
    %6619 = vmatpush.bf16.msra.mxu0 %v5672
    %6620 = vmatpush.bf16.msra.mxu0 %v5668
    %6621 = vmatpush.bf16.msra.mxu0 %v5664
    %6622 = vmatpush.bf16.msra.mxu0 %v5660
    %6623 = vmatpush.bf16.msra.mxu0 %v5656
    %6624 = vmatpush.bf16.msra.mxu0 %v5652
    %6625 = vmatmul.bf16.gmra.mxu0 %v5879
    %v6626 = vpop.f32.mrf.mxu0
    %v6627 = vadd.f32 %v6614, %v6626
    %v6628 = vpop.f32.mrf.mxu0
    %6629 = vdwg.mxu0
    %6630 = vmatpush.bf16.msra.mxu0 %v5712
    %6631 = vmatpush.bf16.msra.mxu0 %v5708
    %6632 = vmatpush.bf16.msra.mxu0 %v5704
    %6633 = vmatpush.bf16.msra.mxu0 %v5700
    %6634 = vmatpush.bf16.msra.mxu0 %v5696
    %6635 = vmatpush.bf16.msra.mxu0 %v5692
    %6636 = vmatpush.bf16.msra.mxu0 %v5688
    %6637 = vmatpush.bf16.msra.mxu0 %v5684
    %6638 = vmatmul.bf16.gmra.mxu0 %v5880
    %v6639 = vpop.f32.mrf.mxu0
    %v6640 = vadd.f32 %v6627, %v6639
    %v6641 = vpop.f32.mrf.mxu0
    %6642 = vdwg.mxu0
    %6643 = vmatpush.bf16.msra.mxu0 %v5744
    %6644 = vmatpush.bf16.msra.mxu0 %v5740
    %6645 = vmatpush.bf16.msra.mxu0 %v5736
    %6646 = vmatpush.bf16.msra.mxu0 %v5732
    %6647 = vmatpush.bf16.msra.mxu0 %v5728
    %6648 = vmatpush.bf16.msra.mxu0 %v5724
    %6649 = vmatpush.bf16.msra.mxu0 %v5720
    %6650 = vmatpush.bf16.msra.mxu0 %v5716
    %6651 = vmatmul.bf16.gmra.mxu0 %v5881
    %v6652 = vpop.f32.mrf.mxu0
    %v6653 = vadd.f32 %v6640, %v6652
    %v6654 = vpop.f32.mrf.mxu0
    %6655 = vdwg.mxu0
    %6656 = vmatpush.bf16.msra.mxu0 %v5776
    %6657 = vmatpush.bf16.msra.mxu0 %v5772
    %6658 = vmatpush.bf16.msra.mxu0 %v5768
    %6659 = vmatpush.bf16.msra.mxu0 %v5764
    %6660 = vmatpush.bf16.msra.mxu0 %v5760
    %6661 = vmatpush.bf16.msra.mxu0 %v5756
    %6662 = vmatpush.bf16.msra.mxu0 %v5752
    %6663 = vmatpush.bf16.msra.mxu0 %v5748
    %6664 = vmatmul.bf16.gmra.mxu0 %v5882
    %v6665 = vpop.f32.mrf.mxu0
    %v6666 = vadd.f32 %v6653, %v6665
    %v6667 = vpop.f32.mrf.mxu0
    %6668 = vdwg.mxu0
    %6669 = vmatpush.bf16.msra.mxu0 %v5808
    %6670 = vmatpush.bf16.msra.mxu0 %v5804
    %6671 = vmatpush.bf16.msra.mxu0 %v5800
    %6672 = vmatpush.bf16.msra.mxu0 %v5796
    %6673 = vmatpush.bf16.msra.mxu0 %v5792
    %6674 = vmatpush.bf16.msra.mxu0 %v5788
    %6675 = vmatpush.bf16.msra.mxu0 %v5784
    %6676 = vmatpush.bf16.msra.mxu0 %v5780
    %6677 = vmatmul.bf16.gmra.mxu0 %v5883
    %v6678 = vpop.f32.mrf.mxu0
    %v6679 = vadd.f32 %v6666, %v6678
    %v6680 = vpop.f32.mrf.mxu0
    %6681 = vdwg.mxu0
    %6682 = vmatpush.bf16.msra.mxu0 %v5840
    %6683 = vmatpush.bf16.msra.mxu0 %v5836
    %6684 = vmatpush.bf16.msra.mxu0 %v5832
    %6685 = vmatpush.bf16.msra.mxu0 %v5828
    %6686 = vmatpush.bf16.msra.mxu0 %v5824
    %6687 = vmatpush.bf16.msra.mxu0 %v5820
    %6688 = vmatpush.bf16.msra.mxu0 %v5816
    %6689 = vmatpush.bf16.msra.mxu0 %v5812
    %6690 = vmatmul.bf16.gmra.mxu0 %v5884
    %v6691 = vpop.f32.mrf.mxu0
    %v6692 = vadd.f32 %v6679, %v6691
    %v6693 = vpop.f32.mrf.mxu0
    %6694 = vdwg.mxu0
    %6695 = vmatpush.bf16.msra.mxu0 %v4913
    %6696 = vmatpush.bf16.msra.mxu0 %v4909
    %6697 = vmatpush.bf16.msra.mxu0 %v4905
    %6698 = vmatpush.bf16.msra.mxu0 %v4901
    %6699 = vmatpush.bf16.msra.mxu0 %v4897
    %6700 = vmatpush.bf16.msra.mxu0 %v4893
    %6701 = vmatpush.bf16.msra.mxu0 %v4889
    %6702 = vmatpush.bf16.msra.mxu0 %v4885
    %6703 = vmatmul.bf16.gmra.mxu0 %v5849
    %v6704 = vpop.f32.mrf.mxu0
    %v6705 = vadd.f32 0.0, %v6704
    %v6706 = vpop.f32.mrf.mxu0
    %6707 = vdwg.mxu0
    %6708 = vmatpush.bf16.msra.mxu0 %v4945
    %6709 = vmatpush.bf16.msra.mxu0 %v4941
    %6710 = vmatpush.bf16.msra.mxu0 %v4937
    %6711 = vmatpush.bf16.msra.mxu0 %v4933
    %6712 = vmatpush.bf16.msra.mxu0 %v4929
    %6713 = vmatpush.bf16.msra.mxu0 %v4925
    %6714 = vmatpush.bf16.msra.mxu0 %v4921
    %6715 = vmatpush.bf16.msra.mxu0 %v4917
    %6716 = vmatmul.bf16.gmra.mxu0 %v5850
    %v6717 = vpop.f32.mrf.mxu0
    %v6718 = vadd.f32 %v6705, %v6717
    %v6719 = vpop.f32.mrf.mxu0
    %6720 = vdwg.mxu0
    %6721 = vmatpush.bf16.msra.mxu0 %v4977
    %6722 = vmatpush.bf16.msra.mxu0 %v4973
    %6723 = vmatpush.bf16.msra.mxu0 %v4969
    %6724 = vmatpush.bf16.msra.mxu0 %v4965
    %6725 = vmatpush.bf16.msra.mxu0 %v4961
    %6726 = vmatpush.bf16.msra.mxu0 %v4957
    %6727 = vmatpush.bf16.msra.mxu0 %v4953
    %6728 = vmatpush.bf16.msra.mxu0 %v4949
    %6729 = vmatmul.bf16.gmra.mxu0 %v5851
    %v6730 = vpop.f32.mrf.mxu0
    %v6731 = vadd.f32 %v6718, %v6730
    %v6732 = vpop.f32.mrf.mxu0
    %6733 = vdwg.mxu0
    %6734 = vmatpush.bf16.msra.mxu0 %v5009
    %6735 = vmatpush.bf16.msra.mxu0 %v5005
    %6736 = vmatpush.bf16.msra.mxu0 %v5001
    %6737 = vmatpush.bf16.msra.mxu0 %v4997
    %6738 = vmatpush.bf16.msra.mxu0 %v4993
    %6739 = vmatpush.bf16.msra.mxu0 %v4989
    %6740 = vmatpush.bf16.msra.mxu0 %v4985
    %6741 = vmatpush.bf16.msra.mxu0 %v4981
    %6742 = vmatmul.bf16.gmra.mxu0 %v5852
    %v6743 = vpop.f32.mrf.mxu0
    %v6744 = vadd.f32 %v6731, %v6743
    %v6745 = vpop.f32.mrf.mxu0
    %6746 = vdwg.mxu0
    %6747 = vmatpush.bf16.msra.mxu0 %v5041
    %6748 = vmatpush.bf16.msra.mxu0 %v5037
    %6749 = vmatpush.bf16.msra.mxu0 %v5033
    %6750 = vmatpush.bf16.msra.mxu0 %v5029
    %6751 = vmatpush.bf16.msra.mxu0 %v5025
    %6752 = vmatpush.bf16.msra.mxu0 %v5021
    %6753 = vmatpush.bf16.msra.mxu0 %v5017
    %6754 = vmatpush.bf16.msra.mxu0 %v5013
    %6755 = vmatmul.bf16.gmra.mxu0 %v5853
    %v6756 = vpop.f32.mrf.mxu0
    %v6757 = vadd.f32 %v6744, %v6756
    %v6758 = vpop.f32.mrf.mxu0
    %6759 = vdwg.mxu0
    %6760 = vmatpush.bf16.msra.mxu0 %v5073
    %6761 = vmatpush.bf16.msra.mxu0 %v5069
    %6762 = vmatpush.bf16.msra.mxu0 %v5065
    %6763 = vmatpush.bf16.msra.mxu0 %v5061
    %6764 = vmatpush.bf16.msra.mxu0 %v5057
    %6765 = vmatpush.bf16.msra.mxu0 %v5053
    %6766 = vmatpush.bf16.msra.mxu0 %v5049
    %6767 = vmatpush.bf16.msra.mxu0 %v5045
    %6768 = vmatmul.bf16.gmra.mxu0 %v5854
    %v6769 = vpop.f32.mrf.mxu0
    %v6770 = vadd.f32 %v6757, %v6769
    %v6771 = vpop.f32.mrf.mxu0
    %6772 = vdwg.mxu0
    %6773 = vmatpush.bf16.msra.mxu0 %v5105
    %6774 = vmatpush.bf16.msra.mxu0 %v5101
    %6775 = vmatpush.bf16.msra.mxu0 %v5097
    %6776 = vmatpush.bf16.msra.mxu0 %v5093
    %6777 = vmatpush.bf16.msra.mxu0 %v5089
    %6778 = vmatpush.bf16.msra.mxu0 %v5085
    %6779 = vmatpush.bf16.msra.mxu0 %v5081
    %6780 = vmatpush.bf16.msra.mxu0 %v5077
    %6781 = vmatmul.bf16.gmra.mxu0 %v5855
    %v6782 = vpop.f32.mrf.mxu0
    %v6783 = vadd.f32 %v6770, %v6782
    %v6784 = vpop.f32.mrf.mxu0
    %6785 = vdwg.mxu0
    %6786 = vmatpush.bf16.msra.mxu0 %v5137
    %6787 = vmatpush.bf16.msra.mxu0 %v5133
    %6788 = vmatpush.bf16.msra.mxu0 %v5129
    %6789 = vmatpush.bf16.msra.mxu0 %v5125
    %6790 = vmatpush.bf16.msra.mxu0 %v5121
    %6791 = vmatpush.bf16.msra.mxu0 %v5117
    %6792 = vmatpush.bf16.msra.mxu0 %v5113
    %6793 = vmatpush.bf16.msra.mxu0 %v5109
    %6794 = vmatmul.bf16.gmra.mxu0 %v5856
    %v6795 = vpop.f32.mrf.mxu0
    %v6796 = vadd.f32 %v6783, %v6795
    %v6797 = vpop.f32.mrf.mxu0
    %6798 = vdwg.mxu0
    %6799 = vmatpush.bf16.msra.mxu0 %v5169
    %6800 = vmatpush.bf16.msra.mxu0 %v5165
    %6801 = vmatpush.bf16.msra.mxu0 %v5161
    %6802 = vmatpush.bf16.msra.mxu0 %v5157
    %6803 = vmatpush.bf16.msra.mxu0 %v5153
    %6804 = vmatpush.bf16.msra.mxu0 %v5149
    %6805 = vmatpush.bf16.msra.mxu0 %v5145
    %6806 = vmatpush.bf16.msra.mxu0 %v5141
    %6807 = vmatmul.bf16.gmra.mxu0 %v5859
    %v6808 = vpop.f32.mrf.mxu0
    %v6809 = vadd.f32 %v6796, %v6808
    %v6810 = vpop.f32.mrf.mxu0
    %6811 = vdwg.mxu0
    %6812 = vmatpush.bf16.msra.mxu0 %v5201
    %6813 = vmatpush.bf16.msra.mxu0 %v5197
    %6814 = vmatpush.bf16.msra.mxu0 %v5193
    %6815 = vmatpush.bf16.msra.mxu0 %v5189
    %6816 = vmatpush.bf16.msra.mxu0 %v5185
    %6817 = vmatpush.bf16.msra.mxu0 %v5181
    %6818 = vmatpush.bf16.msra.mxu0 %v5177
    %6819 = vmatpush.bf16.msra.mxu0 %v5173
    %6820 = vmatmul.bf16.gmra.mxu0 %v5860
    %v6821 = vpop.f32.mrf.mxu0
    %v6822 = vadd.f32 %v6809, %v6821
    %v6823 = vpop.f32.mrf.mxu0
    %6824 = vdwg.mxu0
    %6825 = vmatpush.bf16.msra.mxu0 %v5233
    %6826 = vmatpush.bf16.msra.mxu0 %v5229
    %6827 = vmatpush.bf16.msra.mxu0 %v5225
    %6828 = vmatpush.bf16.msra.mxu0 %v5221
    %6829 = vmatpush.bf16.msra.mxu0 %v5217
    %6830 = vmatpush.bf16.msra.mxu0 %v5213
    %6831 = vmatpush.bf16.msra.mxu0 %v5209
    %6832 = vmatpush.bf16.msra.mxu0 %v5205
    %6833 = vmatmul.bf16.gmra.mxu0 %v5861
    %v6834 = vpop.f32.mrf.mxu0
    %v6835 = vadd.f32 %v6822, %v6834
    %v6836 = vpop.f32.mrf.mxu0
    %6837 = vdwg.mxu0
    %6838 = vmatpush.bf16.msra.mxu0 %v5265
    %6839 = vmatpush.bf16.msra.mxu0 %v5261
    %6840 = vmatpush.bf16.msra.mxu0 %v5257
    %6841 = vmatpush.bf16.msra.mxu0 %v5253
    %6842 = vmatpush.bf16.msra.mxu0 %v5249
    %6843 = vmatpush.bf16.msra.mxu0 %v5245
    %6844 = vmatpush.bf16.msra.mxu0 %v5241
    %6845 = vmatpush.bf16.msra.mxu0 %v5237
    %6846 = vmatmul.bf16.gmra.mxu0 %v5862
    %v6847 = vpop.f32.mrf.mxu0
    %v6848 = vadd.f32 %v6835, %v6847
    %v6849 = vpop.f32.mrf.mxu0
    %6850 = vdwg.mxu0
    %6851 = vmatpush.bf16.msra.mxu0 %v5297
    %6852 = vmatpush.bf16.msra.mxu0 %v5293
    %6853 = vmatpush.bf16.msra.mxu0 %v5289
    %6854 = vmatpush.bf16.msra.mxu0 %v5285
    %6855 = vmatpush.bf16.msra.mxu0 %v5281
    %6856 = vmatpush.bf16.msra.mxu0 %v5277
    %6857 = vmatpush.bf16.msra.mxu0 %v5273
    %6858 = vmatpush.bf16.msra.mxu0 %v5269
    %6859 = vmatmul.bf16.gmra.mxu0 %v5863
    %v6860 = vpop.f32.mrf.mxu0
    %v6861 = vadd.f32 %v6848, %v6860
    %v6862 = vpop.f32.mrf.mxu0
    %6863 = vdwg.mxu0
    %6864 = vmatpush.bf16.msra.mxu0 %v5329
    %6865 = vmatpush.bf16.msra.mxu0 %v5325
    %6866 = vmatpush.bf16.msra.mxu0 %v5321
    %6867 = vmatpush.bf16.msra.mxu0 %v5317
    %6868 = vmatpush.bf16.msra.mxu0 %v5313
    %6869 = vmatpush.bf16.msra.mxu0 %v5309
    %6870 = vmatpush.bf16.msra.mxu0 %v5305
    %6871 = vmatpush.bf16.msra.mxu0 %v5301
    %6872 = vmatmul.bf16.gmra.mxu0 %v5864
    %v6873 = vpop.f32.mrf.mxu0
    %v6874 = vadd.f32 %v6861, %v6873
    %v6875 = vpop.f32.mrf.mxu0
    %6876 = vdwg.mxu0
    %6877 = vmatpush.bf16.msra.mxu0 %v5361
    %6878 = vmatpush.bf16.msra.mxu0 %v5357
    %6879 = vmatpush.bf16.msra.mxu0 %v5353
    %6880 = vmatpush.bf16.msra.mxu0 %v5349
    %6881 = vmatpush.bf16.msra.mxu0 %v5345
    %6882 = vmatpush.bf16.msra.mxu0 %v5341
    %6883 = vmatpush.bf16.msra.mxu0 %v5337
    %6884 = vmatpush.bf16.msra.mxu0 %v5333
    %6885 = vmatmul.bf16.gmra.mxu0 %v5865
    %v6886 = vpop.f32.mrf.mxu0
    %v6887 = vadd.f32 %v6874, %v6886
    %v6888 = vpop.f32.mrf.mxu0
    %6889 = vdwg.mxu0
    %6890 = vmatpush.bf16.msra.mxu0 %v5393
    %6891 = vmatpush.bf16.msra.mxu0 %v5389
    %6892 = vmatpush.bf16.msra.mxu0 %v5385
    %6893 = vmatpush.bf16.msra.mxu0 %v5381
    %6894 = vmatpush.bf16.msra.mxu0 %v5377
    %6895 = vmatpush.bf16.msra.mxu0 %v5373
    %6896 = vmatpush.bf16.msra.mxu0 %v5369
    %6897 = vmatpush.bf16.msra.mxu0 %v5365
    %6898 = vmatmul.bf16.gmra.mxu0 %v5866
    %v6899 = vpop.f32.mrf.mxu0
    %v6900 = vadd.f32 %v6887, %v6899
    %v6901 = vpop.f32.mrf.mxu0
    %6902 = vdwg.mxu0
    %6903 = vmatpush.bf16.msra.mxu0 %v5425
    %6904 = vmatpush.bf16.msra.mxu0 %v5421
    %6905 = vmatpush.bf16.msra.mxu0 %v5417
    %6906 = vmatpush.bf16.msra.mxu0 %v5413
    %6907 = vmatpush.bf16.msra.mxu0 %v5409
    %6908 = vmatpush.bf16.msra.mxu0 %v5405
    %6909 = vmatpush.bf16.msra.mxu0 %v5401
    %6910 = vmatpush.bf16.msra.mxu0 %v5397
    %6911 = vmatmul.bf16.gmra.mxu0 %v5869
    %v6912 = vpop.f32.mrf.mxu0
    %v6913 = vadd.f32 %v6900, %v6912
    %v6914 = vpop.f32.mrf.mxu0
    %6915 = vdwg.mxu0
    %6916 = vmatpush.bf16.msra.mxu0 %v5457
    %6917 = vmatpush.bf16.msra.mxu0 %v5453
    %6918 = vmatpush.bf16.msra.mxu0 %v5449
    %6919 = vmatpush.bf16.msra.mxu0 %v5445
    %6920 = vmatpush.bf16.msra.mxu0 %v5441
    %6921 = vmatpush.bf16.msra.mxu0 %v5437
    %6922 = vmatpush.bf16.msra.mxu0 %v5433
    %6923 = vmatpush.bf16.msra.mxu0 %v5429
    %6924 = vmatmul.bf16.gmra.mxu0 %v5870
    %v6925 = vpop.f32.mrf.mxu0
    %v6926 = vadd.f32 %v6913, %v6925
    %v6927 = vpop.f32.mrf.mxu0
    %6928 = vdwg.mxu0
    %6929 = vmatpush.bf16.msra.mxu0 %v5489
    %6930 = vmatpush.bf16.msra.mxu0 %v5485
    %6931 = vmatpush.bf16.msra.mxu0 %v5481
    %6932 = vmatpush.bf16.msra.mxu0 %v5477
    %6933 = vmatpush.bf16.msra.mxu0 %v5473
    %6934 = vmatpush.bf16.msra.mxu0 %v5469
    %6935 = vmatpush.bf16.msra.mxu0 %v5465
    %6936 = vmatpush.bf16.msra.mxu0 %v5461
    %6937 = vmatmul.bf16.gmra.mxu0 %v5871
    %v6938 = vpop.f32.mrf.mxu0
    %v6939 = vadd.f32 %v6926, %v6938
    %v6940 = vpop.f32.mrf.mxu0
    %6941 = vdwg.mxu0
    %6942 = vmatpush.bf16.msra.mxu0 %v5521
    %6943 = vmatpush.bf16.msra.mxu0 %v5517
    %6944 = vmatpush.bf16.msra.mxu0 %v5513
    %6945 = vmatpush.bf16.msra.mxu0 %v5509
    %6946 = vmatpush.bf16.msra.mxu0 %v5505
    %6947 = vmatpush.bf16.msra.mxu0 %v5501
    %6948 = vmatpush.bf16.msra.mxu0 %v5497
    %6949 = vmatpush.bf16.msra.mxu0 %v5493
    %6950 = vmatmul.bf16.gmra.mxu0 %v5872
    %v6951 = vpop.f32.mrf.mxu0
    %v6952 = vadd.f32 %v6939, %v6951
    %v6953 = vpop.f32.mrf.mxu0
    %6954 = vdwg.mxu0
    %6955 = vmatpush.bf16.msra.mxu0 %v5553
    %6956 = vmatpush.bf16.msra.mxu0 %v5549
    %6957 = vmatpush.bf16.msra.mxu0 %v5545
    %6958 = vmatpush.bf16.msra.mxu0 %v5541
    %6959 = vmatpush.bf16.msra.mxu0 %v5537
    %6960 = vmatpush.bf16.msra.mxu0 %v5533
    %6961 = vmatpush.bf16.msra.mxu0 %v5529
    %6962 = vmatpush.bf16.msra.mxu0 %v5525
    %6963 = vmatmul.bf16.gmra.mxu0 %v5873
    %v6964 = vpop.f32.mrf.mxu0
    %v6965 = vadd.f32 %v6952, %v6964
    %v6966 = vpop.f32.mrf.mxu0
    %6967 = vdwg.mxu0
    %6968 = vmatpush.bf16.msra.mxu0 %v5585
    %6969 = vmatpush.bf16.msra.mxu0 %v5581
    %6970 = vmatpush.bf16.msra.mxu0 %v5577
    %6971 = vmatpush.bf16.msra.mxu0 %v5573
    %6972 = vmatpush.bf16.msra.mxu0 %v5569
    %6973 = vmatpush.bf16.msra.mxu0 %v5565
    %6974 = vmatpush.bf16.msra.mxu0 %v5561
    %6975 = vmatpush.bf16.msra.mxu0 %v5557
    %6976 = vmatmul.bf16.gmra.mxu0 %v5874
    %v6977 = vpop.f32.mrf.mxu0
    %v6978 = vadd.f32 %v6965, %v6977
    %v6979 = vpop.f32.mrf.mxu0
    %6980 = vdwg.mxu0
    %6981 = vmatpush.bf16.msra.mxu0 %v5617
    %6982 = vmatpush.bf16.msra.mxu0 %v5613
    %6983 = vmatpush.bf16.msra.mxu0 %v5609
    %6984 = vmatpush.bf16.msra.mxu0 %v5605
    %6985 = vmatpush.bf16.msra.mxu0 %v5601
    %6986 = vmatpush.bf16.msra.mxu0 %v5597
    %6987 = vmatpush.bf16.msra.mxu0 %v5593
    %6988 = vmatpush.bf16.msra.mxu0 %v5589
    %6989 = vmatmul.bf16.gmra.mxu0 %v5875
    %v6990 = vpop.f32.mrf.mxu0
    %v6991 = vadd.f32 %v6978, %v6990
    %v6992 = vpop.f32.mrf.mxu0
    %6993 = vdwg.mxu0
    %6994 = vmatpush.bf16.msra.mxu0 %v5649
    %6995 = vmatpush.bf16.msra.mxu0 %v5645
    %6996 = vmatpush.bf16.msra.mxu0 %v5641
    %6997 = vmatpush.bf16.msra.mxu0 %v5637
    %6998 = vmatpush.bf16.msra.mxu0 %v5633
    %6999 = vmatpush.bf16.msra.mxu0 %v5629
    %7000 = vmatpush.bf16.msra.mxu0 %v5625
    %7001 = vmatpush.bf16.msra.mxu0 %v5621
    %7002 = vmatmul.bf16.gmra.mxu0 %v5876
    %v7003 = vpop.f32.mrf.mxu0
    %v7004 = vadd.f32 %v6991, %v7003
    %v7005 = vpop.f32.mrf.mxu0
    %7006 = vdwg.mxu0
    %7007 = vmatpush.bf16.msra.mxu0 %v5681
    %7008 = vmatpush.bf16.msra.mxu0 %v5677
    %7009 = vmatpush.bf16.msra.mxu0 %v5673
    %7010 = vmatpush.bf16.msra.mxu0 %v5669
    %7011 = vmatpush.bf16.msra.mxu0 %v5665
    %7012 = vmatpush.bf16.msra.mxu0 %v5661
    %7013 = vmatpush.bf16.msra.mxu0 %v5657
    %7014 = vmatpush.bf16.msra.mxu0 %v5653
    %7015 = vmatmul.bf16.gmra.mxu0 %v5879
    %v7016 = vpop.f32.mrf.mxu0
    %v7017 = vadd.f32 %v7004, %v7016
    %v7018 = vpop.f32.mrf.mxu0
    %7019 = vdwg.mxu0
    %7020 = vmatpush.bf16.msra.mxu0 %v5713
    %7021 = vmatpush.bf16.msra.mxu0 %v5709
    %7022 = vmatpush.bf16.msra.mxu0 %v5705
    %7023 = vmatpush.bf16.msra.mxu0 %v5701
    %7024 = vmatpush.bf16.msra.mxu0 %v5697
    %7025 = vmatpush.bf16.msra.mxu0 %v5693
    %7026 = vmatpush.bf16.msra.mxu0 %v5689
    %7027 = vmatpush.bf16.msra.mxu0 %v5685
    %7028 = vmatmul.bf16.gmra.mxu0 %v5880
    %v7029 = vpop.f32.mrf.mxu0
    %v7030 = vadd.f32 %v7017, %v7029
    %v7031 = vpop.f32.mrf.mxu0
    %7032 = vdwg.mxu0
    %7033 = vmatpush.bf16.msra.mxu0 %v5745
    %7034 = vmatpush.bf16.msra.mxu0 %v5741
    %7035 = vmatpush.bf16.msra.mxu0 %v5737
    %7036 = vmatpush.bf16.msra.mxu0 %v5733
    %7037 = vmatpush.bf16.msra.mxu0 %v5729
    %7038 = vmatpush.bf16.msra.mxu0 %v5725
    %7039 = vmatpush.bf16.msra.mxu0 %v5721
    %7040 = vmatpush.bf16.msra.mxu0 %v5717
    %7041 = vmatmul.bf16.gmra.mxu0 %v5881
    %v7042 = vpop.f32.mrf.mxu0
    %v7043 = vadd.f32 %v7030, %v7042
    %v7044 = vpop.f32.mrf.mxu0
    %7045 = vdwg.mxu0
    %7046 = vmatpush.bf16.msra.mxu0 %v5777
    %7047 = vmatpush.bf16.msra.mxu0 %v5773
    %7048 = vmatpush.bf16.msra.mxu0 %v5769
    %7049 = vmatpush.bf16.msra.mxu0 %v5765
    %7050 = vmatpush.bf16.msra.mxu0 %v5761
    %7051 = vmatpush.bf16.msra.mxu0 %v5757
    %7052 = vmatpush.bf16.msra.mxu0 %v5753
    %7053 = vmatpush.bf16.msra.mxu0 %v5749
    %7054 = vmatmul.bf16.gmra.mxu0 %v5882
    %v7055 = vpop.f32.mrf.mxu0
    %v7056 = vadd.f32 %v7043, %v7055
    %v7057 = vpop.f32.mrf.mxu0
    %7058 = vdwg.mxu0
    %7059 = vmatpush.bf16.msra.mxu0 %v5809
    %7060 = vmatpush.bf16.msra.mxu0 %v5805
    %7061 = vmatpush.bf16.msra.mxu0 %v5801
    %7062 = vmatpush.bf16.msra.mxu0 %v5797
    %7063 = vmatpush.bf16.msra.mxu0 %v5793
    %7064 = vmatpush.bf16.msra.mxu0 %v5789
    %7065 = vmatpush.bf16.msra.mxu0 %v5785
    %7066 = vmatpush.bf16.msra.mxu0 %v5781
    %7067 = vmatmul.bf16.gmra.mxu0 %v5883
    %v7068 = vpop.f32.mrf.mxu0
    %v7069 = vadd.f32 %v7056, %v7068
    %v7070 = vpop.f32.mrf.mxu0
    %7071 = vdwg.mxu0
    %7072 = vmatpush.bf16.msra.mxu0 %v5841
    %7073 = vmatpush.bf16.msra.mxu0 %v5837
    %7074 = vmatpush.bf16.msra.mxu0 %v5833
    %7075 = vmatpush.bf16.msra.mxu0 %v5829
    %7076 = vmatpush.bf16.msra.mxu0 %v5825
    %7077 = vmatpush.bf16.msra.mxu0 %v5821
    %7078 = vmatpush.bf16.msra.mxu0 %v5817
    %7079 = vmatpush.bf16.msra.mxu0 %v5813
    %7080 = vmatmul.bf16.gmra.mxu0 %v5884
    %v7081 = vpop.f32.mrf.mxu0
    %v7082 = vadd.f32 %v7069, %v7081
    %v7083 = vpop.f32.mrf.mxu0
    %7084 = vdwg.mxu0
    %7085 = vmatpush.bf16.msra.mxu0 %v4914
    %7086 = vmatpush.bf16.msra.mxu0 %v4910
    %7087 = vmatpush.bf16.msra.mxu0 %v4906
    %7088 = vmatpush.bf16.msra.mxu0 %v4902
    %7089 = vmatpush.bf16.msra.mxu0 %v4898
    %7090 = vmatpush.bf16.msra.mxu0 %v4894
    %7091 = vmatpush.bf16.msra.mxu0 %v4890
    %7092 = vmatpush.bf16.msra.mxu0 %v4886
    %7093 = vmatmul.bf16.gmra.mxu0 %v5849
    %v7094 = vpop.f32.mrf.mxu0
    %v7095 = vadd.f32 0.0, %v7094
    %v7096 = vpop.f32.mrf.mxu0
    %7097 = vdwg.mxu0
    %7098 = vmatpush.bf16.msra.mxu0 %v4946
    %7099 = vmatpush.bf16.msra.mxu0 %v4942
    %7100 = vmatpush.bf16.msra.mxu0 %v4938
    %7101 = vmatpush.bf16.msra.mxu0 %v4934
    %7102 = vmatpush.bf16.msra.mxu0 %v4930
    %7103 = vmatpush.bf16.msra.mxu0 %v4926
    %7104 = vmatpush.bf16.msra.mxu0 %v4922
    %7105 = vmatpush.bf16.msra.mxu0 %v4918
    %7106 = vmatmul.bf16.gmra.mxu0 %v5850
    %v7107 = vpop.f32.mrf.mxu0
    %v7108 = vadd.f32 %v7095, %v7107
    %v7109 = vpop.f32.mrf.mxu0
    %7110 = vdwg.mxu0
    %7111 = vmatpush.bf16.msra.mxu0 %v4978
    %7112 = vmatpush.bf16.msra.mxu0 %v4974
    %7113 = vmatpush.bf16.msra.mxu0 %v4970
    %7114 = vmatpush.bf16.msra.mxu0 %v4966
    %7115 = vmatpush.bf16.msra.mxu0 %v4962
    %7116 = vmatpush.bf16.msra.mxu0 %v4958
    %7117 = vmatpush.bf16.msra.mxu0 %v4954
    %7118 = vmatpush.bf16.msra.mxu0 %v4950
    %7119 = vmatmul.bf16.gmra.mxu0 %v5851
    %v7120 = vpop.f32.mrf.mxu0
    %v7121 = vadd.f32 %v7108, %v7120
    %v7122 = vpop.f32.mrf.mxu0
    %7123 = vdwg.mxu0
    %7124 = vmatpush.bf16.msra.mxu0 %v5010
    %7125 = vmatpush.bf16.msra.mxu0 %v5006
    %7126 = vmatpush.bf16.msra.mxu0 %v5002
    %7127 = vmatpush.bf16.msra.mxu0 %v4998
    %7128 = vmatpush.bf16.msra.mxu0 %v4994
    %7129 = vmatpush.bf16.msra.mxu0 %v4990
    %7130 = vmatpush.bf16.msra.mxu0 %v4986
    %7131 = vmatpush.bf16.msra.mxu0 %v4982
    %7132 = vmatmul.bf16.gmra.mxu0 %v5852
    %v7133 = vpop.f32.mrf.mxu0
    %v7134 = vadd.f32 %v7121, %v7133
    %v7135 = vpop.f32.mrf.mxu0
    %7136 = vdwg.mxu0
    %7137 = vmatpush.bf16.msra.mxu0 %v5042
    %7138 = vmatpush.bf16.msra.mxu0 %v5038
    %7139 = vmatpush.bf16.msra.mxu0 %v5034
    %7140 = vmatpush.bf16.msra.mxu0 %v5030
    %7141 = vmatpush.bf16.msra.mxu0 %v5026
    %7142 = vmatpush.bf16.msra.mxu0 %v5022
    %7143 = vmatpush.bf16.msra.mxu0 %v5018
    %7144 = vmatpush.bf16.msra.mxu0 %v5014
    %7145 = vmatmul.bf16.gmra.mxu0 %v5853
    %v7146 = vpop.f32.mrf.mxu0
    %v7147 = vadd.f32 %v7134, %v7146
    %v7148 = vpop.f32.mrf.mxu0
    %7149 = vdwg.mxu0
    %7150 = vmatpush.bf16.msra.mxu0 %v5074
    %7151 = vmatpush.bf16.msra.mxu0 %v5070
    %7152 = vmatpush.bf16.msra.mxu0 %v5066
    %7153 = vmatpush.bf16.msra.mxu0 %v5062
    %7154 = vmatpush.bf16.msra.mxu0 %v5058
    %7155 = vmatpush.bf16.msra.mxu0 %v5054
    %7156 = vmatpush.bf16.msra.mxu0 %v5050
    %7157 = vmatpush.bf16.msra.mxu0 %v5046
    %7158 = vmatmul.bf16.gmra.mxu0 %v5854
    %v7159 = vpop.f32.mrf.mxu0
    %v7160 = vadd.f32 %v7147, %v7159
    %v7161 = vpop.f32.mrf.mxu0
    %7162 = vdwg.mxu0
    %7163 = vmatpush.bf16.msra.mxu0 %v5106
    %7164 = vmatpush.bf16.msra.mxu0 %v5102
    %7165 = vmatpush.bf16.msra.mxu0 %v5098
    %7166 = vmatpush.bf16.msra.mxu0 %v5094
    %7167 = vmatpush.bf16.msra.mxu0 %v5090
    %7168 = vmatpush.bf16.msra.mxu0 %v5086
    %7169 = vmatpush.bf16.msra.mxu0 %v5082
    %7170 = vmatpush.bf16.msra.mxu0 %v5078
    %7171 = vmatmul.bf16.gmra.mxu0 %v5855
    %v7172 = vpop.f32.mrf.mxu0
    %v7173 = vadd.f32 %v7160, %v7172
    %v7174 = vpop.f32.mrf.mxu0
    %7175 = vdwg.mxu0
    %7176 = vmatpush.bf16.msra.mxu0 %v5138
    %7177 = vmatpush.bf16.msra.mxu0 %v5134
    %7178 = vmatpush.bf16.msra.mxu0 %v5130
    %7179 = vmatpush.bf16.msra.mxu0 %v5126
    %7180 = vmatpush.bf16.msra.mxu0 %v5122
    %7181 = vmatpush.bf16.msra.mxu0 %v5118
    %7182 = vmatpush.bf16.msra.mxu0 %v5114
    %7183 = vmatpush.bf16.msra.mxu0 %v5110
    %7184 = vmatmul.bf16.gmra.mxu0 %v5856
    %v7185 = vpop.f32.mrf.mxu0
    %v7186 = vadd.f32 %v7173, %v7185
    %v7187 = vpop.f32.mrf.mxu0
    %7188 = vdwg.mxu0
    %7189 = vmatpush.bf16.msra.mxu0 %v5170
    %7190 = vmatpush.bf16.msra.mxu0 %v5166
    %7191 = vmatpush.bf16.msra.mxu0 %v5162
    %7192 = vmatpush.bf16.msra.mxu0 %v5158
    %7193 = vmatpush.bf16.msra.mxu0 %v5154
    %7194 = vmatpush.bf16.msra.mxu0 %v5150
    %7195 = vmatpush.bf16.msra.mxu0 %v5146
    %7196 = vmatpush.bf16.msra.mxu0 %v5142
    %7197 = vmatmul.bf16.gmra.mxu0 %v5859
    %v7198 = vpop.f32.mrf.mxu0
    %v7199 = vadd.f32 %v7186, %v7198
    %v7200 = vpop.f32.mrf.mxu0
    %7201 = vdwg.mxu0
    %7202 = vmatpush.bf16.msra.mxu0 %v5202
    %7203 = vmatpush.bf16.msra.mxu0 %v5198
    %7204 = vmatpush.bf16.msra.mxu0 %v5194
    %7205 = vmatpush.bf16.msra.mxu0 %v5190
    %7206 = vmatpush.bf16.msra.mxu0 %v5186
    %7207 = vmatpush.bf16.msra.mxu0 %v5182
    %7208 = vmatpush.bf16.msra.mxu0 %v5178
    %7209 = vmatpush.bf16.msra.mxu0 %v5174
    %7210 = vmatmul.bf16.gmra.mxu0 %v5860
    %v7211 = vpop.f32.mrf.mxu0
    %v7212 = vadd.f32 %v7199, %v7211
    %v7213 = vpop.f32.mrf.mxu0
    %7214 = vdwg.mxu0
    %7215 = vmatpush.bf16.msra.mxu0 %v5234
    %7216 = vmatpush.bf16.msra.mxu0 %v5230
    %7217 = vmatpush.bf16.msra.mxu0 %v5226
    %7218 = vmatpush.bf16.msra.mxu0 %v5222
    %7219 = vmatpush.bf16.msra.mxu0 %v5218
    %7220 = vmatpush.bf16.msra.mxu0 %v5214
    %7221 = vmatpush.bf16.msra.mxu0 %v5210
    %7222 = vmatpush.bf16.msra.mxu0 %v5206
    %7223 = vmatmul.bf16.gmra.mxu0 %v5861
    %v7224 = vpop.f32.mrf.mxu0
    %v7225 = vadd.f32 %v7212, %v7224
    %v7226 = vpop.f32.mrf.mxu0
    %7227 = vdwg.mxu0
    %7228 = vmatpush.bf16.msra.mxu0 %v5266
    %7229 = vmatpush.bf16.msra.mxu0 %v5262
    %7230 = vmatpush.bf16.msra.mxu0 %v5258
    %7231 = vmatpush.bf16.msra.mxu0 %v5254
    %7232 = vmatpush.bf16.msra.mxu0 %v5250
    %7233 = vmatpush.bf16.msra.mxu0 %v5246
    %7234 = vmatpush.bf16.msra.mxu0 %v5242
    %7235 = vmatpush.bf16.msra.mxu0 %v5238
    %7236 = vmatmul.bf16.gmra.mxu0 %v5862
    %v7237 = vpop.f32.mrf.mxu0
    %v7238 = vadd.f32 %v7225, %v7237
    %v7239 = vpop.f32.mrf.mxu0
    %7240 = vdwg.mxu0
    %7241 = vmatpush.bf16.msra.mxu0 %v5298
    %7242 = vmatpush.bf16.msra.mxu0 %v5294
    %7243 = vmatpush.bf16.msra.mxu0 %v5290
    %7244 = vmatpush.bf16.msra.mxu0 %v5286
    %7245 = vmatpush.bf16.msra.mxu0 %v5282
    %7246 = vmatpush.bf16.msra.mxu0 %v5278
    %7247 = vmatpush.bf16.msra.mxu0 %v5274
    %7248 = vmatpush.bf16.msra.mxu0 %v5270
    %7249 = vmatmul.bf16.gmra.mxu0 %v5863
    %v7250 = vpop.f32.mrf.mxu0
    %v7251 = vadd.f32 %v7238, %v7250
    %v7252 = vpop.f32.mrf.mxu0
    %7253 = vdwg.mxu0
    %7254 = vmatpush.bf16.msra.mxu0 %v5330
    %7255 = vmatpush.bf16.msra.mxu0 %v5326
    %7256 = vmatpush.bf16.msra.mxu0 %v5322
    %7257 = vmatpush.bf16.msra.mxu0 %v5318
    %7258 = vmatpush.bf16.msra.mxu0 %v5314
    %7259 = vmatpush.bf16.msra.mxu0 %v5310
    %7260 = vmatpush.bf16.msra.mxu0 %v5306
    %7261 = vmatpush.bf16.msra.mxu0 %v5302
    %7262 = vmatmul.bf16.gmra.mxu0 %v5864
    %v7263 = vpop.f32.mrf.mxu0
    %v7264 = vadd.f32 %v7251, %v7263
    %v7265 = vpop.f32.mrf.mxu0
    %7266 = vdwg.mxu0
    %7267 = vmatpush.bf16.msra.mxu0 %v5362
    %7268 = vmatpush.bf16.msra.mxu0 %v5358
    %7269 = vmatpush.bf16.msra.mxu0 %v5354
    %7270 = vmatpush.bf16.msra.mxu0 %v5350
    %7271 = vmatpush.bf16.msra.mxu0 %v5346
    %7272 = vmatpush.bf16.msra.mxu0 %v5342
    %7273 = vmatpush.bf16.msra.mxu0 %v5338
    %7274 = vmatpush.bf16.msra.mxu0 %v5334
    %7275 = vmatmul.bf16.gmra.mxu0 %v5865
    %v7276 = vpop.f32.mrf.mxu0
    %v7277 = vadd.f32 %v7264, %v7276
    %v7278 = vpop.f32.mrf.mxu0
    %7279 = vdwg.mxu0
    %7280 = vmatpush.bf16.msra.mxu0 %v5394
    %7281 = vmatpush.bf16.msra.mxu0 %v5390
    %7282 = vmatpush.bf16.msra.mxu0 %v5386
    %7283 = vmatpush.bf16.msra.mxu0 %v5382
    %7284 = vmatpush.bf16.msra.mxu0 %v5378
    %7285 = vmatpush.bf16.msra.mxu0 %v5374
    %7286 = vmatpush.bf16.msra.mxu0 %v5370
    %7287 = vmatpush.bf16.msra.mxu0 %v5366
    %7288 = vmatmul.bf16.gmra.mxu0 %v5866
    %v7289 = vpop.f32.mrf.mxu0
    %v7290 = vadd.f32 %v7277, %v7289
    %v7291 = vpop.f32.mrf.mxu0
    %7292 = vdwg.mxu0
    %7293 = vmatpush.bf16.msra.mxu0 %v5426
    %7294 = vmatpush.bf16.msra.mxu0 %v5422
    %7295 = vmatpush.bf16.msra.mxu0 %v5418
    %7296 = vmatpush.bf16.msra.mxu0 %v5414
    %7297 = vmatpush.bf16.msra.mxu0 %v5410
    %7298 = vmatpush.bf16.msra.mxu0 %v5406
    %7299 = vmatpush.bf16.msra.mxu0 %v5402
    %7300 = vmatpush.bf16.msra.mxu0 %v5398
    %7301 = vmatmul.bf16.gmra.mxu0 %v5869
    %v7302 = vpop.f32.mrf.mxu0
    %v7303 = vadd.f32 %v7290, %v7302
    %v7304 = vpop.f32.mrf.mxu0
    %7305 = vdwg.mxu0
    %7306 = vmatpush.bf16.msra.mxu0 %v5458
    %7307 = vmatpush.bf16.msra.mxu0 %v5454
    %7308 = vmatpush.bf16.msra.mxu0 %v5450
    %7309 = vmatpush.bf16.msra.mxu0 %v5446
    %7310 = vmatpush.bf16.msra.mxu0 %v5442
    %7311 = vmatpush.bf16.msra.mxu0 %v5438
    %7312 = vmatpush.bf16.msra.mxu0 %v5434
    %7313 = vmatpush.bf16.msra.mxu0 %v5430
    %7314 = vmatmul.bf16.gmra.mxu0 %v5870
    %v7315 = vpop.f32.mrf.mxu0
    %v7316 = vadd.f32 %v7303, %v7315
    %v7317 = vpop.f32.mrf.mxu0
    %7318 = vdwg.mxu0
    %7319 = vmatpush.bf16.msra.mxu0 %v5490
    %7320 = vmatpush.bf16.msra.mxu0 %v5486
    %7321 = vmatpush.bf16.msra.mxu0 %v5482
    %7322 = vmatpush.bf16.msra.mxu0 %v5478
    %7323 = vmatpush.bf16.msra.mxu0 %v5474
    %7324 = vmatpush.bf16.msra.mxu0 %v5470
    %7325 = vmatpush.bf16.msra.mxu0 %v5466
    %7326 = vmatpush.bf16.msra.mxu0 %v5462
    %7327 = vmatmul.bf16.gmra.mxu0 %v5871
    %v7328 = vpop.f32.mrf.mxu0
    %v7329 = vadd.f32 %v7316, %v7328
    %v7330 = vpop.f32.mrf.mxu0
    %7331 = vdwg.mxu0
    %7332 = vmatpush.bf16.msra.mxu0 %v5522
    %7333 = vmatpush.bf16.msra.mxu0 %v5518
    %7334 = vmatpush.bf16.msra.mxu0 %v5514
    %7335 = vmatpush.bf16.msra.mxu0 %v5510
    %7336 = vmatpush.bf16.msra.mxu0 %v5506
    %7337 = vmatpush.bf16.msra.mxu0 %v5502
    %7338 = vmatpush.bf16.msra.mxu0 %v5498
    %7339 = vmatpush.bf16.msra.mxu0 %v5494
    %7340 = vmatmul.bf16.gmra.mxu0 %v5872
    %v7341 = vpop.f32.mrf.mxu0
    %v7342 = vadd.f32 %v7329, %v7341
    %v7343 = vpop.f32.mrf.mxu0
    %7344 = vdwg.mxu0
    %7345 = vmatpush.bf16.msra.mxu0 %v5554
    %7346 = vmatpush.bf16.msra.mxu0 %v5550
    %7347 = vmatpush.bf16.msra.mxu0 %v5546
    %7348 = vmatpush.bf16.msra.mxu0 %v5542
    %7349 = vmatpush.bf16.msra.mxu0 %v5538
    %7350 = vmatpush.bf16.msra.mxu0 %v5534
    %7351 = vmatpush.bf16.msra.mxu0 %v5530
    %7352 = vmatpush.bf16.msra.mxu0 %v5526
    %7353 = vmatmul.bf16.gmra.mxu0 %v5873
    %v7354 = vpop.f32.mrf.mxu0
    %v7355 = vadd.f32 %v7342, %v7354
    %v7356 = vpop.f32.mrf.mxu0
    %7357 = vdwg.mxu0
    %7358 = vmatpush.bf16.msra.mxu0 %v5586
    %7359 = vmatpush.bf16.msra.mxu0 %v5582
    %7360 = vmatpush.bf16.msra.mxu0 %v5578
    %7361 = vmatpush.bf16.msra.mxu0 %v5574
    %7362 = vmatpush.bf16.msra.mxu0 %v5570
    %7363 = vmatpush.bf16.msra.mxu0 %v5566
    %7364 = vmatpush.bf16.msra.mxu0 %v5562
    %7365 = vmatpush.bf16.msra.mxu0 %v5558
    %7366 = vmatmul.bf16.gmra.mxu0 %v5874
    %v7367 = vpop.f32.mrf.mxu0
    %v7368 = vadd.f32 %v7355, %v7367
    %v7369 = vpop.f32.mrf.mxu0
    %7370 = vdwg.mxu0
    %7371 = vmatpush.bf16.msra.mxu0 %v5618
    %7372 = vmatpush.bf16.msra.mxu0 %v5614
    %7373 = vmatpush.bf16.msra.mxu0 %v5610
    %7374 = vmatpush.bf16.msra.mxu0 %v5606
    %7375 = vmatpush.bf16.msra.mxu0 %v5602
    %7376 = vmatpush.bf16.msra.mxu0 %v5598
    %7377 = vmatpush.bf16.msra.mxu0 %v5594
    %7378 = vmatpush.bf16.msra.mxu0 %v5590
    %7379 = vmatmul.bf16.gmra.mxu0 %v5875
    %v7380 = vpop.f32.mrf.mxu0
    %v7381 = vadd.f32 %v7368, %v7380
    %v7382 = vpop.f32.mrf.mxu0
    %7383 = vdwg.mxu0
    %7384 = vmatpush.bf16.msra.mxu0 %v5650
    %7385 = vmatpush.bf16.msra.mxu0 %v5646
    %7386 = vmatpush.bf16.msra.mxu0 %v5642
    %7387 = vmatpush.bf16.msra.mxu0 %v5638
    %7388 = vmatpush.bf16.msra.mxu0 %v5634
    %7389 = vmatpush.bf16.msra.mxu0 %v5630
    %7390 = vmatpush.bf16.msra.mxu0 %v5626
    %7391 = vmatpush.bf16.msra.mxu0 %v5622
    %7392 = vmatmul.bf16.gmra.mxu0 %v5876
    %v7393 = vpop.f32.mrf.mxu0
    %v7394 = vadd.f32 %v7381, %v7393
    %v7395 = vpop.f32.mrf.mxu0
    %7396 = vdwg.mxu0
    %7397 = vmatpush.bf16.msra.mxu0 %v5682
    %7398 = vmatpush.bf16.msra.mxu0 %v5678
    %7399 = vmatpush.bf16.msra.mxu0 %v5674
    %7400 = vmatpush.bf16.msra.mxu0 %v5670
    %7401 = vmatpush.bf16.msra.mxu0 %v5666
    %7402 = vmatpush.bf16.msra.mxu0 %v5662
    %7403 = vmatpush.bf16.msra.mxu0 %v5658
    %7404 = vmatpush.bf16.msra.mxu0 %v5654
    %7405 = vmatmul.bf16.gmra.mxu0 %v5879
    %v7406 = vpop.f32.mrf.mxu0
    %v7407 = vadd.f32 %v7394, %v7406
    %v7408 = vpop.f32.mrf.mxu0
    %7409 = vdwg.mxu0
    %7410 = vmatpush.bf16.msra.mxu0 %v5714
    %7411 = vmatpush.bf16.msra.mxu0 %v5710
    %7412 = vmatpush.bf16.msra.mxu0 %v5706
    %7413 = vmatpush.bf16.msra.mxu0 %v5702
    %7414 = vmatpush.bf16.msra.mxu0 %v5698
    %7415 = vmatpush.bf16.msra.mxu0 %v5694
    %7416 = vmatpush.bf16.msra.mxu0 %v5690
    %7417 = vmatpush.bf16.msra.mxu0 %v5686
    %7418 = vmatmul.bf16.gmra.mxu0 %v5880
    %v7419 = vpop.f32.mrf.mxu0
    %v7420 = vadd.f32 %v7407, %v7419
    %v7421 = vpop.f32.mrf.mxu0
    %7422 = vdwg.mxu0
    %7423 = vmatpush.bf16.msra.mxu0 %v5746
    %7424 = vmatpush.bf16.msra.mxu0 %v5742
    %7425 = vmatpush.bf16.msra.mxu0 %v5738
    %7426 = vmatpush.bf16.msra.mxu0 %v5734
    %7427 = vmatpush.bf16.msra.mxu0 %v5730
    %7428 = vmatpush.bf16.msra.mxu0 %v5726
    %7429 = vmatpush.bf16.msra.mxu0 %v5722
    %7430 = vmatpush.bf16.msra.mxu0 %v5718
    %7431 = vmatmul.bf16.gmra.mxu0 %v5881
    %v7432 = vpop.f32.mrf.mxu0
    %v7433 = vadd.f32 %v7420, %v7432
    %v7434 = vpop.f32.mrf.mxu0
    %7435 = vdwg.mxu0
    %7436 = vmatpush.bf16.msra.mxu0 %v5778
    %7437 = vmatpush.bf16.msra.mxu0 %v5774
    %7438 = vmatpush.bf16.msra.mxu0 %v5770
    %7439 = vmatpush.bf16.msra.mxu0 %v5766
    %7440 = vmatpush.bf16.msra.mxu0 %v5762
    %7441 = vmatpush.bf16.msra.mxu0 %v5758
    %7442 = vmatpush.bf16.msra.mxu0 %v5754
    %7443 = vmatpush.bf16.msra.mxu0 %v5750
    %7444 = vmatmul.bf16.gmra.mxu0 %v5882
    %v7445 = vpop.f32.mrf.mxu0
    %v7446 = vadd.f32 %v7433, %v7445
    %v7447 = vpop.f32.mrf.mxu0
    %7448 = vdwg.mxu0
    %7449 = vmatpush.bf16.msra.mxu0 %v5810
    %7450 = vmatpush.bf16.msra.mxu0 %v5806
    %7451 = vmatpush.bf16.msra.mxu0 %v5802
    %7452 = vmatpush.bf16.msra.mxu0 %v5798
    %7453 = vmatpush.bf16.msra.mxu0 %v5794
    %7454 = vmatpush.bf16.msra.mxu0 %v5790
    %7455 = vmatpush.bf16.msra.mxu0 %v5786
    %7456 = vmatpush.bf16.msra.mxu0 %v5782
    %7457 = vmatmul.bf16.gmra.mxu0 %v5883
    %v7458 = vpop.f32.mrf.mxu0
    %v7459 = vadd.f32 %v7446, %v7458
    %v7460 = vpop.f32.mrf.mxu0
    %7461 = vdwg.mxu0
    %7462 = vmatpush.bf16.msra.mxu0 %v5842
    %7463 = vmatpush.bf16.msra.mxu0 %v5838
    %7464 = vmatpush.bf16.msra.mxu0 %v5834
    %7465 = vmatpush.bf16.msra.mxu0 %v5830
    %7466 = vmatpush.bf16.msra.mxu0 %v5826
    %7467 = vmatpush.bf16.msra.mxu0 %v5822
    %7468 = vmatpush.bf16.msra.mxu0 %v5818
    %7469 = vmatpush.bf16.msra.mxu0 %v5814
    %7470 = vmatmul.bf16.gmra.mxu0 %v5884
    %v7471 = vpop.f32.mrf.mxu0
    %v7472 = vadd.f32 %v7459, %v7471
    %v7473 = vpop.f32.mrf.mxu0
    %7474 = vdwg.mxu0
    %v7475 = vld [vmem:[#allocation7] sm:$0xf]
    %v7477 = vperm.slane %v7475, 0
    %v7478 = vperm.slane %v7475, 1
    %v7479 = vperm.slane %v7475, 2
    %v7480 = vperm.slane %v7475, 3
    %v7485 = vmul.f32 %v6302, %v7477
    %v7486 = vmul.f32 %v6692, %v7478
    %v7487 = vmul.f32 %v7082, %v7479
    %v7488 = vmul.f32 %v7472, %v7480
    %v7489 = vld [vmem:[#allocation9] sm:$0xf]
    %v7491 = vperm.slane %v7489, 0
    %v7492 = vperm.slane %v7489, 1
    %v7493 = vperm.slane %v7489, 2
    %v7494 = vperm.slane %v7489, 3
    %v7499 = vadd.f32 %v7485, %v7491
    %v7500 = vadd.f32 %v7486, %v7492
    %v7501 = vadd.f32 %v7487, %v7493
    %v7502 = vadd.f32 %v7488, %v7494
    %v7503 = vpack.c.bf16 %v7499, %v7499
    %v7504 = vpack.c.bf16 %v7500, %v7500
    %v7505 = vpack.c.bf16 %v7501, %v7501
    %v7506 = vpack.c.bf16 %v7502, %v7502
    %v7507 = vld [vmem:[#allocation10] sm:$0xf]
    %v7508 = vld [vmem:[#allocation10 + $0x4] sm:$0xf]
    %v7509 = vld [vmem:[#allocation10 + $0x8] sm:$0xf]
    %v7510 = vld [vmem:[#allocation10 + $0xc] sm:$0xf]
    %v7511 = vld [vmem:[#allocation10 + $0x10] sm:$0xf]
    %v7512 = vld [vmem:[#allocation10 + $0x14] sm:$0xf]
    %v7513 = vld [vmem:[#allocation10 + $0x18] sm:$0xf]
    %v7514 = vld [vmem:[#allocation10 + $0x1c] sm:$0xf]
    %v7515 = vld [vmem:[#allocation10 + $0x20] sm:$0xf]
    %v7516 = vld [vmem:[#allocation10 + $0x24] sm:$0xf]
    %v7517 = vld [vmem:[#allocation10 + $0x28] sm:$0xf]
    %v7518 = vld [vmem:[#allocation10 + $0x2c] sm:$0xf]
    %v7519 = vld [vmem:[#allocation10 + $0x30] sm:$0xf]
    %v7520 = vld [vmem:[#allocation10 + $0x34] sm:$0xf]
    %v7521 = vld [vmem:[#allocation10 + $0x38] sm:$0xf]
    %v7522 = vld [vmem:[#allocation10 + $0x3c] sm:$0xf]
    %v7523 = vld [vmem:[#allocation10 + $0x40] sm:$0xf]
    %v7524 = vld [vmem:[#allocation10 + $0x44] sm:$0xf]
    %v7525 = vld [vmem:[#allocation10 + $0x48] sm:$0xf]
    %v7526 = vld [vmem:[#allocation10 + $0x4c] sm:$0xf]
    %v7527 = vld [vmem:[#allocation10 + $0x50] sm:$0xf]
    %v7528 = vld [vmem:[#allocation10 + $0x54] sm:$0xf]
    %v7529 = vld [vmem:[#allocation10 + $0x58] sm:$0xf]
    %v7530 = vld [vmem:[#allocation10 + $0x5c] sm:$0xf]
    %v7531 = vld [vmem:[#allocation10 + $0x60] sm:$0xf]
    %v7532 = vld [vmem:[#allocation10 + $0x64] sm:$0xf]
    %v7533 = vld [vmem:[#allocation10 + $0x68] sm:$0xf]
    %v7534 = vld [vmem:[#allocation10 + $0x6c] sm:$0xf]
    %v7535 = vld [vmem:[#allocation10 + $0x70] sm:$0xf]
    %v7536 = vld [vmem:[#allocation10 + $0x74] sm:$0xf]
    %v7537 = vld [vmem:[#allocation10 + $0x78] sm:$0xf]
    %v7538 = vld [vmem:[#allocation10 + $0x7c] sm:$0xf]
    %v7539 = vld [vmem:[#allocation10 + $0x80] sm:$0xf]
    %v7540 = vld [vmem:[#allocation10 + $0x84] sm:$0xf]
    %v7541 = vld [vmem:[#allocation10 + $0x88] sm:$0xf]
    %v7542 = vld [vmem:[#allocation10 + $0x8c] sm:$0xf]
    %v7543 = vld [vmem:[#allocation10 + $0x90] sm:$0xf]
    %v7544 = vld [vmem:[#allocation10 + $0x94] sm:$0xf]
    %v7545 = vld [vmem:[#allocation10 + $0x98] sm:$0xf]
    %v7546 = vld [vmem:[#allocation10 + $0x9c] sm:$0xf]
    %v7547 = vld [vmem:[#allocation10 + $0xa0] sm:$0xf]
    %v7548 = vld [vmem:[#allocation10 + $0xa4] sm:$0xf]
    %v7549 = vld [vmem:[#allocation10 + $0xa8] sm:$0xf]
    %v7550 = vld [vmem:[#allocation10 + $0xac] sm:$0xf]
    %v7551 = vld [vmem:[#allocation10 + $0xb0] sm:$0xf]
    %v7552 = vld [vmem:[#allocation10 + $0xb4] sm:$0xf]
    %v7553 = vld [vmem:[#allocation10 + $0xb8] sm:$0xf]
    %v7554 = vld [vmem:[#allocation10 + $0xbc] sm:$0xf]
    %v7555 = vld [vmem:[#allocation10 + $0xc0] sm:$0xf]
    %v7556 = vld [vmem:[#allocation10 + $0xc4] sm:$0xf]
    %v7557 = vld [vmem:[#allocation10 + $0xc8] sm:$0xf]
    %v7558 = vld [vmem:[#allocation10 + $0xcc] sm:$0xf]
    %v7559 = vld [vmem:[#allocation10 + $0xd0] sm:$0xf]
    %v7560 = vld [vmem:[#allocation10 + $0xd4] sm:$0xf]
    %v7561 = vld [vmem:[#allocation10 + $0xd8] sm:$0xf]
    %v7562 = vld [vmem:[#allocation10 + $0xdc] sm:$0xf]
    %v7563 = vld [vmem:[#allocation10 + $0xe0] sm:$0xf]
    %v7564 = vld [vmem:[#allocation10 + $0xe4] sm:$0xf]
    %v7565 = vld [vmem:[#allocation10 + $0xe8] sm:$0xf]
    %v7566 = vld [vmem:[#allocation10 + $0xec] sm:$0xf]
    %v7567 = vld [vmem:[#allocation10 + $0xf0] sm:$0xf]
    %v7568 = vld [vmem:[#allocation10 + $0xf4] sm:$0xf]
    %v7569 = vld [vmem:[#allocation10 + $0xf8] sm:$0xf]
    %v7570 = vld [vmem:[#allocation10 + $0xfc] sm:$0xf]
    %v7571 = vld [vmem:[#allocation12] sm:$0x1]
    %v7573 = vperm.slane %v7571, 0
    %v7639 = vunpack.c.l.b16 %v7507
    %v7640 = vunpack.c.l.b16 %v7508
    %v7641 = vunpack.c.l.b16 %v7509
    %v7642 = vunpack.c.l.b16 %v7510
    %v7643 = vunpack.c.l.b16 %v7511
    %v7644 = vunpack.c.l.b16 %v7512
    %v7645 = vunpack.c.l.b16 %v7513
    %v7646 = vunpack.c.l.b16 %v7514
    %v7647 = vunpack.c.l.b16 %v7515
    %v7648 = vunpack.c.l.b16 %v7516
    %v7649 = vunpack.c.l.b16 %v7517
    %v7650 = vunpack.c.l.b16 %v7518
    %v7651 = vunpack.c.l.b16 %v7519
    %v7652 = vunpack.c.l.b16 %v7520
    %v7653 = vunpack.c.l.b16 %v7521
    %v7654 = vunpack.c.l.b16 %v7522
    %v7655 = vunpack.c.l.b16 %v7523
    %v7656 = vunpack.c.l.b16 %v7524
    %v7657 = vunpack.c.l.b16 %v7525
    %v7658 = vunpack.c.l.b16 %v7526
    %v7659 = vunpack.c.l.b16 %v7527
    %v7660 = vunpack.c.l.b16 %v7528
    %v7661 = vunpack.c.l.b16 %v7529
    %v7662 = vunpack.c.l.b16 %v7530
    %v7663 = vunpack.c.l.b16 %v7531
    %v7664 = vunpack.c.l.b16 %v7532
    %v7665 = vunpack.c.l.b16 %v7533
    %v7666 = vunpack.c.l.b16 %v7534
    %v7667 = vunpack.c.l.b16 %v7535
    %v7668 = vunpack.c.l.b16 %v7536
    %v7669 = vunpack.c.l.b16 %v7537
    %v7670 = vunpack.c.l.b16 %v7538
    %v7671 = vunpack.c.l.b16 %v7539
    %v7672 = vunpack.c.l.b16 %v7540
    %v7673 = vunpack.c.l.b16 %v7541
    %v7674 = vunpack.c.l.b16 %v7542
    %v7675 = vunpack.c.l.b16 %v7543
    %v7676 = vunpack.c.l.b16 %v7544
    %v7677 = vunpack.c.l.b16 %v7545
    %v7678 = vunpack.c.l.b16 %v7546
    %v7679 = vunpack.c.l.b16 %v7547
    %v7680 = vunpack.c.l.b16 %v7548
    %v7681 = vunpack.c.l.b16 %v7549
    %v7682 = vunpack.c.l.b16 %v7550
    %v7683 = vunpack.c.l.b16 %v7551
    %v7684 = vunpack.c.l.b16 %v7552
    %v7685 = vunpack.c.l.b16 %v7553
    %v7686 = vunpack.c.l.b16 %v7554
    %v7687 = vunpack.c.l.b16 %v7555
    %v7688 = vunpack.c.l.b16 %v7556
    %v7689 = vunpack.c.l.b16 %v7557
    %v7690 = vunpack.c.l.b16 %v7558
    %v7691 = vunpack.c.l.b16 %v7559
    %v7692 = vunpack.c.l.b16 %v7560
    %v7693 = vunpack.c.l.b16 %v7561
    %v7694 = vunpack.c.l.b16 %v7562
    %v7695 = vunpack.c.l.b16 %v7563
    %v7696 = vunpack.c.l.b16 %v7564
    %v7697 = vunpack.c.l.b16 %v7565
    %v7698 = vunpack.c.l.b16 %v7566
    %v7699 = vunpack.c.l.b16 %v7567
    %v7700 = vunpack.c.l.b16 %v7568
    %v7701 = vunpack.c.l.b16 %v7569
    %v7702 = vunpack.c.l.b16 %v7570
    %v7703 = vpack.c.b16 %v7640, %v7639
    %v7704 = vpack.c.b16 %v7642, %v7641
    %v7705 = vpack.c.b16 %v7644, %v7643
    %v7706 = vpack.c.b16 %v7646, %v7645
    %v7707 = vpack.c.b16 %v7648, %v7647
    %v7708 = vpack.c.b16 %v7650, %v7649
    %v7709 = vpack.c.b16 %v7652, %v7651
    %v7710 = vpack.c.b16 %v7654, %v7653
    %v7711 = vpack.c.b16 %v7656, %v7655
    %v7712 = vpack.c.b16 %v7658, %v7657
    %v7713 = vpack.c.b16 %v7660, %v7659
    %v7714 = vpack.c.b16 %v7662, %v7661
    %v7715 = vpack.c.b16 %v7664, %v7663
    %v7716 = vpack.c.b16 %v7666, %v7665
    %v7717 = vpack.c.b16 %v7668, %v7667
    %v7718 = vpack.c.b16 %v7670, %v7669
    %v7719 = vpack.c.b16 %v7672, %v7671
    %v7720 = vpack.c.b16 %v7674, %v7673
    %v7721 = vpack.c.b16 %v7676, %v7675
    %v7722 = vpack.c.b16 %v7678, %v7677
    %v7723 = vpack.c.b16 %v7680, %v7679
    %v7724 = vpack.c.b16 %v7682, %v7681
    %v7725 = vpack.c.b16 %v7684, %v7683
    %v7726 = vpack.c.b16 %v7686, %v7685
    %v7727 = vpack.c.b16 %v7688, %v7687
    %v7728 = vpack.c.b16 %v7690, %v7689
    %v7729 = vpack.c.b16 %v7692, %v7691
    %v7730 = vpack.c.b16 %v7694, %v7693
    %v7731 = vpack.c.b16 %v7696, %v7695
    %v7732 = vpack.c.b16 %v7698, %v7697
    %v7733 = vpack.c.b16 %v7700, %v7699
    %v7734 = vpack.c.b16 %v7702, %v7701
    %7767 = vmatpush.bf16.msra.mxu0 %v7710
    %7768 = vmatpush.bf16.msra.mxu0 %v7709
    %7769 = vmatpush.bf16.msra.mxu0 %v7708
    %7770 = vmatpush.bf16.msra.mxu0 %v7707
    %7771 = vmatpush.bf16.msra.mxu0 %v7706
    %7772 = vmatpush.bf16.msra.mxu0 %v7705
    %7773 = vmatpush.bf16.msra.mxu0 %v7704
    %7774 = vmatpush.bf16.msra.mxu0 %v7703
    %7775 = vmatmul.bf16.gmra.mxu0 %v7503
    %v7776 = vpop.f32.mrf.mxu0
    %v7777 = vadd.f32 %v7573, %v7776
    %v7778 = vpop.f32.mrf.mxu0
    %7779 = vdwg.mxu0
    %7780 = vmatpush.bf16.msra.mxu0 %v7718
    %7781 = vmatpush.bf16.msra.mxu0 %v7717
    %7782 = vmatpush.bf16.msra.mxu0 %v7716
    %7783 = vmatpush.bf16.msra.mxu0 %v7715
    %7784 = vmatpush.bf16.msra.mxu0 %v7714
    %7785 = vmatpush.bf16.msra.mxu0 %v7713
    %7786 = vmatpush.bf16.msra.mxu0 %v7712
    %7787 = vmatpush.bf16.msra.mxu0 %v7711
    %7788 = vmatmul.bf16.gmra.mxu0 %v7504
    %v7789 = vpop.f32.mrf.mxu0
    %v7790 = vadd.f32 %v7777, %v7789
    %v7791 = vpop.f32.mrf.mxu0
    %7792 = vdwg.mxu0
    %7793 = vmatpush.bf16.msra.mxu0 %v7726
    %7794 = vmatpush.bf16.msra.mxu0 %v7725
    %7795 = vmatpush.bf16.msra.mxu0 %v7724
    %7796 = vmatpush.bf16.msra.mxu0 %v7723
    %7797 = vmatpush.bf16.msra.mxu0 %v7722
    %7798 = vmatpush.bf16.msra.mxu0 %v7721
    %7799 = vmatpush.bf16.msra.mxu0 %v7720
    %7800 = vmatpush.bf16.msra.mxu0 %v7719
    %7801 = vmatmul.bf16.gmra.mxu0 %v7505
    %v7802 = vpop.f32.mrf.mxu0
    %v7803 = vadd.f32 %v7790, %v7802
    %v7804 = vpop.f32.mrf.mxu0
    %7805 = vdwg.mxu0
    %7806 = vmatpush.bf16.msra.mxu0 %v7734
    %7807 = vmatpush.bf16.msra.mxu0 %v7733
    %7808 = vmatpush.bf16.msra.mxu0 %v7732
    %7809 = vmatpush.bf16.msra.mxu0 %v7731
    %7810 = vmatpush.bf16.msra.mxu0 %v7730
    %7811 = vmatpush.bf16.msra.mxu0 %v7729
    %7812 = vmatpush.bf16.msra.mxu0 %v7728
    %7813 = vmatpush.bf16.msra.mxu0 %v7727
    %7814 = vmatmul.bf16.gmra.mxu0 %v7506
    %v7815 = vpop.f32.mrf.mxu0
    %v7816 = vadd.f32 %v7803, %v7815
    %v7817 = vpop.f32.mrf.mxu0
    %7818 = vdwg.mxu0
    %7819 = vst [vmem:[#allocation13] sm:$0x3] %v7816
    // Predicated region
    $region66: #{bertcls_forward.1} parent=1 // pred_check
      _
    $region67: #{bertcls_forward.1} parent=1 // pred_check_branch
      %7821 = sbr.rel (0) target = $region69
    $region68: #{bertcls_forward.1} parent=1 // pred_region
      %7823 = vsyncadd [#allocation6], 0
      %s7825 = sshll.u32 [#allocation13], 4
      %s7826 = int_to_ptr.vmem [resolvable:$true] %s7825
      %s7827 = sshll.u32 %s11, 4
      %s7828 = int_to_ptr.hbm [resolvable:$true] %s7827
      %7830 = dma.vmem_to_hbm [thread:$0]  %s7826, 32, %s7828, [#allocation6]
    $region69: #{bertcls_forward.1} parent=1 // pred_fallthru
      _
    // Predicated region
    $region70: #{bertcls_forward.1} parent=1 // pred_check
      _
    $region71: #{bertcls_forward.1} parent=1 // pred_check_branch
      %7832 = sbr.rel (0) target = $region73
    $region72: #{bertcls_forward.1} parent=1 // pred_region
      %7834 = dma.done [#allocation6], 32
    $region73: #{bertcls_forward.1} parent=1 // pred_fallthru
      _
    %7835 = vsyncpa [#allocation5], 1
    %7836 = vsyncpa [#allocation8], 1
    %7837 = vsyncpa [#allocation11], 1
    %7838 = vsyncpa [#allocation6], 1

</llo_original>
